<compile_context>
chip_gen: v7x
topology: tpu7x:2x2x1
jax: 0.10.0
libtpu: 0.0.40
codegen_flags: <defaults>
</compile_context>

<pallas_src>
import functools
import math

import jax
import jax.numpy as jnp
from jax.experimental import pallas as pl
from jax.experimental.pallas import tpu as pltpu


def _mha_body(q_ref, k_ref, v_ref, mask_ref, wo_ref, bo_ref, o_ref,
              m_scr, l_scr, acc_scr, *, n_heads):
    ki = pl.program_id(2)
    num_kv = pl.num_programs(2)

    # ---- kv == 0: reset the online-softmax state for this (batch, q-tile).
    @pl.when(ki == 0)
    def _():
        m_scr[...] = jnp.full_like(m_scr, -jnp.inf)
        l_scr[...] = jnp.zeros_like(l_scr)
        acc_scr[...] = jnp.zeros_like(acc_scr)

    q = q_ref[0]          # (H, TQ, d_k) bf16, pre-scaled by 1/sqrt(d_k)
    k = k_ref[0]          # (H, TK, d_k) bf16
    v = v_ref[0]          # (H, TK, d_k) bf16

    # Scores for all heads at once; contraction on the last dim (no K transpose).
    s = jnp.einsum("hqc,hkc->hqk", q, k,
                   preferred_element_type=jnp.float32)        # (H, TQ, TK) f32

    if mask_ref is not None:
        # masked_fill(mask == 0, -1e9); compare hoisted out of the head dimension.
        keep = mask_ref[0] != 0                               # (TQ, TK) bool
        s = jnp.where(keep[None], s, jnp.float32(-1e9))

    # Online softmax update (f32 running state).
    m_prev = m_scr[...]
    m_new = jnp.maximum(m_prev, jnp.max(s, axis=-1, keepdims=True))   # (H, TQ, 1)
    alpha = jnp.exp(m_prev - m_new)
    p = jnp.exp(s - m_new)
    l_scr[...] = alpha * l_scr[...] + jnp.sum(p, axis=-1, keepdims=True)
    acc_scr[...] = alpha * acc_scr[...] + jnp.einsum(
        "hqk,hkc->hqc", p.astype(jnp.bfloat16), v,
        preferred_element_type=jnp.float32)
    m_scr[...] = m_new

    # ---- kv == last: normalize, concat heads along lanes and apply w_o as ONE
    #      lane-dense (TQ, D) @ (D, D) matmul; single lane-dense output store.
    @pl.when(ki == num_kv - 1)
    def _():
        inv_l = pl.reciprocal(l_scr[...], approx=True)        # (H, TQ, 1)
        ctx = acc_scr[...] * inv_l                            # (H, TQ, d_k) f32
        ctx_cat = jnp.concatenate(
            [ctx[h] for h in range(n_heads)], axis=-1)        # (TQ, H*d_k) = (TQ, D)
        out = jnp.dot(ctx_cat.astype(jnp.bfloat16), wo_ref[...],
                      preferred_element_type=jnp.float32) + bo_ref[...]
        o_ref[0] = out.astype(o_ref.dtype)


def _mha_kernel_masked(q_ref, k_ref, v_ref, mask_ref, wo_ref, bo_ref, o_ref,
                       m_scr, l_scr, acc_scr, *, n_heads):
    _mha_body(q_ref, k_ref, v_ref, mask_ref, wo_ref, bo_ref, o_ref,
              m_scr, l_scr, acc_scr, n_heads=n_heads)


def _mha_kernel_unmasked(q_ref, k_ref, v_ref, wo_ref, bo_ref, o_ref,
                         m_scr, l_scr, acc_scr, *, n_heads):
    _mha_body(q_ref, k_ref, v_ref, None, wo_ref, bo_ref, o_ref,
              m_scr, l_scr, acc_scr, n_heads=n_heads)


def multi_head_attention_block(q, k, v, mask, params, n_heads,
                               *, block_q=128, block_kv=128):
    """Pallas forward of MultiHeadAttentionBlock (eval mode, dropout = identity)."""
    B, Sq, D = q.shape
    Skv = k.shape[1]
    assert D % n_heads == 0, "d_model is not divisible by h"
    d_k = D // n_heads
    assert k.shape == (B, Skv, D) and v.shape == (B, Skv, D)

    block_q = min(block_q, Sq)
    block_kv = min(block_kv, Skv)
    assert Sq % block_q == 0, "Sq must be divisible by block_q"
    assert Skv % block_kv == 0, "Skv must be divisible by block_kv"
    # Mask / score tiles need a 128-aligned (or full) lane dim.
    assert block_kv == Skv or block_kv % 128 == 0
    num_q = Sq // block_q
    num_kv = Skv // block_kv

    f32, bf16 = jnp.float32, jnp.bfloat16
    scale = 1.0 / math.sqrt(d_k)

    # --- Input projections: lane-dense (., D) @ (D, D) matmuls in XLA (full MXU
    #     width), then bf16 head-major (B, H, S, d_k) streamed into the flash kernel.
    #     nn.Linear: y = x @ W.T + b.
    def lin(x, p):
        return (x.astype(f32) @ p["weight"].T.astype(f32)) + p["bias"].astype(f32)

    def head_major(x, s_len):
        return x.reshape(B, s_len, n_heads, d_k).transpose(0, 2, 1, 3).astype(bf16)

    qh = head_major(lin(q, params["w_q"]) * scale, Sq)   # 1/sqrt(d_k) folded into Q
    kh = head_major(lin(k, params["w_k"]), Skv)
    vh = head_major(lin(v, params["w_v"]), Skv)

    # Output projection stays in-kernel (the context never round-trips HBM).
    # wo rows are ordered [head0 d_k, head1 d_k, ...] to match the head concat.
    wo = params["w_o"]["weight"].T.astype(bf16)           # (D, D)
    bo = params["w_o"]["bias"].reshape(1, D).astype(f32)

    has_mask = mask is not None
    inputs = [qh, kh, vh]
    in_specs = [
        pl.BlockSpec((1, n_heads, block_q, d_k), lambda b, qi, ki: (b, 0, qi, 0)),
        pl.BlockSpec((1, n_heads, block_kv, d_k), lambda b, qi, ki: (b, 0, ki, 0)),
        pl.BlockSpec((1, n_heads, block_kv, d_k), lambda b, qi, ki: (b, 0, ki, 0)),
    ]
    if has_mask:
        mask_i8 = jnp.broadcast_to(mask != 0, (B, 1, Sq, Skv))
        mask_i8 = mask_i8.reshape(B, Sq, Skv).astype(jnp.int8)
        inputs.append(mask_i8)
        in_specs.append(
            pl.BlockSpec((1, block_q, block_kv), lambda b, qi, ki: (b, qi, ki)))
        kernel = functools.partial(_mha_kernel_masked, n_heads=n_heads)
    else:
        kernel = functools.partial(_mha_kernel_unmasked, n_heads=n_heads)

    inputs += [wo, bo]
    in_specs += [
        pl.BlockSpec((D, D), lambda b, qi, ki: (0, 0)),
        pl.BlockSpec((1, D), lambda b, qi, ki: (0, 0)),
    ]

    scratch_shapes = [
        pltpu.VMEM((n_heads, block_q, 1), f32),      # m: running max
        pltpu.VMEM((n_heads, block_q, 1), f32),      # l: running denominator
        pltpu.VMEM((n_heads, block_q, d_k), f32),    # acc: running context
    ]

    return pl.pallas_call(
        kernel,
        out_shape=jax.ShapeDtypeStruct((B, Sq, D), q.dtype),
        grid_spec=pltpu.PrefetchScalarGridSpec(
            num_scalar_prefetch=0,
            grid=(B, num_q, num_kv),
            in_specs=in_specs,
            out_specs=pl.BlockSpec((1, block_q, D), lambda b, qi, ki: (b, qi, 0)),
            scratch_shapes=scratch_shapes,
        ),
        compiler_params=pltpu.CompilerParams(
            dimension_semantics=("parallel", "parallel", "arbitrary")),
    )(*inputs)


def _reference(q, k, v, mask, params, n_heads):
    """Plain-JAX f32 reference mirroring the PyTorch forward."""
    B, S, D = q.shape
    d_k = D // n_heads

    def lin(x, p):
        return x @ p["weight"].T + p["bias"]

    Q = lin(q, params["w_q"]).reshape(B, -1, n_heads, d_k).transpose(0, 2, 1, 3)
    K = lin(k, params["w_k"]).reshape(B, -1, n_heads, d_k).transpose(0, 2, 1, 3)
    V = lin(v, params["w_v"]).reshape(B, -1, n_heads, d_k).transpose(0, 2, 1, 3)

    scores = jnp.einsum("bhqd,bhkd->bhqk", Q, K) / math.sqrt(d_k)
    if mask is not None:
        scores = jnp.where(mask == 0, -1e9, scores)
    p = jax.nn.softmax(scores, axis=-1)
    ctx = jnp.einsum("bhqk,bhkd->bhqd", p, V)
    ctx = ctx.transpose(0, 2, 1, 3).reshape(B, -1, D)
    return lin(ctx, params["w_o"])


if __name__ == "__main__":
    # Multi-tile config with MXU-friendly head size: grid = (B=2, q_tiles=2, kv_tiles=2),
    # d_model=256, h=4 -> d_k=64.
    B, S, d_model, n_heads = 2, 256, 256, 4

    key = jax.random.PRNGKey(0)
    keys = jax.random.split(key, 12)

    def linear_params(kw, kb, d):
        lim = 1.0 / math.sqrt(d)
        return {
            "weight": jax.random.uniform(kw, (d, d), jnp.float32, -lim, lim),
            "bias": jax.random.uniform(kb, (d,), jnp.float32, -lim, lim),
        }

    params = {
        "w_q": linear_params(keys[0], keys[1], d_model),
        "w_k": linear_params(keys[2], keys[3], d_model),
        "w_v": linear_params(keys[4], keys[5], d_model),
        "w_o": linear_params(keys[6], keys[7], d_model),
    }

    q = jax.random.normal(keys[8], (B, S, d_model), jnp.float32)
    k = jax.random.normal(keys[9], (B, S, d_model), jnp.float32)
    v = jax.random.normal(keys[10], (B, S, d_model), jnp.float32)
    # Causal mask, broadcast over heads: (B, 1, S, S).
    mask = jnp.tril(jnp.ones((S, S), jnp.int32))[None, None].repeat(B, axis=0)

    # Masked path.
    out = multi_head_attention_block(q, k, v, mask, params, n_heads,
                                     block_q=128, block_kv=128)
    out = jax.block_until_ready(out)
    ref = _reference(q, k, v, mask, params, n_heads)
    err = float(jnp.max(jnp.abs(out - ref)))
    assert out.shape == (B, S, d_model)
    # bf16 MXU operands (f32 accumulation) -> loosened tolerance vs f32 reference.
    assert jnp.allclose(out, ref, atol=5e-2, rtol=5e-2), f"max abs err {err}"

    # mask=None path (no mask DMA at all).
    out_nm = jax.block_until_ready(
        multi_head_attention_block(q, k, v, None, params, n_heads))
    ref_nm = _reference(q, k, v, None, params, n_heads)
    err_nm = float(jnp.max(jnp.abs(out_nm - ref_nm)))
    assert jnp.allclose(out_nm, ref_nm, atol=5e-2, rtol=5e-2), f"max abs err {err_nm}"

    print("KERNEL_OK")
</pallas_src>

<mosaic_0001>
module attributes {stable_mosaic.version = 11 : i64} {
  func.func @_mha_kernel_masked(%arg0: i32, %arg1: i32, %arg2: i32, %arg3: memref<1x4x128x64xbf16, #tpu.memory_space<vmem>>, %arg4: memref<1x4x128x64xbf16, #tpu.memory_space<vmem>>, %arg5: memref<1x4x128x64xbf16, #tpu.memory_space<vmem>>, %arg6: memref<1x128x128xi8, #tpu.memory_space<vmem>>, %arg7: memref<256x256xbf16, #tpu.memory_space<vmem>>, %arg8: memref<1x256xf32, #tpu.memory_space<vmem>>, %arg9: memref<1x128x256xf32, #tpu.memory_space<vmem>>, %arg10: memref<4x128x1xf32, #tpu.memory_space<vmem>>, %arg11: memref<4x128x1xf32, #tpu.memory_space<vmem>>, %arg12: memref<4x128x64xf32, #tpu.memory_space<vmem>>) attributes {dimension_semantics = [#tpu.dimension_semantics<parallel>, #tpu.dimension_semantics<parallel>, #tpu.dimension_semantics<arbitrary>], iteration_bounds = array<i64: 2, 2, 2>, scalar_prefetch = 0 : i64, scratch_operands = 3 : i64, tpu.core_type = #tpu.core_type<tc>, window_params = [{transform_indices = @transform_0, window_bounds = array<i64: 1, 4, 128, 64>}, {transform_indices = @transform_1, window_bounds = array<i64: 1, 4, 128, 64>}, {transform_indices = @transform_2, window_bounds = array<i64: 1, 4, 128, 64>}, {transform_indices = @transform_3, window_bounds = array<i64: 1, 128, 128>}, {pipeline_mode = #tpu.pipeline_mode<synchronous>, transform_indices = @transform_4, window_bounds = array<i64: 256, 256>}, {pipeline_mode = #tpu.pipeline_mode<synchronous>, transform_indices = @transform_5, window_bounds = array<i64: 1, 256>}, {transform_indices = @transform_6, window_bounds = array<i64: 1, 128, 256>}]} {
    %c0_i32 = arith.constant 0 : i32
    %0 = arith.cmpi eq, %arg2, %c0_i32 : i32
    %1 = arith.extui %0 : i1 to i32
    %c0_i32_0 = arith.constant 0 : i32
    %2 = arith.cmpi ne, %1, %c0_i32_0 : i32
    scf.if %2 {
      %cst_38 = arith.constant 0xFF800000 : f32
      %45 = vector.broadcast %cst_38 : f32 to vector<4x128x1xf32>
      %c0_39 = arith.constant 0 : index
      %c0_40 = arith.constant 0 : index
      %c0_41 = arith.constant 0 : index
      %46 = vector.load %arg10[%c0_39, %c0_40, %c0_41] : memref<4x128x1xf32, #tpu.memory_space<vmem>>, vector<4x128x1xf32>
      tpu.vector_store %arg10[%c0_39, %c0_40, %c0_41], %45 {strides = array<i32>} : memref<4x128x1xf32, #tpu.memory_space<vmem>>, vector<4x128x1xf32>,
      %cst_42 = arith.constant 0.000000e+00 : f32
      %47 = vector.broadcast %cst_42 : f32 to vector<4x128x1xf32>
      %c0_43 = arith.constant 0 : index
      %c0_44 = arith.constant 0 : index
      %c0_45 = arith.constant 0 : index
      %48 = vector.load %arg11[%c0_43, %c0_44, %c0_45] : memref<4x128x1xf32, #tpu.memory_space<vmem>>, vector<4x128x1xf32>
      tpu.vector_store %arg11[%c0_43, %c0_44, %c0_45], %47 {strides = array<i32>} : memref<4x128x1xf32, #tpu.memory_space<vmem>>, vector<4x128x1xf32>,
      %cst_46 = arith.constant 0.000000e+00 : f32
      %49 = vector.broadcast %cst_46 : f32 to vector<4x128x64xf32>
      %c0_47 = arith.constant 0 : index
      %c0_48 = arith.constant 0 : index
      %c0_49 = arith.constant 0 : index
      %50 = vector.load %arg12[%c0_47, %c0_48, %c0_49] : memref<4x128x64xf32, #tpu.memory_space<vmem>>, vector<4x128x64xf32>
      tpu.vector_store %arg12[%c0_47, %c0_48, %c0_49], %49 {strides = array<i32>} : memref<4x128x64xf32, #tpu.memory_space<vmem>>, vector<4x128x64xf32>,
    } else {
    }
    %c0 = arith.constant 0 : index
    %c0_1 = arith.constant 0 : index
    %c0_2 = arith.constant 0 : index
    %c0_3 = arith.constant 0 : index
    %3 = vector.load %arg3[%c0, %c0_1, %c0_2, %c0_3] : memref<1x4x128x64xbf16, #tpu.memory_space<vmem>>, vector<1x4x128x64xbf16>
    %4 = vector.shape_cast %3 : vector<1x4x128x64xbf16> to vector<4x128x64xbf16>
    %c0_4 = arith.constant 0 : index
    %c0_5 = arith.constant 0 : index
    %c0_6 = arith.constant 0 : index
    %c0_7 = arith.constant 0 : index
    %5 = vector.load %arg4[%c0_4, %c0_5, %c0_6, %c0_7] : memref<1x4x128x64xbf16, #tpu.memory_space<vmem>>, vector<1x4x128x64xbf16>
    %6 = vector.shape_cast %5 : vector<1x4x128x64xbf16> to vector<4x128x64xbf16>
    %c0_8 = arith.constant 0 : index
    %c0_9 = arith.constant 0 : index
    %c0_10 = arith.constant 0 : index
    %c0_11 = arith.constant 0 : index
    %7 = vector.load %arg5[%c0_8, %c0_9, %c0_10, %c0_11] : memref<1x4x128x64xbf16, #tpu.memory_space<vmem>>, vector<1x4x128x64xbf16>
    %8 = vector.shape_cast %7 : vector<1x4x128x64xbf16> to vector<4x128x64xbf16>
    "tpu.trace_start"() <{level = 10 : i32, message = "hqc,hkc->hqk"}> : () -> ()
    %cst = arith.constant dense<0.000000e+00> : vector<4x128x128xf32>
    %9 = tpu.matmul %4, %6, %cst {dimension_numbers = #tpu.dot_dimension_numbers<[2], [2], [1], [1], [0, 0, 0, 1, 1, 1], [0], [0]>} : vector<4x128x64xbf16>, vector<4x128x64xbf16>, vector<4x128x128xf32> -> vector<4x128x128xf32>
    "tpu.trace_stop"() : () -> ()
    %c0_12 = arith.constant 0 : index
    %c0_13 = arith.constant 0 : index
    %c0_14 = arith.constant 0 : index
    %10 = vector.load %arg6[%c0_12, %c0_13, %c0_14] : memref<1x128x128xi8, #tpu.memory_space<vmem>>, vector<1x128x128xi8>
    %11 = vector.shape_cast %10 : vector<1x128x128xi8> to vector<128x128xi8>
    %c0_i8 = arith.constant 0 : i8
    %12 = vector.broadcast %c0_i8 : i8 to vector<128x128xi8>
    %13 = arith.cmpi ne, %11, %12 : vector<128x128xi8>
    %14 = vector.shape_cast %13 : vector<128x128xi1> to vector<1x128x128xi1>
    %cst_15 = arith.constant -1.000000e+09 : f32
    %15 = vector.shape_cast %14 : vector<1x128x128xi1> to vector<1x128x128xi1>
    %16 = vector.broadcast %15 : vector<1x128x128xi1> to vector<4x128x128xi1>
    %17 = vector.broadcast %cst_15 : f32 to vector<4x128x128xf32>
    %18 = arith.select %16, %9, %17 : vector<4x128x128xi1>, vector<4x128x128xf32>
    %c0_16 = arith.constant 0 : index
    %c0_17 = arith.constant 0 : index
    %c0_18 = arith.constant 0 : index
    %19 = vector.load %arg10[%c0_16, %c0_17, %c0_18] : memref<4x128x1xf32, #tpu.memory_space<vmem>>, vector<4x128x1xf32>
    %cst_19 = arith.constant dense<0xFF800000> : vector<4x128xf32>
    %20 = vector.multi_reduction <maximumf>, %18, %cst_19 [2] : vector<4x128x128xf32> to vector<4x128xf32>
    %21 = vector.shape_cast %20 : vector<4x128xf32> to vector<4x128x1xf32>
    %22 = arith.maximumf %19, %21 : vector<4x128x1xf32>
    %23 = arith.subf %19, %22 : vector<4x128x1xf32>
    %24 = math.exp %23 : vector<4x128x1xf32>
    %25 = vector.broadcast %22 : vector<4x128x1xf32> to vector<4x128x128xf32>
    %26 = arith.subf %18, %25 : vector<4x128x128xf32>
    %27 = math.exp %26 : vector<4x128x128xf32>
    %c0_20 = arith.constant 0 : index
    %c0_21 = arith.constant 0 : index
    %c0_22 = arith.constant 0 : index
    %28 = vector.load %arg11[%c0_20, %c0_21, %c0_22] : memref<4x128x1xf32, #tpu.memory_space<vmem>>, vector<4x128x1xf32>
    %29 = arith.mulf %24, %28 : vector<4x128x1xf32>
    %cst_23 = arith.constant dense<0.000000e+00> : vector<4x128xf32>
    %30 = vector.multi_reduction <add>, %27, %cst_23 [2] : vector<4x128x128xf32> to vector<4x128xf32>
    %31 = vector.shape_cast %30 : vector<4x128xf32> to vector<4x128x1xf32>
    %32 = arith.addf %29, %31 : vector<4x128x1xf32>
    %c0_24 = arith.constant 0 : index
    %c0_25 = arith.constant 0 : index
    %c0_26 = arith.constant 0 : index
    %33 = vector.load %arg11[%c0_24, %c0_25, %c0_26] : memref<4x128x1xf32, #tpu.memory_space<vmem>>, vector<4x128x1xf32>
    tpu.vector_store %arg11[%c0_24, %c0_25, %c0_26], %32 {strides = array<i32>} : memref<4x128x1xf32, #tpu.memory_space<vmem>>, vector<4x128x1xf32>,
    %c0_27 = arith.constant 0 : index
    %c0_28 = arith.constant 0 : index
    %c0_29 = arith.constant 0 : index
    %34 = vector.load %arg12[%c0_27, %c0_28, %c0_29] : memref<4x128x64xf32, #tpu.memory_space<vmem>>, vector<4x128x64xf32>
    %35 = vector.broadcast %24 : vector<4x128x1xf32> to vector<4x128x64xf32>
    %36 = arith.mulf %35, %34 : vector<4x128x64xf32>
    %37 = arith.truncf %27 : vector<4x128x128xf32> to vector<4x128x128xbf16>
    "tpu.trace_start"() <{level = 10 : i32, message = "hqk,hkc->hqc"}> : () -> ()
    %cst_30 = arith.constant dense<0.000000e+00> : vector<4x128x64xf32>
    %38 = tpu.matmul %37, %8, %cst_30 {dimension_numbers = #tpu.dot_dimension_numbers<[2], [1], [1], [2], [0, 0, 0, 1, 1, 2], [0], [0]>} : vector<4x128x128xbf16>, vector<4x128x64xbf16>, vector<4x128x64xf32> -> vector<4x128x64xf32>
    "tpu.trace_stop"() : () -> ()
    %39 = arith.addf %36, %38 : vector<4x128x64xf32>
    %c0_31 = arith.constant 0 : index
    %c0_32 = arith.constant 0 : index
    %c0_33 = arith.constant 0 : index
    %40 = vector.load %arg12[%c0_31, %c0_32, %c0_33] : memref<4x128x64xf32, #tpu.memory_space<vmem>>, vector<4x128x64xf32>
    tpu.vector_store %arg12[%c0_31, %c0_32, %c0_33], %39 {strides = array<i32>} : memref<4x128x64xf32, #tpu.memory_space<vmem>>, vector<4x128x64xf32>,
    %c0_34 = arith.constant 0 : index
    %c0_35 = arith.constant 0 : index
    %c0_36 = arith.constant 0 : index
    %41 = vector.load %arg10[%c0_34, %c0_35, %c0_36] : memref<4x128x1xf32, #tpu.memory_space<vmem>>, vector<4x128x1xf32>
    tpu.vector_store %arg10[%c0_34, %c0_35, %c0_36], %22 {strides = array<i32>} : memref<4x128x1xf32, #tpu.memory_space<vmem>>, vector<4x128x1xf32>,
    %c1_i32 = arith.constant 1 : i32
    %42 = arith.cmpi eq, %arg2, %c1_i32 : i32
    %43 = arith.extui %42 : i1 to i32
    %c0_i32_37 = arith.constant 0 : i32
    %44 = arith.cmpi ne, %43, %c0_i32_37 : i32
    scf.if %44 {
      %c0_38 = arith.constant 0 : index
      %c0_39 = arith.constant 0 : index
      %c0_40 = arith.constant 0 : index
      %45 = vector.load %arg11[%c0_38, %c0_39, %c0_40] : memref<4x128x1xf32, #tpu.memory_space<vmem>>, vector<4x128x1xf32>
      %46 = tpu.reciprocal %45 {approx = true} : vector<4x128x1xf32> -> vector<4x128x1xf32>
      %c0_41 = arith.constant 0 : index
      %c0_42 = arith.constant 0 : index
      %c0_43 = arith.constant 0 : index
      %47 = vector.load %arg12[%c0_41, %c0_42, %c0_43] : memref<4x128x64xf32, #tpu.memory_space<vmem>>, vector<4x128x64xf32>
      %48 = vector.broadcast %46 : vector<4x128x1xf32> to vector<4x128x64xf32>
      %49 = arith.mulf %47, %48 : vector<4x128x64xf32>
      %50 = vector.extract_strided_slice %49 {offsets = [0, 0, 0], sizes = [1, 128, 64], strides = [1, 1, 1]} : vector<4x128x64xf32> to vector<1x128x64xf32>
      %51 = vector.shape_cast %50 : vector<1x128x64xf32> to vector<128x64xf32>
      %52 = vector.extract_strided_slice %49 {offsets = [1, 0, 0], sizes = [1, 128, 64], strides = [1, 1, 1]} : vector<4x128x64xf32> to vector<1x128x64xf32>
      %53 = vector.shape_cast %52 : vector<1x128x64xf32> to vector<128x64xf32>
      %54 = vector.extract_strided_slice %49 {offsets = [2, 0, 0], sizes = [1, 128, 64], strides = [1, 1, 1]} : vector<4x128x64xf32> to vector<1x128x64xf32>
      %55 = vector.shape_cast %54 : vector<1x128x64xf32> to vector<128x64xf32>
      %56 = vector.extract_strided_slice %49 {offsets = [3, 0, 0], sizes = [1, 128, 64], strides = [1, 1, 1]} : vector<4x128x64xf32> to vector<1x128x64xf32>
      %57 = vector.shape_cast %56 : vector<1x128x64xf32> to vector<128x64xf32>
      %58 = tpu.concatenate %51, %53, %55, %57 in 1 : vector<128x64xf32>, vector<128x64xf32>, vector<128x64xf32>, vector<128x64xf32> -> vector<128x256xf32>
      %59 = arith.truncf %58 : vector<128x256xf32> to vector<128x256xbf16>
      %c0_44 = arith.constant 0 : index
      %c0_45 = arith.constant 0 : index
      %60 = vector.load %arg7[%c0_44, %c0_45] : memref<256x256xbf16, #tpu.memory_space<vmem>>, vector<256x256xbf16>
      %cst_46 = arith.constant dense<0.000000e+00> : vector<128x256xf32>
      %61 = tpu.matmul %59, %60, %cst_46 {dimension_numbers = #tpu.dot_dimension_numbers<[1], [0], [0], [1], [0, 0, 1, 1], [], []>} : vector<128x256xbf16>, vector<256x256xbf16>, vector<128x256xf32> -> vector<128x256xf32>
      %c0_47 = arith.constant 0 : index
      %c0_48 = arith.constant 0 : index
      %62 = vector.load %arg8[%c0_47, %c0_48] : memref<1x256xf32, #tpu.memory_space<vmem>>, vector<1x256xf32>
      %63 = vector.broadcast %62 : vector<1x256xf32> to vector<128x256xf32>
      %64 = arith.addf %61, %63 : vector<128x256xf32>
      %c0_49 = arith.constant 0 : index
      %c0_50 = arith.constant 0 : index
      %c0_51 = arith.constant 0 : index
      %65 = vector.load %arg9[%c0_49, %c0_50, %c0_51] : memref<1x128x256xf32, #tpu.memory_space<vmem>>, vector<1x128x256xf32>
      %66 = vector.shape_cast %65 : vector<1x128x256xf32> to vector<128x256xf32>
      %67 = vector.shape_cast %64 : vector<128x256xf32> to vector<1x128x256xf32>
      tpu.vector_store %arg9[%c0_49, %c0_50, %c0_51], %67 {strides = array<i32>} : memref<1x128x256xf32, #tpu.memory_space<vmem>>, vector<1x128x256xf32>,
    } else {
    }
    return
  }
  func.func @transform_0(%arg0: i32, %arg1: i32, %arg2: i32) -> (i32, i32, i32, i32) {
    %c0_i32 = arith.constant 0 : i32
    %c0_i32_0 = arith.constant 0 : i32
    %c0_i32_1 = arith.constant 0 : i32
    return %arg0, %c0_i32, %arg1, %c0_i32_0 : i32, i32, i32, i32
  }
  func.func @transform_1(%arg0: i32, %arg1: i32, %arg2: i32) -> (i32, i32, i32, i32) {
    %c0_i32 = arith.constant 0 : i32
    %c0_i32_0 = arith.constant 0 : i32
    %c0_i32_1 = arith.constant 0 : i32
    return %arg0, %c0_i32, %arg2, %c0_i32_0 : i32, i32, i32, i32
  }
  func.func @transform_2(%arg0: i32, %arg1: i32, %arg2: i32) -> (i32, i32, i32, i32) {
    %c0_i32 = arith.constant 0 : i32
    %c0_i32_0 = arith.constant 0 : i32
    %c0_i32_1 = arith.constant 0 : i32
    return %arg0, %c0_i32, %arg2, %c0_i32_0 : i32, i32, i32, i32
  }
  func.func @transform_3(%arg0: i32, %arg1: i32, %arg2: i32) -> (i32, i32, i32) {
    %c0_i32 = arith.constant 0 : i32
    return %arg0, %arg1, %arg2 : i32, i32, i32
  }
  func.func @transform_4(%arg0: i32, %arg1: i32, %arg2: i32) -> (i32, i32) {
    %c0_i32 = arith.constant 0 : i32
    %c0_i32_0 = arith.constant 0 : i32
    %c0_i32_1 = arith.constant 0 : i32
    return %c0_i32, %c0_i32_0 : i32, i32
  }
  func.func @transform_5(%arg0: i32, %arg1: i32, %arg2: i32) -> (i32, i32) {
    %c0_i32 = arith.constant 0 : i32
    %c0_i32_0 = arith.constant 0 : i32
    %c0_i32_1 = arith.constant 0 : i32
    return %c0_i32, %c0_i32_0 : i32, i32
  }
  func.func @transform_6(%arg0: i32, %arg1: i32, %arg2: i32) -> (i32, i32, i32) {
    %c0_i32 = arith.constant 0 : i32
    %c0_i32_0 = arith.constant 0 : i32
    return %arg0, %arg1, %c0_i32 : i32, i32, i32
  }
}

</mosaic_0001>

<llo_original>
// kernel: tpu_custom_call.1
$region0: #{tpu_custom_call.1}
  #allocation0 [shape = 'u32[]', space=smem, size = 0x4, offset = 0x4, fixed_abs, tag = 'smem constant byte address 0x4 - core index']
  #allocation1 [shape = 'u32[144,128]{1,0:T(1,128)}', space=vmem, size = 0x12000, scoped, tag = 'internal scratch']
  #allocation2 [shape = 'f32[4,128,1]{2,1,0:T(8,128)}', space=vmem, size = 0x40000, scoped, tag = 'scratch operand']
  #allocation3 [shape = 'f32[4,128,1]{2,1,0:T(8,128)}', space=vmem, size = 0x40000, scoped, tag = 'scratch operand']
  #allocation4 [shape = 'f32[4,128,64]{2,1,0:T(8,128)}', space=vmem, size = 0x40000, scoped, tag = 'scratch operand']
  %s0 = inlined_call_operand.vmem [shape: bf16[2,4,256,64], index: 0, kind: input, shape index: {}]
  %s1 = inlined_call_operand.vmem [shape: bf16[2,4,256,64], index: 1, kind: input, shape index: {}]
  %s2 = inlined_call_operand.vmem [shape: bf16[2,4,256,64], index: 2, kind: input, shape index: {}]
  %s3 = inlined_call_operand.vmem [shape: s8[2,256,256], index: 3, kind: input, shape index: {}]
  %s4 = inlined_call_operand.vmem [shape: bf16[256,256], index: 4, kind: input, shape index: {}]
  %s5 = inlined_call_operand.vmem [shape: f32[1,256], index: 5, kind: input, shape index: {}]
  %s6 = inlined_call_operand.hbm [shape: f32[2,256,256], index: 6, kind: output, shape index: {}]
  %s7 = sld [smem:[#allocation0]]
  $region226: #{tpu_custom_call.1} parent=0
    _
  %s9 = ssub.s32 1, %s7
  %s10 = scalar_select 0, %s9, %s7
  $region1: #{tpu_custom_call.1} parent=0
    #allocation5 [shape = 'u8[262144]{0}', space=vmem, size = 0x40000, scoped, tag = 'input window, operand 0']
    #allocation6 [shape = 'u8[262144]{0}', space=vmem, size = 0x40000, scoped, tag = 'input window, operand 1']
    #allocation7 [shape = 'u8[262144]{0}', space=vmem, size = 0x40000, scoped, tag = 'input window, operand 2']
    #allocation8 [shape = 'u8[32768]{0}', space=vmem, size = 0x8000, scoped, tag = 'input window, operand 3']
    #allocation9 [shape = 'u8[262144]{0}', space=vmem, size = 0x40000, scoped, tag = 'output window, operand 0']
    #allocation10 [shape = 's32[2]{0}', space=sflag, size = 0x8, scoped, tag = 'scoped memory for tpu_custom_call.1']
    %11 = vsyncpa [#allocation10], 0
    %s12 = scalar_lea.sflag [#allocation10], 1
    %13 = vsyncpa %s12, 0
    loop: start=0, step=1, limit=10
    $region2: #{tpu_custom_call.1} parent=1 // loop_pre_header
      _
    $region3: #{tpu_custom_call.1} parent=1 // loop_header
      %s15 = sphi 0, %s19
      %p16 = scmp.ge.s32.totalorder %s15, 10
      %s22 = sphi 0, %s41
      %s23 = sphi 0, %s37
      %s24 = sphi 0, %s33
      %s25 = sphi 0, %s22
      %s26 = sphi 0, %s23
      %s27 = sphi 0, %s24
      %s28 = sphi 0, %s25
      %s29 = sphi 0, %s26
      %s30 = sphi 0, %s27
      %s46 = sphi 0, %s48
      %s49 = sphi 0, %s46
      %s50 = sphi 0, %s49
      %s66 = sphi 0, %s50
      %s74 = sphi 0, %s76
      %s77 = sphi 0, %s74
      %s78 = sphi 0, %s77
      %s94 = sphi 0, %s78
      %s102 = sphi 0, %s104
      %s105 = sphi 0, %s102
      %s106 = sphi 0, %s105
      %s122 = sphi 0, %s106
      %s132 = sphi 0, %s134
      %s135 = sphi 0, %s132
      %s136 = sphi 0, %s135
      %s152 = sphi 0, %s136
      %s156 = sphi 0, %s156
      %s158 = sphi 0, %s156
      %s159 = sphi 0, %s158
      %s173 = sphi 0, %s159
      %s177 = sphi 0, %s177
      %s179 = sphi 0, %s177
      %s180 = sphi 0, %s179
      %s194 = sphi 0, %s180
      %s202 = sphi 0, %s204
      %s205 = sphi 0, %s202
      %s206 = sphi 0, %s205
      %s222 = sphi 0, %s206
    $region4: #{tpu_custom_call.1} parent=1 // loop_header_branch
      %18 = sbr.rel (%p16) target = $region8
    $region5: #{tpu_custom_call.1} parent=1 // loop_body
      %s20 = ssub.s32 %s15, 1
      %s21 = ssub.s32 %s15, 2
      %s31 = sadd.s32 1, %s24
      %p32 = scmp.ge.s32.totalorder %s31, 2
      %s33 = scalar_select %p32, 0, %s31
      %s34 = sadd.s32 1, %s23
      %s35 = scalar_select %p32, %s34, %s23
      %p36 = scmp.ge.s32.totalorder %s35, 2
      %s37 = scalar_select %p36, 0, %s35
      %s38 = sadd.s32 1, %s22
      %s39 = scalar_select %p36, %s38, %s22
      %p40 = scmp.ge.s32.totalorder %s39, 2
      %s41 = scalar_select %p40, 0, %s39
      %s42 = ssub.s32 %s22, %s41
      %s43 = ssub.s32 %s23, %s37
      %s44 = sor.u32 %s42, %s43
      %p45 = scmp.eq.s32.totalorder %s44, 0
      %s47 = sadd.s32 %s46, 1
      %s48 = scalar_select %p45, %s46, %s47
      %p51 = pneg %p45
      %p52 = scmp.eq.s32.totalorder %s15, 7
      %p53 = por %p51, %p52
      %p54 = scmp.ne.s32.totalorder %s46, %s49
      %p55 = scmp.eq.s32.totalorder %s15, 0
      %p56 = por %p54, %p55
      %p57 = scmp.ne.s32.totalorder %s46, %s49
      %p58 = scmp.eq.s32.totalorder %s20, 7
      %p59 = por %p57, %p58
      %p60 = scmp.ne.s32.totalorder %s49, %s50
      %p61 = scmp.eq.s32.totalorder %s20, 0
      %p62 = por %p60, %p61
      %p63 = scmp.ne.s32.totalorder %s49, %s50
      %p64 = scmp.eq.s32.totalorder %s21, 7
      %p65 = por %p63, %p64
      %p67 = scmp.ne.s32.totalorder %s50, %s66
      %p68 = scmp.eq.s32.totalorder %s21, 0
      %p69 = por %p67, %p68
      %s70 = ssub.s32 %s22, %s41
      %s71 = ssub.s32 %s24, %s33
      %s72 = sor.u32 %s70, %s71
      %p73 = scmp.eq.s32.totalorder %s72, 0
      %s75 = sadd.s32 %s74, 1
      %s76 = scalar_select %p73, %s74, %s75
      %p79 = pneg %p73
      %p80 = scmp.eq.s32.totalorder %s15, 7
      %p81 = por %p79, %p80
      %p82 = scmp.ne.s32.totalorder %s74, %s77
      %p83 = scmp.eq.s32.totalorder %s15, 0
      %p84 = por %p82, %p83
      %p85 = scmp.ne.s32.totalorder %s74, %s77
      %p86 = scmp.eq.s32.totalorder %s20, 7
      %p87 = por %p85, %p86
      %p88 = scmp.ne.s32.totalorder %s77, %s78
      %p89 = scmp.eq.s32.totalorder %s20, 0
      %p90 = por %p88, %p89
      %p91 = scmp.ne.s32.totalorder %s77, %s78
      %p92 = scmp.eq.s32.totalorder %s21, 7
      %p93 = por %p91, %p92
      %p95 = scmp.ne.s32.totalorder %s78, %s94
      %p96 = scmp.eq.s32.totalorder %s21, 0
      %p97 = por %p95, %p96
      %s98 = ssub.s32 %s22, %s41
      %s99 = ssub.s32 %s24, %s33
      %s100 = sor.u32 %s98, %s99
      %p101 = scmp.eq.s32.totalorder %s100, 0
      %s103 = sadd.s32 %s102, 1
      %s104 = scalar_select %p101, %s102, %s103
      %p107 = pneg %p101
      %p108 = scmp.eq.s32.totalorder %s15, 7
      %p109 = por %p107, %p108
      %p110 = scmp.ne.s32.totalorder %s102, %s105
      %p111 = scmp.eq.s32.totalorder %s15, 0
      %p112 = por %p110, %p111
      %p113 = scmp.ne.s32.totalorder %s102, %s105
      %p114 = scmp.eq.s32.totalorder %s20, 7
      %p115 = por %p113, %p114
      %p116 = scmp.ne.s32.totalorder %s105, %s106
      %p117 = scmp.eq.s32.totalorder %s20, 0
      %p118 = por %p116, %p117
      %p119 = scmp.ne.s32.totalorder %s105, %s106
      %p120 = scmp.eq.s32.totalorder %s21, 7
      %p121 = por %p119, %p120
      %p123 = scmp.ne.s32.totalorder %s106, %s122
      %p124 = scmp.eq.s32.totalorder %s21, 0
      %p125 = por %p123, %p124
      %s126 = ssub.s32 %s22, %s41
      %s127 = ssub.s32 %s23, %s37
      %s128 = sor.u32 %s126, %s127
      %s129 = ssub.s32 %s24, %s33
      %s130 = sor.u32 %s128, %s129
      %p131 = scmp.eq.s32.totalorder %s130, 0
      %s133 = sadd.s32 %s132, 1
      %s134 = scalar_select %p131, %s132, %s133
      %p137 = pneg %p131
      %p138 = scmp.eq.s32.totalorder %s15, 7
      %p139 = por %p137, %p138
      %p140 = scmp.ne.s32.totalorder %s132, %s135
      %p141 = scmp.eq.s32.totalorder %s15, 0
      %p142 = por %p140, %p141
      %p143 = scmp.ne.s32.totalorder %s132, %s135
      %p144 = scmp.eq.s32.totalorder %s20, 7
      %p145 = por %p143, %p144
      %p146 = scmp.ne.s32.totalorder %s135, %s136
      %p147 = scmp.eq.s32.totalorder %s20, 0
      %p148 = por %p146, %p147
      %p149 = scmp.ne.s32.totalorder %s135, %s136
      %p150 = scmp.eq.s32.totalorder %s21, 7
      %p151 = por %p149, %p150
      %p153 = scmp.ne.s32.totalorder %s136, %s152
      %p154 = scmp.eq.s32.totalorder %s21, 0
      %p155 = por %p153, %p154
      %s157 = sadd.s32 %s156, 1
      %p160 = scmp.eq.s32.totalorder %s15, 7
      %p161 = scmp.ne.s32.totalorder %s156, %s158
      %p162 = scmp.eq.s32.totalorder %s15, 0
      %p163 = por %p161, %p162
      %p164 = scmp.ne.s32.totalorder %s156, %s158
      %p165 = scmp.eq.s32.totalorder %s20, 7
      %p166 = por %p164, %p165
      %p167 = scmp.ne.s32.totalorder %s158, %s159
      %p168 = scmp.eq.s32.totalorder %s20, 0
      %p169 = por %p167, %p168
      %p170 = scmp.ne.s32.totalorder %s158, %s159
      %p171 = scmp.eq.s32.totalorder %s21, 7
      %p172 = por %p170, %p171
      %p174 = scmp.ne.s32.totalorder %s159, %s173
      %p175 = scmp.eq.s32.totalorder %s21, 0
      %p176 = por %p174, %p175
      %s178 = sadd.s32 %s177, 1
      %p181 = scmp.eq.s32.totalorder %s15, 7
      %p182 = scmp.ne.s32.totalorder %s177, %s179
      %p183 = scmp.eq.s32.totalorder %s15, 0
      %p184 = por %p182, %p183
      %p185 = scmp.ne.s32.totalorder %s177, %s179
      %p186 = scmp.eq.s32.totalorder %s20, 7
      %p187 = por %p185, %p186
      %p188 = scmp.ne.s32.totalorder %s179, %s180
      %p189 = scmp.eq.s32.totalorder %s20, 0
      %p190 = por %p188, %p189
      %p191 = scmp.ne.s32.totalorder %s179, %s180
      %p192 = scmp.eq.s32.totalorder %s21, 7
      %p193 = por %p191, %p192
      %p195 = scmp.ne.s32.totalorder %s180, %s194
      %p196 = scmp.eq.s32.totalorder %s21, 0
      %p197 = por %p195, %p196
      %s198 = ssub.s32 %s22, %s41
      %s199 = ssub.s32 %s23, %s37
      %s200 = sor.u32 %s198, %s199
      %p201 = scmp.eq.s32.totalorder %s200, 0
      %s203 = sadd.s32 %s202, 1
      %s204 = scalar_select %p201, %s202, %s203
      %p207 = pneg %p201
      %p208 = scmp.eq.s32.totalorder %s15, 7
      %p209 = por %p207, %p208
      %p210 = scmp.ne.s32.totalorder %s202, %s205
      %p211 = scmp.eq.s32.totalorder %s15, 0
      %p212 = por %p210, %p211
      %p213 = scmp.ne.s32.totalorder %s202, %s205
      %p214 = scmp.eq.s32.totalorder %s20, 7
      %p215 = por %p213, %p214
      %p216 = scmp.ne.s32.totalorder %s205, %s206
      %p217 = scmp.eq.s32.totalorder %s20, 0
      %p218 = por %p216, %p217
      %p219 = scmp.ne.s32.totalorder %s205, %s206
      %p220 = scmp.eq.s32.totalorder %s21, 7
      %p221 = por %p219, %p220
      %p223 = scmp.ne.s32.totalorder %s206, %s222
      %p224 = scmp.eq.s32.totalorder %s21, 0
      %p225 = por %p223, %p224
      %p226 = scmp.le.s32.totalorder 1, %s15
      %p227 = scmp.lt.s32.totalorder %s15, 9
      %p228 = pnand %p226, %p227
      %p229 = pneg %p228
      // Predicated region
      $region9: #{tpu_custom_call.1} parent=5 // pred_check
        _
      $region10: #{tpu_custom_call.1} parent=5 // pred_check_branch
        %231 = sbr.rel (%p228) target = $region12
      $region11: #{tpu_custom_call.1} parent=5 // pred_region
        %s232 = ssub.s32 %s15, 1
        // Predicated region
        $region13: #{tpu_custom_call.1} parent=11 // pred_check
          %p233 = pneg %p169
        $region14: #{tpu_custom_call.1} parent=11 // pred_check_branch
          %235 = sbr.rel (%p233) target = $region16
        $region15: #{tpu_custom_call.1} parent=11 // pred_region
          _
        $region16: #{tpu_custom_call.1} parent=11 // pred_fallthru
          _
        // Predicated region
        $region17: #{tpu_custom_call.1} parent=11 // pred_check
          %p236 = pneg %p190
        $region18: #{tpu_custom_call.1} parent=11 // pred_check_branch
          %238 = sbr.rel (%p236) target = $region20
        $region19: #{tpu_custom_call.1} parent=11 // pred_region
          _
        $region20: #{tpu_custom_call.1} parent=11 // pred_fallthru
          _
      $region12: #{tpu_custom_call.1} parent=5 // pred_fallthru
        _
      %p239 = scmp.lt.s32.totalorder %s15, 8
      // Predicated region
      $region21: #{tpu_custom_call.1} parent=5 // pred_check
        %p240 = pneg %p239
      $region22: #{tpu_custom_call.1} parent=5 // pred_check_branch
        %242 = sbr.rel (%p240) target = $region24
      $region23: #{tpu_custom_call.1} parent=5 // pred_region
        // Predicated region
        $region25: #{tpu_custom_call.1} parent=23 // pred_check
          %p243 = pneg %p56
        $region26: #{tpu_custom_call.1} parent=23 // pred_check_branch
          %245 = sbr.rel (%p243) target = $region28
        $region27: #{tpu_custom_call.1} parent=23 // pred_region
          %s246 = sand.u32 %s46, 1
          %s247 = sand.u32 %s46, 1
          %s248 = smul.addr %s247, 256
          %s249 = scalar_lea.vmem [#allocation5], %s248
          %s250 = smul.u32 16, %s23
          %s251 = smul.addr %s22, 128
          %s252 = sadd.s32 %s250, %s251
          %s253 = smul.addr %s252, 4
          %s254 = scalar_lea.vmem %s0, %s253
          // Predicated region
          $region29: #{tpu_custom_call.1} parent=27 // pred_check
            _
          $region30: #{tpu_custom_call.1} parent=27 // pred_check_branch
            %256 = sbr.rel (0) target = $region32
          $region31: #{tpu_custom_call.1} parent=27 // pred_region
            // Predicated region
            $region33: #{tpu_custom_call.1} parent=31 // pred_check
              _
            $region34: #{tpu_custom_call.1} parent=31 // pred_check_branch
              %258 = sbr.rel target = $region36
            $region35: #{tpu_custom_call.1} parent=31 // pred_region
              // Predicated region
              $region48: #{tpu_custom_call.1} parent=35 // pred_check
                _
              $region49: #{tpu_custom_call.1} parent=35 // pred_check_branch
                %399 = sbr.rel (0) target = $region51
              $region50: #{tpu_custom_call.1} parent=35 // pred_region
                loop: start=0, step=1, limit=1
                $region52: #{tpu_custom_call.1} parent=50 // loop_pre_header
                  _
                $region53: #{tpu_custom_call.1} parent=50 // loop_header
                  %s401 = sphi 0, %s405
                  %p402 = scmp.ge.s32.totalorder %s401, 1
                  %s406 = sphi %s254, %s254
                  %s407 = sphi %s249, %s249
                $region54: #{tpu_custom_call.1} parent=50 // loop_header_branch
                  %404 = sbr.rel (%p402) target = $region58
                $region55: #{tpu_custom_call.1} parent=50 // loop_body
                  _
                $region56: #{tpu_custom_call.1} parent=50 // loop_footer
                  %s405 = sadd.s32 1, %s401
                $region57: #{tpu_custom_call.1} parent=50 // loop_footer_branch
                  %400 = sbr.rel target = $region53
                $region58: #{tpu_custom_call.1} parent=50 // loop_exit
                  _
                loop: start=0, step=1, limit=1
                $region59: #{tpu_custom_call.1} parent=50 // loop_pre_header
                  _
                $region60: #{tpu_custom_call.1} parent=50 // loop_header
                  %s410 = sphi 0, %s414
                  %p411 = scmp.ge.s32.totalorder %s410, 1
                  %s415 = sphi %s254, %s254
                  %s416 = sphi %s249, %s249
                $region61: #{tpu_custom_call.1} parent=50 // loop_header_branch
                  %413 = sbr.rel (%p411) target = $region65
                $region62: #{tpu_custom_call.1} parent=50 // loop_body
                  %v417 = vld [vmem:[%s415] sm:$0xf]
                  %418 = vst [vmem:[%s416] sm:$0xf] %v417
                  %v419 = vld [vmem:[%s415 + $0x4] sm:$0xf]
                  %420 = vst [vmem:[%s416 + $0x4] sm:$0xf] %v419
                  %v421 = vld [vmem:[%s415 + $0x8] sm:$0xf]
                  %422 = vst [vmem:[%s416 + $0x8] sm:$0xf] %v421
                  %v423 = vld [vmem:[%s415 + $0xc] sm:$0xf]
                  %424 = vst [vmem:[%s416 + $0xc] sm:$0xf] %v423
                  %v425 = vld [vmem:[%s415 + $0x10] sm:$0xf]
                  %426 = vst [vmem:[%s416 + $0x10] sm:$0xf] %v425
                  %v427 = vld [vmem:[%s415 + $0x14] sm:$0xf]
                  %428 = vst [vmem:[%s416 + $0x14] sm:$0xf] %v427
                  %v429 = vld [vmem:[%s415 + $0x18] sm:$0xf]
                  %430 = vst [vmem:[%s416 + $0x18] sm:$0xf] %v429
                  %v431 = vld [vmem:[%s415 + $0x1c] sm:$0xf]
                  %432 = vst [vmem:[%s416 + $0x1c] sm:$0xf] %v431
                  %v433 = vld [vmem:[%s415 + $0x20] sm:$0xf]
                  %434 = vst [vmem:[%s416 + $0x20] sm:$0xf] %v433
                  %v435 = vld [vmem:[%s415 + $0x24] sm:$0xf]
                  %436 = vst [vmem:[%s416 + $0x24] sm:$0xf] %v435
                  %v437 = vld [vmem:[%s415 + $0x28] sm:$0xf]
                  %438 = vst [vmem:[%s416 + $0x28] sm:$0xf] %v437
                  %v439 = vld [vmem:[%s415 + $0x2c] sm:$0xf]
                  %440 = vst [vmem:[%s416 + $0x2c] sm:$0xf] %v439
                  %v441 = vld [vmem:[%s415 + $0x30] sm:$0xf]
                  %442 = vst [vmem:[%s416 + $0x30] sm:$0xf] %v441
                  %v443 = vld [vmem:[%s415 + $0x34] sm:$0xf]
                  %444 = vst [vmem:[%s416 + $0x34] sm:$0xf] %v443
                  %v445 = vld [vmem:[%s415 + $0x38] sm:$0xf]
                  %446 = vst [vmem:[%s416 + $0x38] sm:$0xf] %v445
                  %v447 = vld [vmem:[%s415 + $0x3c] sm:$0xf]
                  %448 = vst [vmem:[%s416 + $0x3c] sm:$0xf] %v447
                  %v449 = vld [vmem:[%s415 + $0x80] sm:$0xf]
                  %450 = vst [vmem:[%s416 + $0x40] sm:$0xf] %v449
                  %v451 = vld [vmem:[%s415 + $0x84] sm:$0xf]
                  %452 = vst [vmem:[%s416 + $0x44] sm:$0xf] %v451
                  %v453 = vld [vmem:[%s415 + $0x88] sm:$0xf]
                  %454 = vst [vmem:[%s416 + $0x48] sm:$0xf] %v453
                  %v455 = vld [vmem:[%s415 + $0x8c] sm:$0xf]
                  %456 = vst [vmem:[%s416 + $0x4c] sm:$0xf] %v455
                  %v457 = vld [vmem:[%s415 + $0x90] sm:$0xf]
                  %458 = vst [vmem:[%s416 + $0x50] sm:$0xf] %v457
                  %v459 = vld [vmem:[%s415 + $0x94] sm:$0xf]
                  %460 = vst [vmem:[%s416 + $0x54] sm:$0xf] %v459
                  %v461 = vld [vmem:[%s415 + $0x98] sm:$0xf]
                  %462 = vst [vmem:[%s416 + $0x58] sm:$0xf] %v461
                  %v463 = vld [vmem:[%s415 + $0x9c] sm:$0xf]
                  %464 = vst [vmem:[%s416 + $0x5c] sm:$0xf] %v463
                  %v465 = vld [vmem:[%s415 + $0xa0] sm:$0xf]
                  %466 = vst [vmem:[%s416 + $0x60] sm:$0xf] %v465
                  %v467 = vld [vmem:[%s415 + $0xa4] sm:$0xf]
                  %468 = vst [vmem:[%s416 + $0x64] sm:$0xf] %v467
                  %v469 = vld [vmem:[%s415 + $0xa8] sm:$0xf]
                  %470 = vst [vmem:[%s416 + $0x68] sm:$0xf] %v469
                  %v471 = vld [vmem:[%s415 + $0xac] sm:$0xf]
                  %472 = vst [vmem:[%s416 + $0x6c] sm:$0xf] %v471
                  %v473 = vld [vmem:[%s415 + $0xb0] sm:$0xf]
                  %474 = vst [vmem:[%s416 + $0x70] sm:$0xf] %v473
                  %v475 = vld [vmem:[%s415 + $0xb4] sm:$0xf]
                  %476 = vst [vmem:[%s416 + $0x74] sm:$0xf] %v475
                  %v477 = vld [vmem:[%s415 + $0xb8] sm:$0xf]
                  %478 = vst [vmem:[%s416 + $0x78] sm:$0xf] %v477
                  %v479 = vld [vmem:[%s415 + $0xbc] sm:$0xf]
                  %480 = vst [vmem:[%s416 + $0x7c] sm:$0xf] %v479
                  %v481 = vld [vmem:[%s415 + $0x100] sm:$0xf]
                  %482 = vst [vmem:[%s416 + $0x80] sm:$0xf] %v481
                  %v483 = vld [vmem:[%s415 + $0x104] sm:$0xf]
                  %484 = vst [vmem:[%s416 + $0x84] sm:$0xf] %v483
                  %v485 = vld [vmem:[%s415 + $0x108] sm:$0xf]
                  %486 = vst [vmem:[%s416 + $0x88] sm:$0xf] %v485
                  %v487 = vld [vmem:[%s415 + $0x10c] sm:$0xf]
                  %488 = vst [vmem:[%s416 + $0x8c] sm:$0xf] %v487
                  %v489 = vld [vmem:[%s415 + $0x110] sm:$0xf]
                  %490 = vst [vmem:[%s416 + $0x90] sm:$0xf] %v489
                  %v491 = vld [vmem:[%s415 + $0x114] sm:$0xf]
                  %492 = vst [vmem:[%s416 + $0x94] sm:$0xf] %v491
                  %v493 = vld [vmem:[%s415 + $0x118] sm:$0xf]
                  %494 = vst [vmem:[%s416 + $0x98] sm:$0xf] %v493
                  %v495 = vld [vmem:[%s415 + $0x11c] sm:$0xf]
                  %496 = vst [vmem:[%s416 + $0x9c] sm:$0xf] %v495
                  %v497 = vld [vmem:[%s415 + $0x120] sm:$0xf]
                  %498 = vst [vmem:[%s416 + $0xa0] sm:$0xf] %v497
                  %v499 = vld [vmem:[%s415 + $0x124] sm:$0xf]
                  %500 = vst [vmem:[%s416 + $0xa4] sm:$0xf] %v499
                  %v501 = vld [vmem:[%s415 + $0x128] sm:$0xf]
                  %502 = vst [vmem:[%s416 + $0xa8] sm:$0xf] %v501
                  %v503 = vld [vmem:[%s415 + $0x12c] sm:$0xf]
                  %504 = vst [vmem:[%s416 + $0xac] sm:$0xf] %v503
                  %v505 = vld [vmem:[%s415 + $0x130] sm:$0xf]
                  %506 = vst [vmem:[%s416 + $0xb0] sm:$0xf] %v505
                  %v507 = vld [vmem:[%s415 + $0x134] sm:$0xf]
                  %508 = vst [vmem:[%s416 + $0xb4] sm:$0xf] %v507
                  %v509 = vld [vmem:[%s415 + $0x138] sm:$0xf]
                  %510 = vst [vmem:[%s416 + $0xb8] sm:$0xf] %v509
                  %v511 = vld [vmem:[%s415 + $0x13c] sm:$0xf]
                  %512 = vst [vmem:[%s416 + $0xbc] sm:$0xf] %v511
                  %v513 = vld [vmem:[%s415 + $0x180] sm:$0xf]
                  %514 = vst [vmem:[%s416 + $0xc0] sm:$0xf] %v513
                  %v515 = vld [vmem:[%s415 + $0x184] sm:$0xf]
                  %516 = vst [vmem:[%s416 + $0xc4] sm:$0xf] %v515
                  %v517 = vld [vmem:[%s415 + $0x188] sm:$0xf]
                  %518 = vst [vmem:[%s416 + $0xc8] sm:$0xf] %v517
                  %v519 = vld [vmem:[%s415 + $0x18c] sm:$0xf]
                  %520 = vst [vmem:[%s416 + $0xcc] sm:$0xf] %v519
                  %v521 = vld [vmem:[%s415 + $0x190] sm:$0xf]
                  %522 = vst [vmem:[%s416 + $0xd0] sm:$0xf] %v521
                  %v523 = vld [vmem:[%s415 + $0x194] sm:$0xf]
                  %524 = vst [vmem:[%s416 + $0xd4] sm:$0xf] %v523
                  %v525 = vld [vmem:[%s415 + $0x198] sm:$0xf]
                  %526 = vst [vmem:[%s416 + $0xd8] sm:$0xf] %v525
                  %v527 = vld [vmem:[%s415 + $0x19c] sm:$0xf]
                  %528 = vst [vmem:[%s416 + $0xdc] sm:$0xf] %v527
                  %v529 = vld [vmem:[%s415 + $0x1a0] sm:$0xf]
                  %530 = vst [vmem:[%s416 + $0xe0] sm:$0xf] %v529
                  %v531 = vld [vmem:[%s415 + $0x1a4] sm:$0xf]
                  %532 = vst [vmem:[%s416 + $0xe4] sm:$0xf] %v531
                  %v533 = vld [vmem:[%s415 + $0x1a8] sm:$0xf]
                  %534 = vst [vmem:[%s416 + $0xe8] sm:$0xf] %v533
                  %v535 = vld [vmem:[%s415 + $0x1ac] sm:$0xf]
                  %536 = vst [vmem:[%s416 + $0xec] sm:$0xf] %v535
                  %v537 = vld [vmem:[%s415 + $0x1b0] sm:$0xf]
                  %538 = vst [vmem:[%s416 + $0xf0] sm:$0xf] %v537
                  %v539 = vld [vmem:[%s415 + $0x1b4] sm:$0xf]
                  %540 = vst [vmem:[%s416 + $0xf4] sm:$0xf] %v539
                  %v541 = vld [vmem:[%s415 + $0x1b8] sm:$0xf]
                  %542 = vst [vmem:[%s416 + $0xf8] sm:$0xf] %v541
                  %v543 = vld [vmem:[%s415 + $0x1bc] sm:$0xf]
                  %544 = vst [vmem:[%s416 + $0xfc] sm:$0xf] %v543
                $region63: #{tpu_custom_call.1} parent=50 // loop_footer
                  %s414 = sadd.s32 1, %s410
                $region64: #{tpu_custom_call.1} parent=50 // loop_footer_branch
                  %409 = sbr.rel target = $region60
                $region65: #{tpu_custom_call.1} parent=50 // loop_exit
                  _
              $region51: #{tpu_custom_call.1} parent=35 // pred_fallthru
                _
            $region36: #{tpu_custom_call.1} parent=31 // pred_fallthru
              _
            // Predicated region
            $region37: #{tpu_custom_call.1} parent=31 // pred_check
              _
            $region38: #{tpu_custom_call.1} parent=31 // pred_check_branch
              %260 = sbr.rel (0) target = $region40
            $region39: #{tpu_custom_call.1} parent=31 // pred_region
              loop: start=0, step=1, limit=1
              $region41: #{tpu_custom_call.1} parent=39 // loop_pre_header
                _
              $region42: #{tpu_custom_call.1} parent=39 // loop_header
                %s263 = sphi 0, %s267
                %p264 = scmp.ge.s32.totalorder %s263, 1
                %s268 = sphi %s254, %s254
                %s269 = sphi %s249, %s249
              $region43: #{tpu_custom_call.1} parent=39 // loop_header_branch
                %266 = sbr.rel (%p264) target = $region47
              $region44: #{tpu_custom_call.1} parent=39 // loop_body
                %v270 = vld [vmem:[%s268] sm:$0xf]
                %271 = vst [vmem:[%s269] sm:$0xf] %v270
                %v272 = vld [vmem:[%s268 + $0x4] sm:$0xf]
                %273 = vst [vmem:[%s269 + $0x4] sm:$0xf] %v272
                %v274 = vld [vmem:[%s268 + $0x8] sm:$0xf]
                %275 = vst [vmem:[%s269 + $0x8] sm:$0xf] %v274
                %v276 = vld [vmem:[%s268 + $0xc] sm:$0xf]
                %277 = vst [vmem:[%s269 + $0xc] sm:$0xf] %v276
                %v278 = vld [vmem:[%s268 + $0x10] sm:$0xf]
                %279 = vst [vmem:[%s269 + $0x10] sm:$0xf] %v278
                %v280 = vld [vmem:[%s268 + $0x14] sm:$0xf]
                %281 = vst [vmem:[%s269 + $0x14] sm:$0xf] %v280
                %v282 = vld [vmem:[%s268 + $0x18] sm:$0xf]
                %283 = vst [vmem:[%s269 + $0x18] sm:$0xf] %v282
                %v284 = vld [vmem:[%s268 + $0x1c] sm:$0xf]
                %285 = vst [vmem:[%s269 + $0x1c] sm:$0xf] %v284
                %v286 = vld [vmem:[%s268 + $0x20] sm:$0xf]
                %287 = vst [vmem:[%s269 + $0x20] sm:$0xf] %v286
                %v288 = vld [vmem:[%s268 + $0x24] sm:$0xf]
                %289 = vst [vmem:[%s269 + $0x24] sm:$0xf] %v288
                %v290 = vld [vmem:[%s268 + $0x28] sm:$0xf]
                %291 = vst [vmem:[%s269 + $0x28] sm:$0xf] %v290
                %v292 = vld [vmem:[%s268 + $0x2c] sm:$0xf]
                %293 = vst [vmem:[%s269 + $0x2c] sm:$0xf] %v292
                %v294 = vld [vmem:[%s268 + $0x30] sm:$0xf]
                %295 = vst [vmem:[%s269 + $0x30] sm:$0xf] %v294
                %v296 = vld [vmem:[%s268 + $0x34] sm:$0xf]
                %297 = vst [vmem:[%s269 + $0x34] sm:$0xf] %v296
                %v298 = vld [vmem:[%s268 + $0x38] sm:$0xf]
                %299 = vst [vmem:[%s269 + $0x38] sm:$0xf] %v298
                %v300 = vld [vmem:[%s268 + $0x3c] sm:$0xf]
                %301 = vst [vmem:[%s269 + $0x3c] sm:$0xf] %v300
                %v302 = vld [vmem:[%s268 + $0x80] sm:$0xf]
                %303 = vst [vmem:[%s269 + $0x40] sm:$0xf] %v302
                %v304 = vld [vmem:[%s268 + $0x84] sm:$0xf]
                %305 = vst [vmem:[%s269 + $0x44] sm:$0xf] %v304
                %v306 = vld [vmem:[%s268 + $0x88] sm:$0xf]
                %307 = vst [vmem:[%s269 + $0x48] sm:$0xf] %v306
                %v308 = vld [vmem:[%s268 + $0x8c] sm:$0xf]
                %309 = vst [vmem:[%s269 + $0x4c] sm:$0xf] %v308
                %v310 = vld [vmem:[%s268 + $0x90] sm:$0xf]
                %311 = vst [vmem:[%s269 + $0x50] sm:$0xf] %v310
                %v312 = vld [vmem:[%s268 + $0x94] sm:$0xf]
                %313 = vst [vmem:[%s269 + $0x54] sm:$0xf] %v312
                %v314 = vld [vmem:[%s268 + $0x98] sm:$0xf]
                %315 = vst [vmem:[%s269 + $0x58] sm:$0xf] %v314
                %v316 = vld [vmem:[%s268 + $0x9c] sm:$0xf]
                %317 = vst [vmem:[%s269 + $0x5c] sm:$0xf] %v316
                %v318 = vld [vmem:[%s268 + $0xa0] sm:$0xf]
                %319 = vst [vmem:[%s269 + $0x60] sm:$0xf] %v318
                %v320 = vld [vmem:[%s268 + $0xa4] sm:$0xf]
                %321 = vst [vmem:[%s269 + $0x64] sm:$0xf] %v320
                %v322 = vld [vmem:[%s268 + $0xa8] sm:$0xf]
                %323 = vst [vmem:[%s269 + $0x68] sm:$0xf] %v322
                %v324 = vld [vmem:[%s268 + $0xac] sm:$0xf]
                %325 = vst [vmem:[%s269 + $0x6c] sm:$0xf] %v324
                %v326 = vld [vmem:[%s268 + $0xb0] sm:$0xf]
                %327 = vst [vmem:[%s269 + $0x70] sm:$0xf] %v326
                %v328 = vld [vmem:[%s268 + $0xb4] sm:$0xf]
                %329 = vst [vmem:[%s269 + $0x74] sm:$0xf] %v328
                %v330 = vld [vmem:[%s268 + $0xb8] sm:$0xf]
                %331 = vst [vmem:[%s269 + $0x78] sm:$0xf] %v330
                %v332 = vld [vmem:[%s268 + $0xbc] sm:$0xf]
                %333 = vst [vmem:[%s269 + $0x7c] sm:$0xf] %v332
                %v334 = vld [vmem:[%s268 + $0x100] sm:$0xf]
                %335 = vst [vmem:[%s269 + $0x80] sm:$0xf] %v334
                %v336 = vld [vmem:[%s268 + $0x104] sm:$0xf]
                %337 = vst [vmem:[%s269 + $0x84] sm:$0xf] %v336
                %v338 = vld [vmem:[%s268 + $0x108] sm:$0xf]
                %339 = vst [vmem:[%s269 + $0x88] sm:$0xf] %v338
                %v340 = vld [vmem:[%s268 + $0x10c] sm:$0xf]
                %341 = vst [vmem:[%s269 + $0x8c] sm:$0xf] %v340
                %v342 = vld [vmem:[%s268 + $0x110] sm:$0xf]
                %343 = vst [vmem:[%s269 + $0x90] sm:$0xf] %v342
                %v344 = vld [vmem:[%s268 + $0x114] sm:$0xf]
                %345 = vst [vmem:[%s269 + $0x94] sm:$0xf] %v344
                %v346 = vld [vmem:[%s268 + $0x118] sm:$0xf]
                %347 = vst [vmem:[%s269 + $0x98] sm:$0xf] %v346
                %v348 = vld [vmem:[%s268 + $0x11c] sm:$0xf]
                %349 = vst [vmem:[%s269 + $0x9c] sm:$0xf] %v348
                %v350 = vld [vmem:[%s268 + $0x120] sm:$0xf]
                %351 = vst [vmem:[%s269 + $0xa0] sm:$0xf] %v350
                %v352 = vld [vmem:[%s268 + $0x124] sm:$0xf]
                %353 = vst [vmem:[%s269 + $0xa4] sm:$0xf] %v352
                %v354 = vld [vmem:[%s268 + $0x128] sm:$0xf]
                %355 = vst [vmem:[%s269 + $0xa8] sm:$0xf] %v354
                %v356 = vld [vmem:[%s268 + $0x12c] sm:$0xf]
                %357 = vst [vmem:[%s269 + $0xac] sm:$0xf] %v356
                %v358 = vld [vmem:[%s268 + $0x130] sm:$0xf]
                %359 = vst [vmem:[%s269 + $0xb0] sm:$0xf] %v358
                %v360 = vld [vmem:[%s268 + $0x134] sm:$0xf]
                %361 = vst [vmem:[%s269 + $0xb4] sm:$0xf] %v360
                %v362 = vld [vmem:[%s268 + $0x138] sm:$0xf]
                %363 = vst [vmem:[%s269 + $0xb8] sm:$0xf] %v362
                %v364 = vld [vmem:[%s268 + $0x13c] sm:$0xf]
                %365 = vst [vmem:[%s269 + $0xbc] sm:$0xf] %v364
                %v366 = vld [vmem:[%s268 + $0x180] sm:$0xf]
                %367 = vst [vmem:[%s269 + $0xc0] sm:$0xf] %v366
                %v368 = vld [vmem:[%s268 + $0x184] sm:$0xf]
                %369 = vst [vmem:[%s269 + $0xc4] sm:$0xf] %v368
                %v370 = vld [vmem:[%s268 + $0x188] sm:$0xf]
                %371 = vst [vmem:[%s269 + $0xc8] sm:$0xf] %v370
                %v372 = vld [vmem:[%s268 + $0x18c] sm:$0xf]
                %373 = vst [vmem:[%s269 + $0xcc] sm:$0xf] %v372
                %v374 = vld [vmem:[%s268 + $0x190] sm:$0xf]
                %375 = vst [vmem:[%s269 + $0xd0] sm:$0xf] %v374
                %v376 = vld [vmem:[%s268 + $0x194] sm:$0xf]
                %377 = vst [vmem:[%s269 + $0xd4] sm:$0xf] %v376
                %v378 = vld [vmem:[%s268 + $0x198] sm:$0xf]
                %379 = vst [vmem:[%s269 + $0xd8] sm:$0xf] %v378
                %v380 = vld [vmem:[%s268 + $0x19c] sm:$0xf]
                %381 = vst [vmem:[%s269 + $0xdc] sm:$0xf] %v380
                %v382 = vld [vmem:[%s268 + $0x1a0] sm:$0xf]
                %383 = vst [vmem:[%s269 + $0xe0] sm:$0xf] %v382
                %v384 = vld [vmem:[%s268 + $0x1a4] sm:$0xf]
                %385 = vst [vmem:[%s269 + $0xe4] sm:$0xf] %v384
                %v386 = vld [vmem:[%s268 + $0x1a8] sm:$0xf]
                %387 = vst [vmem:[%s269 + $0xe8] sm:$0xf] %v386
                %v388 = vld [vmem:[%s268 + $0x1ac] sm:$0xf]
                %389 = vst [vmem:[%s269 + $0xec] sm:$0xf] %v388
                %v390 = vld [vmem:[%s268 + $0x1b0] sm:$0xf]
                %391 = vst [vmem:[%s269 + $0xf0] sm:$0xf] %v390
                %v392 = vld [vmem:[%s268 + $0x1b4] sm:$0xf]
                %393 = vst [vmem:[%s269 + $0xf4] sm:$0xf] %v392
                %v394 = vld [vmem:[%s268 + $0x1b8] sm:$0xf]
                %395 = vst [vmem:[%s269 + $0xf8] sm:$0xf] %v394
                %v396 = vld [vmem:[%s268 + $0x1bc] sm:$0xf]
                %397 = vst [vmem:[%s269 + $0xfc] sm:$0xf] %v396
              $region45: #{tpu_custom_call.1} parent=39 // loop_footer
                %s267 = sadd.s32 1, %s263
              $region46: #{tpu_custom_call.1} parent=39 // loop_footer_branch
                %262 = sbr.rel target = $region42
              $region47: #{tpu_custom_call.1} parent=39 // loop_exit
                _
            $region40: #{tpu_custom_call.1} parent=31 // pred_fallthru
              _
          $region32: #{tpu_custom_call.1} parent=27 // pred_fallthru
            _
          %545 = vnop
        $region28: #{tpu_custom_call.1} parent=23 // pred_fallthru
          _
        // Predicated region
        $region66: #{tpu_custom_call.1} parent=23 // pred_check
          %p546 = pneg %p84
        $region67: #{tpu_custom_call.1} parent=23 // pred_check_branch
          %548 = sbr.rel (%p546) target = $region69
        $region68: #{tpu_custom_call.1} parent=23 // pred_region
          %s549 = sand.u32 %s74, 1
          %s550 = sand.u32 %s74, 1
          %s551 = smul.addr %s550, 256
          %s552 = scalar_lea.vmem [#allocation6], %s551
          %s553 = smul.u32 16, %s24
          %s554 = smul.addr %s22, 128
          %s555 = sadd.s32 %s553, %s554
          %s556 = smul.addr %s555, 4
          %s557 = scalar_lea.vmem %s1, %s556
          // Predicated region
          $region70: #{tpu_custom_call.1} parent=68 // pred_check
            _
          $region71: #{tpu_custom_call.1} parent=68 // pred_check_branch
            %559 = sbr.rel (0) target = $region73
          $region72: #{tpu_custom_call.1} parent=68 // pred_region
            // Predicated region
            $region74: #{tpu_custom_call.1} parent=72 // pred_check
              _
            $region75: #{tpu_custom_call.1} parent=72 // pred_check_branch
              %561 = sbr.rel target = $region77
            $region76: #{tpu_custom_call.1} parent=72 // pred_region
              // Predicated region
              $region89: #{tpu_custom_call.1} parent=76 // pred_check
                _
              $region90: #{tpu_custom_call.1} parent=76 // pred_check_branch
                %702 = sbr.rel (0) target = $region92
              $region91: #{tpu_custom_call.1} parent=76 // pred_region
                loop: start=0, step=1, limit=1
                $region93: #{tpu_custom_call.1} parent=91 // loop_pre_header
                  _
                $region94: #{tpu_custom_call.1} parent=91 // loop_header
                  %s704 = sphi 0, %s708
                  %p705 = scmp.ge.s32.totalorder %s704, 1
                  %s709 = sphi %s557, %s557
                  %s710 = sphi %s552, %s552
                $region95: #{tpu_custom_call.1} parent=91 // loop_header_branch
                  %707 = sbr.rel (%p705) target = $region99
                $region96: #{tpu_custom_call.1} parent=91 // loop_body
                  _
                $region97: #{tpu_custom_call.1} parent=91 // loop_footer
                  %s708 = sadd.s32 1, %s704
                $region98: #{tpu_custom_call.1} parent=91 // loop_footer_branch
                  %703 = sbr.rel target = $region94
                $region99: #{tpu_custom_call.1} parent=91 // loop_exit
                  _
                loop: start=0, step=1, limit=1
                $region100: #{tpu_custom_call.1} parent=91 // loop_pre_header
                  _
                $region101: #{tpu_custom_call.1} parent=91 // loop_header
                  %s713 = sphi 0, %s717
                  %p714 = scmp.ge.s32.totalorder %s713, 1
                  %s718 = sphi %s557, %s557
                  %s719 = sphi %s552, %s552
                $region102: #{tpu_custom_call.1} parent=91 // loop_header_branch
                  %716 = sbr.rel (%p714) target = $region106
                $region103: #{tpu_custom_call.1} parent=91 // loop_body
                  %v720 = vld [vmem:[%s718] sm:$0xf]
                  %721 = vst [vmem:[%s719] sm:$0xf] %v720
                  %v722 = vld [vmem:[%s718 + $0x4] sm:$0xf]
                  %723 = vst [vmem:[%s719 + $0x4] sm:$0xf] %v722
                  %v724 = vld [vmem:[%s718 + $0x8] sm:$0xf]
                  %725 = vst [vmem:[%s719 + $0x8] sm:$0xf] %v724
                  %v726 = vld [vmem:[%s718 + $0xc] sm:$0xf]
                  %727 = vst [vmem:[%s719 + $0xc] sm:$0xf] %v726
                  %v728 = vld [vmem:[%s718 + $0x10] sm:$0xf]
                  %729 = vst [vmem:[%s719 + $0x10] sm:$0xf] %v728
                  %v730 = vld [vmem:[%s718 + $0x14] sm:$0xf]
                  %731 = vst [vmem:[%s719 + $0x14] sm:$0xf] %v730
                  %v732 = vld [vmem:[%s718 + $0x18] sm:$0xf]
                  %733 = vst [vmem:[%s719 + $0x18] sm:$0xf] %v732
                  %v734 = vld [vmem:[%s718 + $0x1c] sm:$0xf]
                  %735 = vst [vmem:[%s719 + $0x1c] sm:$0xf] %v734
                  %v736 = vld [vmem:[%s718 + $0x20] sm:$0xf]
                  %737 = vst [vmem:[%s719 + $0x20] sm:$0xf] %v736
                  %v738 = vld [vmem:[%s718 + $0x24] sm:$0xf]
                  %739 = vst [vmem:[%s719 + $0x24] sm:$0xf] %v738
                  %v740 = vld [vmem:[%s718 + $0x28] sm:$0xf]
                  %741 = vst [vmem:[%s719 + $0x28] sm:$0xf] %v740
                  %v742 = vld [vmem:[%s718 + $0x2c] sm:$0xf]
                  %743 = vst [vmem:[%s719 + $0x2c] sm:$0xf] %v742
                  %v744 = vld [vmem:[%s718 + $0x30] sm:$0xf]
                  %745 = vst [vmem:[%s719 + $0x30] sm:$0xf] %v744
                  %v746 = vld [vmem:[%s718 + $0x34] sm:$0xf]
                  %747 = vst [vmem:[%s719 + $0x34] sm:$0xf] %v746
                  %v748 = vld [vmem:[%s718 + $0x38] sm:$0xf]
                  %749 = vst [vmem:[%s719 + $0x38] sm:$0xf] %v748
                  %v750 = vld [vmem:[%s718 + $0x3c] sm:$0xf]
                  %751 = vst [vmem:[%s719 + $0x3c] sm:$0xf] %v750
                  %v752 = vld [vmem:[%s718 + $0x80] sm:$0xf]
                  %753 = vst [vmem:[%s719 + $0x40] sm:$0xf] %v752
                  %v754 = vld [vmem:[%s718 + $0x84] sm:$0xf]
                  %755 = vst [vmem:[%s719 + $0x44] sm:$0xf] %v754
                  %v756 = vld [vmem:[%s718 + $0x88] sm:$0xf]
                  %757 = vst [vmem:[%s719 + $0x48] sm:$0xf] %v756
                  %v758 = vld [vmem:[%s718 + $0x8c] sm:$0xf]
                  %759 = vst [vmem:[%s719 + $0x4c] sm:$0xf] %v758
                  %v760 = vld [vmem:[%s718 + $0x90] sm:$0xf]
                  %761 = vst [vmem:[%s719 + $0x50] sm:$0xf] %v760
                  %v762 = vld [vmem:[%s718 + $0x94] sm:$0xf]
                  %763 = vst [vmem:[%s719 + $0x54] sm:$0xf] %v762
                  %v764 = vld [vmem:[%s718 + $0x98] sm:$0xf]
                  %765 = vst [vmem:[%s719 + $0x58] sm:$0xf] %v764
                  %v766 = vld [vmem:[%s718 + $0x9c] sm:$0xf]
                  %767 = vst [vmem:[%s719 + $0x5c] sm:$0xf] %v766
                  %v768 = vld [vmem:[%s718 + $0xa0] sm:$0xf]
                  %769 = vst [vmem:[%s719 + $0x60] sm:$0xf] %v768
                  %v770 = vld [vmem:[%s718 + $0xa4] sm:$0xf]
                  %771 = vst [vmem:[%s719 + $0x64] sm:$0xf] %v770
                  %v772 = vld [vmem:[%s718 + $0xa8] sm:$0xf]
                  %773 = vst [vmem:[%s719 + $0x68] sm:$0xf] %v772
                  %v774 = vld [vmem:[%s718 + $0xac] sm:$0xf]
                  %775 = vst [vmem:[%s719 + $0x6c] sm:$0xf] %v774
                  %v776 = vld [vmem:[%s718 + $0xb0] sm:$0xf]
                  %777 = vst [vmem:[%s719 + $0x70] sm:$0xf] %v776
                  %v778 = vld [vmem:[%s718 + $0xb4] sm:$0xf]
                  %779 = vst [vmem:[%s719 + $0x74] sm:$0xf] %v778
                  %v780 = vld [vmem:[%s718 + $0xb8] sm:$0xf]
                  %781 = vst [vmem:[%s719 + $0x78] sm:$0xf] %v780
                  %v782 = vld [vmem:[%s718 + $0xbc] sm:$0xf]
                  %783 = vst [vmem:[%s719 + $0x7c] sm:$0xf] %v782
                  %v784 = vld [vmem:[%s718 + $0x100] sm:$0xf]
                  %785 = vst [vmem:[%s719 + $0x80] sm:$0xf] %v784
                  %v786 = vld [vmem:[%s718 + $0x104] sm:$0xf]
                  %787 = vst [vmem:[%s719 + $0x84] sm:$0xf] %v786
                  %v788 = vld [vmem:[%s718 + $0x108] sm:$0xf]
                  %789 = vst [vmem:[%s719 + $0x88] sm:$0xf] %v788
                  %v790 = vld [vmem:[%s718 + $0x10c] sm:$0xf]
                  %791 = vst [vmem:[%s719 + $0x8c] sm:$0xf] %v790
                  %v792 = vld [vmem:[%s718 + $0x110] sm:$0xf]
                  %793 = vst [vmem:[%s719 + $0x90] sm:$0xf] %v792
                  %v794 = vld [vmem:[%s718 + $0x114] sm:$0xf]
                  %795 = vst [vmem:[%s719 + $0x94] sm:$0xf] %v794
                  %v796 = vld [vmem:[%s718 + $0x118] sm:$0xf]
                  %797 = vst [vmem:[%s719 + $0x98] sm:$0xf] %v796
                  %v798 = vld [vmem:[%s718 + $0x11c] sm:$0xf]
                  %799 = vst [vmem:[%s719 + $0x9c] sm:$0xf] %v798
                  %v800 = vld [vmem:[%s718 + $0x120] sm:$0xf]
                  %801 = vst [vmem:[%s719 + $0xa0] sm:$0xf] %v800
                  %v802 = vld [vmem:[%s718 + $0x124] sm:$0xf]
                  %803 = vst [vmem:[%s719 + $0xa4] sm:$0xf] %v802
                  %v804 = vld [vmem:[%s718 + $0x128] sm:$0xf]
                  %805 = vst [vmem:[%s719 + $0xa8] sm:$0xf] %v804
                  %v806 = vld [vmem:[%s718 + $0x12c] sm:$0xf]
                  %807 = vst [vmem:[%s719 + $0xac] sm:$0xf] %v806
                  %v808 = vld [vmem:[%s718 + $0x130] sm:$0xf]
                  %809 = vst [vmem:[%s719 + $0xb0] sm:$0xf] %v808
                  %v810 = vld [vmem:[%s718 + $0x134] sm:$0xf]
                  %811 = vst [vmem:[%s719 + $0xb4] sm:$0xf] %v810
                  %v812 = vld [vmem:[%s718 + $0x138] sm:$0xf]
                  %813 = vst [vmem:[%s719 + $0xb8] sm:$0xf] %v812
                  %v814 = vld [vmem:[%s718 + $0x13c] sm:$0xf]
                  %815 = vst [vmem:[%s719 + $0xbc] sm:$0xf] %v814
                  %v816 = vld [vmem:[%s718 + $0x180] sm:$0xf]
                  %817 = vst [vmem:[%s719 + $0xc0] sm:$0xf] %v816
                  %v818 = vld [vmem:[%s718 + $0x184] sm:$0xf]
                  %819 = vst [vmem:[%s719 + $0xc4] sm:$0xf] %v818
                  %v820 = vld [vmem:[%s718 + $0x188] sm:$0xf]
                  %821 = vst [vmem:[%s719 + $0xc8] sm:$0xf] %v820
                  %v822 = vld [vmem:[%s718 + $0x18c] sm:$0xf]
                  %823 = vst [vmem:[%s719 + $0xcc] sm:$0xf] %v822
                  %v824 = vld [vmem:[%s718 + $0x190] sm:$0xf]
                  %825 = vst [vmem:[%s719 + $0xd0] sm:$0xf] %v824
                  %v826 = vld [vmem:[%s718 + $0x194] sm:$0xf]
                  %827 = vst [vmem:[%s719 + $0xd4] sm:$0xf] %v826
                  %v828 = vld [vmem:[%s718 + $0x198] sm:$0xf]
                  %829 = vst [vmem:[%s719 + $0xd8] sm:$0xf] %v828
                  %v830 = vld [vmem:[%s718 + $0x19c] sm:$0xf]
                  %831 = vst [vmem:[%s719 + $0xdc] sm:$0xf] %v830
                  %v832 = vld [vmem:[%s718 + $0x1a0] sm:$0xf]
                  %833 = vst [vmem:[%s719 + $0xe0] sm:$0xf] %v832
                  %v834 = vld [vmem:[%s718 + $0x1a4] sm:$0xf]
                  %835 = vst [vmem:[%s719 + $0xe4] sm:$0xf] %v834
                  %v836 = vld [vmem:[%s718 + $0x1a8] sm:$0xf]
                  %837 = vst [vmem:[%s719 + $0xe8] sm:$0xf] %v836
                  %v838 = vld [vmem:[%s718 + $0x1ac] sm:$0xf]
                  %839 = vst [vmem:[%s719 + $0xec] sm:$0xf] %v838
                  %v840 = vld [vmem:[%s718 + $0x1b0] sm:$0xf]
                  %841 = vst [vmem:[%s719 + $0xf0] sm:$0xf] %v840
                  %v842 = vld [vmem:[%s718 + $0x1b4] sm:$0xf]
                  %843 = vst [vmem:[%s719 + $0xf4] sm:$0xf] %v842
                  %v844 = vld [vmem:[%s718 + $0x1b8] sm:$0xf]
                  %845 = vst [vmem:[%s719 + $0xf8] sm:$0xf] %v844
                  %v846 = vld [vmem:[%s718 + $0x1bc] sm:$0xf]
                  %847 = vst [vmem:[%s719 + $0xfc] sm:$0xf] %v846
                $region104: #{tpu_custom_call.1} parent=91 // loop_footer
                  %s717 = sadd.s32 1, %s713
                $region105: #{tpu_custom_call.1} parent=91 // loop_footer_branch
                  %712 = sbr.rel target = $region101
                $region106: #{tpu_custom_call.1} parent=91 // loop_exit
                  _
              $region92: #{tpu_custom_call.1} parent=76 // pred_fallthru
                _
            $region77: #{tpu_custom_call.1} parent=72 // pred_fallthru
              _
            // Predicated region
            $region78: #{tpu_custom_call.1} parent=72 // pred_check
              _
            $region79: #{tpu_custom_call.1} parent=72 // pred_check_branch
              %563 = sbr.rel (0) target = $region81
            $region80: #{tpu_custom_call.1} parent=72 // pred_region
              loop: start=0, step=1, limit=1
              $region82: #{tpu_custom_call.1} parent=80 // loop_pre_header
                _
              $region83: #{tpu_custom_call.1} parent=80 // loop_header
                %s566 = sphi 0, %s570
                %p567 = scmp.ge.s32.totalorder %s566, 1
                %s571 = sphi %s557, %s557
                %s572 = sphi %s552, %s552
              $region84: #{tpu_custom_call.1} parent=80 // loop_header_branch
                %569 = sbr.rel (%p567) target = $region88
              $region85: #{tpu_custom_call.1} parent=80 // loop_body
                %v573 = vld [vmem:[%s571] sm:$0xf]
                %574 = vst [vmem:[%s572] sm:$0xf] %v573
                %v575 = vld [vmem:[%s571 + $0x4] sm:$0xf]
                %576 = vst [vmem:[%s572 + $0x4] sm:$0xf] %v575
                %v577 = vld [vmem:[%s571 + $0x8] sm:$0xf]
                %578 = vst [vmem:[%s572 + $0x8] sm:$0xf] %v577
                %v579 = vld [vmem:[%s571 + $0xc] sm:$0xf]
                %580 = vst [vmem:[%s572 + $0xc] sm:$0xf] %v579
                %v581 = vld [vmem:[%s571 + $0x10] sm:$0xf]
                %582 = vst [vmem:[%s572 + $0x10] sm:$0xf] %v581
                %v583 = vld [vmem:[%s571 + $0x14] sm:$0xf]
                %584 = vst [vmem:[%s572 + $0x14] sm:$0xf] %v583
                %v585 = vld [vmem:[%s571 + $0x18] sm:$0xf]
                %586 = vst [vmem:[%s572 + $0x18] sm:$0xf] %v585
                %v587 = vld [vmem:[%s571 + $0x1c] sm:$0xf]
                %588 = vst [vmem:[%s572 + $0x1c] sm:$0xf] %v587
                %v589 = vld [vmem:[%s571 + $0x20] sm:$0xf]
                %590 = vst [vmem:[%s572 + $0x20] sm:$0xf] %v589
                %v591 = vld [vmem:[%s571 + $0x24] sm:$0xf]
                %592 = vst [vmem:[%s572 + $0x24] sm:$0xf] %v591
                %v593 = vld [vmem:[%s571 + $0x28] sm:$0xf]
                %594 = vst [vmem:[%s572 + $0x28] sm:$0xf] %v593
                %v595 = vld [vmem:[%s571 + $0x2c] sm:$0xf]
                %596 = vst [vmem:[%s572 + $0x2c] sm:$0xf] %v595
                %v597 = vld [vmem:[%s571 + $0x30] sm:$0xf]
                %598 = vst [vmem:[%s572 + $0x30] sm:$0xf] %v597
                %v599 = vld [vmem:[%s571 + $0x34] sm:$0xf]
                %600 = vst [vmem:[%s572 + $0x34] sm:$0xf] %v599
                %v601 = vld [vmem:[%s571 + $0x38] sm:$0xf]
                %602 = vst [vmem:[%s572 + $0x38] sm:$0xf] %v601
                %v603 = vld [vmem:[%s571 + $0x3c] sm:$0xf]
                %604 = vst [vmem:[%s572 + $0x3c] sm:$0xf] %v603
                %v605 = vld [vmem:[%s571 + $0x80] sm:$0xf]
                %606 = vst [vmem:[%s572 + $0x40] sm:$0xf] %v605
                %v607 = vld [vmem:[%s571 + $0x84] sm:$0xf]
                %608 = vst [vmem:[%s572 + $0x44] sm:$0xf] %v607
                %v609 = vld [vmem:[%s571 + $0x88] sm:$0xf]
                %610 = vst [vmem:[%s572 + $0x48] sm:$0xf] %v609
                %v611 = vld [vmem:[%s571 + $0x8c] sm:$0xf]
                %612 = vst [vmem:[%s572 + $0x4c] sm:$0xf] %v611
                %v613 = vld [vmem:[%s571 + $0x90] sm:$0xf]
                %614 = vst [vmem:[%s572 + $0x50] sm:$0xf] %v613
                %v615 = vld [vmem:[%s571 + $0x94] sm:$0xf]
                %616 = vst [vmem:[%s572 + $0x54] sm:$0xf] %v615
                %v617 = vld [vmem:[%s571 + $0x98] sm:$0xf]
                %618 = vst [vmem:[%s572 + $0x58] sm:$0xf] %v617
                %v619 = vld [vmem:[%s571 + $0x9c] sm:$0xf]
                %620 = vst [vmem:[%s572 + $0x5c] sm:$0xf] %v619
                %v621 = vld [vmem:[%s571 + $0xa0] sm:$0xf]
                %622 = vst [vmem:[%s572 + $0x60] sm:$0xf] %v621
                %v623 = vld [vmem:[%s571 + $0xa4] sm:$0xf]
                %624 = vst [vmem:[%s572 + $0x64] sm:$0xf] %v623
                %v625 = vld [vmem:[%s571 + $0xa8] sm:$0xf]
                %626 = vst [vmem:[%s572 + $0x68] sm:$0xf] %v625
                %v627 = vld [vmem:[%s571 + $0xac] sm:$0xf]
                %628 = vst [vmem:[%s572 + $0x6c] sm:$0xf] %v627
                %v629 = vld [vmem:[%s571 + $0xb0] sm:$0xf]
                %630 = vst [vmem:[%s572 + $0x70] sm:$0xf] %v629
                %v631 = vld [vmem:[%s571 + $0xb4] sm:$0xf]
                %632 = vst [vmem:[%s572 + $0x74] sm:$0xf] %v631
                %v633 = vld [vmem:[%s571 + $0xb8] sm:$0xf]
                %634 = vst [vmem:[%s572 + $0x78] sm:$0xf] %v633
                %v635 = vld [vmem:[%s571 + $0xbc] sm:$0xf]
                %636 = vst [vmem:[%s572 + $0x7c] sm:$0xf] %v635
                %v637 = vld [vmem:[%s571 + $0x100] sm:$0xf]
                %638 = vst [vmem:[%s572 + $0x80] sm:$0xf] %v637
                %v639 = vld [vmem:[%s571 + $0x104] sm:$0xf]
                %640 = vst [vmem:[%s572 + $0x84] sm:$0xf] %v639
                %v641 = vld [vmem:[%s571 + $0x108] sm:$0xf]
                %642 = vst [vmem:[%s572 + $0x88] sm:$0xf] %v641
                %v643 = vld [vmem:[%s571 + $0x10c] sm:$0xf]
                %644 = vst [vmem:[%s572 + $0x8c] sm:$0xf] %v643
                %v645 = vld [vmem:[%s571 + $0x110] sm:$0xf]
                %646 = vst [vmem:[%s572 + $0x90] sm:$0xf] %v645
                %v647 = vld [vmem:[%s571 + $0x114] sm:$0xf]
                %648 = vst [vmem:[%s572 + $0x94] sm:$0xf] %v647
                %v649 = vld [vmem:[%s571 + $0x118] sm:$0xf]
                %650 = vst [vmem:[%s572 + $0x98] sm:$0xf] %v649
                %v651 = vld [vmem:[%s571 + $0x11c] sm:$0xf]
                %652 = vst [vmem:[%s572 + $0x9c] sm:$0xf] %v651
                %v653 = vld [vmem:[%s571 + $0x120] sm:$0xf]
                %654 = vst [vmem:[%s572 + $0xa0] sm:$0xf] %v653
                %v655 = vld [vmem:[%s571 + $0x124] sm:$0xf]
                %656 = vst [vmem:[%s572 + $0xa4] sm:$0xf] %v655
                %v657 = vld [vmem:[%s571 + $0x128] sm:$0xf]
                %658 = vst [vmem:[%s572 + $0xa8] sm:$0xf] %v657
                %v659 = vld [vmem:[%s571 + $0x12c] sm:$0xf]
                %660 = vst [vmem:[%s572 + $0xac] sm:$0xf] %v659
                %v661 = vld [vmem:[%s571 + $0x130] sm:$0xf]
                %662 = vst [vmem:[%s572 + $0xb0] sm:$0xf] %v661
                %v663 = vld [vmem:[%s571 + $0x134] sm:$0xf]
                %664 = vst [vmem:[%s572 + $0xb4] sm:$0xf] %v663
                %v665 = vld [vmem:[%s571 + $0x138] sm:$0xf]
                %666 = vst [vmem:[%s572 + $0xb8] sm:$0xf] %v665
                %v667 = vld [vmem:[%s571 + $0x13c] sm:$0xf]
                %668 = vst [vmem:[%s572 + $0xbc] sm:$0xf] %v667
                %v669 = vld [vmem:[%s571 + $0x180] sm:$0xf]
                %670 = vst [vmem:[%s572 + $0xc0] sm:$0xf] %v669
                %v671 = vld [vmem:[%s571 + $0x184] sm:$0xf]
                %672 = vst [vmem:[%s572 + $0xc4] sm:$0xf] %v671
                %v673 = vld [vmem:[%s571 + $0x188] sm:$0xf]
                %674 = vst [vmem:[%s572 + $0xc8] sm:$0xf] %v673
                %v675 = vld [vmem:[%s571 + $0x18c] sm:$0xf]
                %676 = vst [vmem:[%s572 + $0xcc] sm:$0xf] %v675
                %v677 = vld [vmem:[%s571 + $0x190] sm:$0xf]
                %678 = vst [vmem:[%s572 + $0xd0] sm:$0xf] %v677
                %v679 = vld [vmem:[%s571 + $0x194] sm:$0xf]
                %680 = vst [vmem:[%s572 + $0xd4] sm:$0xf] %v679
                %v681 = vld [vmem:[%s571 + $0x198] sm:$0xf]
                %682 = vst [vmem:[%s572 + $0xd8] sm:$0xf] %v681
                %v683 = vld [vmem:[%s571 + $0x19c] sm:$0xf]
                %684 = vst [vmem:[%s572 + $0xdc] sm:$0xf] %v683
                %v685 = vld [vmem:[%s571 + $0x1a0] sm:$0xf]
                %686 = vst [vmem:[%s572 + $0xe0] sm:$0xf] %v685
                %v687 = vld [vmem:[%s571 + $0x1a4] sm:$0xf]
                %688 = vst [vmem:[%s572 + $0xe4] sm:$0xf] %v687
                %v689 = vld [vmem:[%s571 + $0x1a8] sm:$0xf]
                %690 = vst [vmem:[%s572 + $0xe8] sm:$0xf] %v689
                %v691 = vld [vmem:[%s571 + $0x1ac] sm:$0xf]
                %692 = vst [vmem:[%s572 + $0xec] sm:$0xf] %v691
                %v693 = vld [vmem:[%s571 + $0x1b0] sm:$0xf]
                %694 = vst [vmem:[%s572 + $0xf0] sm:$0xf] %v693
                %v695 = vld [vmem:[%s571 + $0x1b4] sm:$0xf]
                %696 = vst [vmem:[%s572 + $0xf4] sm:$0xf] %v695
                %v697 = vld [vmem:[%s571 + $0x1b8] sm:$0xf]
                %698 = vst [vmem:[%s572 + $0xf8] sm:$0xf] %v697
                %v699 = vld [vmem:[%s571 + $0x1bc] sm:$0xf]
                %700 = vst [vmem:[%s572 + $0xfc] sm:$0xf] %v699
              $region86: #{tpu_custom_call.1} parent=80 // loop_footer
                %s570 = sadd.s32 1, %s566
              $region87: #{tpu_custom_call.1} parent=80 // loop_footer_branch
                %565 = sbr.rel target = $region83
              $region88: #{tpu_custom_call.1} parent=80 // loop_exit
                _
            $region81: #{tpu_custom_call.1} parent=72 // pred_fallthru
              _
          $region73: #{tpu_custom_call.1} parent=68 // pred_fallthru
            _
          %848 = vnop
        $region69: #{tpu_custom_call.1} parent=23 // pred_fallthru
          _
        // Predicated region
        $region107: #{tpu_custom_call.1} parent=23 // pred_check
          %p849 = pneg %p112
        $region108: #{tpu_custom_call.1} parent=23 // pred_check_branch
          %851 = sbr.rel (%p849) target = $region110
        $region109: #{tpu_custom_call.1} parent=23 // pred_region
          %s852 = sand.u32 %s102, 1
          %s853 = sand.u32 %s102, 1
          %s854 = smul.addr %s853, 256
          %s855 = scalar_lea.vmem [#allocation7], %s854
          %s856 = smul.u32 16, %s24
          %s857 = smul.addr %s22, 128
          %s858 = sadd.s32 %s856, %s857
          %s859 = smul.addr %s858, 4
          %s860 = scalar_lea.vmem %s2, %s859
          // Predicated region
          $region111: #{tpu_custom_call.1} parent=109 // pred_check
            _
          $region112: #{tpu_custom_call.1} parent=109 // pred_check_branch
            %862 = sbr.rel (0) target = $region114
          $region113: #{tpu_custom_call.1} parent=109 // pred_region
            // Predicated region
            $region115: #{tpu_custom_call.1} parent=113 // pred_check
              _
            $region116: #{tpu_custom_call.1} parent=113 // pred_check_branch
              %864 = sbr.rel target = $region118
            $region117: #{tpu_custom_call.1} parent=113 // pred_region
              // Predicated region
              $region130: #{tpu_custom_call.1} parent=117 // pred_check
                _
              $region131: #{tpu_custom_call.1} parent=117 // pred_check_branch
                %1005 = sbr.rel (0) target = $region133
              $region132: #{tpu_custom_call.1} parent=117 // pred_region
                loop: start=0, step=1, limit=1
                $region134: #{tpu_custom_call.1} parent=132 // loop_pre_header
                  _
                $region135: #{tpu_custom_call.1} parent=132 // loop_header
                  %s1007 = sphi 0, %s1011
                  %p1008 = scmp.ge.s32.totalorder %s1007, 1
                  %s1012 = sphi %s860, %s860
                  %s1013 = sphi %s855, %s855
                $region136: #{tpu_custom_call.1} parent=132 // loop_header_branch
                  %1010 = sbr.rel (%p1008) target = $region140
                $region137: #{tpu_custom_call.1} parent=132 // loop_body
                  _
                $region138: #{tpu_custom_call.1} parent=132 // loop_footer
                  %s1011 = sadd.s32 1, %s1007
                $region139: #{tpu_custom_call.1} parent=132 // loop_footer_branch
                  %1006 = sbr.rel target = $region135
                $region140: #{tpu_custom_call.1} parent=132 // loop_exit
                  _
                loop: start=0, step=1, limit=1
                $region141: #{tpu_custom_call.1} parent=132 // loop_pre_header
                  _
                $region142: #{tpu_custom_call.1} parent=132 // loop_header
                  %s1016 = sphi 0, %s1020
                  %p1017 = scmp.ge.s32.totalorder %s1016, 1
                  %s1021 = sphi %s860, %s860
                  %s1022 = sphi %s855, %s855
                $region143: #{tpu_custom_call.1} parent=132 // loop_header_branch
                  %1019 = sbr.rel (%p1017) target = $region147
                $region144: #{tpu_custom_call.1} parent=132 // loop_body
                  %v1023 = vld [vmem:[%s1021] sm:$0xf]
                  %1024 = vst [vmem:[%s1022] sm:$0xf] %v1023
                  %v1025 = vld [vmem:[%s1021 + $0x4] sm:$0xf]
                  %1026 = vst [vmem:[%s1022 + $0x4] sm:$0xf] %v1025
                  %v1027 = vld [vmem:[%s1021 + $0x8] sm:$0xf]
                  %1028 = vst [vmem:[%s1022 + $0x8] sm:$0xf] %v1027
                  %v1029 = vld [vmem:[%s1021 + $0xc] sm:$0xf]
                  %1030 = vst [vmem:[%s1022 + $0xc] sm:$0xf] %v1029
                  %v1031 = vld [vmem:[%s1021 + $0x10] sm:$0xf]
                  %1032 = vst [vmem:[%s1022 + $0x10] sm:$0xf] %v1031
                  %v1033 = vld [vmem:[%s1021 + $0x14] sm:$0xf]
                  %1034 = vst [vmem:[%s1022 + $0x14] sm:$0xf] %v1033
                  %v1035 = vld [vmem:[%s1021 + $0x18] sm:$0xf]
                  %1036 = vst [vmem:[%s1022 + $0x18] sm:$0xf] %v1035
                  %v1037 = vld [vmem:[%s1021 + $0x1c] sm:$0xf]
                  %1038 = vst [vmem:[%s1022 + $0x1c] sm:$0xf] %v1037
                  %v1039 = vld [vmem:[%s1021 + $0x20] sm:$0xf]
                  %1040 = vst [vmem:[%s1022 + $0x20] sm:$0xf] %v1039
                  %v1041 = vld [vmem:[%s1021 + $0x24] sm:$0xf]
                  %1042 = vst [vmem:[%s1022 + $0x24] sm:$0xf] %v1041
                  %v1043 = vld [vmem:[%s1021 + $0x28] sm:$0xf]
                  %1044 = vst [vmem:[%s1022 + $0x28] sm:$0xf] %v1043
                  %v1045 = vld [vmem:[%s1021 + $0x2c] sm:$0xf]
                  %1046 = vst [vmem:[%s1022 + $0x2c] sm:$0xf] %v1045
                  %v1047 = vld [vmem:[%s1021 + $0x30] sm:$0xf]
                  %1048 = vst [vmem:[%s1022 + $0x30] sm:$0xf] %v1047
                  %v1049 = vld [vmem:[%s1021 + $0x34] sm:$0xf]
                  %1050 = vst [vmem:[%s1022 + $0x34] sm:$0xf] %v1049
                  %v1051 = vld [vmem:[%s1021 + $0x38] sm:$0xf]
                  %1052 = vst [vmem:[%s1022 + $0x38] sm:$0xf] %v1051
                  %v1053 = vld [vmem:[%s1021 + $0x3c] sm:$0xf]
                  %1054 = vst [vmem:[%s1022 + $0x3c] sm:$0xf] %v1053
                  %v1055 = vld [vmem:[%s1021 + $0x80] sm:$0xf]
                  %1056 = vst [vmem:[%s1022 + $0x40] sm:$0xf] %v1055
                  %v1057 = vld [vmem:[%s1021 + $0x84] sm:$0xf]
                  %1058 = vst [vmem:[%s1022 + $0x44] sm:$0xf] %v1057
                  %v1059 = vld [vmem:[%s1021 + $0x88] sm:$0xf]
                  %1060 = vst [vmem:[%s1022 + $0x48] sm:$0xf] %v1059
                  %v1061 = vld [vmem:[%s1021 + $0x8c] sm:$0xf]
                  %1062 = vst [vmem:[%s1022 + $0x4c] sm:$0xf] %v1061
                  %v1063 = vld [vmem:[%s1021 + $0x90] sm:$0xf]
                  %1064 = vst [vmem:[%s1022 + $0x50] sm:$0xf] %v1063
                  %v1065 = vld [vmem:[%s1021 + $0x94] sm:$0xf]
                  %1066 = vst [vmem:[%s1022 + $0x54] sm:$0xf] %v1065
                  %v1067 = vld [vmem:[%s1021 + $0x98] sm:$0xf]
                  %1068 = vst [vmem:[%s1022 + $0x58] sm:$0xf] %v1067
                  %v1069 = vld [vmem:[%s1021 + $0x9c] sm:$0xf]
                  %1070 = vst [vmem:[%s1022 + $0x5c] sm:$0xf] %v1069
                  %v1071 = vld [vmem:[%s1021 + $0xa0] sm:$0xf]
                  %1072 = vst [vmem:[%s1022 + $0x60] sm:$0xf] %v1071
                  %v1073 = vld [vmem:[%s1021 + $0xa4] sm:$0xf]
                  %1074 = vst [vmem:[%s1022 + $0x64] sm:$0xf] %v1073
                  %v1075 = vld [vmem:[%s1021 + $0xa8] sm:$0xf]
                  %1076 = vst [vmem:[%s1022 + $0x68] sm:$0xf] %v1075
                  %v1077 = vld [vmem:[%s1021 + $0xac] sm:$0xf]
                  %1078 = vst [vmem:[%s1022 + $0x6c] sm:$0xf] %v1077
                  %v1079 = vld [vmem:[%s1021 + $0xb0] sm:$0xf]
                  %1080 = vst [vmem:[%s1022 + $0x70] sm:$0xf] %v1079
                  %v1081 = vld [vmem:[%s1021 + $0xb4] sm:$0xf]
                  %1082 = vst [vmem:[%s1022 + $0x74] sm:$0xf] %v1081
                  %v1083 = vld [vmem:[%s1021 + $0xb8] sm:$0xf]
                  %1084 = vst [vmem:[%s1022 + $0x78] sm:$0xf] %v1083
                  %v1085 = vld [vmem:[%s1021 + $0xbc] sm:$0xf]
                  %1086 = vst [vmem:[%s1022 + $0x7c] sm:$0xf] %v1085
                  %v1087 = vld [vmem:[%s1021 + $0x100] sm:$0xf]
                  %1088 = vst [vmem:[%s1022 + $0x80] sm:$0xf] %v1087
                  %v1089 = vld [vmem:[%s1021 + $0x104] sm:$0xf]
                  %1090 = vst [vmem:[%s1022 + $0x84] sm:$0xf] %v1089
                  %v1091 = vld [vmem:[%s1021 + $0x108] sm:$0xf]
                  %1092 = vst [vmem:[%s1022 + $0x88] sm:$0xf] %v1091
                  %v1093 = vld [vmem:[%s1021 + $0x10c] sm:$0xf]
                  %1094 = vst [vmem:[%s1022 + $0x8c] sm:$0xf] %v1093
                  %v1095 = vld [vmem:[%s1021 + $0x110] sm:$0xf]
                  %1096 = vst [vmem:[%s1022 + $0x90] sm:$0xf] %v1095
                  %v1097 = vld [vmem:[%s1021 + $0x114] sm:$0xf]
                  %1098 = vst [vmem:[%s1022 + $0x94] sm:$0xf] %v1097
                  %v1099 = vld [vmem:[%s1021 + $0x118] sm:$0xf]
                  %1100 = vst [vmem:[%s1022 + $0x98] sm:$0xf] %v1099
                  %v1101 = vld [vmem:[%s1021 + $0x11c] sm:$0xf]
                  %1102 = vst [vmem:[%s1022 + $0x9c] sm:$0xf] %v1101
                  %v1103 = vld [vmem:[%s1021 + $0x120] sm:$0xf]
                  %1104 = vst [vmem:[%s1022 + $0xa0] sm:$0xf] %v1103
                  %v1105 = vld [vmem:[%s1021 + $0x124] sm:$0xf]
                  %1106 = vst [vmem:[%s1022 + $0xa4] sm:$0xf] %v1105
                  %v1107 = vld [vmem:[%s1021 + $0x128] sm:$0xf]
                  %1108 = vst [vmem:[%s1022 + $0xa8] sm:$0xf] %v1107
                  %v1109 = vld [vmem:[%s1021 + $0x12c] sm:$0xf]
                  %1110 = vst [vmem:[%s1022 + $0xac] sm:$0xf] %v1109
                  %v1111 = vld [vmem:[%s1021 + $0x130] sm:$0xf]
                  %1112 = vst [vmem:[%s1022 + $0xb0] sm:$0xf] %v1111
                  %v1113 = vld [vmem:[%s1021 + $0x134] sm:$0xf]
                  %1114 = vst [vmem:[%s1022 + $0xb4] sm:$0xf] %v1113
                  %v1115 = vld [vmem:[%s1021 + $0x138] sm:$0xf]
                  %1116 = vst [vmem:[%s1022 + $0xb8] sm:$0xf] %v1115
                  %v1117 = vld [vmem:[%s1021 + $0x13c] sm:$0xf]
                  %1118 = vst [vmem:[%s1022 + $0xbc] sm:$0xf] %v1117
                  %v1119 = vld [vmem:[%s1021 + $0x180] sm:$0xf]
                  %1120 = vst [vmem:[%s1022 + $0xc0] sm:$0xf] %v1119
                  %v1121 = vld [vmem:[%s1021 + $0x184] sm:$0xf]
                  %1122 = vst [vmem:[%s1022 + $0xc4] sm:$0xf] %v1121
                  %v1123 = vld [vmem:[%s1021 + $0x188] sm:$0xf]
                  %1124 = vst [vmem:[%s1022 + $0xc8] sm:$0xf] %v1123
                  %v1125 = vld [vmem:[%s1021 + $0x18c] sm:$0xf]
                  %1126 = vst [vmem:[%s1022 + $0xcc] sm:$0xf] %v1125
                  %v1127 = vld [vmem:[%s1021 + $0x190] sm:$0xf]
                  %1128 = vst [vmem:[%s1022 + $0xd0] sm:$0xf] %v1127
                  %v1129 = vld [vmem:[%s1021 + $0x194] sm:$0xf]
                  %1130 = vst [vmem:[%s1022 + $0xd4] sm:$0xf] %v1129
                  %v1131 = vld [vmem:[%s1021 + $0x198] sm:$0xf]
                  %1132 = vst [vmem:[%s1022 + $0xd8] sm:$0xf] %v1131
                  %v1133 = vld [vmem:[%s1021 + $0x19c] sm:$0xf]
                  %1134 = vst [vmem:[%s1022 + $0xdc] sm:$0xf] %v1133
                  %v1135 = vld [vmem:[%s1021 + $0x1a0] sm:$0xf]
                  %1136 = vst [vmem:[%s1022 + $0xe0] sm:$0xf] %v1135
                  %v1137 = vld [vmem:[%s1021 + $0x1a4] sm:$0xf]
                  %1138 = vst [vmem:[%s1022 + $0xe4] sm:$0xf] %v1137
                  %v1139 = vld [vmem:[%s1021 + $0x1a8] sm:$0xf]
                  %1140 = vst [vmem:[%s1022 + $0xe8] sm:$0xf] %v1139
                  %v1141 = vld [vmem:[%s1021 + $0x1ac] sm:$0xf]
                  %1142 = vst [vmem:[%s1022 + $0xec] sm:$0xf] %v1141
                  %v1143 = vld [vmem:[%s1021 + $0x1b0] sm:$0xf]
                  %1144 = vst [vmem:[%s1022 + $0xf0] sm:$0xf] %v1143
                  %v1145 = vld [vmem:[%s1021 + $0x1b4] sm:$0xf]
                  %1146 = vst [vmem:[%s1022 + $0xf4] sm:$0xf] %v1145
                  %v1147 = vld [vmem:[%s1021 + $0x1b8] sm:$0xf]
                  %1148 = vst [vmem:[%s1022 + $0xf8] sm:$0xf] %v1147
                  %v1149 = vld [vmem:[%s1021 + $0x1bc] sm:$0xf]
                  %1150 = vst [vmem:[%s1022 + $0xfc] sm:$0xf] %v1149
                $region145: #{tpu_custom_call.1} parent=132 // loop_footer
                  %s1020 = sadd.s32 1, %s1016
                $region146: #{tpu_custom_call.1} parent=132 // loop_footer_branch
                  %1015 = sbr.rel target = $region142
                $region147: #{tpu_custom_call.1} parent=132 // loop_exit
                  _
              $region133: #{tpu_custom_call.1} parent=117 // pred_fallthru
                _
            $region118: #{tpu_custom_call.1} parent=113 // pred_fallthru
              _
            // Predicated region
            $region119: #{tpu_custom_call.1} parent=113 // pred_check
              _
            $region120: #{tpu_custom_call.1} parent=113 // pred_check_branch
              %866 = sbr.rel (0) target = $region122
            $region121: #{tpu_custom_call.1} parent=113 // pred_region
              loop: start=0, step=1, limit=1
              $region123: #{tpu_custom_call.1} parent=121 // loop_pre_header
                _
              $region124: #{tpu_custom_call.1} parent=121 // loop_header
                %s869 = sphi 0, %s873
                %p870 = scmp.ge.s32.totalorder %s869, 1
                %s874 = sphi %s860, %s860
                %s875 = sphi %s855, %s855
              $region125: #{tpu_custom_call.1} parent=121 // loop_header_branch
                %872 = sbr.rel (%p870) target = $region129
              $region126: #{tpu_custom_call.1} parent=121 // loop_body
                %v876 = vld [vmem:[%s874] sm:$0xf]
                %877 = vst [vmem:[%s875] sm:$0xf] %v876
                %v878 = vld [vmem:[%s874 + $0x4] sm:$0xf]
                %879 = vst [vmem:[%s875 + $0x4] sm:$0xf] %v878
                %v880 = vld [vmem:[%s874 + $0x8] sm:$0xf]
                %881 = vst [vmem:[%s875 + $0x8] sm:$0xf] %v880
                %v882 = vld [vmem:[%s874 + $0xc] sm:$0xf]
                %883 = vst [vmem:[%s875 + $0xc] sm:$0xf] %v882
                %v884 = vld [vmem:[%s874 + $0x10] sm:$0xf]
                %885 = vst [vmem:[%s875 + $0x10] sm:$0xf] %v884
                %v886 = vld [vmem:[%s874 + $0x14] sm:$0xf]
                %887 = vst [vmem:[%s875 + $0x14] sm:$0xf] %v886
                %v888 = vld [vmem:[%s874 + $0x18] sm:$0xf]
                %889 = vst [vmem:[%s875 + $0x18] sm:$0xf] %v888
                %v890 = vld [vmem:[%s874 + $0x1c] sm:$0xf]
                %891 = vst [vmem:[%s875 + $0x1c] sm:$0xf] %v890
                %v892 = vld [vmem:[%s874 + $0x20] sm:$0xf]
                %893 = vst [vmem:[%s875 + $0x20] sm:$0xf] %v892
                %v894 = vld [vmem:[%s874 + $0x24] sm:$0xf]
                %895 = vst [vmem:[%s875 + $0x24] sm:$0xf] %v894
                %v896 = vld [vmem:[%s874 + $0x28] sm:$0xf]
                %897 = vst [vmem:[%s875 + $0x28] sm:$0xf] %v896
                %v898 = vld [vmem:[%s874 + $0x2c] sm:$0xf]
                %899 = vst [vmem:[%s875 + $0x2c] sm:$0xf] %v898
                %v900 = vld [vmem:[%s874 + $0x30] sm:$0xf]
                %901 = vst [vmem:[%s875 + $0x30] sm:$0xf] %v900
                %v902 = vld [vmem:[%s874 + $0x34] sm:$0xf]
                %903 = vst [vmem:[%s875 + $0x34] sm:$0xf] %v902
                %v904 = vld [vmem:[%s874 + $0x38] sm:$0xf]
                %905 = vst [vmem:[%s875 + $0x38] sm:$0xf] %v904
                %v906 = vld [vmem:[%s874 + $0x3c] sm:$0xf]
                %907 = vst [vmem:[%s875 + $0x3c] sm:$0xf] %v906
                %v908 = vld [vmem:[%s874 + $0x80] sm:$0xf]
                %909 = vst [vmem:[%s875 + $0x40] sm:$0xf] %v908
                %v910 = vld [vmem:[%s874 + $0x84] sm:$0xf]
                %911 = vst [vmem:[%s875 + $0x44] sm:$0xf] %v910
                %v912 = vld [vmem:[%s874 + $0x88] sm:$0xf]
                %913 = vst [vmem:[%s875 + $0x48] sm:$0xf] %v912
                %v914 = vld [vmem:[%s874 + $0x8c] sm:$0xf]
                %915 = vst [vmem:[%s875 + $0x4c] sm:$0xf] %v914
                %v916 = vld [vmem:[%s874 + $0x90] sm:$0xf]
                %917 = vst [vmem:[%s875 + $0x50] sm:$0xf] %v916
                %v918 = vld [vmem:[%s874 + $0x94] sm:$0xf]
                %919 = vst [vmem:[%s875 + $0x54] sm:$0xf] %v918
                %v920 = vld [vmem:[%s874 + $0x98] sm:$0xf]
                %921 = vst [vmem:[%s875 + $0x58] sm:$0xf] %v920
                %v922 = vld [vmem:[%s874 + $0x9c] sm:$0xf]
                %923 = vst [vmem:[%s875 + $0x5c] sm:$0xf] %v922
                %v924 = vld [vmem:[%s874 + $0xa0] sm:$0xf]
                %925 = vst [vmem:[%s875 + $0x60] sm:$0xf] %v924
                %v926 = vld [vmem:[%s874 + $0xa4] sm:$0xf]
                %927 = vst [vmem:[%s875 + $0x64] sm:$0xf] %v926
                %v928 = vld [vmem:[%s874 + $0xa8] sm:$0xf]
                %929 = vst [vmem:[%s875 + $0x68] sm:$0xf] %v928
                %v930 = vld [vmem:[%s874 + $0xac] sm:$0xf]
                %931 = vst [vmem:[%s875 + $0x6c] sm:$0xf] %v930
                %v932 = vld [vmem:[%s874 + $0xb0] sm:$0xf]
                %933 = vst [vmem:[%s875 + $0x70] sm:$0xf] %v932
                %v934 = vld [vmem:[%s874 + $0xb4] sm:$0xf]
                %935 = vst [vmem:[%s875 + $0x74] sm:$0xf] %v934
                %v936 = vld [vmem:[%s874 + $0xb8] sm:$0xf]
                %937 = vst [vmem:[%s875 + $0x78] sm:$0xf] %v936
                %v938 = vld [vmem:[%s874 + $0xbc] sm:$0xf]
                %939 = vst [vmem:[%s875 + $0x7c] sm:$0xf] %v938
                %v940 = vld [vmem:[%s874 + $0x100] sm:$0xf]
                %941 = vst [vmem:[%s875 + $0x80] sm:$0xf] %v940
                %v942 = vld [vmem:[%s874 + $0x104] sm:$0xf]
                %943 = vst [vmem:[%s875 + $0x84] sm:$0xf] %v942
                %v944 = vld [vmem:[%s874 + $0x108] sm:$0xf]
                %945 = vst [vmem:[%s875 + $0x88] sm:$0xf] %v944
                %v946 = vld [vmem:[%s874 + $0x10c] sm:$0xf]
                %947 = vst [vmem:[%s875 + $0x8c] sm:$0xf] %v946
                %v948 = vld [vmem:[%s874 + $0x110] sm:$0xf]
                %949 = vst [vmem:[%s875 + $0x90] sm:$0xf] %v948
                %v950 = vld [vmem:[%s874 + $0x114] sm:$0xf]
                %951 = vst [vmem:[%s875 + $0x94] sm:$0xf] %v950
                %v952 = vld [vmem:[%s874 + $0x118] sm:$0xf]
                %953 = vst [vmem:[%s875 + $0x98] sm:$0xf] %v952
                %v954 = vld [vmem:[%s874 + $0x11c] sm:$0xf]
                %955 = vst [vmem:[%s875 + $0x9c] sm:$0xf] %v954
                %v956 = vld [vmem:[%s874 + $0x120] sm:$0xf]
                %957 = vst [vmem:[%s875 + $0xa0] sm:$0xf] %v956
                %v958 = vld [vmem:[%s874 + $0x124] sm:$0xf]
                %959 = vst [vmem:[%s875 + $0xa4] sm:$0xf] %v958
                %v960 = vld [vmem:[%s874 + $0x128] sm:$0xf]
                %961 = vst [vmem:[%s875 + $0xa8] sm:$0xf] %v960
                %v962 = vld [vmem:[%s874 + $0x12c] sm:$0xf]
                %963 = vst [vmem:[%s875 + $0xac] sm:$0xf] %v962
                %v964 = vld [vmem:[%s874 + $0x130] sm:$0xf]
                %965 = vst [vmem:[%s875 + $0xb0] sm:$0xf] %v964
                %v966 = vld [vmem:[%s874 + $0x134] sm:$0xf]
                %967 = vst [vmem:[%s875 + $0xb4] sm:$0xf] %v966
                %v968 = vld [vmem:[%s874 + $0x138] sm:$0xf]
                %969 = vst [vmem:[%s875 + $0xb8] sm:$0xf] %v968
                %v970 = vld [vmem:[%s874 + $0x13c] sm:$0xf]
                %971 = vst [vmem:[%s875 + $0xbc] sm:$0xf] %v970
                %v972 = vld [vmem:[%s874 + $0x180] sm:$0xf]
                %973 = vst [vmem:[%s875 + $0xc0] sm:$0xf] %v972
                %v974 = vld [vmem:[%s874 + $0x184] sm:$0xf]
                %975 = vst [vmem:[%s875 + $0xc4] sm:$0xf] %v974
                %v976 = vld [vmem:[%s874 + $0x188] sm:$0xf]
                %977 = vst [vmem:[%s875 + $0xc8] sm:$0xf] %v976
                %v978 = vld [vmem:[%s874 + $0x18c] sm:$0xf]
                %979 = vst [vmem:[%s875 + $0xcc] sm:$0xf] %v978
                %v980 = vld [vmem:[%s874 + $0x190] sm:$0xf]
                %981 = vst [vmem:[%s875 + $0xd0] sm:$0xf] %v980
                %v982 = vld [vmem:[%s874 + $0x194] sm:$0xf]
                %983 = vst [vmem:[%s875 + $0xd4] sm:$0xf] %v982
                %v984 = vld [vmem:[%s874 + $0x198] sm:$0xf]
                %985 = vst [vmem:[%s875 + $0xd8] sm:$0xf] %v984
                %v986 = vld [vmem:[%s874 + $0x19c] sm:$0xf]
                %987 = vst [vmem:[%s875 + $0xdc] sm:$0xf] %v986
                %v988 = vld [vmem:[%s874 + $0x1a0] sm:$0xf]
                %989 = vst [vmem:[%s875 + $0xe0] sm:$0xf] %v988
                %v990 = vld [vmem:[%s874 + $0x1a4] sm:$0xf]
                %991 = vst [vmem:[%s875 + $0xe4] sm:$0xf] %v990
                %v992 = vld [vmem:[%s874 + $0x1a8] sm:$0xf]
                %993 = vst [vmem:[%s875 + $0xe8] sm:$0xf] %v992
                %v994 = vld [vmem:[%s874 + $0x1ac] sm:$0xf]
                %995 = vst [vmem:[%s875 + $0xec] sm:$0xf] %v994
                %v996 = vld [vmem:[%s874 + $0x1b0] sm:$0xf]
                %997 = vst [vmem:[%s875 + $0xf0] sm:$0xf] %v996
                %v998 = vld [vmem:[%s874 + $0x1b4] sm:$0xf]
                %999 = vst [vmem:[%s875 + $0xf4] sm:$0xf] %v998
                %v1000 = vld [vmem:[%s874 + $0x1b8] sm:$0xf]
                %1001 = vst [vmem:[%s875 + $0xf8] sm:$0xf] %v1000
                %v1002 = vld [vmem:[%s874 + $0x1bc] sm:$0xf]
                %1003 = vst [vmem:[%s875 + $0xfc] sm:$0xf] %v1002
              $region127: #{tpu_custom_call.1} parent=121 // loop_footer
                %s873 = sadd.s32 1, %s869
              $region128: #{tpu_custom_call.1} parent=121 // loop_footer_branch
                %868 = sbr.rel target = $region124
              $region129: #{tpu_custom_call.1} parent=121 // loop_exit
                _
            $region122: #{tpu_custom_call.1} parent=113 // pred_fallthru
              _
          $region114: #{tpu_custom_call.1} parent=109 // pred_fallthru
            _
          %1151 = vnop
        $region110: #{tpu_custom_call.1} parent=23 // pred_fallthru
          _
        // Predicated region
        $region148: #{tpu_custom_call.1} parent=23 // pred_check
          %p1152 = pneg %p142
        $region149: #{tpu_custom_call.1} parent=23 // pred_check_branch
          %1154 = sbr.rel (%p1152) target = $region151
        $region150: #{tpu_custom_call.1} parent=23 // pred_region
          %s1155 = sand.u32 %s132, 1
          %s1156 = sand.u32 %s132, 1
          %s1157 = smul.addr %s1156, 32
          %s1158 = scalar_lea.vmem [#allocation8], %s1157
          %s1159 = smul.u32 4, %s23
          %s1160 = smul.addr %s1159, 2
          %s1161 = sadd.s32 %s24, %s1160
          %s1162 = smul.addr %s22, 16
          %s1163 = sadd.s32 %s1161, %s1162
          %s1164 = smul.addr %s1163, 8
          %s1165 = scalar_lea.vmem %s3, %s1164
          // Predicated region
          $region152: #{tpu_custom_call.1} parent=150 // pred_check
            _
          $region153: #{tpu_custom_call.1} parent=150 // pred_check_branch
            %1167 = sbr.rel (0) target = $region155
          $region154: #{tpu_custom_call.1} parent=150 // pred_region
            // Predicated region
            $region156: #{tpu_custom_call.1} parent=154 // pred_check
              _
            $region157: #{tpu_custom_call.1} parent=154 // pred_check_branch
              %1169 = sbr.rel (0) target = $region159
            $region158: #{tpu_custom_call.1} parent=154 // pred_region
              // Predicated region
              $region171: #{tpu_custom_call.1} parent=158 // pred_check
                _
              $region172: #{tpu_custom_call.1} parent=158 // pred_check_branch
                %1190 = sbr.rel (0) target = $region174
              $region173: #{tpu_custom_call.1} parent=158 // pred_region
                loop: start=0, step=1, limit=1
                $region175: #{tpu_custom_call.1} parent=173 // loop_pre_header
                  _
                $region176: #{tpu_custom_call.1} parent=173 // loop_header
                  %s1192 = sphi 0, %s1196
                  %p1193 = scmp.ge.s32.totalorder %s1192, 1
                  %s1197 = sphi %s1165, %s1165
                  %s1198 = sphi %s1158, %s1158
                $region177: #{tpu_custom_call.1} parent=173 // loop_header_branch
                  %1195 = sbr.rel (%p1193) target = $region181
                $region178: #{tpu_custom_call.1} parent=173 // loop_body
                  %v1199 = vld [vmem:[%s1197] sm:$0xff]
                  %1200 = vst [vmem:[%s1198] sm:$0xff] %v1199
                  %v1201 = vld [vmem:[%s1197 + $0x10] sm:$0xff]
                  %1202 = vst [vmem:[%s1198 + $0x8] sm:$0xff] %v1201
                  %v1203 = vld [vmem:[%s1197 + $0x20] sm:$0xff]
                  %1204 = vst [vmem:[%s1198 + $0x10] sm:$0xff] %v1203
                  %v1205 = vld [vmem:[%s1197 + $0x30] sm:$0xff]
                  %1206 = vst [vmem:[%s1198 + $0x18] sm:$0xff] %v1205
                $region179: #{tpu_custom_call.1} parent=173 // loop_footer
                  %s1196 = sadd.s32 1, %s1192
                $region180: #{tpu_custom_call.1} parent=173 // loop_footer_branch
                  %1191 = sbr.rel target = $region176
                $region181: #{tpu_custom_call.1} parent=173 // loop_exit
                  _
              $region174: #{tpu_custom_call.1} parent=158 // pred_fallthru
                _
              // Predicated region
              $region182: #{tpu_custom_call.1} parent=158 // pred_check
                _
              $region183: #{tpu_custom_call.1} parent=158 // pred_check_branch
                %1208 = sbr.rel target = $region185
              $region184: #{tpu_custom_call.1} parent=158 // pred_region
                _
              $region185: #{tpu_custom_call.1} parent=158 // pred_fallthru
                _
            $region159: #{tpu_custom_call.1} parent=154 // pred_fallthru
              _
            // Predicated region
            $region160: #{tpu_custom_call.1} parent=154 // pred_check
              _
            $region161: #{tpu_custom_call.1} parent=154 // pred_check_branch
              %1171 = sbr.rel target = $region163
            $region162: #{tpu_custom_call.1} parent=154 // pred_region
              loop: start=0, step=1, limit=1
              $region164: #{tpu_custom_call.1} parent=162 // loop_pre_header
                _
              $region165: #{tpu_custom_call.1} parent=162 // loop_header
                %s1174 = sphi 0, %s1178
                %p1175 = scmp.ge.s32.totalorder %s1174, 1
                %s1179 = sphi %s1165, %s1165
                %s1180 = sphi %s1158, %s1158
              $region166: #{tpu_custom_call.1} parent=162 // loop_header_branch
                %1177 = sbr.rel (%p1175) target = $region170
              $region167: #{tpu_custom_call.1} parent=162 // loop_body
                %v1181 = vld [vmem:[%s1179] sm:$0xff]
                %1182 = vst [vmem:[%s1180] sm:$0xff] %v1181
                %v1183 = vld [vmem:[%s1179 + $0x10] sm:$0xff]
                %1184 = vst [vmem:[%s1180 + $0x8] sm:$0xff] %v1183
                %v1185 = vld [vmem:[%s1179 + $0x20] sm:$0xff]
                %1186 = vst [vmem:[%s1180 + $0x10] sm:$0xff] %v1185
                %v1187 = vld [vmem:[%s1179 + $0x30] sm:$0xff]
                %1188 = vst [vmem:[%s1180 + $0x18] sm:$0xff] %v1187
              $region168: #{tpu_custom_call.1} parent=162 // loop_footer
                %s1178 = sadd.s32 1, %s1174
              $region169: #{tpu_custom_call.1} parent=162 // loop_footer_branch
                %1173 = sbr.rel target = $region165
              $region170: #{tpu_custom_call.1} parent=162 // loop_exit
                _
            $region163: #{tpu_custom_call.1} parent=154 // pred_fallthru
              _
          $region155: #{tpu_custom_call.1} parent=150 // pred_fallthru
            _
          %1209 = vnop
        $region151: #{tpu_custom_call.1} parent=23 // pred_fallthru
          _
      $region24: #{tpu_custom_call.1} parent=5 // pred_fallthru
        _
      %p1210 = scmp.le.s32.totalorder 1, %s15
      %p1211 = scmp.lt.s32.totalorder %s15, 9
      %p1212 = pnand %p1210, %p1211
      %p1213 = pneg %p1212
      // Predicated region
      $region186: #{tpu_custom_call.1} parent=5 // pred_check
        _
      $region187: #{tpu_custom_call.1} parent=5 // pred_check_branch
        %1215 = sbr.rel (%p1212) target = $region189
      $region188: #{tpu_custom_call.1} parent=5 // pred_region
        %s1216 = ssub.s32 %s15, 1
        %s1217 = sand.u32 %s49, 1
        %s1218 = sand.u32 %s49, 1
        %s1219 = smul.addr %s1218, 256
        %s1220 = scalar_lea.vmem [#allocation5], %s1219
        // Predicated region
        $region190: #{tpu_custom_call.1} parent=188 // pred_check
          %p1221 = pneg %p62
        $region191: #{tpu_custom_call.1} parent=188 // pred_check_branch
          %1223 = sbr.rel (%p1221) target = $region193
        $region192: #{tpu_custom_call.1} parent=188 // pred_region
          _
        $region193: #{tpu_custom_call.1} parent=188 // pred_fallthru
          _
        %s1224 = sand.u32 %s77, 1
        %s1225 = sand.u32 %s77, 1
        %s1226 = smul.addr %s1225, 256
        %s1227 = scalar_lea.vmem [#allocation6], %s1226
        // Predicated region
        $region194: #{tpu_custom_call.1} parent=188 // pred_check
          %p1228 = pneg %p90
        $region195: #{tpu_custom_call.1} parent=188 // pred_check_branch
          %1230 = sbr.rel (%p1228) target = $region197
        $region196: #{tpu_custom_call.1} parent=188 // pred_region
          _
        $region197: #{tpu_custom_call.1} parent=188 // pred_fallthru
          _
        %s1231 = sand.u32 %s105, 1
        %s1232 = sand.u32 %s105, 1
        %s1233 = smul.addr %s1232, 256
        %s1234 = scalar_lea.vmem [#allocation7], %s1233
        // Predicated region
        $region198: #{tpu_custom_call.1} parent=188 // pred_check
          %p1235 = pneg %p118
        $region199: #{tpu_custom_call.1} parent=188 // pred_check_branch
          %1237 = sbr.rel (%p1235) target = $region201
        $region200: #{tpu_custom_call.1} parent=188 // pred_region
          _
        $region201: #{tpu_custom_call.1} parent=188 // pred_fallthru
          _
        %s1238 = sand.u32 %s135, 1
        %s1239 = sand.u32 %s135, 1
        %s1240 = smul.addr %s1239, 32
        %s1241 = scalar_lea.vmem [#allocation8], %s1240
        // Predicated region
        $region202: #{tpu_custom_call.1} parent=188 // pred_check
          %p1242 = pneg %p148
        $region203: #{tpu_custom_call.1} parent=188 // pred_check_branch
          %1244 = sbr.rel (%p1242) target = $region205
        $region204: #{tpu_custom_call.1} parent=188 // pred_region
          _
        $region205: #{tpu_custom_call.1} parent=188 // pred_fallthru
          _
        %s1245 = sand.u32 %s49, 1
        %s1246 = sand.u32 %s49, 1
        %s1247 = smul.addr %s1246, 256
        %s1248 = scalar_lea.vmem [#allocation5], %s1247
        %p1249 = pneg %p62
        %p1250 = pneg %p59
        %s1251 = sand.u32 %s77, 1
        %s1252 = sand.u32 %s77, 1
        %s1253 = smul.addr %s1252, 256
        %s1254 = scalar_lea.vmem [#allocation6], %s1253
        %p1255 = pneg %p90
        %p1256 = pneg %p87
        %s1257 = sand.u32 %s105, 1
        %s1258 = sand.u32 %s105, 1
        %s1259 = smul.addr %s1258, 256
        %s1260 = scalar_lea.vmem [#allocation7], %s1259
        %p1261 = pneg %p118
        %p1262 = pneg %p115
        %s1263 = sand.u32 %s135, 1
        %s1264 = sand.u32 %s135, 1
        %s1265 = smul.addr %s1264, 32
        %s1266 = scalar_lea.vmem [#allocation8], %s1265
        %p1267 = pneg %p148
        %p1268 = pneg %p145
        %p1269 = pneg %p169
        %p1270 = pneg %p166
        %p1271 = pneg %p190
        %p1272 = pneg %p187
        %p1273 = pneg %p218
        %p1274 = pneg %p215
        %s1275 = sand.u32 %s205, 1
        %s1276 = scalar_lea.sflag [#allocation10], %s1275
        %s1277 = sand.u32 %s205, 1
        %s1278 = smul.addr %s1277, 256
        %s1279 = scalar_lea.vmem [#allocation9], %s1278
        %s1280 = smul.u32 16, %s26
        %s1281 = smul.u32 16, %s27
        %s1282 = smul.u32 16, %s27
        %s1283 = smul.u32 4, %s26
        %s1284 = smul.u32 16, %s26
        %p1288 = scmp.eq.s32.totalorder %s27, 0
        // Predicated region
        $region206: #{tpu_custom_call.1} parent=188 // pred_check
          %p1289 = pneg %p1288
        $region207: #{tpu_custom_call.1} parent=188 // pred_check_branch
          %1291 = sbr.rel (%p1289) target = $region209
        $region208: #{tpu_custom_call.1} parent=188 // pred_region
          %vm1292 = vcmask 7168
          %1293 = vst.msk [vmem:[#allocation2] sm:$0xff] %vm1292, -inf
          %1294 = vst.msk [vmem:[#allocation2 + $0x8] sm:$0xff] %vm1292, -inf
          %1295 = vst.msk [vmem:[#allocation2 + $0x10] sm:$0xff] %vm1292, -inf
          %1296 = vst.msk [vmem:[#allocation2 + $0x18] sm:$0xff] %vm1292, -inf
          %1297 = vst.msk [vmem:[#allocation2 + $0x20] sm:$0xff] %vm1292, -inf
          %1298 = vst.msk [vmem:[#allocation2 + $0x28] sm:$0xff] %vm1292, -inf
          %1299 = vst.msk [vmem:[#allocation2 + $0x30] sm:$0xff] %vm1292, -inf
          %1300 = vst.msk [vmem:[#allocation2 + $0x38] sm:$0xff] %vm1292, -inf
          %1301 = vst.msk [vmem:[#allocation2 + $0x40] sm:$0xff] %vm1292, -inf
          %1302 = vst.msk [vmem:[#allocation2 + $0x48] sm:$0xff] %vm1292, -inf
          %1303 = vst.msk [vmem:[#allocation2 + $0x50] sm:$0xff] %vm1292, -inf
          %1304 = vst.msk [vmem:[#allocation2 + $0x58] sm:$0xff] %vm1292, -inf
          %1305 = vst.msk [vmem:[#allocation2 + $0x60] sm:$0xff] %vm1292, -inf
          %1306 = vst.msk [vmem:[#allocation2 + $0x68] sm:$0xff] %vm1292, -inf
          %1307 = vst.msk [vmem:[#allocation2 + $0x70] sm:$0xff] %vm1292, -inf
          %1308 = vst.msk [vmem:[#allocation2 + $0x78] sm:$0xff] %vm1292, -inf
          %1309 = vst.msk [vmem:[#allocation2 + $0x80] sm:$0xff] %vm1292, -inf
          %1310 = vst.msk [vmem:[#allocation2 + $0x88] sm:$0xff] %vm1292, -inf
          %1311 = vst.msk [vmem:[#allocation2 + $0x90] sm:$0xff] %vm1292, -inf
          %1312 = vst.msk [vmem:[#allocation2 + $0x98] sm:$0xff] %vm1292, -inf
          %1313 = vst.msk [vmem:[#allocation2 + $0xa0] sm:$0xff] %vm1292, -inf
          %1314 = vst.msk [vmem:[#allocation2 + $0xa8] sm:$0xff] %vm1292, -inf
          %1315 = vst.msk [vmem:[#allocation2 + $0xb0] sm:$0xff] %vm1292, -inf
          %1316 = vst.msk [vmem:[#allocation2 + $0xb8] sm:$0xff] %vm1292, -inf
          %1317 = vst.msk [vmem:[#allocation2 + $0xc0] sm:$0xff] %vm1292, -inf
          %1318 = vst.msk [vmem:[#allocation2 + $0xc8] sm:$0xff] %vm1292, -inf
          %1319 = vst.msk [vmem:[#allocation2 + $0xd0] sm:$0xff] %vm1292, -inf
          %1320 = vst.msk [vmem:[#allocation2 + $0xd8] sm:$0xff] %vm1292, -inf
          %1321 = vst.msk [vmem:[#allocation2 + $0xe0] sm:$0xff] %vm1292, -inf
          %1322 = vst.msk [vmem:[#allocation2 + $0xe8] sm:$0xff] %vm1292, -inf
          %1323 = vst.msk [vmem:[#allocation2 + $0xf0] sm:$0xff] %vm1292, -inf
          %1324 = vst.msk [vmem:[#allocation2 + $0xf8] sm:$0xff] %vm1292, -inf
          %1325 = vst.msk [vmem:[#allocation2 + $0x100] sm:$0xff] %vm1292, -inf
          %1326 = vst.msk [vmem:[#allocation2 + $0x108] sm:$0xff] %vm1292, -inf
          %1327 = vst.msk [vmem:[#allocation2 + $0x110] sm:$0xff] %vm1292, -inf
          %1328 = vst.msk [vmem:[#allocation2 + $0x118] sm:$0xff] %vm1292, -inf
          %1329 = vst.msk [vmem:[#allocation2 + $0x120] sm:$0xff] %vm1292, -inf
          %1330 = vst.msk [vmem:[#allocation2 + $0x128] sm:$0xff] %vm1292, -inf
          %1331 = vst.msk [vmem:[#allocation2 + $0x130] sm:$0xff] %vm1292, -inf
          %1332 = vst.msk [vmem:[#allocation2 + $0x138] sm:$0xff] %vm1292, -inf
          %1333 = vst.msk [vmem:[#allocation2 + $0x140] sm:$0xff] %vm1292, -inf
          %1334 = vst.msk [vmem:[#allocation2 + $0x148] sm:$0xff] %vm1292, -inf
          %1335 = vst.msk [vmem:[#allocation2 + $0x150] sm:$0xff] %vm1292, -inf
          %1336 = vst.msk [vmem:[#allocation2 + $0x158] sm:$0xff] %vm1292, -inf
          %1337 = vst.msk [vmem:[#allocation2 + $0x160] sm:$0xff] %vm1292, -inf
          %1338 = vst.msk [vmem:[#allocation2 + $0x168] sm:$0xff] %vm1292, -inf
          %1339 = vst.msk [vmem:[#allocation2 + $0x170] sm:$0xff] %vm1292, -inf
          %1340 = vst.msk [vmem:[#allocation2 + $0x178] sm:$0xff] %vm1292, -inf
          %1341 = vst.msk [vmem:[#allocation2 + $0x180] sm:$0xff] %vm1292, -inf
          %1342 = vst.msk [vmem:[#allocation2 + $0x188] sm:$0xff] %vm1292, -inf
          %1343 = vst.msk [vmem:[#allocation2 + $0x190] sm:$0xff] %vm1292, -inf
          %1344 = vst.msk [vmem:[#allocation2 + $0x198] sm:$0xff] %vm1292, -inf
          %1345 = vst.msk [vmem:[#allocation2 + $0x1a0] sm:$0xff] %vm1292, -inf
          %1346 = vst.msk [vmem:[#allocation2 + $0x1a8] sm:$0xff] %vm1292, -inf
          %1347 = vst.msk [vmem:[#allocation2 + $0x1b0] sm:$0xff] %vm1292, -inf
          %1348 = vst.msk [vmem:[#allocation2 + $0x1b8] sm:$0xff] %vm1292, -inf
          %1349 = vst.msk [vmem:[#allocation2 + $0x1c0] sm:$0xff] %vm1292, -inf
          %1350 = vst.msk [vmem:[#allocation2 + $0x1c8] sm:$0xff] %vm1292, -inf
          %1351 = vst.msk [vmem:[#allocation2 + $0x1d0] sm:$0xff] %vm1292, -inf
          %1352 = vst.msk [vmem:[#allocation2 + $0x1d8] sm:$0xff] %vm1292, -inf
          %1353 = vst.msk [vmem:[#allocation2 + $0x1e0] sm:$0xff] %vm1292, -inf
          %1354 = vst.msk [vmem:[#allocation2 + $0x1e8] sm:$0xff] %vm1292, -inf
          %1355 = vst.msk [vmem:[#allocation2 + $0x1f0] sm:$0xff] %vm1292, -inf
          %1356 = vst.msk [vmem:[#allocation2 + $0x1f8] sm:$0xff] %vm1292, -inf
          %1357 = vst.msk [vmem:[#allocation3] sm:$0xff] %vm1292, 0.0
          %1358 = vst.msk [vmem:[#allocation3 + $0x8] sm:$0xff] %vm1292, 0.0
          %1359 = vst.msk [vmem:[#allocation3 + $0x10] sm:$0xff] %vm1292, 0.0
          %1360 = vst.msk [vmem:[#allocation3 + $0x18] sm:$0xff] %vm1292, 0.0
          %1361 = vst.msk [vmem:[#allocation3 + $0x20] sm:$0xff] %vm1292, 0.0
          %1362 = vst.msk [vmem:[#allocation3 + $0x28] sm:$0xff] %vm1292, 0.0
          %1363 = vst.msk [vmem:[#allocation3 + $0x30] sm:$0xff] %vm1292, 0.0
          %1364 = vst.msk [vmem:[#allocation3 + $0x38] sm:$0xff] %vm1292, 0.0
          %1365 = vst.msk [vmem:[#allocation3 + $0x40] sm:$0xff] %vm1292, 0.0
          %1366 = vst.msk [vmem:[#allocation3 + $0x48] sm:$0xff] %vm1292, 0.0
          %1367 = vst.msk [vmem:[#allocation3 + $0x50] sm:$0xff] %vm1292, 0.0
          %1368 = vst.msk [vmem:[#allocation3 + $0x58] sm:$0xff] %vm1292, 0.0
          %1369 = vst.msk [vmem:[#allocation3 + $0x60] sm:$0xff] %vm1292, 0.0
          %1370 = vst.msk [vmem:[#allocation3 + $0x68] sm:$0xff] %vm1292, 0.0
          %1371 = vst.msk [vmem:[#allocation3 + $0x70] sm:$0xff] %vm1292, 0.0
          %1372 = vst.msk [vmem:[#allocation3 + $0x78] sm:$0xff] %vm1292, 0.0
          %1373 = vst.msk [vmem:[#allocation3 + $0x80] sm:$0xff] %vm1292, 0.0
          %1374 = vst.msk [vmem:[#allocation3 + $0x88] sm:$0xff] %vm1292, 0.0
          %1375 = vst.msk [vmem:[#allocation3 + $0x90] sm:$0xff] %vm1292, 0.0
          %1376 = vst.msk [vmem:[#allocation3 + $0x98] sm:$0xff] %vm1292, 0.0
          %1377 = vst.msk [vmem:[#allocation3 + $0xa0] sm:$0xff] %vm1292, 0.0
          %1378 = vst.msk [vmem:[#allocation3 + $0xa8] sm:$0xff] %vm1292, 0.0
          %1379 = vst.msk [vmem:[#allocation3 + $0xb0] sm:$0xff] %vm1292, 0.0
          %1380 = vst.msk [vmem:[#allocation3 + $0xb8] sm:$0xff] %vm1292, 0.0
          %1381 = vst.msk [vmem:[#allocation3 + $0xc0] sm:$0xff] %vm1292, 0.0
          %1382 = vst.msk [vmem:[#allocation3 + $0xc8] sm:$0xff] %vm1292, 0.0
          %1383 = vst.msk [vmem:[#allocation3 + $0xd0] sm:$0xff] %vm1292, 0.0
          %1384 = vst.msk [vmem:[#allocation3 + $0xd8] sm:$0xff] %vm1292, 0.0
          %1385 = vst.msk [vmem:[#allocation3 + $0xe0] sm:$0xff] %vm1292, 0.0
          %1386 = vst.msk [vmem:[#allocation3 + $0xe8] sm:$0xff] %vm1292, 0.0
          %1387 = vst.msk [vmem:[#allocation3 + $0xf0] sm:$0xff] %vm1292, 0.0
          %1388 = vst.msk [vmem:[#allocation3 + $0xf8] sm:$0xff] %vm1292, 0.0
          %1389 = vst.msk [vmem:[#allocation3 + $0x100] sm:$0xff] %vm1292, 0.0
          %1390 = vst.msk [vmem:[#allocation3 + $0x108] sm:$0xff] %vm1292, 0.0
          %1391 = vst.msk [vmem:[#allocation3 + $0x110] sm:$0xff] %vm1292, 0.0
          %1392 = vst.msk [vmem:[#allocation3 + $0x118] sm:$0xff] %vm1292, 0.0
          %1393 = vst.msk [vmem:[#allocation3 + $0x120] sm:$0xff] %vm1292, 0.0
          %1394 = vst.msk [vmem:[#allocation3 + $0x128] sm:$0xff] %vm1292, 0.0
          %1395 = vst.msk [vmem:[#allocation3 + $0x130] sm:$0xff] %vm1292, 0.0
          %1396 = vst.msk [vmem:[#allocation3 + $0x138] sm:$0xff] %vm1292, 0.0
          %1397 = vst.msk [vmem:[#allocation3 + $0x140] sm:$0xff] %vm1292, 0.0
          %1398 = vst.msk [vmem:[#allocation3 + $0x148] sm:$0xff] %vm1292, 0.0
          %1399 = vst.msk [vmem:[#allocation3 + $0x150] sm:$0xff] %vm1292, 0.0
          %1400 = vst.msk [vmem:[#allocation3 + $0x158] sm:$0xff] %vm1292, 0.0
          %1401 = vst.msk [vmem:[#allocation3 + $0x160] sm:$0xff] %vm1292, 0.0
          %1402 = vst.msk [vmem:[#allocation3 + $0x168] sm:$0xff] %vm1292, 0.0
          %1403 = vst.msk [vmem:[#allocation3 + $0x170] sm:$0xff] %vm1292, 0.0
          %1404 = vst.msk [vmem:[#allocation3 + $0x178] sm:$0xff] %vm1292, 0.0
          %1405 = vst.msk [vmem:[#allocation3 + $0x180] sm:$0xff] %vm1292, 0.0
          %1406 = vst.msk [vmem:[#allocation3 + $0x188] sm:$0xff] %vm1292, 0.0
          %1407 = vst.msk [vmem:[#allocation3 + $0x190] sm:$0xff] %vm1292, 0.0
          %1408 = vst.msk [vmem:[#allocation3 + $0x198] sm:$0xff] %vm1292, 0.0
          %1409 = vst.msk [vmem:[#allocation3 + $0x1a0] sm:$0xff] %vm1292, 0.0
          %1410 = vst.msk [vmem:[#allocation3 + $0x1a8] sm:$0xff] %vm1292, 0.0
          %1411 = vst.msk [vmem:[#allocation3 + $0x1b0] sm:$0xff] %vm1292, 0.0
          %1412 = vst.msk [vmem:[#allocation3 + $0x1b8] sm:$0xff] %vm1292, 0.0
          %1413 = vst.msk [vmem:[#allocation3 + $0x1c0] sm:$0xff] %vm1292, 0.0
          %1414 = vst.msk [vmem:[#allocation3 + $0x1c8] sm:$0xff] %vm1292, 0.0
          %1415 = vst.msk [vmem:[#allocation3 + $0x1d0] sm:$0xff] %vm1292, 0.0
          %1416 = vst.msk [vmem:[#allocation3 + $0x1d8] sm:$0xff] %vm1292, 0.0
          %1417 = vst.msk [vmem:[#allocation3 + $0x1e0] sm:$0xff] %vm1292, 0.0
          %1418 = vst.msk [vmem:[#allocation3 + $0x1e8] sm:$0xff] %vm1292, 0.0
          %1419 = vst.msk [vmem:[#allocation3 + $0x1f0] sm:$0xff] %vm1292, 0.0
          %1420 = vst.msk [vmem:[#allocation3 + $0x1f8] sm:$0xff] %vm1292, 0.0
          %vm1421 = vcmask 523264
          %1422 = vst.msk [vmem:[#allocation4] sm:$0xff] %vm1421, 0.0
          %1423 = vst.msk [vmem:[#allocation4 + $0x8] sm:$0xff] %vm1421, 0.0
          %1424 = vst.msk [vmem:[#allocation4 + $0x10] sm:$0xff] %vm1421, 0.0
          %1425 = vst.msk [vmem:[#allocation4 + $0x18] sm:$0xff] %vm1421, 0.0
          %1426 = vst.msk [vmem:[#allocation4 + $0x20] sm:$0xff] %vm1421, 0.0
          %1427 = vst.msk [vmem:[#allocation4 + $0x28] sm:$0xff] %vm1421, 0.0
          %1428 = vst.msk [vmem:[#allocation4 + $0x30] sm:$0xff] %vm1421, 0.0
          %1429 = vst.msk [vmem:[#allocation4 + $0x38] sm:$0xff] %vm1421, 0.0
          %1430 = vst.msk [vmem:[#allocation4 + $0x40] sm:$0xff] %vm1421, 0.0
          %1431 = vst.msk [vmem:[#allocation4 + $0x48] sm:$0xff] %vm1421, 0.0
          %1432 = vst.msk [vmem:[#allocation4 + $0x50] sm:$0xff] %vm1421, 0.0
          %1433 = vst.msk [vmem:[#allocation4 + $0x58] sm:$0xff] %vm1421, 0.0
          %1434 = vst.msk [vmem:[#allocation4 + $0x60] sm:$0xff] %vm1421, 0.0
          %1435 = vst.msk [vmem:[#allocation4 + $0x68] sm:$0xff] %vm1421, 0.0
          %1436 = vst.msk [vmem:[#allocation4 + $0x70] sm:$0xff] %vm1421, 0.0
          %1437 = vst.msk [vmem:[#allocation4 + $0x78] sm:$0xff] %vm1421, 0.0
          %1438 = vst.msk [vmem:[#allocation4 + $0x80] sm:$0xff] %vm1421, 0.0
          %1439 = vst.msk [vmem:[#allocation4 + $0x88] sm:$0xff] %vm1421, 0.0
          %1440 = vst.msk [vmem:[#allocation4 + $0x90] sm:$0xff] %vm1421, 0.0
          %1441 = vst.msk [vmem:[#allocation4 + $0x98] sm:$0xff] %vm1421, 0.0
          %1442 = vst.msk [vmem:[#allocation4 + $0xa0] sm:$0xff] %vm1421, 0.0
          %1443 = vst.msk [vmem:[#allocation4 + $0xa8] sm:$0xff] %vm1421, 0.0
          %1444 = vst.msk [vmem:[#allocation4 + $0xb0] sm:$0xff] %vm1421, 0.0
          %1445 = vst.msk [vmem:[#allocation4 + $0xb8] sm:$0xff] %vm1421, 0.0
          %1446 = vst.msk [vmem:[#allocation4 + $0xc0] sm:$0xff] %vm1421, 0.0
          %1447 = vst.msk [vmem:[#allocation4 + $0xc8] sm:$0xff] %vm1421, 0.0
          %1448 = vst.msk [vmem:[#allocation4 + $0xd0] sm:$0xff] %vm1421, 0.0
          %1449 = vst.msk [vmem:[#allocation4 + $0xd8] sm:$0xff] %vm1421, 0.0
          %1450 = vst.msk [vmem:[#allocation4 + $0xe0] sm:$0xff] %vm1421, 0.0
          %1451 = vst.msk [vmem:[#allocation4 + $0xe8] sm:$0xff] %vm1421, 0.0
          %1452 = vst.msk [vmem:[#allocation4 + $0xf0] sm:$0xff] %vm1421, 0.0
          %1453 = vst.msk [vmem:[#allocation4 + $0xf8] sm:$0xff] %vm1421, 0.0
          %1454 = vst.msk [vmem:[#allocation4 + $0x100] sm:$0xff] %vm1421, 0.0
          %1455 = vst.msk [vmem:[#allocation4 + $0x108] sm:$0xff] %vm1421, 0.0
          %1456 = vst.msk [vmem:[#allocation4 + $0x110] sm:$0xff] %vm1421, 0.0
          %1457 = vst.msk [vmem:[#allocation4 + $0x118] sm:$0xff] %vm1421, 0.0
          %1458 = vst.msk [vmem:[#allocation4 + $0x120] sm:$0xff] %vm1421, 0.0
          %1459 = vst.msk [vmem:[#allocation4 + $0x128] sm:$0xff] %vm1421, 0.0
          %1460 = vst.msk [vmem:[#allocation4 + $0x130] sm:$0xff] %vm1421, 0.0
          %1461 = vst.msk [vmem:[#allocation4 + $0x138] sm:$0xff] %vm1421, 0.0
          %1462 = vst.msk [vmem:[#allocation4 + $0x140] sm:$0xff] %vm1421, 0.0
          %1463 = vst.msk [vmem:[#allocation4 + $0x148] sm:$0xff] %vm1421, 0.0
          %1464 = vst.msk [vmem:[#allocation4 + $0x150] sm:$0xff] %vm1421, 0.0
          %1465 = vst.msk [vmem:[#allocation4 + $0x158] sm:$0xff] %vm1421, 0.0
          %1466 = vst.msk [vmem:[#allocation4 + $0x160] sm:$0xff] %vm1421, 0.0
          %1467 = vst.msk [vmem:[#allocation4 + $0x168] sm:$0xff] %vm1421, 0.0
          %1468 = vst.msk [vmem:[#allocation4 + $0x170] sm:$0xff] %vm1421, 0.0
          %1469 = vst.msk [vmem:[#allocation4 + $0x178] sm:$0xff] %vm1421, 0.0
          %1470 = vst.msk [vmem:[#allocation4 + $0x180] sm:$0xff] %vm1421, 0.0
          %1471 = vst.msk [vmem:[#allocation4 + $0x188] sm:$0xff] %vm1421, 0.0
          %1472 = vst.msk [vmem:[#allocation4 + $0x190] sm:$0xff] %vm1421, 0.0
          %1473 = vst.msk [vmem:[#allocation4 + $0x198] sm:$0xff] %vm1421, 0.0
          %1474 = vst.msk [vmem:[#allocation4 + $0x1a0] sm:$0xff] %vm1421, 0.0
          %1475 = vst.msk [vmem:[#allocation4 + $0x1a8] sm:$0xff] %vm1421, 0.0
          %1476 = vst.msk [vmem:[#allocation4 + $0x1b0] sm:$0xff] %vm1421, 0.0
          %1477 = vst.msk [vmem:[#allocation4 + $0x1b8] sm:$0xff] %vm1421, 0.0
          %1478 = vst.msk [vmem:[#allocation4 + $0x1c0] sm:$0xff] %vm1421, 0.0
          %1479 = vst.msk [vmem:[#allocation4 + $0x1c8] sm:$0xff] %vm1421, 0.0
          %1480 = vst.msk [vmem:[#allocation4 + $0x1d0] sm:$0xff] %vm1421, 0.0
          %1481 = vst.msk [vmem:[#allocation4 + $0x1d8] sm:$0xff] %vm1421, 0.0
          %1482 = vst.msk [vmem:[#allocation4 + $0x1e0] sm:$0xff] %vm1421, 0.0
          %1483 = vst.msk [vmem:[#allocation4 + $0x1e8] sm:$0xff] %vm1421, 0.0
          %1484 = vst.msk [vmem:[#allocation4 + $0x1f0] sm:$0xff] %vm1421, 0.0
          %1485 = vst.msk [vmem:[#allocation4 + $0x1f8] sm:$0xff] %vm1421, 0.0
        $region209: #{tpu_custom_call.1} parent=188 // pred_fallthru
          _
        %v1486 = vld [vmem:[%s1220] sm:$0xf]
        %v1487 = vld [vmem:[%s1220 + $0x4] sm:$0xf]
        %v1488 = vld [vmem:[%s1220 + $0x8] sm:$0xf]
        %v1489 = vld [vmem:[%s1220 + $0xc] sm:$0xf]
        %v1490 = vld [vmem:[%s1220 + $0x10] sm:$0xf]
        %v1491 = vld [vmem:[%s1220 + $0x14] sm:$0xf]
        %v1492 = vld [vmem:[%s1220 + $0x18] sm:$0xf]
        %v1493 = vld [vmem:[%s1220 + $0x1c] sm:$0xf]
        %v1494 = vld [vmem:[%s1220 + $0x20] sm:$0xf]
        %v1495 = vld [vmem:[%s1220 + $0x24] sm:$0xf]
        %v1496 = vld [vmem:[%s1220 + $0x28] sm:$0xf]
        %v1497 = vld [vmem:[%s1220 + $0x2c] sm:$0xf]
        %v1498 = vld [vmem:[%s1220 + $0x30] sm:$0xf]
        %v1499 = vld [vmem:[%s1220 + $0x34] sm:$0xf]
        %v1500 = vld [vmem:[%s1220 + $0x38] sm:$0xf]
        %v1501 = vld [vmem:[%s1220 + $0x3c] sm:$0xf]
        %v1502 = vld [vmem:[%s1220 + $0x40] sm:$0xf]
        %v1503 = vld [vmem:[%s1220 + $0x44] sm:$0xf]
        %v1504 = vld [vmem:[%s1220 + $0x48] sm:$0xf]
        %v1505 = vld [vmem:[%s1220 + $0x4c] sm:$0xf]
        %v1506 = vld [vmem:[%s1220 + $0x50] sm:$0xf]
        %v1507 = vld [vmem:[%s1220 + $0x54] sm:$0xf]
        %v1508 = vld [vmem:[%s1220 + $0x58] sm:$0xf]
        %v1509 = vld [vmem:[%s1220 + $0x5c] sm:$0xf]
        %v1510 = vld [vmem:[%s1220 + $0x60] sm:$0xf]
        %v1511 = vld [vmem:[%s1220 + $0x64] sm:$0xf]
        %v1512 = vld [vmem:[%s1220 + $0x68] sm:$0xf]
        %v1513 = vld [vmem:[%s1220 + $0x6c] sm:$0xf]
        %v1514 = vld [vmem:[%s1220 + $0x70] sm:$0xf]
        %v1515 = vld [vmem:[%s1220 + $0x74] sm:$0xf]
        %v1516 = vld [vmem:[%s1220 + $0x78] sm:$0xf]
        %v1517 = vld [vmem:[%s1220 + $0x7c] sm:$0xf]
        %v1518 = vld [vmem:[%s1220 + $0x80] sm:$0xf]
        %v1519 = vld [vmem:[%s1220 + $0x84] sm:$0xf]
        %v1520 = vld [vmem:[%s1220 + $0x88] sm:$0xf]
        %v1521 = vld [vmem:[%s1220 + $0x8c] sm:$0xf]
        %v1522 = vld [vmem:[%s1220 + $0x90] sm:$0xf]
        %v1523 = vld [vmem:[%s1220 + $0x94] sm:$0xf]
        %v1524 = vld [vmem:[%s1220 + $0x98] sm:$0xf]
        %v1525 = vld [vmem:[%s1220 + $0x9c] sm:$0xf]
        %v1526 = vld [vmem:[%s1220 + $0xa0] sm:$0xf]
        %v1527 = vld [vmem:[%s1220 + $0xa4] sm:$0xf]
        %v1528 = vld [vmem:[%s1220 + $0xa8] sm:$0xf]
        %v1529 = vld [vmem:[%s1220 + $0xac] sm:$0xf]
        %v1530 = vld [vmem:[%s1220 + $0xb0] sm:$0xf]
        %v1531 = vld [vmem:[%s1220 + $0xb4] sm:$0xf]
        %v1532 = vld [vmem:[%s1220 + $0xb8] sm:$0xf]
        %v1533 = vld [vmem:[%s1220 + $0xbc] sm:$0xf]
        %v1534 = vld [vmem:[%s1220 + $0xc0] sm:$0xf]
        %v1535 = vld [vmem:[%s1220 + $0xc4] sm:$0xf]
        %v1536 = vld [vmem:[%s1220 + $0xc8] sm:$0xf]
        %v1537 = vld [vmem:[%s1220 + $0xcc] sm:$0xf]
        %v1538 = vld [vmem:[%s1220 + $0xd0] sm:$0xf]
        %v1539 = vld [vmem:[%s1220 + $0xd4] sm:$0xf]
        %v1540 = vld [vmem:[%s1220 + $0xd8] sm:$0xf]
        %v1541 = vld [vmem:[%s1220 + $0xdc] sm:$0xf]
        %v1542 = vld [vmem:[%s1220 + $0xe0] sm:$0xf]
        %v1543 = vld [vmem:[%s1220 + $0xe4] sm:$0xf]
        %v1544 = vld [vmem:[%s1220 + $0xe8] sm:$0xf]
        %v1545 = vld [vmem:[%s1220 + $0xec] sm:$0xf]
        %v1546 = vld [vmem:[%s1220 + $0xf0] sm:$0xf]
        %v1547 = vld [vmem:[%s1220 + $0xf4] sm:$0xf]
        %v1548 = vld [vmem:[%s1220 + $0xf8] sm:$0xf]
        %v1549 = vld [vmem:[%s1220 + $0xfc] sm:$0xf]
        %v1550 = vld [vmem:[%s1227] sm:$0xf]
        %v1551 = vld [vmem:[%s1227 + $0x4] sm:$0xf]
        %v1552 = vld [vmem:[%s1227 + $0x8] sm:$0xf]
        %v1553 = vld [vmem:[%s1227 + $0xc] sm:$0xf]
        %v1554 = vld [vmem:[%s1227 + $0x10] sm:$0xf]
        %v1555 = vld [vmem:[%s1227 + $0x14] sm:$0xf]
        %v1556 = vld [vmem:[%s1227 + $0x18] sm:$0xf]
        %v1557 = vld [vmem:[%s1227 + $0x1c] sm:$0xf]
        %v1558 = vld [vmem:[%s1227 + $0x20] sm:$0xf]
        %v1559 = vld [vmem:[%s1227 + $0x24] sm:$0xf]
        %v1560 = vld [vmem:[%s1227 + $0x28] sm:$0xf]
        %v1561 = vld [vmem:[%s1227 + $0x2c] sm:$0xf]
        %v1562 = vld [vmem:[%s1227 + $0x30] sm:$0xf]
        %v1563 = vld [vmem:[%s1227 + $0x34] sm:$0xf]
        %v1564 = vld [vmem:[%s1227 + $0x38] sm:$0xf]
        %v1565 = vld [vmem:[%s1227 + $0x3c] sm:$0xf]
        %v1566 = vld [vmem:[%s1227 + $0x40] sm:$0xf]
        %v1567 = vld [vmem:[%s1227 + $0x44] sm:$0xf]
        %v1568 = vld [vmem:[%s1227 + $0x48] sm:$0xf]
        %v1569 = vld [vmem:[%s1227 + $0x4c] sm:$0xf]
        %v1570 = vld [vmem:[%s1227 + $0x50] sm:$0xf]
        %v1571 = vld [vmem:[%s1227 + $0x54] sm:$0xf]
        %v1572 = vld [vmem:[%s1227 + $0x58] sm:$0xf]
        %v1573 = vld [vmem:[%s1227 + $0x5c] sm:$0xf]
        %v1574 = vld [vmem:[%s1227 + $0x60] sm:$0xf]
        %v1575 = vld [vmem:[%s1227 + $0x64] sm:$0xf]
        %v1576 = vld [vmem:[%s1227 + $0x68] sm:$0xf]
        %v1577 = vld [vmem:[%s1227 + $0x6c] sm:$0xf]
        %v1578 = vld [vmem:[%s1227 + $0x70] sm:$0xf]
        %v1579 = vld [vmem:[%s1227 + $0x74] sm:$0xf]
        %v1580 = vld [vmem:[%s1227 + $0x78] sm:$0xf]
        %v1581 = vld [vmem:[%s1227 + $0x7c] sm:$0xf]
        %v1582 = vld [vmem:[%s1227 + $0x80] sm:$0xf]
        %v1583 = vld [vmem:[%s1227 + $0x84] sm:$0xf]
        %v1584 = vld [vmem:[%s1227 + $0x88] sm:$0xf]
        %v1585 = vld [vmem:[%s1227 + $0x8c] sm:$0xf]
        %v1586 = vld [vmem:[%s1227 + $0x90] sm:$0xf]
        %v1587 = vld [vmem:[%s1227 + $0x94] sm:$0xf]
        %v1588 = vld [vmem:[%s1227 + $0x98] sm:$0xf]
        %v1589 = vld [vmem:[%s1227 + $0x9c] sm:$0xf]
        %v1590 = vld [vmem:[%s1227 + $0xa0] sm:$0xf]
        %v1591 = vld [vmem:[%s1227 + $0xa4] sm:$0xf]
        %v1592 = vld [vmem:[%s1227 + $0xa8] sm:$0xf]
        %v1593 = vld [vmem:[%s1227 + $0xac] sm:$0xf]
        %v1594 = vld [vmem:[%s1227 + $0xb0] sm:$0xf]
        %v1595 = vld [vmem:[%s1227 + $0xb4] sm:$0xf]
        %v1596 = vld [vmem:[%s1227 + $0xb8] sm:$0xf]
        %v1597 = vld [vmem:[%s1227 + $0xbc] sm:$0xf]
        %v1598 = vld [vmem:[%s1227 + $0xc0] sm:$0xf]
        %v1599 = vld [vmem:[%s1227 + $0xc4] sm:$0xf]
        %v1600 = vld [vmem:[%s1227 + $0xc8] sm:$0xf]
        %v1601 = vld [vmem:[%s1227 + $0xcc] sm:$0xf]
        %v1602 = vld [vmem:[%s1227 + $0xd0] sm:$0xf]
        %v1603 = vld [vmem:[%s1227 + $0xd4] sm:$0xf]
        %v1604 = vld [vmem:[%s1227 + $0xd8] sm:$0xf]
        %v1605 = vld [vmem:[%s1227 + $0xdc] sm:$0xf]
        %v1606 = vld [vmem:[%s1227 + $0xe0] sm:$0xf]
        %v1607 = vld [vmem:[%s1227 + $0xe4] sm:$0xf]
        %v1608 = vld [vmem:[%s1227 + $0xe8] sm:$0xf]
        %v1609 = vld [vmem:[%s1227 + $0xec] sm:$0xf]
        %v1610 = vld [vmem:[%s1227 + $0xf0] sm:$0xf]
        %v1611 = vld [vmem:[%s1227 + $0xf4] sm:$0xf]
        %v1612 = vld [vmem:[%s1227 + $0xf8] sm:$0xf]
        %v1613 = vld [vmem:[%s1227 + $0xfc] sm:$0xf]
        %v1614 = vld [vmem:[%s1234] sm:$0xf]
        %v1615 = vld [vmem:[%s1234 + $0x4] sm:$0xf]
        %v1616 = vld [vmem:[%s1234 + $0x8] sm:$0xf]
        %v1617 = vld [vmem:[%s1234 + $0xc] sm:$0xf]
        %v1618 = vld [vmem:[%s1234 + $0x10] sm:$0xf]
        %v1619 = vld [vmem:[%s1234 + $0x14] sm:$0xf]
        %v1620 = vld [vmem:[%s1234 + $0x18] sm:$0xf]
        %v1621 = vld [vmem:[%s1234 + $0x1c] sm:$0xf]
        %v1622 = vld [vmem:[%s1234 + $0x20] sm:$0xf]
        %v1623 = vld [vmem:[%s1234 + $0x24] sm:$0xf]
        %v1624 = vld [vmem:[%s1234 + $0x28] sm:$0xf]
        %v1625 = vld [vmem:[%s1234 + $0x2c] sm:$0xf]
        %v1626 = vld [vmem:[%s1234 + $0x30] sm:$0xf]
        %v1627 = vld [vmem:[%s1234 + $0x34] sm:$0xf]
        %v1628 = vld [vmem:[%s1234 + $0x38] sm:$0xf]
        %v1629 = vld [vmem:[%s1234 + $0x3c] sm:$0xf]
        %v1630 = vld [vmem:[%s1234 + $0x40] sm:$0xf]
        %v1631 = vld [vmem:[%s1234 + $0x44] sm:$0xf]
        %v1632 = vld [vmem:[%s1234 + $0x48] sm:$0xf]
        %v1633 = vld [vmem:[%s1234 + $0x4c] sm:$0xf]
        %v1634 = vld [vmem:[%s1234 + $0x50] sm:$0xf]
        %v1635 = vld [vmem:[%s1234 + $0x54] sm:$0xf]
        %v1636 = vld [vmem:[%s1234 + $0x58] sm:$0xf]
        %v1637 = vld [vmem:[%s1234 + $0x5c] sm:$0xf]
        %v1638 = vld [vmem:[%s1234 + $0x60] sm:$0xf]
        %v1639 = vld [vmem:[%s1234 + $0x64] sm:$0xf]
        %v1640 = vld [vmem:[%s1234 + $0x68] sm:$0xf]
        %v1641 = vld [vmem:[%s1234 + $0x6c] sm:$0xf]
        %v1642 = vld [vmem:[%s1234 + $0x70] sm:$0xf]
        %v1643 = vld [vmem:[%s1234 + $0x74] sm:$0xf]
        %v1644 = vld [vmem:[%s1234 + $0x78] sm:$0xf]
        %v1645 = vld [vmem:[%s1234 + $0x7c] sm:$0xf]
        %v1646 = vld [vmem:[%s1234 + $0x80] sm:$0xf]
        %v1647 = vld [vmem:[%s1234 + $0x84] sm:$0xf]
        %v1648 = vld [vmem:[%s1234 + $0x88] sm:$0xf]
        %v1649 = vld [vmem:[%s1234 + $0x8c] sm:$0xf]
        %v1650 = vld [vmem:[%s1234 + $0x90] sm:$0xf]
        %v1651 = vld [vmem:[%s1234 + $0x94] sm:$0xf]
        %v1652 = vld [vmem:[%s1234 + $0x98] sm:$0xf]
        %v1653 = vld [vmem:[%s1234 + $0x9c] sm:$0xf]
        %v1654 = vld [vmem:[%s1234 + $0xa0] sm:$0xf]
        %v1655 = vld [vmem:[%s1234 + $0xa4] sm:$0xf]
        %v1656 = vld [vmem:[%s1234 + $0xa8] sm:$0xf]
        %v1657 = vld [vmem:[%s1234 + $0xac] sm:$0xf]
        %v1658 = vld [vmem:[%s1234 + $0xb0] sm:$0xf]
        %v1659 = vld [vmem:[%s1234 + $0xb4] sm:$0xf]
        %v1660 = vld [vmem:[%s1234 + $0xb8] sm:$0xf]
        %v1661 = vld [vmem:[%s1234 + $0xbc] sm:$0xf]
        %v1662 = vld [vmem:[%s1234 + $0xc0] sm:$0xf]
        %v1663 = vld [vmem:[%s1234 + $0xc4] sm:$0xf]
        %v1664 = vld [vmem:[%s1234 + $0xc8] sm:$0xf]
        %v1665 = vld [vmem:[%s1234 + $0xcc] sm:$0xf]
        %v1666 = vld [vmem:[%s1234 + $0xd0] sm:$0xf]
        %v1667 = vld [vmem:[%s1234 + $0xd4] sm:$0xf]
        %v1668 = vld [vmem:[%s1234 + $0xd8] sm:$0xf]
        %v1669 = vld [vmem:[%s1234 + $0xdc] sm:$0xf]
        %v1670 = vld [vmem:[%s1234 + $0xe0] sm:$0xf]
        %v1671 = vld [vmem:[%s1234 + $0xe4] sm:$0xf]
        %v1672 = vld [vmem:[%s1234 + $0xe8] sm:$0xf]
        %v1673 = vld [vmem:[%s1234 + $0xec] sm:$0xf]
        %v1674 = vld [vmem:[%s1234 + $0xf0] sm:$0xf]
        %v1675 = vld [vmem:[%s1234 + $0xf4] sm:$0xf]
        %v1676 = vld [vmem:[%s1234 + $0xf8] sm:$0xf]
        %v1677 = vld [vmem:[%s1234 + $0xfc] sm:$0xf]
        %v1694 = vunpack.c.l.b16 %v1486
        %v1695 = vunpack.c.l.b16 %v1487
        %v1696 = vunpack.c.l.b16 %v1488
        %v1697 = vunpack.c.l.b16 %v1489
        %v1698 = vunpack.c.l.b16 %v1490
        %v1699 = vunpack.c.l.b16 %v1491
        %v1700 = vunpack.c.l.b16 %v1492
        %v1701 = vunpack.c.l.b16 %v1493
        %v1702 = vunpack.c.l.b16 %v1494
        %v1703 = vunpack.c.l.b16 %v1495
        %v1704 = vunpack.c.l.b16 %v1496
        %v1705 = vunpack.c.l.b16 %v1497
        %v1706 = vunpack.c.l.b16 %v1498
        %v1707 = vunpack.c.l.b16 %v1499
        %v1708 = vunpack.c.l.b16 %v1500
        %v1709 = vunpack.c.l.b16 %v1501
        %v1710 = vpack.c.b16 %v1695, %v1694
        %v1711 = vpack.c.b16 %v1697, %v1696
        %v1712 = vpack.c.b16 %v1699, %v1698
        %v1713 = vpack.c.b16 %v1701, %v1700
        %v1714 = vpack.c.b16 %v1703, %v1702
        %v1715 = vpack.c.b16 %v1705, %v1704
        %v1716 = vpack.c.b16 %v1707, %v1706
        %v1717 = vpack.c.b16 %v1709, %v1708
        %v1734 = vunpack.c.l.b16 %v1550
        %v1735 = vunpack.c.l.b16 %v1551
        %v1736 = vunpack.c.l.b16 %v1552
        %v1737 = vunpack.c.l.b16 %v1553
        %v1738 = vunpack.c.l.b16 %v1554
        %v1739 = vunpack.c.l.b16 %v1555
        %v1740 = vunpack.c.l.b16 %v1556
        %v1741 = vunpack.c.l.b16 %v1557
        %v1742 = vunpack.c.l.b16 %v1558
        %v1743 = vunpack.c.l.b16 %v1559
        %v1744 = vunpack.c.l.b16 %v1560
        %v1745 = vunpack.c.l.b16 %v1561
        %v1746 = vunpack.c.l.b16 %v1562
        %v1747 = vunpack.c.l.b16 %v1563
        %v1748 = vunpack.c.l.b16 %v1564
        %v1749 = vunpack.c.l.b16 %v1565
        %v1750 = vpack.c.b16 %v1735, %v1734
        %v1751 = vpack.c.b16 %v1737, %v1736
        %v1752 = vpack.c.b16 %v1739, %v1738
        %v1753 = vpack.c.b16 %v1741, %v1740
        %v1754 = vpack.c.b16 %v1743, %v1742
        %v1755 = vpack.c.b16 %v1745, %v1744
        %v1756 = vpack.c.b16 %v1747, %v1746
        %v1757 = vpack.c.b16 %v1749, %v1748
        %vm1758 = vcmask 523264
        %v1760 = vsel %vm1758, %v1710, 0
        %v1763 = vsel %vm1758, %v1711, 0
        %v1766 = vsel %vm1758, %v1712, 0
        %v1769 = vsel %vm1758, %v1713, 0
        %v1772 = vsel %vm1758, %v1714, 0
        %v1775 = vsel %vm1758, %v1715, 0
        %v1778 = vsel %vm1758, %v1716, 0
        %v1781 = vsel %vm1758, %v1717, 0
        %v1784 = vsel %vm1758, %v1750, 0
        %v1787 = vsel %vm1758, %v1751, 0
        %v1790 = vsel %vm1758, %v1752, 0
        %v1793 = vsel %vm1758, %v1753, 0
        %v1796 = vsel %vm1758, %v1754, 0
        %v1799 = vsel %vm1758, %v1755, 0
        %v1802 = vsel %vm1758, %v1756, 0
        %v1805 = vsel %vm1758, %v1757, 0
        %1807 = vmatprep.subr.bf16.mxu0 0
        %1808 = vmatpush1.bf16.xpose.msra.mxu0 %v1784
        %1809 = vmatprep.subr.bf16.mxu0 0
        %1810 = vmatpush1.bf16.xpose.msra.mxu0 %v1787
        %1811 = vmatprep.subr.bf16.mxu0 0
        %1812 = vmatpush1.bf16.xpose.msra.mxu0 %v1790
        %1813 = vmatprep.subr.bf16.mxu0 0
        %1814 = vmatpush1.bf16.xpose.msra.mxu0 %v1793
        %1815 = vmatprep.subr.bf16.mxu0 0
        %1816 = vmatpush1.bf16.xpose.msra.mxu0 %v1796
        %1817 = vmatprep.subr.bf16.mxu0 0
        %1818 = vmatpush1.bf16.xpose.msra.mxu0 %v1799
        %1819 = vmatprep.subr.bf16.mxu0 0
        %1820 = vmatpush1.bf16.xpose.msra.mxu0 %v1802
        %1821 = vmatprep.subr.bf16.mxu0 0
        %1822 = vmatpush1.bf16.xpose.msra.mxu0 %v1805
        %1823 = vmatprep.subr.bf16.mxu0 0
        %1824 = vmatpush1.bf16.xpose.msra.mxu0 0
        %1825 = vmatprep.subr.bf16.mxu0 0
        %1826 = vmatpush1.bf16.xpose.msra.mxu0 0
        %1827 = vmatprep.subr.bf16.mxu0 0
        %1828 = vmatpush1.bf16.xpose.msra.mxu0 0
        %1829 = vmatprep.subr.bf16.mxu0 0
        %1830 = vmatpush1.bf16.xpose.msra.mxu0 0
        %1831 = vmatprep.subr.bf16.mxu0 0
        %1832 = vmatpush1.bf16.xpose.msra.mxu0 0
        %1833 = vmatprep.subr.bf16.mxu0 0
        %1834 = vmatpush1.bf16.xpose.msra.mxu0 0
        %1835 = vmatprep.subr.bf16.mxu0 0
        %1836 = vmatpush1.bf16.xpose.msra.mxu0 0
        %1837 = vmatprep.subr.bf16.mxu0 0
        %1838 = vmatpush1.bf16.xpose.msra.mxu0 0
        %1839 = vmatprep.mubr.bf16.mxu0 0
        %1840 = vmatmul.mubr.bf16.gmra.mrb[0].mxu0 %v1760
        %v1841 = vpop.f32.mrb[0].mxu0
        %v1842 = vadd.f32 0.0, %v1841
        %v1843 = vpop.f32.mrb[0].mxu0
        %v1844 = vpop.f32.mrb[0].mxu0
        %v1845 = vadd.f32 0.0, %v1844
        %v1846 = vpop.f32.mrb[0].mxu0
        %1847 = vmatprep.mubr.bf16.mxu0 0
        %1848 = vmatmul.mubr.bf16.gmra.mrb[0].mxu0 %v1763
        %v1849 = vpop.f32.mrb[0].mxu0
        %v1850 = vadd.f32 0.0, %v1849
        %v1851 = vpop.f32.mrb[0].mxu0
        %v1852 = vpop.f32.mrb[0].mxu0
        %v1853 = vadd.f32 0.0, %v1852
        %v1854 = vpop.f32.mrb[0].mxu0
        %1855 = vmatprep.mubr.bf16.mxu0 0
        %1856 = vmatmul.mubr.bf16.gmra.mrb[0].mxu0 %v1766
        %v1857 = vpop.f32.mrb[0].mxu0
        %v1858 = vadd.f32 0.0, %v1857
        %v1859 = vpop.f32.mrb[0].mxu0
        %v1860 = vpop.f32.mrb[0].mxu0
        %v1861 = vadd.f32 0.0, %v1860
        %v1862 = vpop.f32.mrb[0].mxu0
        %1863 = vmatprep.mubr.bf16.mxu0 0
        %1864 = vmatmul.mubr.bf16.gmra.mrb[0].mxu0 %v1769
        %v1865 = vpop.f32.mrb[0].mxu0
        %v1866 = vadd.f32 0.0, %v1865
        %v1867 = vpop.f32.mrb[0].mxu0
        %v1868 = vpop.f32.mrb[0].mxu0
        %v1869 = vadd.f32 0.0, %v1868
        %v1870 = vpop.f32.mrb[0].mxu0
        %1871 = vmatprep.mubr.bf16.mxu0 0
        %1872 = vmatmul.mubr.bf16.gmra.mrb[0].mxu0 %v1772
        %v1873 = vpop.f32.mrb[0].mxu0
        %v1874 = vadd.f32 0.0, %v1873
        %v1875 = vpop.f32.mrb[0].mxu0
        %v1876 = vpop.f32.mrb[0].mxu0
        %v1877 = vadd.f32 0.0, %v1876
        %v1878 = vpop.f32.mrb[0].mxu0
        %1879 = vmatprep.mubr.bf16.mxu0 0
        %1880 = vmatmul.mubr.bf16.gmra.mrb[0].mxu0 %v1775
        %v1881 = vpop.f32.mrb[0].mxu0
        %v1882 = vadd.f32 0.0, %v1881
        %v1883 = vpop.f32.mrb[0].mxu0
        %v1884 = vpop.f32.mrb[0].mxu0
        %v1885 = vadd.f32 0.0, %v1884
        %v1886 = vpop.f32.mrb[0].mxu0
        %1887 = vmatprep.mubr.bf16.mxu0 0
        %1888 = vmatmul.mubr.bf16.gmra.mrb[0].mxu0 %v1778
        %v1889 = vpop.f32.mrb[0].mxu0
        %v1890 = vadd.f32 0.0, %v1889
        %v1891 = vpop.f32.mrb[0].mxu0
        %v1892 = vpop.f32.mrb[0].mxu0
        %v1893 = vadd.f32 0.0, %v1892
        %v1894 = vpop.f32.mrb[0].mxu0
        %1895 = vmatprep.mubr.bf16.mxu0 0
        %1896 = vmatmul.mubr.bf16.gmra.mrb[0].mxu0 %v1781
        %v1897 = vpop.f32.mrb[0].mxu0
        %v1898 = vadd.f32 0.0, %v1897
        %v1899 = vpop.f32.mrb[0].mxu0
        %v1900 = vpop.f32.mrb[0].mxu0
        %v1901 = vadd.f32 0.0, %v1900
        %v1902 = vpop.f32.mrb[0].mxu0
        %1903 = vdwg.mxu0
        %v1920 = vunpack.c.l.b16 %v1502
        %v1921 = vunpack.c.l.b16 %v1503
        %v1922 = vunpack.c.l.b16 %v1504
        %v1923 = vunpack.c.l.b16 %v1505
        %v1924 = vunpack.c.l.b16 %v1506
        %v1925 = vunpack.c.l.b16 %v1507
        %v1926 = vunpack.c.l.b16 %v1508
        %v1927 = vunpack.c.l.b16 %v1509
        %v1928 = vunpack.c.l.b16 %v1510
        %v1929 = vunpack.c.l.b16 %v1511
        %v1930 = vunpack.c.l.b16 %v1512
        %v1931 = vunpack.c.l.b16 %v1513
        %v1932 = vunpack.c.l.b16 %v1514
        %v1933 = vunpack.c.l.b16 %v1515
        %v1934 = vunpack.c.l.b16 %v1516
        %v1935 = vunpack.c.l.b16 %v1517
        %v1936 = vpack.c.b16 %v1921, %v1920
        %v1937 = vpack.c.b16 %v1923, %v1922
        %v1938 = vpack.c.b16 %v1925, %v1924
        %v1939 = vpack.c.b16 %v1927, %v1926
        %v1940 = vpack.c.b16 %v1929, %v1928
        %v1941 = vpack.c.b16 %v1931, %v1930
        %v1942 = vpack.c.b16 %v1933, %v1932
        %v1943 = vpack.c.b16 %v1935, %v1934
        %v1960 = vunpack.c.l.b16 %v1566
        %v1961 = vunpack.c.l.b16 %v1567
        %v1962 = vunpack.c.l.b16 %v1568
        %v1963 = vunpack.c.l.b16 %v1569
        %v1964 = vunpack.c.l.b16 %v1570
        %v1965 = vunpack.c.l.b16 %v1571
        %v1966 = vunpack.c.l.b16 %v1572
        %v1967 = vunpack.c.l.b16 %v1573
        %v1968 = vunpack.c.l.b16 %v1574
        %v1969 = vunpack.c.l.b16 %v1575
        %v1970 = vunpack.c.l.b16 %v1576
        %v1971 = vunpack.c.l.b16 %v1577
        %v1972 = vunpack.c.l.b16 %v1578
        %v1973 = vunpack.c.l.b16 %v1579
        %v1974 = vunpack.c.l.b16 %v1580
        %v1975 = vunpack.c.l.b16 %v1581
        %v1976 = vpack.c.b16 %v1961, %v1960
        %v1977 = vpack.c.b16 %v1963, %v1962
        %v1978 = vpack.c.b16 %v1965, %v1964
        %v1979 = vpack.c.b16 %v1967, %v1966
        %v1980 = vpack.c.b16 %v1969, %v1968
        %v1981 = vpack.c.b16 %v1971, %v1970
        %v1982 = vpack.c.b16 %v1973, %v1972
        %v1983 = vpack.c.b16 %v1975, %v1974
        %v1985 = vsel %vm1758, %v1936, 0
        %v1988 = vsel %vm1758, %v1937, 0
        %v1991 = vsel %vm1758, %v1938, 0
        %v1994 = vsel %vm1758, %v1939, 0
        %v1997 = vsel %vm1758, %v1940, 0
        %v2000 = vsel %vm1758, %v1941, 0
        %v2003 = vsel %vm1758, %v1942, 0
        %v2006 = vsel %vm1758, %v1943, 0
        %v2009 = vsel %vm1758, %v1976, 0
        %v2012 = vsel %vm1758, %v1977, 0
        %v2015 = vsel %vm1758, %v1978, 0
        %v2018 = vsel %vm1758, %v1979, 0
        %v2021 = vsel %vm1758, %v1980, 0
        %v2024 = vsel %vm1758, %v1981, 0
        %v2027 = vsel %vm1758, %v1982, 0
        %v2030 = vsel %vm1758, %v1983, 0
        %2032 = vmatprep.subr.bf16.mxu0 0
        %2033 = vmatpush1.bf16.xpose.msra.mxu0 %v2009
        %2034 = vmatprep.subr.bf16.mxu0 0
        %2035 = vmatpush1.bf16.xpose.msra.mxu0 %v2012
        %2036 = vmatprep.subr.bf16.mxu0 0
        %2037 = vmatpush1.bf16.xpose.msra.mxu0 %v2015
        %2038 = vmatprep.subr.bf16.mxu0 0
        %2039 = vmatpush1.bf16.xpose.msra.mxu0 %v2018
        %2040 = vmatprep.subr.bf16.mxu0 0
        %2041 = vmatpush1.bf16.xpose.msra.mxu0 %v2021
        %2042 = vmatprep.subr.bf16.mxu0 0
        %2043 = vmatpush1.bf16.xpose.msra.mxu0 %v2024
        %2044 = vmatprep.subr.bf16.mxu0 0
        %2045 = vmatpush1.bf16.xpose.msra.mxu0 %v2027
        %2046 = vmatprep.subr.bf16.mxu0 0
        %2047 = vmatpush1.bf16.xpose.msra.mxu0 %v2030
        %2048 = vmatprep.subr.bf16.mxu0 0
        %2049 = vmatpush1.bf16.xpose.msra.mxu0 0
        %2050 = vmatprep.subr.bf16.mxu0 0
        %2051 = vmatpush1.bf16.xpose.msra.mxu0 0
        %2052 = vmatprep.subr.bf16.mxu0 0
        %2053 = vmatpush1.bf16.xpose.msra.mxu0 0
        %2054 = vmatprep.subr.bf16.mxu0 0
        %2055 = vmatpush1.bf16.xpose.msra.mxu0 0
        %2056 = vmatprep.subr.bf16.mxu0 0
        %2057 = vmatpush1.bf16.xpose.msra.mxu0 0
        %2058 = vmatprep.subr.bf16.mxu0 0
        %2059 = vmatpush1.bf16.xpose.msra.mxu0 0
        %2060 = vmatprep.subr.bf16.mxu0 0
        %2061 = vmatpush1.bf16.xpose.msra.mxu0 0
        %2062 = vmatprep.subr.bf16.mxu0 0
        %2063 = vmatpush1.bf16.xpose.msra.mxu0 0
        %2064 = vmatprep.mubr.bf16.mxu0 0
        %2065 = vmatmul.mubr.bf16.gmra.mrb[0].mxu0 %v1985
        %v2066 = vpop.f32.mrb[0].mxu0
        %v2067 = vadd.f32 0.0, %v2066
        %v2068 = vpop.f32.mrb[0].mxu0
        %v2069 = vpop.f32.mrb[0].mxu0
        %v2070 = vadd.f32 0.0, %v2069
        %v2071 = vpop.f32.mrb[0].mxu0
        %2072 = vmatprep.mubr.bf16.mxu0 0
        %2073 = vmatmul.mubr.bf16.gmra.mrb[0].mxu0 %v1988
        %v2074 = vpop.f32.mrb[0].mxu0
        %v2075 = vadd.f32 0.0, %v2074
        %v2076 = vpop.f32.mrb[0].mxu0
        %v2077 = vpop.f32.mrb[0].mxu0
        %v2078 = vadd.f32 0.0, %v2077
        %v2079 = vpop.f32.mrb[0].mxu0
        %2080 = vmatprep.mubr.bf16.mxu0 0
        %2081 = vmatmul.mubr.bf16.gmra.mrb[0].mxu0 %v1991
        %v2082 = vpop.f32.mrb[0].mxu0
        %v2083 = vadd.f32 0.0, %v2082
        %v2084 = vpop.f32.mrb[0].mxu0
        %v2085 = vpop.f32.mrb[0].mxu0
        %v2086 = vadd.f32 0.0, %v2085
        %v2087 = vpop.f32.mrb[0].mxu0
        %2088 = vmatprep.mubr.bf16.mxu0 0
        %2089 = vmatmul.mubr.bf16.gmra.mrb[0].mxu0 %v1994
        %v2090 = vpop.f32.mrb[0].mxu0
        %v2091 = vadd.f32 0.0, %v2090
        %v2092 = vpop.f32.mrb[0].mxu0
        %v2093 = vpop.f32.mrb[0].mxu0
        %v2094 = vadd.f32 0.0, %v2093
        %v2095 = vpop.f32.mrb[0].mxu0
        %2096 = vmatprep.mubr.bf16.mxu0 0
        %2097 = vmatmul.mubr.bf16.gmra.mrb[0].mxu0 %v1997
        %v2098 = vpop.f32.mrb[0].mxu0
        %v2099 = vadd.f32 0.0, %v2098
        %v2100 = vpop.f32.mrb[0].mxu0
        %v2101 = vpop.f32.mrb[0].mxu0
        %v2102 = vadd.f32 0.0, %v2101
        %v2103 = vpop.f32.mrb[0].mxu0
        %2104 = vmatprep.mubr.bf16.mxu0 0
        %2105 = vmatmul.mubr.bf16.gmra.mrb[0].mxu0 %v2000
        %v2106 = vpop.f32.mrb[0].mxu0
        %v2107 = vadd.f32 0.0, %v2106
        %v2108 = vpop.f32.mrb[0].mxu0
        %v2109 = vpop.f32.mrb[0].mxu0
        %v2110 = vadd.f32 0.0, %v2109
        %v2111 = vpop.f32.mrb[0].mxu0
        %2112 = vmatprep.mubr.bf16.mxu0 0
        %2113 = vmatmul.mubr.bf16.gmra.mrb[0].mxu0 %v2003
        %v2114 = vpop.f32.mrb[0].mxu0
        %v2115 = vadd.f32 0.0, %v2114
        %v2116 = vpop.f32.mrb[0].mxu0
        %v2117 = vpop.f32.mrb[0].mxu0
        %v2118 = vadd.f32 0.0, %v2117
        %v2119 = vpop.f32.mrb[0].mxu0
        %2120 = vmatprep.mubr.bf16.mxu0 0
        %2121 = vmatmul.mubr.bf16.gmra.mrb[0].mxu0 %v2006
        %v2122 = vpop.f32.mrb[0].mxu0
        %v2123 = vadd.f32 0.0, %v2122
        %v2124 = vpop.f32.mrb[0].mxu0
        %v2125 = vpop.f32.mrb[0].mxu0
        %v2126 = vadd.f32 0.0, %v2125
        %v2127 = vpop.f32.mrb[0].mxu0
        %2128 = vdwg.mxu0
        %v2145 = vunpack.c.l.b16 %v1518
        %v2146 = vunpack.c.l.b16 %v1519
        %v2147 = vunpack.c.l.b16 %v1520
        %v2148 = vunpack.c.l.b16 %v1521
        %v2149 = vunpack.c.l.b16 %v1522
        %v2150 = vunpack.c.l.b16 %v1523
        %v2151 = vunpack.c.l.b16 %v1524
        %v2152 = vunpack.c.l.b16 %v1525
        %v2153 = vunpack.c.l.b16 %v1526
        %v2154 = vunpack.c.l.b16 %v1527
        %v2155 = vunpack.c.l.b16 %v1528
        %v2156 = vunpack.c.l.b16 %v1529
        %v2157 = vunpack.c.l.b16 %v1530
        %v2158 = vunpack.c.l.b16 %v1531
        %v2159 = vunpack.c.l.b16 %v1532
        %v2160 = vunpack.c.l.b16 %v1533
        %v2161 = vpack.c.b16 %v2146, %v2145
        %v2162 = vpack.c.b16 %v2148, %v2147
        %v2163 = vpack.c.b16 %v2150, %v2149
        %v2164 = vpack.c.b16 %v2152, %v2151
        %v2165 = vpack.c.b16 %v2154, %v2153
        %v2166 = vpack.c.b16 %v2156, %v2155
        %v2167 = vpack.c.b16 %v2158, %v2157
        %v2168 = vpack.c.b16 %v2160, %v2159
        %v2185 = vunpack.c.l.b16 %v1582
        %v2186 = vunpack.c.l.b16 %v1583
        %v2187 = vunpack.c.l.b16 %v1584
        %v2188 = vunpack.c.l.b16 %v1585
        %v2189 = vunpack.c.l.b16 %v1586
        %v2190 = vunpack.c.l.b16 %v1587
        %v2191 = vunpack.c.l.b16 %v1588
        %v2192 = vunpack.c.l.b16 %v1589
        %v2193 = vunpack.c.l.b16 %v1590
        %v2194 = vunpack.c.l.b16 %v1591
        %v2195 = vunpack.c.l.b16 %v1592
        %v2196 = vunpack.c.l.b16 %v1593
        %v2197 = vunpack.c.l.b16 %v1594
        %v2198 = vunpack.c.l.b16 %v1595
        %v2199 = vunpack.c.l.b16 %v1596
        %v2200 = vunpack.c.l.b16 %v1597
        %v2201 = vpack.c.b16 %v2186, %v2185
        %v2202 = vpack.c.b16 %v2188, %v2187
        %v2203 = vpack.c.b16 %v2190, %v2189
        %v2204 = vpack.c.b16 %v2192, %v2191
        %v2205 = vpack.c.b16 %v2194, %v2193
        %v2206 = vpack.c.b16 %v2196, %v2195
        %v2207 = vpack.c.b16 %v2198, %v2197
        %v2208 = vpack.c.b16 %v2200, %v2199
        %v2210 = vsel %vm1758, %v2161, 0
        %v2213 = vsel %vm1758, %v2162, 0
        %v2216 = vsel %vm1758, %v2163, 0
        %v2219 = vsel %vm1758, %v2164, 0
        %v2222 = vsel %vm1758, %v2165, 0
        %v2225 = vsel %vm1758, %v2166, 0
        %v2228 = vsel %vm1758, %v2167, 0
        %v2231 = vsel %vm1758, %v2168, 0
        %v2234 = vsel %vm1758, %v2201, 0
        %v2237 = vsel %vm1758, %v2202, 0
        %v2240 = vsel %vm1758, %v2203, 0
        %v2243 = vsel %vm1758, %v2204, 0
        %v2246 = vsel %vm1758, %v2205, 0
        %v2249 = vsel %vm1758, %v2206, 0
        %v2252 = vsel %vm1758, %v2207, 0
        %v2255 = vsel %vm1758, %v2208, 0
        %2257 = vmatprep.subr.bf16.mxu0 0
        %2258 = vmatpush1.bf16.xpose.msra.mxu0 %v2234
        %2259 = vmatprep.subr.bf16.mxu0 0
        %2260 = vmatpush1.bf16.xpose.msra.mxu0 %v2237
        %2261 = vmatprep.subr.bf16.mxu0 0
        %2262 = vmatpush1.bf16.xpose.msra.mxu0 %v2240
        %2263 = vmatprep.subr.bf16.mxu0 0
        %2264 = vmatpush1.bf16.xpose.msra.mxu0 %v2243
        %2265 = vmatprep.subr.bf16.mxu0 0
        %2266 = vmatpush1.bf16.xpose.msra.mxu0 %v2246
        %2267 = vmatprep.subr.bf16.mxu0 0
        %2268 = vmatpush1.bf16.xpose.msra.mxu0 %v2249
        %2269 = vmatprep.subr.bf16.mxu0 0
        %2270 = vmatpush1.bf16.xpose.msra.mxu0 %v2252
        %2271 = vmatprep.subr.bf16.mxu0 0
        %2272 = vmatpush1.bf16.xpose.msra.mxu0 %v2255
        %2273 = vmatprep.subr.bf16.mxu0 0
        %2274 = vmatpush1.bf16.xpose.msra.mxu0 0
        %2275 = vmatprep.subr.bf16.mxu0 0
        %2276 = vmatpush1.bf16.xpose.msra.mxu0 0
        %2277 = vmatprep.subr.bf16.mxu0 0
        %2278 = vmatpush1.bf16.xpose.msra.mxu0 0
        %2279 = vmatprep.subr.bf16.mxu0 0
        %2280 = vmatpush1.bf16.xpose.msra.mxu0 0
        %2281 = vmatprep.subr.bf16.mxu0 0
        %2282 = vmatpush1.bf16.xpose.msra.mxu0 0
        %2283 = vmatprep.subr.bf16.mxu0 0
        %2284 = vmatpush1.bf16.xpose.msra.mxu0 0
        %2285 = vmatprep.subr.bf16.mxu0 0
        %2286 = vmatpush1.bf16.xpose.msra.mxu0 0
        %2287 = vmatprep.subr.bf16.mxu0 0
        %2288 = vmatpush1.bf16.xpose.msra.mxu0 0
        %2289 = vmatprep.mubr.bf16.mxu0 0
        %2290 = vmatmul.mubr.bf16.gmra.mrb[0].mxu0 %v2210
        %v2291 = vpop.f32.mrb[0].mxu0
        %v2292 = vadd.f32 0.0, %v2291
        %v2293 = vpop.f32.mrb[0].mxu0
        %v2294 = vpop.f32.mrb[0].mxu0
        %v2295 = vadd.f32 0.0, %v2294
        %v2296 = vpop.f32.mrb[0].mxu0
        %2297 = vmatprep.mubr.bf16.mxu0 0
        %2298 = vmatmul.mubr.bf16.gmra.mrb[0].mxu0 %v2213
        %v2299 = vpop.f32.mrb[0].mxu0
        %v2300 = vadd.f32 0.0, %v2299
        %v2301 = vpop.f32.mrb[0].mxu0
        %v2302 = vpop.f32.mrb[0].mxu0
        %v2303 = vadd.f32 0.0, %v2302
        %v2304 = vpop.f32.mrb[0].mxu0
        %2305 = vmatprep.mubr.bf16.mxu0 0
        %2306 = vmatmul.mubr.bf16.gmra.mrb[0].mxu0 %v2216
        %v2307 = vpop.f32.mrb[0].mxu0
        %v2308 = vadd.f32 0.0, %v2307
        %v2309 = vpop.f32.mrb[0].mxu0
        %v2310 = vpop.f32.mrb[0].mxu0
        %v2311 = vadd.f32 0.0, %v2310
        %v2312 = vpop.f32.mrb[0].mxu0
        %2313 = vmatprep.mubr.bf16.mxu0 0
        %2314 = vmatmul.mubr.bf16.gmra.mrb[0].mxu0 %v2219
        %v2315 = vpop.f32.mrb[0].mxu0
        %v2316 = vadd.f32 0.0, %v2315
        %v2317 = vpop.f32.mrb[0].mxu0
        %v2318 = vpop.f32.mrb[0].mxu0
        %v2319 = vadd.f32 0.0, %v2318
        %v2320 = vpop.f32.mrb[0].mxu0
        %2321 = vmatprep.mubr.bf16.mxu0 0
        %2322 = vmatmul.mubr.bf16.gmra.mrb[0].mxu0 %v2222
        %v2323 = vpop.f32.mrb[0].mxu0
        %v2324 = vadd.f32 0.0, %v2323
        %v2325 = vpop.f32.mrb[0].mxu0
        %v2326 = vpop.f32.mrb[0].mxu0
        %v2327 = vadd.f32 0.0, %v2326
        %v2328 = vpop.f32.mrb[0].mxu0
        %2329 = vmatprep.mubr.bf16.mxu0 0
        %2330 = vmatmul.mubr.bf16.gmra.mrb[0].mxu0 %v2225
        %v2331 = vpop.f32.mrb[0].mxu0
        %v2332 = vadd.f32 0.0, %v2331
        %v2333 = vpop.f32.mrb[0].mxu0
        %v2334 = vpop.f32.mrb[0].mxu0
        %v2335 = vadd.f32 0.0, %v2334
        %v2336 = vpop.f32.mrb[0].mxu0
        %2337 = vmatprep.mubr.bf16.mxu0 0
        %2338 = vmatmul.mubr.bf16.gmra.mrb[0].mxu0 %v2228
        %v2339 = vpop.f32.mrb[0].mxu0
        %v2340 = vadd.f32 0.0, %v2339
        %v2341 = vpop.f32.mrb[0].mxu0
        %v2342 = vpop.f32.mrb[0].mxu0
        %v2343 = vadd.f32 0.0, %v2342
        %v2344 = vpop.f32.mrb[0].mxu0
        %2345 = vmatprep.mubr.bf16.mxu0 0
        %2346 = vmatmul.mubr.bf16.gmra.mrb[0].mxu0 %v2231
        %v2347 = vpop.f32.mrb[0].mxu0
        %v2348 = vadd.f32 0.0, %v2347
        %v2349 = vpop.f32.mrb[0].mxu0
        %v2350 = vpop.f32.mrb[0].mxu0
        %v2351 = vadd.f32 0.0, %v2350
        %v2352 = vpop.f32.mrb[0].mxu0
        %2353 = vdwg.mxu0
        %v2370 = vunpack.c.l.b16 %v1534
        %v2371 = vunpack.c.l.b16 %v1535
        %v2372 = vunpack.c.l.b16 %v1536
        %v2373 = vunpack.c.l.b16 %v1537
        %v2374 = vunpack.c.l.b16 %v1538
        %v2375 = vunpack.c.l.b16 %v1539
        %v2376 = vunpack.c.l.b16 %v1540
        %v2377 = vunpack.c.l.b16 %v1541
        %v2378 = vunpack.c.l.b16 %v1542
        %v2379 = vunpack.c.l.b16 %v1543
        %v2380 = vunpack.c.l.b16 %v1544
        %v2381 = vunpack.c.l.b16 %v1545
        %v2382 = vunpack.c.l.b16 %v1546
        %v2383 = vunpack.c.l.b16 %v1547
        %v2384 = vunpack.c.l.b16 %v1548
        %v2385 = vunpack.c.l.b16 %v1549
        %v2386 = vpack.c.b16 %v2371, %v2370
        %v2387 = vpack.c.b16 %v2373, %v2372
        %v2388 = vpack.c.b16 %v2375, %v2374
        %v2389 = vpack.c.b16 %v2377, %v2376
        %v2390 = vpack.c.b16 %v2379, %v2378
        %v2391 = vpack.c.b16 %v2381, %v2380
        %v2392 = vpack.c.b16 %v2383, %v2382
        %v2393 = vpack.c.b16 %v2385, %v2384
        %v2410 = vunpack.c.l.b16 %v1598
        %v2411 = vunpack.c.l.b16 %v1599
        %v2412 = vunpack.c.l.b16 %v1600
        %v2413 = vunpack.c.l.b16 %v1601
        %v2414 = vunpack.c.l.b16 %v1602
        %v2415 = vunpack.c.l.b16 %v1603
        %v2416 = vunpack.c.l.b16 %v1604
        %v2417 = vunpack.c.l.b16 %v1605
        %v2418 = vunpack.c.l.b16 %v1606
        %v2419 = vunpack.c.l.b16 %v1607
        %v2420 = vunpack.c.l.b16 %v1608
        %v2421 = vunpack.c.l.b16 %v1609
        %v2422 = vunpack.c.l.b16 %v1610
        %v2423 = vunpack.c.l.b16 %v1611
        %v2424 = vunpack.c.l.b16 %v1612
        %v2425 = vunpack.c.l.b16 %v1613
        %v2426 = vpack.c.b16 %v2411, %v2410
        %v2427 = vpack.c.b16 %v2413, %v2412
        %v2428 = vpack.c.b16 %v2415, %v2414
        %v2429 = vpack.c.b16 %v2417, %v2416
        %v2430 = vpack.c.b16 %v2419, %v2418
        %v2431 = vpack.c.b16 %v2421, %v2420
        %v2432 = vpack.c.b16 %v2423, %v2422
        %v2433 = vpack.c.b16 %v2425, %v2424
        %v2435 = vsel %vm1758, %v2386, 0
        %v2438 = vsel %vm1758, %v2387, 0
        %v2441 = vsel %vm1758, %v2388, 0
        %v2444 = vsel %vm1758, %v2389, 0
        %v2447 = vsel %vm1758, %v2390, 0
        %v2450 = vsel %vm1758, %v2391, 0
        %v2453 = vsel %vm1758, %v2392, 0
        %v2456 = vsel %vm1758, %v2393, 0
        %v2459 = vsel %vm1758, %v2426, 0
        %v2462 = vsel %vm1758, %v2427, 0
        %v2465 = vsel %vm1758, %v2428, 0
        %v2468 = vsel %vm1758, %v2429, 0
        %v2471 = vsel %vm1758, %v2430, 0
        %v2474 = vsel %vm1758, %v2431, 0
        %v2477 = vsel %vm1758, %v2432, 0
        %v2480 = vsel %vm1758, %v2433, 0
        %2482 = vmatprep.subr.bf16.mxu0 0
        %2483 = vmatpush1.bf16.xpose.msra.mxu0 %v2459
        %2484 = vmatprep.subr.bf16.mxu0 0
        %2485 = vmatpush1.bf16.xpose.msra.mxu0 %v2462
        %2486 = vmatprep.subr.bf16.mxu0 0
        %2487 = vmatpush1.bf16.xpose.msra.mxu0 %v2465
        %2488 = vmatprep.subr.bf16.mxu0 0
        %2489 = vmatpush1.bf16.xpose.msra.mxu0 %v2468
        %2490 = vmatprep.subr.bf16.mxu0 0
        %2491 = vmatpush1.bf16.xpose.msra.mxu0 %v2471
        %2492 = vmatprep.subr.bf16.mxu0 0
        %2493 = vmatpush1.bf16.xpose.msra.mxu0 %v2474
        %2494 = vmatprep.subr.bf16.mxu0 0
        %2495 = vmatpush1.bf16.xpose.msra.mxu0 %v2477
        %2496 = vmatprep.subr.bf16.mxu0 0
        %2497 = vmatpush1.bf16.xpose.msra.mxu0 %v2480
        %2498 = vmatprep.subr.bf16.mxu0 0
        %2499 = vmatpush1.bf16.xpose.msra.mxu0 0
        %2500 = vmatprep.subr.bf16.mxu0 0
        %2501 = vmatpush1.bf16.xpose.msra.mxu0 0
        %2502 = vmatprep.subr.bf16.mxu0 0
        %2503 = vmatpush1.bf16.xpose.msra.mxu0 0
        %2504 = vmatprep.subr.bf16.mxu0 0
        %2505 = vmatpush1.bf16.xpose.msra.mxu0 0
        %2506 = vmatprep.subr.bf16.mxu0 0
        %2507 = vmatpush1.bf16.xpose.msra.mxu0 0
        %2508 = vmatprep.subr.bf16.mxu0 0
        %2509 = vmatpush1.bf16.xpose.msra.mxu0 0
        %2510 = vmatprep.subr.bf16.mxu0 0
        %2511 = vmatpush1.bf16.xpose.msra.mxu0 0
        %2512 = vmatprep.subr.bf16.mxu0 0
        %2513 = vmatpush1.bf16.xpose.msra.mxu0 0
        %2514 = vmatprep.mubr.bf16.mxu0 0
        %2515 = vmatmul.mubr.bf16.gmra.mrb[0].mxu0 %v2435
        %v2516 = vpop.f32.mrb[0].mxu0
        %v2517 = vadd.f32 0.0, %v2516
        %v2518 = vpop.f32.mrb[0].mxu0
        %v2519 = vpop.f32.mrb[0].mxu0
        %v2520 = vadd.f32 0.0, %v2519
        %v2521 = vpop.f32.mrb[0].mxu0
        %2522 = vmatprep.mubr.bf16.mxu0 0
        %2523 = vmatmul.mubr.bf16.gmra.mrb[0].mxu0 %v2438
        %v2524 = vpop.f32.mrb[0].mxu0
        %v2525 = vadd.f32 0.0, %v2524
        %v2526 = vpop.f32.mrb[0].mxu0
        %v2527 = vpop.f32.mrb[0].mxu0
        %v2528 = vadd.f32 0.0, %v2527
        %v2529 = vpop.f32.mrb[0].mxu0
        %2530 = vmatprep.mubr.bf16.mxu0 0
        %2531 = vmatmul.mubr.bf16.gmra.mrb[0].mxu0 %v2441
        %v2532 = vpop.f32.mrb[0].mxu0
        %v2533 = vadd.f32 0.0, %v2532
        %v2534 = vpop.f32.mrb[0].mxu0
        %v2535 = vpop.f32.mrb[0].mxu0
        %v2536 = vadd.f32 0.0, %v2535
        %v2537 = vpop.f32.mrb[0].mxu0
        %2538 = vmatprep.mubr.bf16.mxu0 0
        %2539 = vmatmul.mubr.bf16.gmra.mrb[0].mxu0 %v2444
        %v2540 = vpop.f32.mrb[0].mxu0
        %v2541 = vadd.f32 0.0, %v2540
        %v2542 = vpop.f32.mrb[0].mxu0
        %v2543 = vpop.f32.mrb[0].mxu0
        %v2544 = vadd.f32 0.0, %v2543
        %v2545 = vpop.f32.mrb[0].mxu0
        %2546 = vmatprep.mubr.bf16.mxu0 0
        %2547 = vmatmul.mubr.bf16.gmra.mrb[0].mxu0 %v2447
        %v2548 = vpop.f32.mrb[0].mxu0
        %v2549 = vadd.f32 0.0, %v2548
        %v2550 = vpop.f32.mrb[0].mxu0
        %v2551 = vpop.f32.mrb[0].mxu0
        %v2552 = vadd.f32 0.0, %v2551
        %v2553 = vpop.f32.mrb[0].mxu0
        %2554 = vmatprep.mubr.bf16.mxu0 0
        %2555 = vmatmul.mubr.bf16.gmra.mrb[0].mxu0 %v2450
        %v2556 = vpop.f32.mrb[0].mxu0
        %v2557 = vadd.f32 0.0, %v2556
        %v2558 = vpop.f32.mrb[0].mxu0
        %v2559 = vpop.f32.mrb[0].mxu0
        %v2560 = vadd.f32 0.0, %v2559
        %v2561 = vpop.f32.mrb[0].mxu0
        %2562 = vmatprep.mubr.bf16.mxu0 0
        %2563 = vmatmul.mubr.bf16.gmra.mrb[0].mxu0 %v2453
        %v2564 = vpop.f32.mrb[0].mxu0
        %v2565 = vadd.f32 0.0, %v2564
        %v2566 = vpop.f32.mrb[0].mxu0
        %v2567 = vpop.f32.mrb[0].mxu0
        %v2568 = vadd.f32 0.0, %v2567
        %v2569 = vpop.f32.mrb[0].mxu0
        %2570 = vmatprep.mubr.bf16.mxu0 0
        %2571 = vmatmul.mubr.bf16.gmra.mrb[0].mxu0 %v2456
        %v2572 = vpop.f32.mrb[0].mxu0
        %v2573 = vadd.f32 0.0, %v2572
        %v2574 = vpop.f32.mrb[0].mxu0
        %v2575 = vpop.f32.mrb[0].mxu0
        %v2576 = vadd.f32 0.0, %v2575
        %v2577 = vpop.f32.mrb[0].mxu0
        %2578 = vdwg.mxu0
        %v2579 = vld [vmem:[%s1241] sm:$0xff]
        %v2580 = vld [vmem:[%s1241 + $0x8] sm:$0xff]
        %v2581 = vld [vmem:[%s1241 + $0x10] sm:$0xff]
        %v2582 = vld [vmem:[%s1241 + $0x18] sm:$0xff]
        %vm2583 = vnez %v2579
        %vm2584 = vnez %v2580
        %vm2585 = vnez %v2581
        %vm2586 = vnez %v2582
        %v2587 = vsel %vm2583, 16843009, 0
        %v2588 = vsel %vm2584, 16843009, 0
        %v2589 = vsel %vm2585, 16843009, 0
        %v2590 = vsel %vm2586, 16843009, 0
        %v2591 = vunpack.c.0.s8 %v2587
        %v2592 = vunpack.c.1.s8 %v2587
        %v2593 = vunpack.c.2.s8 %v2587
        %v2594 = vunpack.c.3.s8 %v2587
        %v2595 = vunpack.c.0.s8 %v2588
        %v2596 = vunpack.c.1.s8 %v2588
        %v2597 = vunpack.c.2.s8 %v2588
        %v2598 = vunpack.c.3.s8 %v2588
        %v2599 = vunpack.c.0.s8 %v2589
        %v2600 = vunpack.c.1.s8 %v2589
        %v2601 = vunpack.c.2.s8 %v2589
        %v2602 = vunpack.c.3.s8 %v2589
        %v2603 = vunpack.c.0.s8 %v2590
        %v2604 = vunpack.c.1.s8 %v2590
        %v2605 = vunpack.c.2.s8 %v2590
        %v2606 = vunpack.c.3.s8 %v2590
        %v2607 = vpack.c.b16 %v2591, %v2591
        %v2608 = vpack.c.b8 %v2607, %v2607
        %v2609 = vpack.c.b16 %v2592, %v2592
        %v2610 = vpack.c.b8 %v2609, %v2609
        %v2611 = vpack.c.b16 %v2593, %v2593
        %v2612 = vpack.c.b8 %v2611, %v2611
        %v2613 = vpack.c.b16 %v2594, %v2594
        %v2614 = vpack.c.b8 %v2613, %v2613
        %v2615 = vpack.c.b16 %v2595, %v2595
        %v2616 = vpack.c.b8 %v2615, %v2615
        %v2617 = vpack.c.b16 %v2596, %v2596
        %v2618 = vpack.c.b8 %v2617, %v2617
        %v2619 = vpack.c.b16 %v2597, %v2597
        %v2620 = vpack.c.b8 %v2619, %v2619
        %v2621 = vpack.c.b16 %v2598, %v2598
        %v2622 = vpack.c.b8 %v2621, %v2621
        %v2623 = vpack.c.b16 %v2599, %v2599
        %v2624 = vpack.c.b8 %v2623, %v2623
        %v2625 = vpack.c.b16 %v2600, %v2600
        %v2626 = vpack.c.b8 %v2625, %v2625
        %v2627 = vpack.c.b16 %v2601, %v2601
        %v2628 = vpack.c.b8 %v2627, %v2627
        %v2629 = vpack.c.b16 %v2602, %v2602
        %v2630 = vpack.c.b8 %v2629, %v2629
        %v2631 = vpack.c.b16 %v2603, %v2603
        %v2632 = vpack.c.b8 %v2631, %v2631
        %v2633 = vpack.c.b16 %v2604, %v2604
        %v2634 = vpack.c.b8 %v2633, %v2633
        %v2635 = vpack.c.b16 %v2605, %v2605
        %v2636 = vpack.c.b8 %v2635, %v2635
        %v2637 = vpack.c.b16 %v2606, %v2606
        %v2638 = vpack.c.b8 %v2637, %v2637
        %vm2639 = vnez %v2608
        %vm2640 = vnez %v2610
        %vm2641 = vnez %v2612
        %vm2642 = vnez %v2614
        %vm2643 = vnez %v2616
        %vm2644 = vnez %v2618
        %vm2645 = vnez %v2620
        %vm2646 = vnez %v2622
        %vm2647 = vnez %v2624
        %vm2648 = vnez %v2626
        %vm2649 = vnez %v2628
        %vm2650 = vnez %v2630
        %vm2651 = vnez %v2632
        %vm2652 = vnez %v2634
        %vm2653 = vnez %v2636
        %vm2654 = vnez %v2638
        %v2655 = vsel %vm2639, 16843009, 0
        %v2656 = vsel %vm2640, 16843009, 0
        %v2657 = vsel %vm2641, 16843009, 0
        %v2658 = vsel %vm2642, 16843009, 0
        %v2659 = vsel %vm2643, 16843009, 0
        %v2660 = vsel %vm2644, 16843009, 0
        %v2661 = vsel %vm2645, 16843009, 0
        %v2662 = vsel %vm2646, 16843009, 0
        %v2663 = vsel %vm2647, 16843009, 0
        %v2664 = vsel %vm2648, 16843009, 0
        %v2665 = vsel %vm2649, 16843009, 0
        %v2666 = vsel %vm2650, 16843009, 0
        %v2667 = vsel %vm2651, 16843009, 0
        %v2668 = vsel %vm2652, 16843009, 0
        %v2669 = vsel %vm2653, 16843009, 0
        %v2670 = vsel %vm2654, 16843009, 0
        %v2671 = vunpack.c.0.s8 %v2655
        %v2672 = vunpack.c.0.s8 %v2656
        %v2673 = vunpack.c.0.s8 %v2657
        %v2674 = vunpack.c.0.s8 %v2658
        %v2675 = vunpack.c.0.s8 %v2659
        %v2676 = vunpack.c.0.s8 %v2660
        %v2677 = vunpack.c.0.s8 %v2661
        %v2678 = vunpack.c.0.s8 %v2662
        %v2679 = vunpack.c.0.s8 %v2663
        %v2680 = vunpack.c.0.s8 %v2664
        %v2681 = vunpack.c.0.s8 %v2665
        %v2682 = vunpack.c.0.s8 %v2666
        %v2683 = vunpack.c.0.s8 %v2667
        %v2684 = vunpack.c.0.s8 %v2668
        %v2685 = vunpack.c.0.s8 %v2669
        %v2686 = vunpack.c.0.s8 %v2670
        %vm2687 = vcmp.ne.s32.totalorder %v2671, 0
        %vm2688 = vcmp.ne.s32.totalorder %v2672, 0
        %vm2689 = vcmp.ne.s32.totalorder %v2673, 0
        %vm2690 = vcmp.ne.s32.totalorder %v2674, 0
        %vm2691 = vcmp.ne.s32.totalorder %v2675, 0
        %vm2692 = vcmp.ne.s32.totalorder %v2676, 0
        %vm2693 = vcmp.ne.s32.totalorder %v2677, 0
        %vm2694 = vcmp.ne.s32.totalorder %v2678, 0
        %vm2695 = vcmp.ne.s32.totalorder %v2679, 0
        %vm2696 = vcmp.ne.s32.totalorder %v2680, 0
        %vm2697 = vcmp.ne.s32.totalorder %v2681, 0
        %vm2698 = vcmp.ne.s32.totalorder %v2682, 0
        %vm2699 = vcmp.ne.s32.totalorder %v2683, 0
        %vm2700 = vcmp.ne.s32.totalorder %v2684, 0
        %vm2701 = vcmp.ne.s32.totalorder %v2685, 0
        %vm2702 = vcmp.ne.s32.totalorder %v2686, 0
        %v2703 = vsel %vm2687, 1, 0
        %v2704 = vsel %vm2688, 1, 0
        %v2705 = vsel %vm2689, 1, 0
        %v2706 = vsel %vm2690, 1, 0
        %v2707 = vsel %vm2691, 1, 0
        %v2708 = vsel %vm2692, 1, 0
        %v2709 = vsel %vm2693, 1, 0
        %v2710 = vsel %vm2694, 1, 0
        %v2711 = vsel %vm2695, 1, 0
        %v2712 = vsel %vm2696, 1, 0
        %v2713 = vsel %vm2697, 1, 0
        %v2714 = vsel %vm2698, 1, 0
        %v2715 = vsel %vm2699, 1, 0
        %v2716 = vsel %vm2700, 1, 0
        %v2717 = vsel %vm2701, 1, 0
        %v2718 = vsel %vm2702, 1, 0
        %vm2719 = vcmp.eq.s32.totalorder %v2703, 1
        %vm2720 = vcmp.eq.s32.totalorder %v2704, 1
        %vm2721 = vcmp.eq.s32.totalorder %v2705, 1
        %vm2722 = vcmp.eq.s32.totalorder %v2706, 1
        %vm2723 = vcmp.eq.s32.totalorder %v2707, 1
        %vm2724 = vcmp.eq.s32.totalorder %v2708, 1
        %vm2725 = vcmp.eq.s32.totalorder %v2709, 1
        %vm2726 = vcmp.eq.s32.totalorder %v2710, 1
        %vm2727 = vcmp.eq.s32.totalorder %v2711, 1
        %vm2728 = vcmp.eq.s32.totalorder %v2712, 1
        %vm2729 = vcmp.eq.s32.totalorder %v2713, 1
        %vm2730 = vcmp.eq.s32.totalorder %v2714, 1
        %vm2731 = vcmp.eq.s32.totalorder %v2715, 1
        %vm2732 = vcmp.eq.s32.totalorder %v2716, 1
        %vm2733 = vcmp.eq.s32.totalorder %v2717, 1
        %vm2734 = vcmp.eq.s32.totalorder %v2718, 1
        %v2735 = vsel %vm2719, %v1842, -1e+09
        %v2736 = vsel %vm2720, %v1845, -1e+09
        %v2737 = vsel %vm2721, %v1850, -1e+09
        %v2738 = vsel %vm2722, %v1853, -1e+09
        %v2739 = vsel %vm2723, %v1858, -1e+09
        %v2740 = vsel %vm2724, %v1861, -1e+09
        %v2741 = vsel %vm2725, %v1866, -1e+09
        %v2742 = vsel %vm2726, %v1869, -1e+09
        %v2743 = vsel %vm2727, %v1874, -1e+09
        %v2744 = vsel %vm2728, %v1877, -1e+09
        %v2745 = vsel %vm2729, %v1882, -1e+09
        %v2746 = vsel %vm2730, %v1885, -1e+09
        %v2747 = vsel %vm2731, %v1890, -1e+09
        %v2748 = vsel %vm2732, %v1893, -1e+09
        %v2749 = vsel %vm2733, %v1898, -1e+09
        %v2750 = vsel %vm2734, %v1901, -1e+09
        %v2751 = vsel %vm2719, %v2067, -1e+09
        %v2752 = vsel %vm2720, %v2070, -1e+09
        %v2753 = vsel %vm2721, %v2075, -1e+09
        %v2754 = vsel %vm2722, %v2078, -1e+09
        %v2755 = vsel %vm2723, %v2083, -1e+09
        %v2756 = vsel %vm2724, %v2086, -1e+09
        %v2757 = vsel %vm2725, %v2091, -1e+09
        %v2758 = vsel %vm2726, %v2094, -1e+09
        %v2759 = vsel %vm2727, %v2099, -1e+09
        %v2760 = vsel %vm2728, %v2102, -1e+09
        %v2761 = vsel %vm2729, %v2107, -1e+09
        %v2762 = vsel %vm2730, %v2110, -1e+09
        %v2763 = vsel %vm2731, %v2115, -1e+09
        %v2764 = vsel %vm2732, %v2118, -1e+09
        %v2765 = vsel %vm2733, %v2123, -1e+09
        %v2766 = vsel %vm2734, %v2126, -1e+09
        %v2767 = vsel %vm2719, %v2292, -1e+09
        %v2768 = vsel %vm2720, %v2295, -1e+09
        %v2769 = vsel %vm2721, %v2300, -1e+09
        %v2770 = vsel %vm2722, %v2303, -1e+09
        %v2771 = vsel %vm2723, %v2308, -1e+09
        %v2772 = vsel %vm2724, %v2311, -1e+09
        %v2773 = vsel %vm2725, %v2316, -1e+09
        %v2774 = vsel %vm2726, %v2319, -1e+09
        %v2775 = vsel %vm2727, %v2324, -1e+09
        %v2776 = vsel %vm2728, %v2327, -1e+09
        %v2777 = vsel %vm2729, %v2332, -1e+09
        %v2778 = vsel %vm2730, %v2335, -1e+09
        %v2779 = vsel %vm2731, %v2340, -1e+09
        %v2780 = vsel %vm2732, %v2343, -1e+09
        %v2781 = vsel %vm2733, %v2348, -1e+09
        %v2782 = vsel %vm2734, %v2351, -1e+09
        %v2783 = vsel %vm2719, %v2517, -1e+09
        %v2784 = vsel %vm2720, %v2520, -1e+09
        %v2785 = vsel %vm2721, %v2525, -1e+09
        %v2786 = vsel %vm2722, %v2528, -1e+09
        %v2787 = vsel %vm2723, %v2533, -1e+09
        %v2788 = vsel %vm2724, %v2536, -1e+09
        %v2789 = vsel %vm2725, %v2541, -1e+09
        %v2790 = vsel %vm2726, %v2544, -1e+09
        %v2791 = vsel %vm2727, %v2549, -1e+09
        %v2792 = vsel %vm2728, %v2552, -1e+09
        %v2793 = vsel %vm2729, %v2557, -1e+09
        %v2794 = vsel %vm2730, %v2560, -1e+09
        %v2795 = vsel %vm2731, %v2565, -1e+09
        %v2796 = vsel %vm2732, %v2568, -1e+09
        %v2797 = vsel %vm2733, %v2573, -1e+09
        %v2798 = vsel %vm2734, %v2576, -1e+09
        %v2799 = vld [vmem:[#allocation2] sm:$0xff]
        %v2800 = vld [vmem:[#allocation2 + $0x8] sm:$0xff]
        %v2801 = vld [vmem:[#allocation2 + $0x10] sm:$0xff]
        %v2802 = vld [vmem:[#allocation2 + $0x18] sm:$0xff]
        %v2803 = vld [vmem:[#allocation2 + $0x20] sm:$0xff]
        %v2804 = vld [vmem:[#allocation2 + $0x28] sm:$0xff]
        %v2805 = vld [vmem:[#allocation2 + $0x30] sm:$0xff]
        %v2806 = vld [vmem:[#allocation2 + $0x38] sm:$0xff]
        %v2807 = vld [vmem:[#allocation2 + $0x40] sm:$0xff]
        %v2808 = vld [vmem:[#allocation2 + $0x48] sm:$0xff]
        %v2809 = vld [vmem:[#allocation2 + $0x50] sm:$0xff]
        %v2810 = vld [vmem:[#allocation2 + $0x58] sm:$0xff]
        %v2811 = vld [vmem:[#allocation2 + $0x60] sm:$0xff]
        %v2812 = vld [vmem:[#allocation2 + $0x68] sm:$0xff]
        %v2813 = vld [vmem:[#allocation2 + $0x70] sm:$0xff]
        %v2814 = vld [vmem:[#allocation2 + $0x78] sm:$0xff]
        %v2815 = vld [vmem:[#allocation2 + $0x80] sm:$0xff]
        %v2816 = vld [vmem:[#allocation2 + $0x88] sm:$0xff]
        %v2817 = vld [vmem:[#allocation2 + $0x90] sm:$0xff]
        %v2818 = vld [vmem:[#allocation2 + $0x98] sm:$0xff]
        %v2819 = vld [vmem:[#allocation2 + $0xa0] sm:$0xff]
        %v2820 = vld [vmem:[#allocation2 + $0xa8] sm:$0xff]
        %v2821 = vld [vmem:[#allocation2 + $0xb0] sm:$0xff]
        %v2822 = vld [vmem:[#allocation2 + $0xb8] sm:$0xff]
        %v2823 = vld [vmem:[#allocation2 + $0xc0] sm:$0xff]
        %v2824 = vld [vmem:[#allocation2 + $0xc8] sm:$0xff]
        %v2825 = vld [vmem:[#allocation2 + $0xd0] sm:$0xff]
        %v2826 = vld [vmem:[#allocation2 + $0xd8] sm:$0xff]
        %v2827 = vld [vmem:[#allocation2 + $0xe0] sm:$0xff]
        %v2828 = vld [vmem:[#allocation2 + $0xe8] sm:$0xff]
        %v2829 = vld [vmem:[#allocation2 + $0xf0] sm:$0xff]
        %v2830 = vld [vmem:[#allocation2 + $0xf8] sm:$0xff]
        %v2831 = vld [vmem:[#allocation2 + $0x100] sm:$0xff]
        %v2832 = vld [vmem:[#allocation2 + $0x108] sm:$0xff]
        %v2833 = vld [vmem:[#allocation2 + $0x110] sm:$0xff]
        %v2834 = vld [vmem:[#allocation2 + $0x118] sm:$0xff]
        %v2835 = vld [vmem:[#allocation2 + $0x120] sm:$0xff]
        %v2836 = vld [vmem:[#allocation2 + $0x128] sm:$0xff]
        %v2837 = vld [vmem:[#allocation2 + $0x130] sm:$0xff]
        %v2838 = vld [vmem:[#allocation2 + $0x138] sm:$0xff]
        %v2839 = vld [vmem:[#allocation2 + $0x140] sm:$0xff]
        %v2840 = vld [vmem:[#allocation2 + $0x148] sm:$0xff]
        %v2841 = vld [vmem:[#allocation2 + $0x150] sm:$0xff]
        %v2842 = vld [vmem:[#allocation2 + $0x158] sm:$0xff]
        %v2843 = vld [vmem:[#allocation2 + $0x160] sm:$0xff]
        %v2844 = vld [vmem:[#allocation2 + $0x168] sm:$0xff]
        %v2845 = vld [vmem:[#allocation2 + $0x170] sm:$0xff]
        %v2846 = vld [vmem:[#allocation2 + $0x178] sm:$0xff]
        %v2847 = vld [vmem:[#allocation2 + $0x180] sm:$0xff]
        %v2848 = vld [vmem:[#allocation2 + $0x188] sm:$0xff]
        %v2849 = vld [vmem:[#allocation2 + $0x190] sm:$0xff]
        %v2850 = vld [vmem:[#allocation2 + $0x198] sm:$0xff]
        %v2851 = vld [vmem:[#allocation2 + $0x1a0] sm:$0xff]
        %v2852 = vld [vmem:[#allocation2 + $0x1a8] sm:$0xff]
        %v2853 = vld [vmem:[#allocation2 + $0x1b0] sm:$0xff]
        %v2854 = vld [vmem:[#allocation2 + $0x1b8] sm:$0xff]
        %v2855 = vld [vmem:[#allocation2 + $0x1c0] sm:$0xff]
        %v2856 = vld [vmem:[#allocation2 + $0x1c8] sm:$0xff]
        %v2857 = vld [vmem:[#allocation2 + $0x1d0] sm:$0xff]
        %v2858 = vld [vmem:[#allocation2 + $0x1d8] sm:$0xff]
        %v2859 = vld [vmem:[#allocation2 + $0x1e0] sm:$0xff]
        %v2860 = vld [vmem:[#allocation2 + $0x1e8] sm:$0xff]
        %v2861 = vld [vmem:[#allocation2 + $0x1f0] sm:$0xff]
        %v2862 = vld [vmem:[#allocation2 + $0x1f8] sm:$0xff]
        %2863 = vmax.xlane.f32.xlu0 %v2735
        %v2864 = vpop.xlane.xlu0 %2863
        %2865 = vmax.xlane.f32.xlu0 %v2736
        %v2866 = vpop.xlane.xlu0 %2865
        %2867 = vmax.xlane.f32.xlu0 %v2737
        %v2868 = vpop.xlane.xlu0 %2867
        %2869 = vmax.xlane.f32.xlu0 %v2738
        %v2870 = vpop.xlane.xlu0 %2869
        %2871 = vmax.xlane.f32.xlu0 %v2739
        %v2872 = vpop.xlane.xlu0 %2871
        %2873 = vmax.xlane.f32.xlu0 %v2740
        %v2874 = vpop.xlane.xlu0 %2873
        %2875 = vmax.xlane.f32.xlu0 %v2741
        %v2876 = vpop.xlane.xlu0 %2875
        %2877 = vmax.xlane.f32.xlu0 %v2742
        %v2878 = vpop.xlane.xlu0 %2877
        %2879 = vmax.xlane.f32.xlu0 %v2743
        %v2880 = vpop.xlane.xlu0 %2879
        %2881 = vmax.xlane.f32.xlu0 %v2744
        %v2882 = vpop.xlane.xlu0 %2881
        %2883 = vmax.xlane.f32.xlu0 %v2745
        %v2884 = vpop.xlane.xlu0 %2883
        %2885 = vmax.xlane.f32.xlu0 %v2746
        %v2886 = vpop.xlane.xlu0 %2885
        %2887 = vmax.xlane.f32.xlu0 %v2747
        %v2888 = vpop.xlane.xlu0 %2887
        %2889 = vmax.xlane.f32.xlu0 %v2748
        %v2890 = vpop.xlane.xlu0 %2889
        %2891 = vmax.xlane.f32.xlu0 %v2749
        %v2892 = vpop.xlane.xlu0 %2891
        %2893 = vmax.xlane.f32.xlu0 %v2750
        %v2894 = vpop.xlane.xlu0 %2893
        %2895 = vmax.xlane.f32.xlu0 %v2751
        %v2896 = vpop.xlane.xlu0 %2895
        %2897 = vmax.xlane.f32.xlu0 %v2752
        %v2898 = vpop.xlane.xlu0 %2897
        %2899 = vmax.xlane.f32.xlu0 %v2753
        %v2900 = vpop.xlane.xlu0 %2899
        %2901 = vmax.xlane.f32.xlu0 %v2754
        %v2902 = vpop.xlane.xlu0 %2901
        %2903 = vmax.xlane.f32.xlu0 %v2755
        %v2904 = vpop.xlane.xlu0 %2903
        %2905 = vmax.xlane.f32.xlu0 %v2756
        %v2906 = vpop.xlane.xlu0 %2905
        %2907 = vmax.xlane.f32.xlu0 %v2757
        %v2908 = vpop.xlane.xlu0 %2907
        %2909 = vmax.xlane.f32.xlu0 %v2758
        %v2910 = vpop.xlane.xlu0 %2909
        %2911 = vmax.xlane.f32.xlu0 %v2759
        %v2912 = vpop.xlane.xlu0 %2911
        %2913 = vmax.xlane.f32.xlu0 %v2760
        %v2914 = vpop.xlane.xlu0 %2913
        %2915 = vmax.xlane.f32.xlu0 %v2761
        %v2916 = vpop.xlane.xlu0 %2915
        %2917 = vmax.xlane.f32.xlu0 %v2762
        %v2918 = vpop.xlane.xlu0 %2917
        %2919 = vmax.xlane.f32.xlu0 %v2763
        %v2920 = vpop.xlane.xlu0 %2919
        %2921 = vmax.xlane.f32.xlu0 %v2764
        %v2922 = vpop.xlane.xlu0 %2921
        %2923 = vmax.xlane.f32.xlu0 %v2765
        %v2924 = vpop.xlane.xlu0 %2923
        %2925 = vmax.xlane.f32.xlu0 %v2766
        %v2926 = vpop.xlane.xlu0 %2925
        %2927 = vmax.xlane.f32.xlu0 %v2767
        %v2928 = vpop.xlane.xlu0 %2927
        %2929 = vmax.xlane.f32.xlu0 %v2768
        %v2930 = vpop.xlane.xlu0 %2929
        %2931 = vmax.xlane.f32.xlu0 %v2769
        %v2932 = vpop.xlane.xlu0 %2931
        %2933 = vmax.xlane.f32.xlu0 %v2770
        %v2934 = vpop.xlane.xlu0 %2933
        %2935 = vmax.xlane.f32.xlu0 %v2771
        %v2936 = vpop.xlane.xlu0 %2935
        %2937 = vmax.xlane.f32.xlu0 %v2772
        %v2938 = vpop.xlane.xlu0 %2937
        %2939 = vmax.xlane.f32.xlu0 %v2773
        %v2940 = vpop.xlane.xlu0 %2939
        %2941 = vmax.xlane.f32.xlu0 %v2774
        %v2942 = vpop.xlane.xlu0 %2941
        %2943 = vmax.xlane.f32.xlu0 %v2775
        %v2944 = vpop.xlane.xlu0 %2943
        %2945 = vmax.xlane.f32.xlu0 %v2776
        %v2946 = vpop.xlane.xlu0 %2945
        %2947 = vmax.xlane.f32.xlu0 %v2777
        %v2948 = vpop.xlane.xlu0 %2947
        %2949 = vmax.xlane.f32.xlu0 %v2778
        %v2950 = vpop.xlane.xlu0 %2949
        %2951 = vmax.xlane.f32.xlu0 %v2779
        %v2952 = vpop.xlane.xlu0 %2951
        %2953 = vmax.xlane.f32.xlu0 %v2780
        %v2954 = vpop.xlane.xlu0 %2953
        %2955 = vmax.xlane.f32.xlu0 %v2781
        %v2956 = vpop.xlane.xlu0 %2955
        %2957 = vmax.xlane.f32.xlu0 %v2782
        %v2958 = vpop.xlane.xlu0 %2957
        %2959 = vmax.xlane.f32.xlu0 %v2783
        %v2960 = vpop.xlane.xlu0 %2959
        %2961 = vmax.xlane.f32.xlu0 %v2784
        %v2962 = vpop.xlane.xlu0 %2961
        %2963 = vmax.xlane.f32.xlu0 %v2785
        %v2964 = vpop.xlane.xlu0 %2963
        %2965 = vmax.xlane.f32.xlu0 %v2786
        %v2966 = vpop.xlane.xlu0 %2965
        %2967 = vmax.xlane.f32.xlu0 %v2787
        %v2968 = vpop.xlane.xlu0 %2967
        %2969 = vmax.xlane.f32.xlu0 %v2788
        %v2970 = vpop.xlane.xlu0 %2969
        %2971 = vmax.xlane.f32.xlu0 %v2789
        %v2972 = vpop.xlane.xlu0 %2971
        %2973 = vmax.xlane.f32.xlu0 %v2790
        %v2974 = vpop.xlane.xlu0 %2973
        %2975 = vmax.xlane.f32.xlu0 %v2791
        %v2976 = vpop.xlane.xlu0 %2975
        %2977 = vmax.xlane.f32.xlu0 %v2792
        %v2978 = vpop.xlane.xlu0 %2977
        %2979 = vmax.xlane.f32.xlu0 %v2793
        %v2980 = vpop.xlane.xlu0 %2979
        %2981 = vmax.xlane.f32.xlu0 %v2794
        %v2982 = vpop.xlane.xlu0 %2981
        %2983 = vmax.xlane.f32.xlu0 %v2795
        %v2984 = vpop.xlane.xlu0 %2983
        %2985 = vmax.xlane.f32.xlu0 %v2796
        %v2986 = vpop.xlane.xlu0 %2985
        %2987 = vmax.xlane.f32.xlu0 %v2797
        %v2988 = vpop.xlane.xlu0 %2987
        %2989 = vmax.xlane.f32.xlu0 %v2798
        %v2990 = vpop.xlane.xlu0 %2989
        %v2991 = vmax.f32 %v2799, %v2864
        %v2992 = vmax.f32 %v2800, %v2866
        %v2993 = vmax.f32 %v2801, %v2868
        %v2994 = vmax.f32 %v2802, %v2870
        %v2995 = vmax.f32 %v2803, %v2872
        %v2996 = vmax.f32 %v2804, %v2874
        %v2997 = vmax.f32 %v2805, %v2876
        %v2998 = vmax.f32 %v2806, %v2878
        %v2999 = vmax.f32 %v2807, %v2880
        %v3000 = vmax.f32 %v2808, %v2882
        %v3001 = vmax.f32 %v2809, %v2884
        %v3002 = vmax.f32 %v2810, %v2886
        %v3003 = vmax.f32 %v2811, %v2888
        %v3004 = vmax.f32 %v2812, %v2890
        %v3005 = vmax.f32 %v2813, %v2892
        %v3006 = vmax.f32 %v2814, %v2894
        %v3007 = vmax.f32 %v2815, %v2896
        %v3008 = vmax.f32 %v2816, %v2898
        %v3009 = vmax.f32 %v2817, %v2900
        %v3010 = vmax.f32 %v2818, %v2902
        %v3011 = vmax.f32 %v2819, %v2904
        %v3012 = vmax.f32 %v2820, %v2906
        %v3013 = vmax.f32 %v2821, %v2908
        %v3014 = vmax.f32 %v2822, %v2910
        %v3015 = vmax.f32 %v2823, %v2912
        %v3016 = vmax.f32 %v2824, %v2914
        %v3017 = vmax.f32 %v2825, %v2916
        %v3018 = vmax.f32 %v2826, %v2918
        %v3019 = vmax.f32 %v2827, %v2920
        %v3020 = vmax.f32 %v2828, %v2922
        %v3021 = vmax.f32 %v2829, %v2924
        %v3022 = vmax.f32 %v2830, %v2926
        %v3023 = vmax.f32 %v2831, %v2928
        %v3024 = vmax.f32 %v2832, %v2930
        %v3025 = vmax.f32 %v2833, %v2932
        %v3026 = vmax.f32 %v2834, %v2934
        %v3027 = vmax.f32 %v2835, %v2936
        %v3028 = vmax.f32 %v2836, %v2938
        %v3029 = vmax.f32 %v2837, %v2940
        %v3030 = vmax.f32 %v2838, %v2942
        %v3031 = vmax.f32 %v2839, %v2944
        %v3032 = vmax.f32 %v2840, %v2946
        %v3033 = vmax.f32 %v2841, %v2948
        %v3034 = vmax.f32 %v2842, %v2950
        %v3035 = vmax.f32 %v2843, %v2952
        %v3036 = vmax.f32 %v2844, %v2954
        %v3037 = vmax.f32 %v2845, %v2956
        %v3038 = vmax.f32 %v2846, %v2958
        %v3039 = vmax.f32 %v2847, %v2960
        %v3040 = vmax.f32 %v2848, %v2962
        %v3041 = vmax.f32 %v2849, %v2964
        %v3042 = vmax.f32 %v2850, %v2966
        %v3043 = vmax.f32 %v2851, %v2968
        %v3044 = vmax.f32 %v2852, %v2970
        %v3045 = vmax.f32 %v2853, %v2972
        %v3046 = vmax.f32 %v2854, %v2974
        %v3047 = vmax.f32 %v2855, %v2976
        %v3048 = vmax.f32 %v2856, %v2978
        %v3049 = vmax.f32 %v2857, %v2980
        %v3050 = vmax.f32 %v2858, %v2982
        %v3051 = vmax.f32 %v2859, %v2984
        %v3052 = vmax.f32 %v2860, %v2986
        %v3053 = vmax.f32 %v2861, %v2988
        %v3054 = vmax.f32 %v2862, %v2990
        %v3055 = vsub.f32 %v2799, %v2991
        %v3056 = vsub.f32 %v2800, %v2992
        %v3057 = vsub.f32 %v2801, %v2993
        %v3058 = vsub.f32 %v2802, %v2994
        %v3059 = vsub.f32 %v2803, %v2995
        %v3060 = vsub.f32 %v2804, %v2996
        %v3061 = vsub.f32 %v2805, %v2997
        %v3062 = vsub.f32 %v2806, %v2998
        %v3063 = vsub.f32 %v2807, %v2999
        %v3064 = vsub.f32 %v2808, %v3000
        %v3065 = vsub.f32 %v2809, %v3001
        %v3066 = vsub.f32 %v2810, %v3002
        %v3067 = vsub.f32 %v2811, %v3003
        %v3068 = vsub.f32 %v2812, %v3004
        %v3069 = vsub.f32 %v2813, %v3005
        %v3070 = vsub.f32 %v2814, %v3006
        %v3071 = vsub.f32 %v2815, %v3007
        %v3072 = vsub.f32 %v2816, %v3008
        %v3073 = vsub.f32 %v2817, %v3009
        %v3074 = vsub.f32 %v2818, %v3010
        %v3075 = vsub.f32 %v2819, %v3011
        %v3076 = vsub.f32 %v2820, %v3012
        %v3077 = vsub.f32 %v2821, %v3013
        %v3078 = vsub.f32 %v2822, %v3014
        %v3079 = vsub.f32 %v2823, %v3015
        %v3080 = vsub.f32 %v2824, %v3016
        %v3081 = vsub.f32 %v2825, %v3017
        %v3082 = vsub.f32 %v2826, %v3018
        %v3083 = vsub.f32 %v2827, %v3019
        %v3084 = vsub.f32 %v2828, %v3020
        %v3085 = vsub.f32 %v2829, %v3021
        %v3086 = vsub.f32 %v2830, %v3022
        %v3087 = vsub.f32 %v2831, %v3023
        %v3088 = vsub.f32 %v2832, %v3024
        %v3089 = vsub.f32 %v2833, %v3025
        %v3090 = vsub.f32 %v2834, %v3026
        %v3091 = vsub.f32 %v2835, %v3027
        %v3092 = vsub.f32 %v2836, %v3028
        %v3093 = vsub.f32 %v2837, %v3029
        %v3094 = vsub.f32 %v2838, %v3030
        %v3095 = vsub.f32 %v2839, %v3031
        %v3096 = vsub.f32 %v2840, %v3032
        %v3097 = vsub.f32 %v2841, %v3033
        %v3098 = vsub.f32 %v2842, %v3034
        %v3099 = vsub.f32 %v2843, %v3035
        %v3100 = vsub.f32 %v2844, %v3036
        %v3101 = vsub.f32 %v2845, %v3037
        %v3102 = vsub.f32 %v2846, %v3038
        %v3103 = vsub.f32 %v2847, %v3039
        %v3104 = vsub.f32 %v2848, %v3040
        %v3105 = vsub.f32 %v2849, %v3041
        %v3106 = vsub.f32 %v2850, %v3042
        %v3107 = vsub.f32 %v2851, %v3043
        %v3108 = vsub.f32 %v2852, %v3044
        %v3109 = vsub.f32 %v2853, %v3045
        %v3110 = vsub.f32 %v2854, %v3046
        %v3111 = vsub.f32 %v2855, %v3047
        %v3112 = vsub.f32 %v2856, %v3048
        %v3113 = vsub.f32 %v2857, %v3049
        %v3114 = vsub.f32 %v2858, %v3050
        %v3115 = vsub.f32 %v2859, %v3051
        %v3116 = vsub.f32 %v2860, %v3052
        %v3117 = vsub.f32 %v2861, %v3053
        %v3118 = vsub.f32 %v2862, %v3054
        %v3119 = vmul.f32 %v3055, 1.442695
        %v3120 = vpow.pop %v3119
        %v3121 = vmul.f32 %v3056, 1.442695
        %v3122 = vpow.pop %v3121
        %v3123 = vmul.f32 %v3057, 1.442695
        %v3124 = vpow.pop %v3123
        %v3125 = vmul.f32 %v3058, 1.442695
        %v3126 = vpow.pop %v3125
        %v3127 = vmul.f32 %v3059, 1.442695
        %v3128 = vpow.pop %v3127
        %v3129 = vmul.f32 %v3060, 1.442695
        %v3130 = vpow.pop %v3129
        %v3131 = vmul.f32 %v3061, 1.442695
        %v3132 = vpow.pop %v3131
        %v3133 = vmul.f32 %v3062, 1.442695
        %v3134 = vpow.pop %v3133
        %v3135 = vmul.f32 %v3063, 1.442695
        %v3136 = vpow.pop %v3135
        %v3137 = vmul.f32 %v3064, 1.442695
        %v3138 = vpow.pop %v3137
        %v3139 = vmul.f32 %v3065, 1.442695
        %v3140 = vpow.pop %v3139
        %v3141 = vmul.f32 %v3066, 1.442695
        %v3142 = vpow.pop %v3141
        %v3143 = vmul.f32 %v3067, 1.442695
        %v3144 = vpow.pop %v3143
        %v3145 = vmul.f32 %v3068, 1.442695
        %v3146 = vpow.pop %v3145
        %v3147 = vmul.f32 %v3069, 1.442695
        %v3148 = vpow.pop %v3147
        %v3149 = vmul.f32 %v3070, 1.442695
        %v3150 = vpow.pop %v3149
        %v3151 = vmul.f32 %v3071, 1.442695
        %v3152 = vpow.pop %v3151
        %v3153 = vmul.f32 %v3072, 1.442695
        %v3154 = vpow.pop %v3153
        %v3155 = vmul.f32 %v3073, 1.442695
        %v3156 = vpow.pop %v3155
        %v3157 = vmul.f32 %v3074, 1.442695
        %v3158 = vpow.pop %v3157
        %v3159 = vmul.f32 %v3075, 1.442695
        %v3160 = vpow.pop %v3159
        %v3161 = vmul.f32 %v3076, 1.442695
        %v3162 = vpow.pop %v3161
        %v3163 = vmul.f32 %v3077, 1.442695
        %v3164 = vpow.pop %v3163
        %v3165 = vmul.f32 %v3078, 1.442695
        %v3166 = vpow.pop %v3165
        %v3167 = vmul.f32 %v3079, 1.442695
        %v3168 = vpow.pop %v3167
        %v3169 = vmul.f32 %v3080, 1.442695
        %v3170 = vpow.pop %v3169
        %v3171 = vmul.f32 %v3081, 1.442695
        %v3172 = vpow.pop %v3171
        %v3173 = vmul.f32 %v3082, 1.442695
        %v3174 = vpow.pop %v3173
        %v3175 = vmul.f32 %v3083, 1.442695
        %v3176 = vpow.pop %v3175
        %v3177 = vmul.f32 %v3084, 1.442695
        %v3178 = vpow.pop %v3177
        %v3179 = vmul.f32 %v3085, 1.442695
        %v3180 = vpow.pop %v3179
        %v3181 = vmul.f32 %v3086, 1.442695
        %v3182 = vpow.pop %v3181
        %v3183 = vmul.f32 %v3087, 1.442695
        %v3184 = vpow.pop %v3183
        %v3185 = vmul.f32 %v3088, 1.442695
        %v3186 = vpow.pop %v3185
        %v3187 = vmul.f32 %v3089, 1.442695
        %v3188 = vpow.pop %v3187
        %v3189 = vmul.f32 %v3090, 1.442695
        %v3190 = vpow.pop %v3189
        %v3191 = vmul.f32 %v3091, 1.442695
        %v3192 = vpow.pop %v3191
        %v3193 = vmul.f32 %v3092, 1.442695
        %v3194 = vpow.pop %v3193
        %v3195 = vmul.f32 %v3093, 1.442695
        %v3196 = vpow.pop %v3195
        %v3197 = vmul.f32 %v3094, 1.442695
        %v3198 = vpow.pop %v3197
        %v3199 = vmul.f32 %v3095, 1.442695
        %v3200 = vpow.pop %v3199
        %v3201 = vmul.f32 %v3096, 1.442695
        %v3202 = vpow.pop %v3201
        %v3203 = vmul.f32 %v3097, 1.442695
        %v3204 = vpow.pop %v3203
        %v3205 = vmul.f32 %v3098, 1.442695
        %v3206 = vpow.pop %v3205
        %v3207 = vmul.f32 %v3099, 1.442695
        %v3208 = vpow.pop %v3207
        %v3209 = vmul.f32 %v3100, 1.442695
        %v3210 = vpow.pop %v3209
        %v3211 = vmul.f32 %v3101, 1.442695
        %v3212 = vpow.pop %v3211
        %v3213 = vmul.f32 %v3102, 1.442695
        %v3214 = vpow.pop %v3213
        %v3215 = vmul.f32 %v3103, 1.442695
        %v3216 = vpow.pop %v3215
        %v3217 = vmul.f32 %v3104, 1.442695
        %v3218 = vpow.pop %v3217
        %v3219 = vmul.f32 %v3105, 1.442695
        %v3220 = vpow.pop %v3219
        %v3221 = vmul.f32 %v3106, 1.442695
        %v3222 = vpow.pop %v3221
        %v3223 = vmul.f32 %v3107, 1.442695
        %v3224 = vpow.pop %v3223
        %v3225 = vmul.f32 %v3108, 1.442695
        %v3226 = vpow.pop %v3225
        %v3227 = vmul.f32 %v3109, 1.442695
        %v3228 = vpow.pop %v3227
        %v3229 = vmul.f32 %v3110, 1.442695
        %v3230 = vpow.pop %v3229
        %v3231 = vmul.f32 %v3111, 1.442695
        %v3232 = vpow.pop %v3231
        %v3233 = vmul.f32 %v3112, 1.442695
        %v3234 = vpow.pop %v3233
        %v3235 = vmul.f32 %v3113, 1.442695
        %v3236 = vpow.pop %v3235
        %v3237 = vmul.f32 %v3114, 1.442695
        %v3238 = vpow.pop %v3237
        %v3239 = vmul.f32 %v3115, 1.442695
        %v3240 = vpow.pop %v3239
        %v3241 = vmul.f32 %v3116, 1.442695
        %v3242 = vpow.pop %v3241
        %v3243 = vmul.f32 %v3117, 1.442695
        %v3244 = vpow.pop %v3243
        %v3245 = vmul.f32 %v3118, 1.442695
        %v3246 = vpow.pop %v3245
        %3248 = vset.pattern.permute.xlu0 0
        %3249 = vperm.xlu0 %3248, %v2991
        %v3250 = vpop.permute.xlu0 %3249
        %3253 = vset.pattern.permute.xlu0 0
        %3254 = vperm.xlu0 %3253, %v2992
        %v3255 = vpop.permute.xlu0 %3254
        %3258 = vset.pattern.permute.xlu0 0
        %3259 = vperm.xlu0 %3258, %v2993
        %v3260 = vpop.permute.xlu0 %3259
        %3263 = vset.pattern.permute.xlu0 0
        %3264 = vperm.xlu0 %3263, %v2994
        %v3265 = vpop.permute.xlu0 %3264
        %3268 = vset.pattern.permute.xlu0 0
        %3269 = vperm.xlu0 %3268, %v2995
        %v3270 = vpop.permute.xlu0 %3269
        %3273 = vset.pattern.permute.xlu0 0
        %3274 = vperm.xlu0 %3273, %v2996
        %v3275 = vpop.permute.xlu0 %3274
        %3278 = vset.pattern.permute.xlu0 0
        %3279 = vperm.xlu0 %3278, %v2997
        %v3280 = vpop.permute.xlu0 %3279
        %3283 = vset.pattern.permute.xlu0 0
        %3284 = vperm.xlu0 %3283, %v2998
        %v3285 = vpop.permute.xlu0 %3284
        %3288 = vset.pattern.permute.xlu0 0
        %3289 = vperm.xlu0 %3288, %v2999
        %v3290 = vpop.permute.xlu0 %3289
        %3293 = vset.pattern.permute.xlu0 0
        %3294 = vperm.xlu0 %3293, %v3000
        %v3295 = vpop.permute.xlu0 %3294
        %3298 = vset.pattern.permute.xlu0 0
        %3299 = vperm.xlu0 %3298, %v3001
        %v3300 = vpop.permute.xlu0 %3299
        %3303 = vset.pattern.permute.xlu0 0
        %3304 = vperm.xlu0 %3303, %v3002
        %v3305 = vpop.permute.xlu0 %3304
        %3308 = vset.pattern.permute.xlu0 0
        %3309 = vperm.xlu0 %3308, %v3003
        %v3310 = vpop.permute.xlu0 %3309
        %3313 = vset.pattern.permute.xlu0 0
        %3314 = vperm.xlu0 %3313, %v3004
        %v3315 = vpop.permute.xlu0 %3314
        %3318 = vset.pattern.permute.xlu0 0
        %3319 = vperm.xlu0 %3318, %v3005
        %v3320 = vpop.permute.xlu0 %3319
        %3323 = vset.pattern.permute.xlu0 0
        %3324 = vperm.xlu0 %3323, %v3006
        %v3325 = vpop.permute.xlu0 %3324
        %3328 = vset.pattern.permute.xlu0 0
        %3329 = vperm.xlu0 %3328, %v3007
        %v3330 = vpop.permute.xlu0 %3329
        %3333 = vset.pattern.permute.xlu0 0
        %3334 = vperm.xlu0 %3333, %v3008
        %v3335 = vpop.permute.xlu0 %3334
        %3338 = vset.pattern.permute.xlu0 0
        %3339 = vperm.xlu0 %3338, %v3009
        %v3340 = vpop.permute.xlu0 %3339
        %3343 = vset.pattern.permute.xlu0 0
        %3344 = vperm.xlu0 %3343, %v3010
        %v3345 = vpop.permute.xlu0 %3344
        %3348 = vset.pattern.permute.xlu0 0
        %3349 = vperm.xlu0 %3348, %v3011
        %v3350 = vpop.permute.xlu0 %3349
        %3353 = vset.pattern.permute.xlu0 0
        %3354 = vperm.xlu0 %3353, %v3012
        %v3355 = vpop.permute.xlu0 %3354
        %3358 = vset.pattern.permute.xlu0 0
        %3359 = vperm.xlu0 %3358, %v3013
        %v3360 = vpop.permute.xlu0 %3359
        %3363 = vset.pattern.permute.xlu0 0
        %3364 = vperm.xlu0 %3363, %v3014
        %v3365 = vpop.permute.xlu0 %3364
        %3368 = vset.pattern.permute.xlu0 0
        %3369 = vperm.xlu0 %3368, %v3015
        %v3370 = vpop.permute.xlu0 %3369
        %3373 = vset.pattern.permute.xlu0 0
        %3374 = vperm.xlu0 %3373, %v3016
        %v3375 = vpop.permute.xlu0 %3374
        %3378 = vset.pattern.permute.xlu0 0
        %3379 = vperm.xlu0 %3378, %v3017
        %v3380 = vpop.permute.xlu0 %3379
        %3383 = vset.pattern.permute.xlu0 0
        %3384 = vperm.xlu0 %3383, %v3018
        %v3385 = vpop.permute.xlu0 %3384
        %3388 = vset.pattern.permute.xlu0 0
        %3389 = vperm.xlu0 %3388, %v3019
        %v3390 = vpop.permute.xlu0 %3389
        %3393 = vset.pattern.permute.xlu0 0
        %3394 = vperm.xlu0 %3393, %v3020
        %v3395 = vpop.permute.xlu0 %3394
        %3398 = vset.pattern.permute.xlu0 0
        %3399 = vperm.xlu0 %3398, %v3021
        %v3400 = vpop.permute.xlu0 %3399
        %3403 = vset.pattern.permute.xlu0 0
        %3404 = vperm.xlu0 %3403, %v3022
        %v3405 = vpop.permute.xlu0 %3404
        %3408 = vset.pattern.permute.xlu0 0
        %3409 = vperm.xlu0 %3408, %v3023
        %v3410 = vpop.permute.xlu0 %3409
        %3413 = vset.pattern.permute.xlu0 0
        %3414 = vperm.xlu0 %3413, %v3024
        %v3415 = vpop.permute.xlu0 %3414
        %3418 = vset.pattern.permute.xlu0 0
        %3419 = vperm.xlu0 %3418, %v3025
        %v3420 = vpop.permute.xlu0 %3419
        %3423 = vset.pattern.permute.xlu0 0
        %3424 = vperm.xlu0 %3423, %v3026
        %v3425 = vpop.permute.xlu0 %3424
        %3428 = vset.pattern.permute.xlu0 0
        %3429 = vperm.xlu0 %3428, %v3027
        %v3430 = vpop.permute.xlu0 %3429
        %3433 = vset.pattern.permute.xlu0 0
        %3434 = vperm.xlu0 %3433, %v3028
        %v3435 = vpop.permute.xlu0 %3434
        %3438 = vset.pattern.permute.xlu0 0
        %3439 = vperm.xlu0 %3438, %v3029
        %v3440 = vpop.permute.xlu0 %3439
        %3443 = vset.pattern.permute.xlu0 0
        %3444 = vperm.xlu0 %3443, %v3030
        %v3445 = vpop.permute.xlu0 %3444
        %3448 = vset.pattern.permute.xlu0 0
        %3449 = vperm.xlu0 %3448, %v3031
        %v3450 = vpop.permute.xlu0 %3449
        %3453 = vset.pattern.permute.xlu0 0
        %3454 = vperm.xlu0 %3453, %v3032
        %v3455 = vpop.permute.xlu0 %3454
        %3458 = vset.pattern.permute.xlu0 0
        %3459 = vperm.xlu0 %3458, %v3033
        %v3460 = vpop.permute.xlu0 %3459
        %3463 = vset.pattern.permute.xlu0 0
        %3464 = vperm.xlu0 %3463, %v3034
        %v3465 = vpop.permute.xlu0 %3464
        %3468 = vset.pattern.permute.xlu0 0
        %3469 = vperm.xlu0 %3468, %v3035
        %v3470 = vpop.permute.xlu0 %3469
        %3473 = vset.pattern.permute.xlu0 0
        %3474 = vperm.xlu0 %3473, %v3036
        %v3475 = vpop.permute.xlu0 %3474
        %3478 = vset.pattern.permute.xlu0 0
        %3479 = vperm.xlu0 %3478, %v3037
        %v3480 = vpop.permute.xlu0 %3479
        %3483 = vset.pattern.permute.xlu0 0
        %3484 = vperm.xlu0 %3483, %v3038
        %v3485 = vpop.permute.xlu0 %3484
        %3488 = vset.pattern.permute.xlu0 0
        %3489 = vperm.xlu0 %3488, %v3039
        %v3490 = vpop.permute.xlu0 %3489
        %3493 = vset.pattern.permute.xlu0 0
        %3494 = vperm.xlu0 %3493, %v3040
        %v3495 = vpop.permute.xlu0 %3494
        %3498 = vset.pattern.permute.xlu0 0
        %3499 = vperm.xlu0 %3498, %v3041
        %v3500 = vpop.permute.xlu0 %3499
        %3503 = vset.pattern.permute.xlu0 0
        %3504 = vperm.xlu0 %3503, %v3042
        %v3505 = vpop.permute.xlu0 %3504
        %3508 = vset.pattern.permute.xlu0 0
        %3509 = vperm.xlu0 %3508, %v3043
        %v3510 = vpop.permute.xlu0 %3509
        %3513 = vset.pattern.permute.xlu0 0
        %3514 = vperm.xlu0 %3513, %v3044
        %v3515 = vpop.permute.xlu0 %3514
        %3518 = vset.pattern.permute.xlu0 0
        %3519 = vperm.xlu0 %3518, %v3045
        %v3520 = vpop.permute.xlu0 %3519
        %3523 = vset.pattern.permute.xlu0 0
        %3524 = vperm.xlu0 %3523, %v3046
        %v3525 = vpop.permute.xlu0 %3524
        %3528 = vset.pattern.permute.xlu0 0
        %3529 = vperm.xlu0 %3528, %v3047
        %v3530 = vpop.permute.xlu0 %3529
        %3533 = vset.pattern.permute.xlu0 0
        %3534 = vperm.xlu0 %3533, %v3048
        %v3535 = vpop.permute.xlu0 %3534
        %3538 = vset.pattern.permute.xlu0 0
        %3539 = vperm.xlu0 %3538, %v3049
        %v3540 = vpop.permute.xlu0 %3539
        %3543 = vset.pattern.permute.xlu0 0
        %3544 = vperm.xlu0 %3543, %v3050
        %v3545 = vpop.permute.xlu0 %3544
        %3548 = vset.pattern.permute.xlu0 0
        %3549 = vperm.xlu0 %3548, %v3051
        %v3550 = vpop.permute.xlu0 %3549
        %3553 = vset.pattern.permute.xlu0 0
        %3554 = vperm.xlu0 %3553, %v3052
        %v3555 = vpop.permute.xlu0 %3554
        %3558 = vset.pattern.permute.xlu0 0
        %3559 = vperm.xlu0 %3558, %v3053
        %v3560 = vpop.permute.xlu0 %3559
        %3563 = vset.pattern.permute.xlu0 0
        %3564 = vperm.xlu0 %3563, %v3054
        %v3565 = vpop.permute.xlu0 %3564
        %v3567 = vsub.f32 %v2735, %v3250
        %v3568 = vsub.f32 %v2736, %v3255
        %v3569 = vsub.f32 %v2737, %v3260
        %v3570 = vsub.f32 %v2738, %v3265
        %v3571 = vsub.f32 %v2739, %v3270
        %v3572 = vsub.f32 %v2740, %v3275
        %v3573 = vsub.f32 %v2741, %v3280
        %v3574 = vsub.f32 %v2742, %v3285
        %v3575 = vsub.f32 %v2743, %v3290
        %v3576 = vsub.f32 %v2744, %v3295
        %v3577 = vsub.f32 %v2745, %v3300
        %v3578 = vsub.f32 %v2746, %v3305
        %v3579 = vsub.f32 %v2747, %v3310
        %v3580 = vsub.f32 %v2748, %v3315
        %v3581 = vsub.f32 %v2749, %v3320
        %v3582 = vsub.f32 %v2750, %v3325
        %v3583 = vsub.f32 %v2751, %v3330
        %v3584 = vsub.f32 %v2752, %v3335
        %v3585 = vsub.f32 %v2753, %v3340
        %v3586 = vsub.f32 %v2754, %v3345
        %v3587 = vsub.f32 %v2755, %v3350
        %v3588 = vsub.f32 %v2756, %v3355
        %v3589 = vsub.f32 %v2757, %v3360
        %v3590 = vsub.f32 %v2758, %v3365
        %v3591 = vsub.f32 %v2759, %v3370
        %v3592 = vsub.f32 %v2760, %v3375
        %v3593 = vsub.f32 %v2761, %v3380
        %v3594 = vsub.f32 %v2762, %v3385
        %v3595 = vsub.f32 %v2763, %v3390
        %v3596 = vsub.f32 %v2764, %v3395
        %v3597 = vsub.f32 %v2765, %v3400
        %v3598 = vsub.f32 %v2766, %v3405
        %v3599 = vsub.f32 %v2767, %v3410
        %v3600 = vsub.f32 %v2768, %v3415
        %v3601 = vsub.f32 %v2769, %v3420
        %v3602 = vsub.f32 %v2770, %v3425
        %v3603 = vsub.f32 %v2771, %v3430
        %v3604 = vsub.f32 %v2772, %v3435
        %v3605 = vsub.f32 %v2773, %v3440
        %v3606 = vsub.f32 %v2774, %v3445
        %v3607 = vsub.f32 %v2775, %v3450
        %v3608 = vsub.f32 %v2776, %v3455
        %v3609 = vsub.f32 %v2777, %v3460
        %v3610 = vsub.f32 %v2778, %v3465
        %v3611 = vsub.f32 %v2779, %v3470
        %v3612 = vsub.f32 %v2780, %v3475
        %v3613 = vsub.f32 %v2781, %v3480
        %v3614 = vsub.f32 %v2782, %v3485
        %v3615 = vsub.f32 %v2783, %v3490
        %v3616 = vsub.f32 %v2784, %v3495
        %v3617 = vsub.f32 %v2785, %v3500
        %v3618 = vsub.f32 %v2786, %v3505
        %v3619 = vsub.f32 %v2787, %v3510
        %v3620 = vsub.f32 %v2788, %v3515
        %v3621 = vsub.f32 %v2789, %v3520
        %v3622 = vsub.f32 %v2790, %v3525
        %v3623 = vsub.f32 %v2791, %v3530
        %v3624 = vsub.f32 %v2792, %v3535
        %v3625 = vsub.f32 %v2793, %v3540
        %v3626 = vsub.f32 %v2794, %v3545
        %v3627 = vsub.f32 %v2795, %v3550
        %v3628 = vsub.f32 %v2796, %v3555
        %v3629 = vsub.f32 %v2797, %v3560
        %v3630 = vsub.f32 %v2798, %v3565
        %v3631 = vmul.f32 %v3567, 1.442695
        %v3632 = vpow.pop %v3631
        %v3633 = vmul.f32 %v3568, 1.442695
        %v3634 = vpow.pop %v3633
        %v3635 = vmul.f32 %v3569, 1.442695
        %v3636 = vpow.pop %v3635
        %v3637 = vmul.f32 %v3570, 1.442695
        %v3638 = vpow.pop %v3637
        %v3639 = vmul.f32 %v3571, 1.442695
        %v3640 = vpow.pop %v3639
        %v3641 = vmul.f32 %v3572, 1.442695
        %v3642 = vpow.pop %v3641
        %v3643 = vmul.f32 %v3573, 1.442695
        %v3644 = vpow.pop %v3643
        %v3645 = vmul.f32 %v3574, 1.442695
        %v3646 = vpow.pop %v3645
        %v3647 = vmul.f32 %v3575, 1.442695
        %v3648 = vpow.pop %v3647
        %v3649 = vmul.f32 %v3576, 1.442695
        %v3650 = vpow.pop %v3649
        %v3651 = vmul.f32 %v3577, 1.442695
        %v3652 = vpow.pop %v3651
        %v3653 = vmul.f32 %v3578, 1.442695
        %v3654 = vpow.pop %v3653
        %v3655 = vmul.f32 %v3579, 1.442695
        %v3656 = vpow.pop %v3655
        %v3657 = vmul.f32 %v3580, 1.442695
        %v3658 = vpow.pop %v3657
        %v3659 = vmul.f32 %v3581, 1.442695
        %v3660 = vpow.pop %v3659
        %v3661 = vmul.f32 %v3582, 1.442695
        %v3662 = vpow.pop %v3661
        %v3663 = vmul.f32 %v3583, 1.442695
        %v3664 = vpow.pop %v3663
        %v3665 = vmul.f32 %v3584, 1.442695
        %v3666 = vpow.pop %v3665
        %v3667 = vmul.f32 %v3585, 1.442695
        %v3668 = vpow.pop %v3667
        %v3669 = vmul.f32 %v3586, 1.442695
        %v3670 = vpow.pop %v3669
        %v3671 = vmul.f32 %v3587, 1.442695
        %v3672 = vpow.pop %v3671
        %v3673 = vmul.f32 %v3588, 1.442695
        %v3674 = vpow.pop %v3673
        %v3675 = vmul.f32 %v3589, 1.442695
        %v3676 = vpow.pop %v3675
        %v3677 = vmul.f32 %v3590, 1.442695
        %v3678 = vpow.pop %v3677
        %v3679 = vmul.f32 %v3591, 1.442695
        %v3680 = vpow.pop %v3679
        %v3681 = vmul.f32 %v3592, 1.442695
        %v3682 = vpow.pop %v3681
        %v3683 = vmul.f32 %v3593, 1.442695
        %v3684 = vpow.pop %v3683
        %v3685 = vmul.f32 %v3594, 1.442695
        %v3686 = vpow.pop %v3685
        %v3687 = vmul.f32 %v3595, 1.442695
        %v3688 = vpow.pop %v3687
        %v3689 = vmul.f32 %v3596, 1.442695
        %v3690 = vpow.pop %v3689
        %v3691 = vmul.f32 %v3597, 1.442695
        %v3692 = vpow.pop %v3691
        %v3693 = vmul.f32 %v3598, 1.442695
        %v3694 = vpow.pop %v3693
        %v3695 = vmul.f32 %v3599, 1.442695
        %v3696 = vpow.pop %v3695
        %v3697 = vmul.f32 %v3600, 1.442695
        %v3698 = vpow.pop %v3697
        %v3699 = vmul.f32 %v3601, 1.442695
        %v3700 = vpow.pop %v3699
        %v3701 = vmul.f32 %v3602, 1.442695
        %v3702 = vpow.pop %v3701
        %v3703 = vmul.f32 %v3603, 1.442695
        %v3704 = vpow.pop %v3703
        %v3705 = vmul.f32 %v3604, 1.442695
        %v3706 = vpow.pop %v3705
        %v3707 = vmul.f32 %v3605, 1.442695
        %v3708 = vpow.pop %v3707
        %v3709 = vmul.f32 %v3606, 1.442695
        %v3710 = vpow.pop %v3709
        %v3711 = vmul.f32 %v3607, 1.442695
        %v3712 = vpow.pop %v3711
        %v3713 = vmul.f32 %v3608, 1.442695
        %v3714 = vpow.pop %v3713
        %v3715 = vmul.f32 %v3609, 1.442695
        %v3716 = vpow.pop %v3715
        %v3717 = vmul.f32 %v3610, 1.442695
        %v3718 = vpow.pop %v3717
        %v3719 = vmul.f32 %v3611, 1.442695
        %v3720 = vpow.pop %v3719
        %v3721 = vmul.f32 %v3612, 1.442695
        %v3722 = vpow.pop %v3721
        %v3723 = vmul.f32 %v3613, 1.442695
        %v3724 = vpow.pop %v3723
        %v3725 = vmul.f32 %v3614, 1.442695
        %v3726 = vpow.pop %v3725
        %v3727 = vmul.f32 %v3615, 1.442695
        %v3728 = vpow.pop %v3727
        %v3729 = vmul.f32 %v3616, 1.442695
        %v3730 = vpow.pop %v3729
        %v3731 = vmul.f32 %v3617, 1.442695
        %v3732 = vpow.pop %v3731
        %v3733 = vmul.f32 %v3618, 1.442695
        %v3734 = vpow.pop %v3733
        %v3735 = vmul.f32 %v3619, 1.442695
        %v3736 = vpow.pop %v3735
        %v3737 = vmul.f32 %v3620, 1.442695
        %v3738 = vpow.pop %v3737
        %v3739 = vmul.f32 %v3621, 1.442695
        %v3740 = vpow.pop %v3739
        %v3741 = vmul.f32 %v3622, 1.442695
        %v3742 = vpow.pop %v3741
        %v3743 = vmul.f32 %v3623, 1.442695
        %v3744 = vpow.pop %v3743
        %v3745 = vmul.f32 %v3624, 1.442695
        %v3746 = vpow.pop %v3745
        %v3747 = vmul.f32 %v3625, 1.442695
        %v3748 = vpow.pop %v3747
        %v3749 = vmul.f32 %v3626, 1.442695
        %v3750 = vpow.pop %v3749
        %v3751 = vmul.f32 %v3627, 1.442695
        %v3752 = vpow.pop %v3751
        %v3753 = vmul.f32 %v3628, 1.442695
        %v3754 = vpow.pop %v3753
        %v3755 = vmul.f32 %v3629, 1.442695
        %v3756 = vpow.pop %v3755
        %v3757 = vmul.f32 %v3630, 1.442695
        %v3758 = vpow.pop %v3757
        %v3759 = vld [vmem:[#allocation3] sm:$0xff]
        %v3760 = vld [vmem:[#allocation3 + $0x8] sm:$0xff]
        %v3761 = vld [vmem:[#allocation3 + $0x10] sm:$0xff]
        %v3762 = vld [vmem:[#allocation3 + $0x18] sm:$0xff]
        %v3763 = vld [vmem:[#allocation3 + $0x20] sm:$0xff]
        %v3764 = vld [vmem:[#allocation3 + $0x28] sm:$0xff]
        %v3765 = vld [vmem:[#allocation3 + $0x30] sm:$0xff]
        %v3766 = vld [vmem:[#allocation3 + $0x38] sm:$0xff]
        %v3767 = vld [vmem:[#allocation3 + $0x40] sm:$0xff]
        %v3768 = vld [vmem:[#allocation3 + $0x48] sm:$0xff]
        %v3769 = vld [vmem:[#allocation3 + $0x50] sm:$0xff]
        %v3770 = vld [vmem:[#allocation3 + $0x58] sm:$0xff]
        %v3771 = vld [vmem:[#allocation3 + $0x60] sm:$0xff]
        %v3772 = vld [vmem:[#allocation3 + $0x68] sm:$0xff]
        %v3773 = vld [vmem:[#allocation3 + $0x70] sm:$0xff]
        %v3774 = vld [vmem:[#allocation3 + $0x78] sm:$0xff]
        %v3775 = vld [vmem:[#allocation3 + $0x80] sm:$0xff]
        %v3776 = vld [vmem:[#allocation3 + $0x88] sm:$0xff]
        %v3777 = vld [vmem:[#allocation3 + $0x90] sm:$0xff]
        %v3778 = vld [vmem:[#allocation3 + $0x98] sm:$0xff]
        %v3779 = vld [vmem:[#allocation3 + $0xa0] sm:$0xff]
        %v3780 = vld [vmem:[#allocation3 + $0xa8] sm:$0xff]
        %v3781 = vld [vmem:[#allocation3 + $0xb0] sm:$0xff]
        %v3782 = vld [vmem:[#allocation3 + $0xb8] sm:$0xff]
        %v3783 = vld [vmem:[#allocation3 + $0xc0] sm:$0xff]
        %v3784 = vld [vmem:[#allocation3 + $0xc8] sm:$0xff]
        %v3785 = vld [vmem:[#allocation3 + $0xd0] sm:$0xff]
        %v3786 = vld [vmem:[#allocation3 + $0xd8] sm:$0xff]
        %v3787 = vld [vmem:[#allocation3 + $0xe0] sm:$0xff]
        %v3788 = vld [vmem:[#allocation3 + $0xe8] sm:$0xff]
        %v3789 = vld [vmem:[#allocation3 + $0xf0] sm:$0xff]
        %v3790 = vld [vmem:[#allocation3 + $0xf8] sm:$0xff]
        %v3791 = vld [vmem:[#allocation3 + $0x100] sm:$0xff]
        %v3792 = vld [vmem:[#allocation3 + $0x108] sm:$0xff]
        %v3793 = vld [vmem:[#allocation3 + $0x110] sm:$0xff]
        %v3794 = vld [vmem:[#allocation3 + $0x118] sm:$0xff]
        %v3795 = vld [vmem:[#allocation3 + $0x120] sm:$0xff]
        %v3796 = vld [vmem:[#allocation3 + $0x128] sm:$0xff]
        %v3797 = vld [vmem:[#allocation3 + $0x130] sm:$0xff]
        %v3798 = vld [vmem:[#allocation3 + $0x138] sm:$0xff]
        %v3799 = vld [vmem:[#allocation3 + $0x140] sm:$0xff]
        %v3800 = vld [vmem:[#allocation3 + $0x148] sm:$0xff]
        %v3801 = vld [vmem:[#allocation3 + $0x150] sm:$0xff]
        %v3802 = vld [vmem:[#allocation3 + $0x158] sm:$0xff]
        %v3803 = vld [vmem:[#allocation3 + $0x160] sm:$0xff]
        %v3804 = vld [vmem:[#allocation3 + $0x168] sm:$0xff]
        %v3805 = vld [vmem:[#allocation3 + $0x170] sm:$0xff]
        %v3806 = vld [vmem:[#allocation3 + $0x178] sm:$0xff]
        %v3807 = vld [vmem:[#allocation3 + $0x180] sm:$0xff]
        %v3808 = vld [vmem:[#allocation3 + $0x188] sm:$0xff]
        %v3809 = vld [vmem:[#allocation3 + $0x190] sm:$0xff]
        %v3810 = vld [vmem:[#allocation3 + $0x198] sm:$0xff]
        %v3811 = vld [vmem:[#allocation3 + $0x1a0] sm:$0xff]
        %v3812 = vld [vmem:[#allocation3 + $0x1a8] sm:$0xff]
        %v3813 = vld [vmem:[#allocation3 + $0x1b0] sm:$0xff]
        %v3814 = vld [vmem:[#allocation3 + $0x1b8] sm:$0xff]
        %v3815 = vld [vmem:[#allocation3 + $0x1c0] sm:$0xff]
        %v3816 = vld [vmem:[#allocation3 + $0x1c8] sm:$0xff]
        %v3817 = vld [vmem:[#allocation3 + $0x1d0] sm:$0xff]
        %v3818 = vld [vmem:[#allocation3 + $0x1d8] sm:$0xff]
        %v3819 = vld [vmem:[#allocation3 + $0x1e0] sm:$0xff]
        %v3820 = vld [vmem:[#allocation3 + $0x1e8] sm:$0xff]
        %v3821 = vld [vmem:[#allocation3 + $0x1f0] sm:$0xff]
        %v3822 = vld [vmem:[#allocation3 + $0x1f8] sm:$0xff]
        %v3823 = vmul.f32 %v3120, %v3759
        %v3824 = vmul.f32 %v3122, %v3760
        %v3825 = vmul.f32 %v3124, %v3761
        %v3826 = vmul.f32 %v3126, %v3762
        %v3827 = vmul.f32 %v3128, %v3763
        %v3828 = vmul.f32 %v3130, %v3764
        %v3829 = vmul.f32 %v3132, %v3765
        %v3830 = vmul.f32 %v3134, %v3766
        %v3831 = vmul.f32 %v3136, %v3767
        %v3832 = vmul.f32 %v3138, %v3768
        %v3833 = vmul.f32 %v3140, %v3769
        %v3834 = vmul.f32 %v3142, %v3770
        %v3835 = vmul.f32 %v3144, %v3771
        %v3836 = vmul.f32 %v3146, %v3772
        %v3837 = vmul.f32 %v3148, %v3773
        %v3838 = vmul.f32 %v3150, %v3774
        %v3839 = vmul.f32 %v3152, %v3775
        %v3840 = vmul.f32 %v3154, %v3776
        %v3841 = vmul.f32 %v3156, %v3777
        %v3842 = vmul.f32 %v3158, %v3778
        %v3843 = vmul.f32 %v3160, %v3779
        %v3844 = vmul.f32 %v3162, %v3780
        %v3845 = vmul.f32 %v3164, %v3781
        %v3846 = vmul.f32 %v3166, %v3782
        %v3847 = vmul.f32 %v3168, %v3783
        %v3848 = vmul.f32 %v3170, %v3784
        %v3849 = vmul.f32 %v3172, %v3785
        %v3850 = vmul.f32 %v3174, %v3786
        %v3851 = vmul.f32 %v3176, %v3787
        %v3852 = vmul.f32 %v3178, %v3788
        %v3853 = vmul.f32 %v3180, %v3789
        %v3854 = vmul.f32 %v3182, %v3790
        %v3855 = vmul.f32 %v3184, %v3791
        %v3856 = vmul.f32 %v3186, %v3792
        %v3857 = vmul.f32 %v3188, %v3793
        %v3858 = vmul.f32 %v3190, %v3794
        %v3859 = vmul.f32 %v3192, %v3795
        %v3860 = vmul.f32 %v3194, %v3796
        %v3861 = vmul.f32 %v3196, %v3797
        %v3862 = vmul.f32 %v3198, %v3798
        %v3863 = vmul.f32 %v3200, %v3799
        %v3864 = vmul.f32 %v3202, %v3800
        %v3865 = vmul.f32 %v3204, %v3801
        %v3866 = vmul.f32 %v3206, %v3802
        %v3867 = vmul.f32 %v3208, %v3803
        %v3868 = vmul.f32 %v3210, %v3804
        %v3869 = vmul.f32 %v3212, %v3805
        %v3870 = vmul.f32 %v3214, %v3806
        %v3871 = vmul.f32 %v3216, %v3807
        %v3872 = vmul.f32 %v3218, %v3808
        %v3873 = vmul.f32 %v3220, %v3809
        %v3874 = vmul.f32 %v3222, %v3810
        %v3875 = vmul.f32 %v3224, %v3811
        %v3876 = vmul.f32 %v3226, %v3812
        %v3877 = vmul.f32 %v3228, %v3813
        %v3878 = vmul.f32 %v3230, %v3814
        %v3879 = vmul.f32 %v3232, %v3815
        %v3880 = vmul.f32 %v3234, %v3816
        %v3881 = vmul.f32 %v3236, %v3817
        %v3882 = vmul.f32 %v3238, %v3818
        %v3883 = vmul.f32 %v3240, %v3819
        %v3884 = vmul.f32 %v3242, %v3820
        %v3885 = vmul.f32 %v3244, %v3821
        %v3886 = vmul.f32 %v3246, %v3822
        %3887 = vadd.xlane.f32.xlu0 %v3632
        %v3888 = vpop.xlane.xlu0 %3887
        %3889 = vadd.xlane.f32.xlu0 %v3634
        %v3890 = vpop.xlane.xlu0 %3889
        %3891 = vadd.xlane.f32.xlu0 %v3636
        %v3892 = vpop.xlane.xlu0 %3891
        %3893 = vadd.xlane.f32.xlu0 %v3638
        %v3894 = vpop.xlane.xlu0 %3893
        %3895 = vadd.xlane.f32.xlu0 %v3640
        %v3896 = vpop.xlane.xlu0 %3895
        %3897 = vadd.xlane.f32.xlu0 %v3642
        %v3898 = vpop.xlane.xlu0 %3897
        %3899 = vadd.xlane.f32.xlu0 %v3644
        %v3900 = vpop.xlane.xlu0 %3899
        %3901 = vadd.xlane.f32.xlu0 %v3646
        %v3902 = vpop.xlane.xlu0 %3901
        %3903 = vadd.xlane.f32.xlu0 %v3648
        %v3904 = vpop.xlane.xlu0 %3903
        %3905 = vadd.xlane.f32.xlu0 %v3650
        %v3906 = vpop.xlane.xlu0 %3905
        %3907 = vadd.xlane.f32.xlu0 %v3652
        %v3908 = vpop.xlane.xlu0 %3907
        %3909 = vadd.xlane.f32.xlu0 %v3654
        %v3910 = vpop.xlane.xlu0 %3909
        %3911 = vadd.xlane.f32.xlu0 %v3656
        %v3912 = vpop.xlane.xlu0 %3911
        %3913 = vadd.xlane.f32.xlu0 %v3658
        %v3914 = vpop.xlane.xlu0 %3913
        %3915 = vadd.xlane.f32.xlu0 %v3660
        %v3916 = vpop.xlane.xlu0 %3915
        %3917 = vadd.xlane.f32.xlu0 %v3662
        %v3918 = vpop.xlane.xlu0 %3917
        %3919 = vadd.xlane.f32.xlu0 %v3664
        %v3920 = vpop.xlane.xlu0 %3919
        %3921 = vadd.xlane.f32.xlu0 %v3666
        %v3922 = vpop.xlane.xlu0 %3921
        %3923 = vadd.xlane.f32.xlu0 %v3668
        %v3924 = vpop.xlane.xlu0 %3923
        %3925 = vadd.xlane.f32.xlu0 %v3670
        %v3926 = vpop.xlane.xlu0 %3925
        %3927 = vadd.xlane.f32.xlu0 %v3672
        %v3928 = vpop.xlane.xlu0 %3927
        %3929 = vadd.xlane.f32.xlu0 %v3674
        %v3930 = vpop.xlane.xlu0 %3929
        %3931 = vadd.xlane.f32.xlu0 %v3676
        %v3932 = vpop.xlane.xlu0 %3931
        %3933 = vadd.xlane.f32.xlu0 %v3678
        %v3934 = vpop.xlane.xlu0 %3933
        %3935 = vadd.xlane.f32.xlu0 %v3680
        %v3936 = vpop.xlane.xlu0 %3935
        %3937 = vadd.xlane.f32.xlu0 %v3682
        %v3938 = vpop.xlane.xlu0 %3937
        %3939 = vadd.xlane.f32.xlu0 %v3684
        %v3940 = vpop.xlane.xlu0 %3939
        %3941 = vadd.xlane.f32.xlu0 %v3686
        %v3942 = vpop.xlane.xlu0 %3941
        %3943 = vadd.xlane.f32.xlu0 %v3688
        %v3944 = vpop.xlane.xlu0 %3943
        %3945 = vadd.xlane.f32.xlu0 %v3690
        %v3946 = vpop.xlane.xlu0 %3945
        %3947 = vadd.xlane.f32.xlu0 %v3692
        %v3948 = vpop.xlane.xlu0 %3947
        %3949 = vadd.xlane.f32.xlu0 %v3694
        %v3950 = vpop.xlane.xlu0 %3949
        %3951 = vadd.xlane.f32.xlu0 %v3696
        %v3952 = vpop.xlane.xlu0 %3951
        %3953 = vadd.xlane.f32.xlu0 %v3698
        %v3954 = vpop.xlane.xlu0 %3953
        %3955 = vadd.xlane.f32.xlu0 %v3700
        %v3956 = vpop.xlane.xlu0 %3955
        %3957 = vadd.xlane.f32.xlu0 %v3702
        %v3958 = vpop.xlane.xlu0 %3957
        %3959 = vadd.xlane.f32.xlu0 %v3704
        %v3960 = vpop.xlane.xlu0 %3959
        %3961 = vadd.xlane.f32.xlu0 %v3706
        %v3962 = vpop.xlane.xlu0 %3961
        %3963 = vadd.xlane.f32.xlu0 %v3708
        %v3964 = vpop.xlane.xlu0 %3963
        %3965 = vadd.xlane.f32.xlu0 %v3710
        %v3966 = vpop.xlane.xlu0 %3965
        %3967 = vadd.xlane.f32.xlu0 %v3712
        %v3968 = vpop.xlane.xlu0 %3967
        %3969 = vadd.xlane.f32.xlu0 %v3714
        %v3970 = vpop.xlane.xlu0 %3969
        %3971 = vadd.xlane.f32.xlu0 %v3716
        %v3972 = vpop.xlane.xlu0 %3971
        %3973 = vadd.xlane.f32.xlu0 %v3718
        %v3974 = vpop.xlane.xlu0 %3973
        %3975 = vadd.xlane.f32.xlu0 %v3720
        %v3976 = vpop.xlane.xlu0 %3975
        %3977 = vadd.xlane.f32.xlu0 %v3722
        %v3978 = vpop.xlane.xlu0 %3977
        %3979 = vadd.xlane.f32.xlu0 %v3724
        %v3980 = vpop.xlane.xlu0 %3979
        %3981 = vadd.xlane.f32.xlu0 %v3726
        %v3982 = vpop.xlane.xlu0 %3981
        %3983 = vadd.xlane.f32.xlu0 %v3728
        %v3984 = vpop.xlane.xlu0 %3983
        %3985 = vadd.xlane.f32.xlu0 %v3730
        %v3986 = vpop.xlane.xlu0 %3985
        %3987 = vadd.xlane.f32.xlu0 %v3732
        %v3988 = vpop.xlane.xlu0 %3987
        %3989 = vadd.xlane.f32.xlu0 %v3734
        %v3990 = vpop.xlane.xlu0 %3989
        %3991 = vadd.xlane.f32.xlu0 %v3736
        %v3992 = vpop.xlane.xlu0 %3991
        %3993 = vadd.xlane.f32.xlu0 %v3738
        %v3994 = vpop.xlane.xlu0 %3993
        %3995 = vadd.xlane.f32.xlu0 %v3740
        %v3996 = vpop.xlane.xlu0 %3995
        %3997 = vadd.xlane.f32.xlu0 %v3742
        %v3998 = vpop.xlane.xlu0 %3997
        %3999 = vadd.xlane.f32.xlu0 %v3744
        %v4000 = vpop.xlane.xlu0 %3999
        %4001 = vadd.xlane.f32.xlu0 %v3746
        %v4002 = vpop.xlane.xlu0 %4001
        %4003 = vadd.xlane.f32.xlu0 %v3748
        %v4004 = vpop.xlane.xlu0 %4003
        %4005 = vadd.xlane.f32.xlu0 %v3750
        %v4006 = vpop.xlane.xlu0 %4005
        %4007 = vadd.xlane.f32.xlu0 %v3752
        %v4008 = vpop.xlane.xlu0 %4007
        %4009 = vadd.xlane.f32.xlu0 %v3754
        %v4010 = vpop.xlane.xlu0 %4009
        %4011 = vadd.xlane.f32.xlu0 %v3756
        %v4012 = vpop.xlane.xlu0 %4011
        %4013 = vadd.xlane.f32.xlu0 %v3758
        %v4014 = vpop.xlane.xlu0 %4013
        %v4015 = vadd.f32 %v3823, %v3888
        %v4016 = vadd.f32 %v3824, %v3890
        %v4017 = vadd.f32 %v3825, %v3892
        %v4018 = vadd.f32 %v3826, %v3894
        %v4019 = vadd.f32 %v3827, %v3896
        %v4020 = vadd.f32 %v3828, %v3898
        %v4021 = vadd.f32 %v3829, %v3900
        %v4022 = vadd.f32 %v3830, %v3902
        %v4023 = vadd.f32 %v3831, %v3904
        %v4024 = vadd.f32 %v3832, %v3906
        %v4025 = vadd.f32 %v3833, %v3908
        %v4026 = vadd.f32 %v3834, %v3910
        %v4027 = vadd.f32 %v3835, %v3912
        %v4028 = vadd.f32 %v3836, %v3914
        %v4029 = vadd.f32 %v3837, %v3916
        %v4030 = vadd.f32 %v3838, %v3918
        %v4031 = vadd.f32 %v3839, %v3920
        %v4032 = vadd.f32 %v3840, %v3922
        %v4033 = vadd.f32 %v3841, %v3924
        %v4034 = vadd.f32 %v3842, %v3926
        %v4035 = vadd.f32 %v3843, %v3928
        %v4036 = vadd.f32 %v3844, %v3930
        %v4037 = vadd.f32 %v3845, %v3932
        %v4038 = vadd.f32 %v3846, %v3934
        %v4039 = vadd.f32 %v3847, %v3936
        %v4040 = vadd.f32 %v3848, %v3938
        %v4041 = vadd.f32 %v3849, %v3940
        %v4042 = vadd.f32 %v3850, %v3942
        %v4043 = vadd.f32 %v3851, %v3944
        %v4044 = vadd.f32 %v3852, %v3946
        %v4045 = vadd.f32 %v3853, %v3948
        %v4046 = vadd.f32 %v3854, %v3950
        %v4047 = vadd.f32 %v3855, %v3952
        %v4048 = vadd.f32 %v3856, %v3954
        %v4049 = vadd.f32 %v3857, %v3956
        %v4050 = vadd.f32 %v3858, %v3958
        %v4051 = vadd.f32 %v3859, %v3960
        %v4052 = vadd.f32 %v3860, %v3962
        %v4053 = vadd.f32 %v3861, %v3964
        %v4054 = vadd.f32 %v3862, %v3966
        %v4055 = vadd.f32 %v3863, %v3968
        %v4056 = vadd.f32 %v3864, %v3970
        %v4057 = vadd.f32 %v3865, %v3972
        %v4058 = vadd.f32 %v3866, %v3974
        %v4059 = vadd.f32 %v3867, %v3976
        %v4060 = vadd.f32 %v3868, %v3978
        %v4061 = vadd.f32 %v3869, %v3980
        %v4062 = vadd.f32 %v3870, %v3982
        %v4063 = vadd.f32 %v3871, %v3984
        %v4064 = vadd.f32 %v3872, %v3986
        %v4065 = vadd.f32 %v3873, %v3988
        %v4066 = vadd.f32 %v3874, %v3990
        %v4067 = vadd.f32 %v3875, %v3992
        %v4068 = vadd.f32 %v3876, %v3994
        %v4069 = vadd.f32 %v3877, %v3996
        %v4070 = vadd.f32 %v3878, %v3998
        %v4071 = vadd.f32 %v3879, %v4000
        %v4072 = vadd.f32 %v3880, %v4002
        %v4073 = vadd.f32 %v3881, %v4004
        %v4074 = vadd.f32 %v3882, %v4006
        %v4075 = vadd.f32 %v3883, %v4008
        %v4076 = vadd.f32 %v3884, %v4010
        %v4077 = vadd.f32 %v3885, %v4012
        %v4078 = vadd.f32 %v3886, %v4014
        %vm4079 = vcmask 7168
        %4080 = vst.msk [vmem:[#allocation3] sm:$0xff] %vm4079, %v4015
        %4081 = vst.msk [vmem:[#allocation3 + $0x8] sm:$0xff] %vm4079, %v4016
        %4082 = vst.msk [vmem:[#allocation3 + $0x10] sm:$0xff] %vm4079, %v4017
        %4083 = vst.msk [vmem:[#allocation3 + $0x18] sm:$0xff] %vm4079, %v4018
        %4084 = vst.msk [vmem:[#allocation3 + $0x20] sm:$0xff] %vm4079, %v4019
        %4085 = vst.msk [vmem:[#allocation3 + $0x28] sm:$0xff] %vm4079, %v4020
        %4086 = vst.msk [vmem:[#allocation3 + $0x30] sm:$0xff] %vm4079, %v4021
        %4087 = vst.msk [vmem:[#allocation3 + $0x38] sm:$0xff] %vm4079, %v4022
        %4088 = vst.msk [vmem:[#allocation3 + $0x40] sm:$0xff] %vm4079, %v4023
        %4089 = vst.msk [vmem:[#allocation3 + $0x48] sm:$0xff] %vm4079, %v4024
        %4090 = vst.msk [vmem:[#allocation3 + $0x50] sm:$0xff] %vm4079, %v4025
        %4091 = vst.msk [vmem:[#allocation3 + $0x58] sm:$0xff] %vm4079, %v4026
        %4092 = vst.msk [vmem:[#allocation3 + $0x60] sm:$0xff] %vm4079, %v4027
        %4093 = vst.msk [vmem:[#allocation3 + $0x68] sm:$0xff] %vm4079, %v4028
        %4094 = vst.msk [vmem:[#allocation3 + $0x70] sm:$0xff] %vm4079, %v4029
        %4095 = vst.msk [vmem:[#allocation3 + $0x78] sm:$0xff] %vm4079, %v4030
        %4096 = vst.msk [vmem:[#allocation3 + $0x80] sm:$0xff] %vm4079, %v4031
        %4097 = vst.msk [vmem:[#allocation3 + $0x88] sm:$0xff] %vm4079, %v4032
        %4098 = vst.msk [vmem:[#allocation3 + $0x90] sm:$0xff] %vm4079, %v4033
        %4099 = vst.msk [vmem:[#allocation3 + $0x98] sm:$0xff] %vm4079, %v4034
        %4100 = vst.msk [vmem:[#allocation3 + $0xa0] sm:$0xff] %vm4079, %v4035
        %4101 = vst.msk [vmem:[#allocation3 + $0xa8] sm:$0xff] %vm4079, %v4036
        %4102 = vst.msk [vmem:[#allocation3 + $0xb0] sm:$0xff] %vm4079, %v4037
        %4103 = vst.msk [vmem:[#allocation3 + $0xb8] sm:$0xff] %vm4079, %v4038
        %4104 = vst.msk [vmem:[#allocation3 + $0xc0] sm:$0xff] %vm4079, %v4039
        %4105 = vst.msk [vmem:[#allocation3 + $0xc8] sm:$0xff] %vm4079, %v4040
        %4106 = vst.msk [vmem:[#allocation3 + $0xd0] sm:$0xff] %vm4079, %v4041
        %4107 = vst.msk [vmem:[#allocation3 + $0xd8] sm:$0xff] %vm4079, %v4042
        %4108 = vst.msk [vmem:[#allocation3 + $0xe0] sm:$0xff] %vm4079, %v4043
        %4109 = vst.msk [vmem:[#allocation3 + $0xe8] sm:$0xff] %vm4079, %v4044
        %4110 = vst.msk [vmem:[#allocation3 + $0xf0] sm:$0xff] %vm4079, %v4045
        %4111 = vst.msk [vmem:[#allocation3 + $0xf8] sm:$0xff] %vm4079, %v4046
        %4112 = vst.msk [vmem:[#allocation3 + $0x100] sm:$0xff] %vm4079, %v4047
        %4113 = vst.msk [vmem:[#allocation3 + $0x108] sm:$0xff] %vm4079, %v4048
        %4114 = vst.msk [vmem:[#allocation3 + $0x110] sm:$0xff] %vm4079, %v4049
        %4115 = vst.msk [vmem:[#allocation3 + $0x118] sm:$0xff] %vm4079, %v4050
        %4116 = vst.msk [vmem:[#allocation3 + $0x120] sm:$0xff] %vm4079, %v4051
        %4117 = vst.msk [vmem:[#allocation3 + $0x128] sm:$0xff] %vm4079, %v4052
        %4118 = vst.msk [vmem:[#allocation3 + $0x130] sm:$0xff] %vm4079, %v4053
        %4119 = vst.msk [vmem:[#allocation3 + $0x138] sm:$0xff] %vm4079, %v4054
        %4120 = vst.msk [vmem:[#allocation3 + $0x140] sm:$0xff] %vm4079, %v4055
        %4121 = vst.msk [vmem:[#allocation3 + $0x148] sm:$0xff] %vm4079, %v4056
        %4122 = vst.msk [vmem:[#allocation3 + $0x150] sm:$0xff] %vm4079, %v4057
        %4123 = vst.msk [vmem:[#allocation3 + $0x158] sm:$0xff] %vm4079, %v4058
        %4124 = vst.msk [vmem:[#allocation3 + $0x160] sm:$0xff] %vm4079, %v4059
        %4125 = vst.msk [vmem:[#allocation3 + $0x168] sm:$0xff] %vm4079, %v4060
        %4126 = vst.msk [vmem:[#allocation3 + $0x170] sm:$0xff] %vm4079, %v4061
        %4127 = vst.msk [vmem:[#allocation3 + $0x178] sm:$0xff] %vm4079, %v4062
        %4128 = vst.msk [vmem:[#allocation3 + $0x180] sm:$0xff] %vm4079, %v4063
        %4129 = vst.msk [vmem:[#allocation3 + $0x188] sm:$0xff] %vm4079, %v4064
        %4130 = vst.msk [vmem:[#allocation3 + $0x190] sm:$0xff] %vm4079, %v4065
        %4131 = vst.msk [vmem:[#allocation3 + $0x198] sm:$0xff] %vm4079, %v4066
        %4132 = vst.msk [vmem:[#allocation3 + $0x1a0] sm:$0xff] %vm4079, %v4067
        %4133 = vst.msk [vmem:[#allocation3 + $0x1a8] sm:$0xff] %vm4079, %v4068
        %4134 = vst.msk [vmem:[#allocation3 + $0x1b0] sm:$0xff] %vm4079, %v4069
        %4135 = vst.msk [vmem:[#allocation3 + $0x1b8] sm:$0xff] %vm4079, %v4070
        %4136 = vst.msk [vmem:[#allocation3 + $0x1c0] sm:$0xff] %vm4079, %v4071
        %4137 = vst.msk [vmem:[#allocation3 + $0x1c8] sm:$0xff] %vm4079, %v4072
        %4138 = vst.msk [vmem:[#allocation3 + $0x1d0] sm:$0xff] %vm4079, %v4073
        %4139 = vst.msk [vmem:[#allocation3 + $0x1d8] sm:$0xff] %vm4079, %v4074
        %4140 = vst.msk [vmem:[#allocation3 + $0x1e0] sm:$0xff] %vm4079, %v4075
        %4141 = vst.msk [vmem:[#allocation3 + $0x1e8] sm:$0xff] %vm4079, %v4076
        %4142 = vst.msk [vmem:[#allocation3 + $0x1f0] sm:$0xff] %vm4079, %v4077
        %4143 = vst.msk [vmem:[#allocation3 + $0x1f8] sm:$0xff] %vm4079, %v4078
        %v4144 = vld [vmem:[#allocation4] sm:$0xff]
        %v4145 = vld [vmem:[#allocation4 + $0x8] sm:$0xff]
        %v4146 = vld [vmem:[#allocation4 + $0x10] sm:$0xff]
        %v4147 = vld [vmem:[#allocation4 + $0x18] sm:$0xff]
        %v4148 = vld [vmem:[#allocation4 + $0x20] sm:$0xff]
        %v4149 = vld [vmem:[#allocation4 + $0x28] sm:$0xff]
        %v4150 = vld [vmem:[#allocation4 + $0x30] sm:$0xff]
        %v4151 = vld [vmem:[#allocation4 + $0x38] sm:$0xff]
        %v4152 = vld [vmem:[#allocation4 + $0x40] sm:$0xff]
        %v4153 = vld [vmem:[#allocation4 + $0x48] sm:$0xff]
        %v4154 = vld [vmem:[#allocation4 + $0x50] sm:$0xff]
        %v4155 = vld [vmem:[#allocation4 + $0x58] sm:$0xff]
        %v4156 = vld [vmem:[#allocation4 + $0x60] sm:$0xff]
        %v4157 = vld [vmem:[#allocation4 + $0x68] sm:$0xff]
        %v4158 = vld [vmem:[#allocation4 + $0x70] sm:$0xff]
        %v4159 = vld [vmem:[#allocation4 + $0x78] sm:$0xff]
        %v4160 = vld [vmem:[#allocation4 + $0x80] sm:$0xff]
        %v4161 = vld [vmem:[#allocation4 + $0x88] sm:$0xff]
        %v4162 = vld [vmem:[#allocation4 + $0x90] sm:$0xff]
        %v4163 = vld [vmem:[#allocation4 + $0x98] sm:$0xff]
        %v4164 = vld [vmem:[#allocation4 + $0xa0] sm:$0xff]
        %v4165 = vld [vmem:[#allocation4 + $0xa8] sm:$0xff]
        %v4166 = vld [vmem:[#allocation4 + $0xb0] sm:$0xff]
        %v4167 = vld [vmem:[#allocation4 + $0xb8] sm:$0xff]
        %v4168 = vld [vmem:[#allocation4 + $0xc0] sm:$0xff]
        %v4169 = vld [vmem:[#allocation4 + $0xc8] sm:$0xff]
        %v4170 = vld [vmem:[#allocation4 + $0xd0] sm:$0xff]
        %v4171 = vld [vmem:[#allocation4 + $0xd8] sm:$0xff]
        %v4172 = vld [vmem:[#allocation4 + $0xe0] sm:$0xff]
        %v4173 = vld [vmem:[#allocation4 + $0xe8] sm:$0xff]
        %v4174 = vld [vmem:[#allocation4 + $0xf0] sm:$0xff]
        %v4175 = vld [vmem:[#allocation4 + $0xf8] sm:$0xff]
        %v4176 = vld [vmem:[#allocation4 + $0x100] sm:$0xff]
        %v4177 = vld [vmem:[#allocation4 + $0x108] sm:$0xff]
        %v4178 = vld [vmem:[#allocation4 + $0x110] sm:$0xff]
        %v4179 = vld [vmem:[#allocation4 + $0x118] sm:$0xff]
        %v4180 = vld [vmem:[#allocation4 + $0x120] sm:$0xff]
        %v4181 = vld [vmem:[#allocation4 + $0x128] sm:$0xff]
        %v4182 = vld [vmem:[#allocation4 + $0x130] sm:$0xff]
        %v4183 = vld [vmem:[#allocation4 + $0x138] sm:$0xff]
        %v4184 = vld [vmem:[#allocation4 + $0x140] sm:$0xff]
        %v4185 = vld [vmem:[#allocation4 + $0x148] sm:$0xff]
        %v4186 = vld [vmem:[#allocation4 + $0x150] sm:$0xff]
        %v4187 = vld [vmem:[#allocation4 + $0x158] sm:$0xff]
        %v4188 = vld [vmem:[#allocation4 + $0x160] sm:$0xff]
        %v4189 = vld [vmem:[#allocation4 + $0x168] sm:$0xff]
        %v4190 = vld [vmem:[#allocation4 + $0x170] sm:$0xff]
        %v4191 = vld [vmem:[#allocation4 + $0x178] sm:$0xff]
        %v4192 = vld [vmem:[#allocation4 + $0x180] sm:$0xff]
        %v4193 = vld [vmem:[#allocation4 + $0x188] sm:$0xff]
        %v4194 = vld [vmem:[#allocation4 + $0x190] sm:$0xff]
        %v4195 = vld [vmem:[#allocation4 + $0x198] sm:$0xff]
        %v4196 = vld [vmem:[#allocation4 + $0x1a0] sm:$0xff]
        %v4197 = vld [vmem:[#allocation4 + $0x1a8] sm:$0xff]
        %v4198 = vld [vmem:[#allocation4 + $0x1b0] sm:$0xff]
        %v4199 = vld [vmem:[#allocation4 + $0x1b8] sm:$0xff]
        %v4200 = vld [vmem:[#allocation4 + $0x1c0] sm:$0xff]
        %v4201 = vld [vmem:[#allocation4 + $0x1c8] sm:$0xff]
        %v4202 = vld [vmem:[#allocation4 + $0x1d0] sm:$0xff]
        %v4203 = vld [vmem:[#allocation4 + $0x1d8] sm:$0xff]
        %v4204 = vld [vmem:[#allocation4 + $0x1e0] sm:$0xff]
        %v4205 = vld [vmem:[#allocation4 + $0x1e8] sm:$0xff]
        %v4206 = vld [vmem:[#allocation4 + $0x1f0] sm:$0xff]
        %v4207 = vld [vmem:[#allocation4 + $0x1f8] sm:$0xff]
        %4209 = vset.pattern.permute.xlu0 0
        %4210 = vperm.xlu0 %4209, %v3120
        %v4211 = vpop.permute.xlu0 %4210
        %4214 = vset.pattern.permute.xlu0 0
        %4215 = vperm.xlu0 %4214, %v3122
        %v4216 = vpop.permute.xlu0 %4215
        %4219 = vset.pattern.permute.xlu0 0
        %4220 = vperm.xlu0 %4219, %v3124
        %v4221 = vpop.permute.xlu0 %4220
        %4224 = vset.pattern.permute.xlu0 0
        %4225 = vperm.xlu0 %4224, %v3126
        %v4226 = vpop.permute.xlu0 %4225
        %4229 = vset.pattern.permute.xlu0 0
        %4230 = vperm.xlu0 %4229, %v3128
        %v4231 = vpop.permute.xlu0 %4230
        %4234 = vset.pattern.permute.xlu0 0
        %4235 = vperm.xlu0 %4234, %v3130
        %v4236 = vpop.permute.xlu0 %4235
        %4239 = vset.pattern.permute.xlu0 0
        %4240 = vperm.xlu0 %4239, %v3132
        %v4241 = vpop.permute.xlu0 %4240
        %4244 = vset.pattern.permute.xlu0 0
        %4245 = vperm.xlu0 %4244, %v3134
        %v4246 = vpop.permute.xlu0 %4245
        %4249 = vset.pattern.permute.xlu0 0
        %4250 = vperm.xlu0 %4249, %v3136
        %v4251 = vpop.permute.xlu0 %4250
        %4254 = vset.pattern.permute.xlu0 0
        %4255 = vperm.xlu0 %4254, %v3138
        %v4256 = vpop.permute.xlu0 %4255
        %4259 = vset.pattern.permute.xlu0 0
        %4260 = vperm.xlu0 %4259, %v3140
        %v4261 = vpop.permute.xlu0 %4260
        %4264 = vset.pattern.permute.xlu0 0
        %4265 = vperm.xlu0 %4264, %v3142
        %v4266 = vpop.permute.xlu0 %4265
        %4269 = vset.pattern.permute.xlu0 0
        %4270 = vperm.xlu0 %4269, %v3144
        %v4271 = vpop.permute.xlu0 %4270
        %4274 = vset.pattern.permute.xlu0 0
        %4275 = vperm.xlu0 %4274, %v3146
        %v4276 = vpop.permute.xlu0 %4275
        %4279 = vset.pattern.permute.xlu0 0
        %4280 = vperm.xlu0 %4279, %v3148
        %v4281 = vpop.permute.xlu0 %4280
        %4284 = vset.pattern.permute.xlu0 0
        %4285 = vperm.xlu0 %4284, %v3150
        %v4286 = vpop.permute.xlu0 %4285
        %4289 = vset.pattern.permute.xlu0 0
        %4290 = vperm.xlu0 %4289, %v3152
        %v4291 = vpop.permute.xlu0 %4290
        %4294 = vset.pattern.permute.xlu0 0
        %4295 = vperm.xlu0 %4294, %v3154
        %v4296 = vpop.permute.xlu0 %4295
        %4299 = vset.pattern.permute.xlu0 0
        %4300 = vperm.xlu0 %4299, %v3156
        %v4301 = vpop.permute.xlu0 %4300
        %4304 = vset.pattern.permute.xlu0 0
        %4305 = vperm.xlu0 %4304, %v3158
        %v4306 = vpop.permute.xlu0 %4305
        %4309 = vset.pattern.permute.xlu0 0
        %4310 = vperm.xlu0 %4309, %v3160
        %v4311 = vpop.permute.xlu0 %4310
        %4314 = vset.pattern.permute.xlu0 0
        %4315 = vperm.xlu0 %4314, %v3162
        %v4316 = vpop.permute.xlu0 %4315
        %4319 = vset.pattern.permute.xlu0 0
        %4320 = vperm.xlu0 %4319, %v3164
        %v4321 = vpop.permute.xlu0 %4320
        %4324 = vset.pattern.permute.xlu0 0
        %4325 = vperm.xlu0 %4324, %v3166
        %v4326 = vpop.permute.xlu0 %4325
        %4329 = vset.pattern.permute.xlu0 0
        %4330 = vperm.xlu0 %4329, %v3168
        %v4331 = vpop.permute.xlu0 %4330
        %4334 = vset.pattern.permute.xlu0 0
        %4335 = vperm.xlu0 %4334, %v3170
        %v4336 = vpop.permute.xlu0 %4335
        %4339 = vset.pattern.permute.xlu0 0
        %4340 = vperm.xlu0 %4339, %v3172
        %v4341 = vpop.permute.xlu0 %4340
        %4344 = vset.pattern.permute.xlu0 0
        %4345 = vperm.xlu0 %4344, %v3174
        %v4346 = vpop.permute.xlu0 %4345
        %4349 = vset.pattern.permute.xlu0 0
        %4350 = vperm.xlu0 %4349, %v3176
        %v4351 = vpop.permute.xlu0 %4350
        %4354 = vset.pattern.permute.xlu0 0
        %4355 = vperm.xlu0 %4354, %v3178
        %v4356 = vpop.permute.xlu0 %4355
        %4359 = vset.pattern.permute.xlu0 0
        %4360 = vperm.xlu0 %4359, %v3180
        %v4361 = vpop.permute.xlu0 %4360
        %4364 = vset.pattern.permute.xlu0 0
        %4365 = vperm.xlu0 %4364, %v3182
        %v4366 = vpop.permute.xlu0 %4365
        %4369 = vset.pattern.permute.xlu0 0
        %4370 = vperm.xlu0 %4369, %v3184
        %v4371 = vpop.permute.xlu0 %4370
        %4374 = vset.pattern.permute.xlu0 0
        %4375 = vperm.xlu0 %4374, %v3186
        %v4376 = vpop.permute.xlu0 %4375
        %4379 = vset.pattern.permute.xlu0 0
        %4380 = vperm.xlu0 %4379, %v3188
        %v4381 = vpop.permute.xlu0 %4380
        %4384 = vset.pattern.permute.xlu0 0
        %4385 = vperm.xlu0 %4384, %v3190
        %v4386 = vpop.permute.xlu0 %4385
        %4389 = vset.pattern.permute.xlu0 0
        %4390 = vperm.xlu0 %4389, %v3192
        %v4391 = vpop.permute.xlu0 %4390
        %4394 = vset.pattern.permute.xlu0 0
        %4395 = vperm.xlu0 %4394, %v3194
        %v4396 = vpop.permute.xlu0 %4395
        %4399 = vset.pattern.permute.xlu0 0
        %4400 = vperm.xlu0 %4399, %v3196
        %v4401 = vpop.permute.xlu0 %4400
        %4404 = vset.pattern.permute.xlu0 0
        %4405 = vperm.xlu0 %4404, %v3198
        %v4406 = vpop.permute.xlu0 %4405
        %4409 = vset.pattern.permute.xlu0 0
        %4410 = vperm.xlu0 %4409, %v3200
        %v4411 = vpop.permute.xlu0 %4410
        %4414 = vset.pattern.permute.xlu0 0
        %4415 = vperm.xlu0 %4414, %v3202
        %v4416 = vpop.permute.xlu0 %4415
        %4419 = vset.pattern.permute.xlu0 0
        %4420 = vperm.xlu0 %4419, %v3204
        %v4421 = vpop.permute.xlu0 %4420
        %4424 = vset.pattern.permute.xlu0 0
        %4425 = vperm.xlu0 %4424, %v3206
        %v4426 = vpop.permute.xlu0 %4425
        %4429 = vset.pattern.permute.xlu0 0
        %4430 = vperm.xlu0 %4429, %v3208
        %v4431 = vpop.permute.xlu0 %4430
        %4434 = vset.pattern.permute.xlu0 0
        %4435 = vperm.xlu0 %4434, %v3210
        %v4436 = vpop.permute.xlu0 %4435
        %4439 = vset.pattern.permute.xlu0 0
        %4440 = vperm.xlu0 %4439, %v3212
        %v4441 = vpop.permute.xlu0 %4440
        %4444 = vset.pattern.permute.xlu0 0
        %4445 = vperm.xlu0 %4444, %v3214
        %v4446 = vpop.permute.xlu0 %4445
        %4449 = vset.pattern.permute.xlu0 0
        %4450 = vperm.xlu0 %4449, %v3216
        %v4451 = vpop.permute.xlu0 %4450
        %4454 = vset.pattern.permute.xlu0 0
        %4455 = vperm.xlu0 %4454, %v3218
        %v4456 = vpop.permute.xlu0 %4455
        %4459 = vset.pattern.permute.xlu0 0
        %4460 = vperm.xlu0 %4459, %v3220
        %v4461 = vpop.permute.xlu0 %4460
        %4464 = vset.pattern.permute.xlu0 0
        %4465 = vperm.xlu0 %4464, %v3222
        %v4466 = vpop.permute.xlu0 %4465
        %4469 = vset.pattern.permute.xlu0 0
        %4470 = vperm.xlu0 %4469, %v3224
        %v4471 = vpop.permute.xlu0 %4470
        %4474 = vset.pattern.permute.xlu0 0
        %4475 = vperm.xlu0 %4474, %v3226
        %v4476 = vpop.permute.xlu0 %4475
        %4479 = vset.pattern.permute.xlu0 0
        %4480 = vperm.xlu0 %4479, %v3228
        %v4481 = vpop.permute.xlu0 %4480
        %4484 = vset.pattern.permute.xlu0 0
        %4485 = vperm.xlu0 %4484, %v3230
        %v4486 = vpop.permute.xlu0 %4485
        %4489 = vset.pattern.permute.xlu0 0
        %4490 = vperm.xlu0 %4489, %v3232
        %v4491 = vpop.permute.xlu0 %4490
        %4494 = vset.pattern.permute.xlu0 0
        %4495 = vperm.xlu0 %4494, %v3234
        %v4496 = vpop.permute.xlu0 %4495
        %4499 = vset.pattern.permute.xlu0 0
        %4500 = vperm.xlu0 %4499, %v3236
        %v4501 = vpop.permute.xlu0 %4500
        %4504 = vset.pattern.permute.xlu0 0
        %4505 = vperm.xlu0 %4504, %v3238
        %v4506 = vpop.permute.xlu0 %4505
        %4509 = vset.pattern.permute.xlu0 0
        %4510 = vperm.xlu0 %4509, %v3240
        %v4511 = vpop.permute.xlu0 %4510
        %4514 = vset.pattern.permute.xlu0 0
        %4515 = vperm.xlu0 %4514, %v3242
        %v4516 = vpop.permute.xlu0 %4515
        %4519 = vset.pattern.permute.xlu0 0
        %4520 = vperm.xlu0 %4519, %v3244
        %v4521 = vpop.permute.xlu0 %4520
        %4524 = vset.pattern.permute.xlu0 0
        %4525 = vperm.xlu0 %4524, %v3246
        %v4526 = vpop.permute.xlu0 %4525
        %v4528 = vmul.f32 %v4211, %v4144
        %v4529 = vmul.f32 %v4216, %v4145
        %v4530 = vmul.f32 %v4221, %v4146
        %v4531 = vmul.f32 %v4226, %v4147
        %v4532 = vmul.f32 %v4231, %v4148
        %v4533 = vmul.f32 %v4236, %v4149
        %v4534 = vmul.f32 %v4241, %v4150
        %v4535 = vmul.f32 %v4246, %v4151
        %v4536 = vmul.f32 %v4251, %v4152
        %v4537 = vmul.f32 %v4256, %v4153
        %v4538 = vmul.f32 %v4261, %v4154
        %v4539 = vmul.f32 %v4266, %v4155
        %v4540 = vmul.f32 %v4271, %v4156
        %v4541 = vmul.f32 %v4276, %v4157
        %v4542 = vmul.f32 %v4281, %v4158
        %v4543 = vmul.f32 %v4286, %v4159
        %v4544 = vmul.f32 %v4291, %v4160
        %v4545 = vmul.f32 %v4296, %v4161
        %v4546 = vmul.f32 %v4301, %v4162
        %v4547 = vmul.f32 %v4306, %v4163
        %v4548 = vmul.f32 %v4311, %v4164
        %v4549 = vmul.f32 %v4316, %v4165
        %v4550 = vmul.f32 %v4321, %v4166
        %v4551 = vmul.f32 %v4326, %v4167
        %v4552 = vmul.f32 %v4331, %v4168
        %v4553 = vmul.f32 %v4336, %v4169
        %v4554 = vmul.f32 %v4341, %v4170
        %v4555 = vmul.f32 %v4346, %v4171
        %v4556 = vmul.f32 %v4351, %v4172
        %v4557 = vmul.f32 %v4356, %v4173
        %v4558 = vmul.f32 %v4361, %v4174
        %v4559 = vmul.f32 %v4366, %v4175
        %v4560 = vmul.f32 %v4371, %v4176
        %v4561 = vmul.f32 %v4376, %v4177
        %v4562 = vmul.f32 %v4381, %v4178
        %v4563 = vmul.f32 %v4386, %v4179
        %v4564 = vmul.f32 %v4391, %v4180
        %v4565 = vmul.f32 %v4396, %v4181
        %v4566 = vmul.f32 %v4401, %v4182
        %v4567 = vmul.f32 %v4406, %v4183
        %v4568 = vmul.f32 %v4411, %v4184
        %v4569 = vmul.f32 %v4416, %v4185
        %v4570 = vmul.f32 %v4421, %v4186
        %v4571 = vmul.f32 %v4426, %v4187
        %v4572 = vmul.f32 %v4431, %v4188
        %v4573 = vmul.f32 %v4436, %v4189
        %v4574 = vmul.f32 %v4441, %v4190
        %v4575 = vmul.f32 %v4446, %v4191
        %v4576 = vmul.f32 %v4451, %v4192
        %v4577 = vmul.f32 %v4456, %v4193
        %v4578 = vmul.f32 %v4461, %v4194
        %v4579 = vmul.f32 %v4466, %v4195
        %v4580 = vmul.f32 %v4471, %v4196
        %v4581 = vmul.f32 %v4476, %v4197
        %v4582 = vmul.f32 %v4481, %v4198
        %v4583 = vmul.f32 %v4486, %v4199
        %v4584 = vmul.f32 %v4491, %v4200
        %v4585 = vmul.f32 %v4496, %v4201
        %v4586 = vmul.f32 %v4501, %v4202
        %v4587 = vmul.f32 %v4506, %v4203
        %v4588 = vmul.f32 %v4511, %v4204
        %v4589 = vmul.f32 %v4516, %v4205
        %v4590 = vmul.f32 %v4521, %v4206
        %v4591 = vmul.f32 %v4526, %v4207
        %v4592 = vpack.c.bf16 %v3634, %v3632
        %v4593 = vpack.c.bf16 %v3638, %v3636
        %v4594 = vpack.c.bf16 %v3642, %v3640
        %v4595 = vpack.c.bf16 %v3646, %v3644
        %v4596 = vpack.c.bf16 %v3650, %v3648
        %v4597 = vpack.c.bf16 %v3654, %v3652
        %v4598 = vpack.c.bf16 %v3658, %v3656
        %v4599 = vpack.c.bf16 %v3662, %v3660
        %v4600 = vpack.c.bf16 %v3666, %v3664
        %v4601 = vpack.c.bf16 %v3670, %v3668
        %v4602 = vpack.c.bf16 %v3674, %v3672
        %v4603 = vpack.c.bf16 %v3678, %v3676
        %v4604 = vpack.c.bf16 %v3682, %v3680
        %v4605 = vpack.c.bf16 %v3686, %v3684
        %v4606 = vpack.c.bf16 %v3690, %v3688
        %v4607 = vpack.c.bf16 %v3694, %v3692
        %v4608 = vpack.c.bf16 %v3698, %v3696
        %v4609 = vpack.c.bf16 %v3702, %v3700
        %v4610 = vpack.c.bf16 %v3706, %v3704
        %v4611 = vpack.c.bf16 %v3710, %v3708
        %v4612 = vpack.c.bf16 %v3714, %v3712
        %v4613 = vpack.c.bf16 %v3718, %v3716
        %v4614 = vpack.c.bf16 %v3722, %v3720
        %v4615 = vpack.c.bf16 %v3726, %v3724
        %v4616 = vpack.c.bf16 %v3730, %v3728
        %v4617 = vpack.c.bf16 %v3734, %v3732
        %v4618 = vpack.c.bf16 %v3738, %v3736
        %v4619 = vpack.c.bf16 %v3742, %v3740
        %v4620 = vpack.c.bf16 %v3746, %v3744
        %v4621 = vpack.c.bf16 %v3750, %v3748
        %v4622 = vpack.c.bf16 %v3754, %v3752
        %v4623 = vpack.c.bf16 %v3758, %v3756
        %v4640 = vunpack.c.l.b16 %v1614
        %v4641 = vunpack.c.l.b16 %v1615
        %v4642 = vunpack.c.l.b16 %v1616
        %v4643 = vunpack.c.l.b16 %v1617
        %v4644 = vunpack.c.l.b16 %v1618
        %v4645 = vunpack.c.l.b16 %v1619
        %v4646 = vunpack.c.l.b16 %v1620
        %v4647 = vunpack.c.l.b16 %v1621
        %v4648 = vunpack.c.l.b16 %v1622
        %v4649 = vunpack.c.l.b16 %v1623
        %v4650 = vunpack.c.l.b16 %v1624
        %v4651 = vunpack.c.l.b16 %v1625
        %v4652 = vunpack.c.l.b16 %v1626
        %v4653 = vunpack.c.l.b16 %v1627
        %v4654 = vunpack.c.l.b16 %v1628
        %v4655 = vunpack.c.l.b16 %v1629
        %v4656 = vpack.c.b16 %v4641, %v4640
        %v4657 = vpack.c.b16 %v4643, %v4642
        %v4658 = vpack.c.b16 %v4645, %v4644
        %v4659 = vpack.c.b16 %v4647, %v4646
        %v4660 = vpack.c.b16 %v4649, %v4648
        %v4661 = vpack.c.b16 %v4651, %v4650
        %v4662 = vpack.c.b16 %v4653, %v4652
        %v4663 = vpack.c.b16 %v4655, %v4654
        %4672 = vmatprep.subr.bf16.mxu0 0
        %4673 = vmatpush1.bf16.msra.mxu0 %v4656
        %4674 = vmatprep.subr.bf16.mxu0 0
        %4675 = vmatpush1.bf16.msra.mxu0 %v4657
        %4676 = vmatprep.subr.bf16.mxu0 0
        %4677 = vmatpush1.bf16.msra.mxu0 %v4658
        %4678 = vmatprep.subr.bf16.mxu0 0
        %4679 = vmatpush1.bf16.msra.mxu0 %v4659
        %4680 = vmatprep.subr.bf16.mxu0 0
        %4681 = vmatpush1.bf16.msra.mxu0 %v4660
        %4682 = vmatprep.subr.bf16.mxu0 0
        %4683 = vmatpush1.bf16.msra.mxu0 %v4661
        %4684 = vmatprep.subr.bf16.mxu0 0
        %4685 = vmatpush1.bf16.msra.mxu0 %v4662
        %4686 = vmatprep.subr.bf16.mxu0 0
        %4687 = vmatpush1.bf16.msra.mxu0 %v4663
        %4688 = vmatprep.subr.bf16.mxu0 0
        %4689 = vmatpush1.bf16.msra.mxu0 0
        %4690 = vmatprep.subr.bf16.mxu0 0
        %4691 = vmatpush1.bf16.msra.mxu0 0
        %4692 = vmatprep.subr.bf16.mxu0 0
        %4693 = vmatpush1.bf16.msra.mxu0 0
        %4694 = vmatprep.subr.bf16.mxu0 0
        %4695 = vmatpush1.bf16.msra.mxu0 0
        %4696 = vmatprep.subr.bf16.mxu0 0
        %4697 = vmatpush1.bf16.msra.mxu0 0
        %4698 = vmatprep.subr.bf16.mxu0 0
        %4699 = vmatpush1.bf16.msra.mxu0 0
        %4700 = vmatprep.subr.bf16.mxu0 0
        %4701 = vmatpush1.bf16.msra.mxu0 0
        %4702 = vmatprep.subr.bf16.mxu0 0
        %4703 = vmatpush1.bf16.msra.mxu0 0
        %4704 = vmatprep.mubr.bf16.mxu0 0
        %4705 = vmatmul.mubr.bf16.gmra.mrb[0].mxu0 %v4592
        %v4706 = vpop.f32.mrb[0].mxu0
        %v4707 = vadd.f32 0.0, %v4706
        %v4708 = vpop.f32.mrb[0].mxu0
        %v4709 = vpop.f32.mrb[0].mxu0
        %v4710 = vadd.f32 0.0, %v4709
        %v4711 = vpop.f32.mrb[0].mxu0
        %4712 = vmatprep.mubr.bf16.mxu0 0
        %4713 = vmatmul.mubr.bf16.gmra.mrb[0].mxu0 %v4593
        %v4714 = vpop.f32.mrb[0].mxu0
        %v4715 = vadd.f32 0.0, %v4714
        %v4716 = vpop.f32.mrb[0].mxu0
        %v4717 = vpop.f32.mrb[0].mxu0
        %v4718 = vadd.f32 0.0, %v4717
        %v4719 = vpop.f32.mrb[0].mxu0
        %4720 = vmatprep.mubr.bf16.mxu0 0
        %4721 = vmatmul.mubr.bf16.gmra.mrb[0].mxu0 %v4594
        %v4722 = vpop.f32.mrb[0].mxu0
        %v4723 = vadd.f32 0.0, %v4722
        %v4724 = vpop.f32.mrb[0].mxu0
        %v4725 = vpop.f32.mrb[0].mxu0
        %v4726 = vadd.f32 0.0, %v4725
        %v4727 = vpop.f32.mrb[0].mxu0
        %4728 = vmatprep.mubr.bf16.mxu0 0
        %4729 = vmatmul.mubr.bf16.gmra.mrb[0].mxu0 %v4595
        %v4730 = vpop.f32.mrb[0].mxu0
        %v4731 = vadd.f32 0.0, %v4730
        %v4732 = vpop.f32.mrb[0].mxu0
        %v4733 = vpop.f32.mrb[0].mxu0
        %v4734 = vadd.f32 0.0, %v4733
        %v4735 = vpop.f32.mrb[0].mxu0
        %4736 = vmatprep.mubr.bf16.mxu0 0
        %4737 = vmatmul.mubr.bf16.gmra.mrb[0].mxu0 %v4596
        %v4738 = vpop.f32.mrb[0].mxu0
        %v4739 = vadd.f32 0.0, %v4738
        %v4740 = vpop.f32.mrb[0].mxu0
        %v4741 = vpop.f32.mrb[0].mxu0
        %v4742 = vadd.f32 0.0, %v4741
        %v4743 = vpop.f32.mrb[0].mxu0
        %4744 = vmatprep.mubr.bf16.mxu0 0
        %4745 = vmatmul.mubr.bf16.gmra.mrb[0].mxu0 %v4597
        %v4746 = vpop.f32.mrb[0].mxu0
        %v4747 = vadd.f32 0.0, %v4746
        %v4748 = vpop.f32.mrb[0].mxu0
        %v4749 = vpop.f32.mrb[0].mxu0
        %v4750 = vadd.f32 0.0, %v4749
        %v4751 = vpop.f32.mrb[0].mxu0
        %4752 = vmatprep.mubr.bf16.mxu0 0
        %4753 = vmatmul.mubr.bf16.gmra.mrb[0].mxu0 %v4598
        %v4754 = vpop.f32.mrb[0].mxu0
        %v4755 = vadd.f32 0.0, %v4754
        %v4756 = vpop.f32.mrb[0].mxu0
        %v4757 = vpop.f32.mrb[0].mxu0
        %v4758 = vadd.f32 0.0, %v4757
        %v4759 = vpop.f32.mrb[0].mxu0
        %4760 = vmatprep.mubr.bf16.mxu0 0
        %4761 = vmatmul.mubr.bf16.gmra.mrb[0].mxu0 %v4599
        %v4762 = vpop.f32.mrb[0].mxu0
        %v4763 = vadd.f32 0.0, %v4762
        %v4764 = vpop.f32.mrb[0].mxu0
        %v4765 = vpop.f32.mrb[0].mxu0
        %v4766 = vadd.f32 0.0, %v4765
        %v4767 = vpop.f32.mrb[0].mxu0
        %4768 = vdwg.mxu0
        %v4785 = vunpack.c.l.b16 %v1630
        %v4786 = vunpack.c.l.b16 %v1631
        %v4787 = vunpack.c.l.b16 %v1632
        %v4788 = vunpack.c.l.b16 %v1633
        %v4789 = vunpack.c.l.b16 %v1634
        %v4790 = vunpack.c.l.b16 %v1635
        %v4791 = vunpack.c.l.b16 %v1636
        %v4792 = vunpack.c.l.b16 %v1637
        %v4793 = vunpack.c.l.b16 %v1638
        %v4794 = vunpack.c.l.b16 %v1639
        %v4795 = vunpack.c.l.b16 %v1640
        %v4796 = vunpack.c.l.b16 %v1641
        %v4797 = vunpack.c.l.b16 %v1642
        %v4798 = vunpack.c.l.b16 %v1643
        %v4799 = vunpack.c.l.b16 %v1644
        %v4800 = vunpack.c.l.b16 %v1645
        %v4801 = vpack.c.b16 %v4786, %v4785
        %v4802 = vpack.c.b16 %v4788, %v4787
        %v4803 = vpack.c.b16 %v4790, %v4789
        %v4804 = vpack.c.b16 %v4792, %v4791
        %v4805 = vpack.c.b16 %v4794, %v4793
        %v4806 = vpack.c.b16 %v4796, %v4795
        %v4807 = vpack.c.b16 %v4798, %v4797
        %v4808 = vpack.c.b16 %v4800, %v4799
        %4817 = vmatprep.subr.bf16.mxu0 0
        %4818 = vmatpush1.bf16.msra.mxu0 %v4801
        %4819 = vmatprep.subr.bf16.mxu0 0
        %4820 = vmatpush1.bf16.msra.mxu0 %v4802
        %4821 = vmatprep.subr.bf16.mxu0 0
        %4822 = vmatpush1.bf16.msra.mxu0 %v4803
        %4823 = vmatprep.subr.bf16.mxu0 0
        %4824 = vmatpush1.bf16.msra.mxu0 %v4804
        %4825 = vmatprep.subr.bf16.mxu0 0
        %4826 = vmatpush1.bf16.msra.mxu0 %v4805
        %4827 = vmatprep.subr.bf16.mxu0 0
        %4828 = vmatpush1.bf16.msra.mxu0 %v4806
        %4829 = vmatprep.subr.bf16.mxu0 0
        %4830 = vmatpush1.bf16.msra.mxu0 %v4807
        %4831 = vmatprep.subr.bf16.mxu0 0
        %4832 = vmatpush1.bf16.msra.mxu0 %v4808
        %4833 = vmatprep.subr.bf16.mxu0 0
        %4834 = vmatpush1.bf16.msra.mxu0 0
        %4835 = vmatprep.subr.bf16.mxu0 0
        %4836 = vmatpush1.bf16.msra.mxu0 0
        %4837 = vmatprep.subr.bf16.mxu0 0
        %4838 = vmatpush1.bf16.msra.mxu0 0
        %4839 = vmatprep.subr.bf16.mxu0 0
        %4840 = vmatpush1.bf16.msra.mxu0 0
        %4841 = vmatprep.subr.bf16.mxu0 0
        %4842 = vmatpush1.bf16.msra.mxu0 0
        %4843 = vmatprep.subr.bf16.mxu0 0
        %4844 = vmatpush1.bf16.msra.mxu0 0
        %4845 = vmatprep.subr.bf16.mxu0 0
        %4846 = vmatpush1.bf16.msra.mxu0 0
        %4847 = vmatprep.subr.bf16.mxu0 0
        %4848 = vmatpush1.bf16.msra.mxu0 0
        %4849 = vmatprep.mubr.bf16.mxu0 0
        %4850 = vmatmul.mubr.bf16.gmra.mrb[0].mxu0 %v4600
        %v4851 = vpop.f32.mrb[0].mxu0
        %v4852 = vadd.f32 0.0, %v4851
        %v4853 = vpop.f32.mrb[0].mxu0
        %v4854 = vpop.f32.mrb[0].mxu0
        %v4855 = vadd.f32 0.0, %v4854
        %v4856 = vpop.f32.mrb[0].mxu0
        %4857 = vmatprep.mubr.bf16.mxu0 0
        %4858 = vmatmul.mubr.bf16.gmra.mrb[0].mxu0 %v4601
        %v4859 = vpop.f32.mrb[0].mxu0
        %v4860 = vadd.f32 0.0, %v4859
        %v4861 = vpop.f32.mrb[0].mxu0
        %v4862 = vpop.f32.mrb[0].mxu0
        %v4863 = vadd.f32 0.0, %v4862
        %v4864 = vpop.f32.mrb[0].mxu0
        %4865 = vmatprep.mubr.bf16.mxu0 0
        %4866 = vmatmul.mubr.bf16.gmra.mrb[0].mxu0 %v4602
        %v4867 = vpop.f32.mrb[0].mxu0
        %v4868 = vadd.f32 0.0, %v4867
        %v4869 = vpop.f32.mrb[0].mxu0
        %v4870 = vpop.f32.mrb[0].mxu0
        %v4871 = vadd.f32 0.0, %v4870
        %v4872 = vpop.f32.mrb[0].mxu0
        %4873 = vmatprep.mubr.bf16.mxu0 0
        %4874 = vmatmul.mubr.bf16.gmra.mrb[0].mxu0 %v4603
        %v4875 = vpop.f32.mrb[0].mxu0
        %v4876 = vadd.f32 0.0, %v4875
        %v4877 = vpop.f32.mrb[0].mxu0
        %v4878 = vpop.f32.mrb[0].mxu0
        %v4879 = vadd.f32 0.0, %v4878
        %v4880 = vpop.f32.mrb[0].mxu0
        %4881 = vmatprep.mubr.bf16.mxu0 0
        %4882 = vmatmul.mubr.bf16.gmra.mrb[0].mxu0 %v4604
        %v4883 = vpop.f32.mrb[0].mxu0
        %v4884 = vadd.f32 0.0, %v4883
        %v4885 = vpop.f32.mrb[0].mxu0
        %v4886 = vpop.f32.mrb[0].mxu0
        %v4887 = vadd.f32 0.0, %v4886
        %v4888 = vpop.f32.mrb[0].mxu0
        %4889 = vmatprep.mubr.bf16.mxu0 0
        %4890 = vmatmul.mubr.bf16.gmra.mrb[0].mxu0 %v4605
        %v4891 = vpop.f32.mrb[0].mxu0
        %v4892 = vadd.f32 0.0, %v4891
        %v4893 = vpop.f32.mrb[0].mxu0
        %v4894 = vpop.f32.mrb[0].mxu0
        %v4895 = vadd.f32 0.0, %v4894
        %v4896 = vpop.f32.mrb[0].mxu0
        %4897 = vmatprep.mubr.bf16.mxu0 0
        %4898 = vmatmul.mubr.bf16.gmra.mrb[0].mxu0 %v4606
        %v4899 = vpop.f32.mrb[0].mxu0
        %v4900 = vadd.f32 0.0, %v4899
        %v4901 = vpop.f32.mrb[0].mxu0
        %v4902 = vpop.f32.mrb[0].mxu0
        %v4903 = vadd.f32 0.0, %v4902
        %v4904 = vpop.f32.mrb[0].mxu0
        %4905 = vmatprep.mubr.bf16.mxu0 0
        %4906 = vmatmul.mubr.bf16.gmra.mrb[0].mxu0 %v4607
        %v4907 = vpop.f32.mrb[0].mxu0
        %v4908 = vadd.f32 0.0, %v4907
        %v4909 = vpop.f32.mrb[0].mxu0
        %v4910 = vpop.f32.mrb[0].mxu0
        %v4911 = vadd.f32 0.0, %v4910
        %v4912 = vpop.f32.mrb[0].mxu0
        %4913 = vdwg.mxu0
        %v4930 = vunpack.c.l.b16 %v1646
        %v4931 = vunpack.c.l.b16 %v1647
        %v4932 = vunpack.c.l.b16 %v1648
        %v4933 = vunpack.c.l.b16 %v1649
        %v4934 = vunpack.c.l.b16 %v1650
        %v4935 = vunpack.c.l.b16 %v1651
        %v4936 = vunpack.c.l.b16 %v1652
        %v4937 = vunpack.c.l.b16 %v1653
        %v4938 = vunpack.c.l.b16 %v1654
        %v4939 = vunpack.c.l.b16 %v1655
        %v4940 = vunpack.c.l.b16 %v1656
        %v4941 = vunpack.c.l.b16 %v1657
        %v4942 = vunpack.c.l.b16 %v1658
        %v4943 = vunpack.c.l.b16 %v1659
        %v4944 = vunpack.c.l.b16 %v1660
        %v4945 = vunpack.c.l.b16 %v1661
        %v4946 = vpack.c.b16 %v4931, %v4930
        %v4947 = vpack.c.b16 %v4933, %v4932
        %v4948 = vpack.c.b16 %v4935, %v4934
        %v4949 = vpack.c.b16 %v4937, %v4936
        %v4950 = vpack.c.b16 %v4939, %v4938
        %v4951 = vpack.c.b16 %v4941, %v4940
        %v4952 = vpack.c.b16 %v4943, %v4942
        %v4953 = vpack.c.b16 %v4945, %v4944
        %4962 = vmatprep.subr.bf16.mxu0 0
        %4963 = vmatpush1.bf16.msra.mxu0 %v4946
        %4964 = vmatprep.subr.bf16.mxu0 0
        %4965 = vmatpush1.bf16.msra.mxu0 %v4947
        %4966 = vmatprep.subr.bf16.mxu0 0
        %4967 = vmatpush1.bf16.msra.mxu0 %v4948
        %4968 = vmatprep.subr.bf16.mxu0 0
        %4969 = vmatpush1.bf16.msra.mxu0 %v4949
        %4970 = vmatprep.subr.bf16.mxu0 0
        %4971 = vmatpush1.bf16.msra.mxu0 %v4950
        %4972 = vmatprep.subr.bf16.mxu0 0
        %4973 = vmatpush1.bf16.msra.mxu0 %v4951
        %4974 = vmatprep.subr.bf16.mxu0 0
        %4975 = vmatpush1.bf16.msra.mxu0 %v4952
        %4976 = vmatprep.subr.bf16.mxu0 0
        %4977 = vmatpush1.bf16.msra.mxu0 %v4953
        %4978 = vmatprep.subr.bf16.mxu0 0
        %4979 = vmatpush1.bf16.msra.mxu0 0
        %4980 = vmatprep.subr.bf16.mxu0 0
        %4981 = vmatpush1.bf16.msra.mxu0 0
        %4982 = vmatprep.subr.bf16.mxu0 0
        %4983 = vmatpush1.bf16.msra.mxu0 0
        %4984 = vmatprep.subr.bf16.mxu0 0
        %4985 = vmatpush1.bf16.msra.mxu0 0
        %4986 = vmatprep.subr.bf16.mxu0 0
        %4987 = vmatpush1.bf16.msra.mxu0 0
        %4988 = vmatprep.subr.bf16.mxu0 0
        %4989 = vmatpush1.bf16.msra.mxu0 0
        %4990 = vmatprep.subr.bf16.mxu0 0
        %4991 = vmatpush1.bf16.msra.mxu0 0
        %4992 = vmatprep.subr.bf16.mxu0 0
        %4993 = vmatpush1.bf16.msra.mxu0 0
        %4994 = vmatprep.mubr.bf16.mxu0 0
        %4995 = vmatmul.mubr.bf16.gmra.mrb[0].mxu0 %v4608
        %v4996 = vpop.f32.mrb[0].mxu0
        %v4997 = vadd.f32 0.0, %v4996
        %v4998 = vpop.f32.mrb[0].mxu0
        %v4999 = vpop.f32.mrb[0].mxu0
        %v5000 = vadd.f32 0.0, %v4999
        %v5001 = vpop.f32.mrb[0].mxu0
        %5002 = vmatprep.mubr.bf16.mxu0 0
        %5003 = vmatmul.mubr.bf16.gmra.mrb[0].mxu0 %v4609
        %v5004 = vpop.f32.mrb[0].mxu0
        %v5005 = vadd.f32 0.0, %v5004
        %v5006 = vpop.f32.mrb[0].mxu0
        %v5007 = vpop.f32.mrb[0].mxu0
        %v5008 = vadd.f32 0.0, %v5007
        %v5009 = vpop.f32.mrb[0].mxu0
        %5010 = vmatprep.mubr.bf16.mxu0 0
        %5011 = vmatmul.mubr.bf16.gmra.mrb[0].mxu0 %v4610
        %v5012 = vpop.f32.mrb[0].mxu0
        %v5013 = vadd.f32 0.0, %v5012
        %v5014 = vpop.f32.mrb[0].mxu0
        %v5015 = vpop.f32.mrb[0].mxu0
        %v5016 = vadd.f32 0.0, %v5015
        %v5017 = vpop.f32.mrb[0].mxu0
        %5018 = vmatprep.mubr.bf16.mxu0 0
        %5019 = vmatmul.mubr.bf16.gmra.mrb[0].mxu0 %v4611
        %v5020 = vpop.f32.mrb[0].mxu0
        %v5021 = vadd.f32 0.0, %v5020
        %v5022 = vpop.f32.mrb[0].mxu0
        %v5023 = vpop.f32.mrb[0].mxu0
        %v5024 = vadd.f32 0.0, %v5023
        %v5025 = vpop.f32.mrb[0].mxu0
        %5026 = vmatprep.mubr.bf16.mxu0 0
        %5027 = vmatmul.mubr.bf16.gmra.mrb[0].mxu0 %v4612
        %v5028 = vpop.f32.mrb[0].mxu0
        %v5029 = vadd.f32 0.0, %v5028
        %v5030 = vpop.f32.mrb[0].mxu0
        %v5031 = vpop.f32.mrb[0].mxu0
        %v5032 = vadd.f32 0.0, %v5031
        %v5033 = vpop.f32.mrb[0].mxu0
        %5034 = vmatprep.mubr.bf16.mxu0 0
        %5035 = vmatmul.mubr.bf16.gmra.mrb[0].mxu0 %v4613
        %v5036 = vpop.f32.mrb[0].mxu0
        %v5037 = vadd.f32 0.0, %v5036
        %v5038 = vpop.f32.mrb[0].mxu0
        %v5039 = vpop.f32.mrb[0].mxu0
        %v5040 = vadd.f32 0.0, %v5039
        %v5041 = vpop.f32.mrb[0].mxu0
        %5042 = vmatprep.mubr.bf16.mxu0 0
        %5043 = vmatmul.mubr.bf16.gmra.mrb[0].mxu0 %v4614
        %v5044 = vpop.f32.mrb[0].mxu0
        %v5045 = vadd.f32 0.0, %v5044
        %v5046 = vpop.f32.mrb[0].mxu0
        %v5047 = vpop.f32.mrb[0].mxu0
        %v5048 = vadd.f32 0.0, %v5047
        %v5049 = vpop.f32.mrb[0].mxu0
        %5050 = vmatprep.mubr.bf16.mxu0 0
        %5051 = vmatmul.mubr.bf16.gmra.mrb[0].mxu0 %v4615
        %v5052 = vpop.f32.mrb[0].mxu0
        %v5053 = vadd.f32 0.0, %v5052
        %v5054 = vpop.f32.mrb[0].mxu0
        %v5055 = vpop.f32.mrb[0].mxu0
        %v5056 = vadd.f32 0.0, %v5055
        %v5057 = vpop.f32.mrb[0].mxu0
        %5058 = vdwg.mxu0
        %v5075 = vunpack.c.l.b16 %v1662
        %v5076 = vunpack.c.l.b16 %v1663
        %v5077 = vunpack.c.l.b16 %v1664
        %v5078 = vunpack.c.l.b16 %v1665
        %v5079 = vunpack.c.l.b16 %v1666
        %v5080 = vunpack.c.l.b16 %v1667
        %v5081 = vunpack.c.l.b16 %v1668
        %v5082 = vunpack.c.l.b16 %v1669
        %v5083 = vunpack.c.l.b16 %v1670
        %v5084 = vunpack.c.l.b16 %v1671
        %v5085 = vunpack.c.l.b16 %v1672
        %v5086 = vunpack.c.l.b16 %v1673
        %v5087 = vunpack.c.l.b16 %v1674
        %v5088 = vunpack.c.l.b16 %v1675
        %v5089 = vunpack.c.l.b16 %v1676
        %v5090 = vunpack.c.l.b16 %v1677
        %v5091 = vpack.c.b16 %v5076, %v5075
        %v5092 = vpack.c.b16 %v5078, %v5077
        %v5093 = vpack.c.b16 %v5080, %v5079
        %v5094 = vpack.c.b16 %v5082, %v5081
        %v5095 = vpack.c.b16 %v5084, %v5083
        %v5096 = vpack.c.b16 %v5086, %v5085
        %v5097 = vpack.c.b16 %v5088, %v5087
        %v5098 = vpack.c.b16 %v5090, %v5089
        %5107 = vmatprep.subr.bf16.mxu0 0
        %5108 = vmatpush1.bf16.msra.mxu0 %v5091
        %5109 = vmatprep.subr.bf16.mxu0 0
        %5110 = vmatpush1.bf16.msra.mxu0 %v5092
        %5111 = vmatprep.subr.bf16.mxu0 0
        %5112 = vmatpush1.bf16.msra.mxu0 %v5093
        %5113 = vmatprep.subr.bf16.mxu0 0
        %5114 = vmatpush1.bf16.msra.mxu0 %v5094
        %5115 = vmatprep.subr.bf16.mxu0 0
        %5116 = vmatpush1.bf16.msra.mxu0 %v5095
        %5117 = vmatprep.subr.bf16.mxu0 0
        %5118 = vmatpush1.bf16.msra.mxu0 %v5096
        %5119 = vmatprep.subr.bf16.mxu0 0
        %5120 = vmatpush1.bf16.msra.mxu0 %v5097
        %5121 = vmatprep.subr.bf16.mxu0 0
        %5122 = vmatpush1.bf16.msra.mxu0 %v5098
        %5123 = vmatprep.subr.bf16.mxu0 0
        %5124 = vmatpush1.bf16.msra.mxu0 0
        %5125 = vmatprep.subr.bf16.mxu0 0
        %5126 = vmatpush1.bf16.msra.mxu0 0
        %5127 = vmatprep.subr.bf16.mxu0 0
        %5128 = vmatpush1.bf16.msra.mxu0 0
        %5129 = vmatprep.subr.bf16.mxu0 0
        %5130 = vmatpush1.bf16.msra.mxu0 0
        %5131 = vmatprep.subr.bf16.mxu0 0
        %5132 = vmatpush1.bf16.msra.mxu0 0
        %5133 = vmatprep.subr.bf16.mxu0 0
        %5134 = vmatpush1.bf16.msra.mxu0 0
        %5135 = vmatprep.subr.bf16.mxu0 0
        %5136 = vmatpush1.bf16.msra.mxu0 0
        %5137 = vmatprep.subr.bf16.mxu0 0
        %5138 = vmatpush1.bf16.msra.mxu0 0
        %5139 = vmatprep.mubr.bf16.mxu0 0
        %5140 = vmatmul.mubr.bf16.gmra.mrb[0].mxu0 %v4616
        %v5141 = vpop.f32.mrb[0].mxu0
        %v5142 = vadd.f32 0.0, %v5141
        %v5143 = vpop.f32.mrb[0].mxu0
        %v5144 = vpop.f32.mrb[0].mxu0
        %v5145 = vadd.f32 0.0, %v5144
        %v5146 = vpop.f32.mrb[0].mxu0
        %5147 = vmatprep.mubr.bf16.mxu0 0
        %5148 = vmatmul.mubr.bf16.gmra.mrb[0].mxu0 %v4617
        %v5149 = vpop.f32.mrb[0].mxu0
        %v5150 = vadd.f32 0.0, %v5149
        %v5151 = vpop.f32.mrb[0].mxu0
        %v5152 = vpop.f32.mrb[0].mxu0
        %v5153 = vadd.f32 0.0, %v5152
        %v5154 = vpop.f32.mrb[0].mxu0
        %5155 = vmatprep.mubr.bf16.mxu0 0
        %5156 = vmatmul.mubr.bf16.gmra.mrb[0].mxu0 %v4618
        %v5157 = vpop.f32.mrb[0].mxu0
        %v5158 = vadd.f32 0.0, %v5157
        %v5159 = vpop.f32.mrb[0].mxu0
        %v5160 = vpop.f32.mrb[0].mxu0
        %v5161 = vadd.f32 0.0, %v5160
        %v5162 = vpop.f32.mrb[0].mxu0
        %5163 = vmatprep.mubr.bf16.mxu0 0
        %5164 = vmatmul.mubr.bf16.gmra.mrb[0].mxu0 %v4619
        %v5165 = vpop.f32.mrb[0].mxu0
        %v5166 = vadd.f32 0.0, %v5165
        %v5167 = vpop.f32.mrb[0].mxu0
        %v5168 = vpop.f32.mrb[0].mxu0
        %v5169 = vadd.f32 0.0, %v5168
        %v5170 = vpop.f32.mrb[0].mxu0
        %5171 = vmatprep.mubr.bf16.mxu0 0
        %5172 = vmatmul.mubr.bf16.gmra.mrb[0].mxu0 %v4620
        %v5173 = vpop.f32.mrb[0].mxu0
        %v5174 = vadd.f32 0.0, %v5173
        %v5175 = vpop.f32.mrb[0].mxu0
        %v5176 = vpop.f32.mrb[0].mxu0
        %v5177 = vadd.f32 0.0, %v5176
        %v5178 = vpop.f32.mrb[0].mxu0
        %5179 = vmatprep.mubr.bf16.mxu0 0
        %5180 = vmatmul.mubr.bf16.gmra.mrb[0].mxu0 %v4621
        %v5181 = vpop.f32.mrb[0].mxu0
        %v5182 = vadd.f32 0.0, %v5181
        %v5183 = vpop.f32.mrb[0].mxu0
        %v5184 = vpop.f32.mrb[0].mxu0
        %v5185 = vadd.f32 0.0, %v5184
        %v5186 = vpop.f32.mrb[0].mxu0
        %5187 = vmatprep.mubr.bf16.mxu0 0
        %5188 = vmatmul.mubr.bf16.gmra.mrb[0].mxu0 %v4622
        %v5189 = vpop.f32.mrb[0].mxu0
        %v5190 = vadd.f32 0.0, %v5189
        %v5191 = vpop.f32.mrb[0].mxu0
        %v5192 = vpop.f32.mrb[0].mxu0
        %v5193 = vadd.f32 0.0, %v5192
        %v5194 = vpop.f32.mrb[0].mxu0
        %5195 = vmatprep.mubr.bf16.mxu0 0
        %5196 = vmatmul.mubr.bf16.gmra.mrb[0].mxu0 %v4623
        %v5197 = vpop.f32.mrb[0].mxu0
        %v5198 = vadd.f32 0.0, %v5197
        %v5199 = vpop.f32.mrb[0].mxu0
        %v5200 = vpop.f32.mrb[0].mxu0
        %v5201 = vadd.f32 0.0, %v5200
        %v5202 = vpop.f32.mrb[0].mxu0
        %5203 = vdwg.mxu0
        %v5204 = vadd.f32 %v4528, %v4707
        %v5205 = vadd.f32 %v4529, %v4710
        %v5206 = vadd.f32 %v4530, %v4715
        %v5207 = vadd.f32 %v4531, %v4718
        %v5208 = vadd.f32 %v4532, %v4723
        %v5209 = vadd.f32 %v4533, %v4726
        %v5210 = vadd.f32 %v4534, %v4731
        %v5211 = vadd.f32 %v4535, %v4734
        %v5212 = vadd.f32 %v4536, %v4739
        %v5213 = vadd.f32 %v4537, %v4742
        %v5214 = vadd.f32 %v4538, %v4747
        %v5215 = vadd.f32 %v4539, %v4750
        %v5216 = vadd.f32 %v4540, %v4755
        %v5217 = vadd.f32 %v4541, %v4758
        %v5218 = vadd.f32 %v4542, %v4763
        %v5219 = vadd.f32 %v4543, %v4766
        %v5220 = vadd.f32 %v4544, %v4852
        %v5221 = vadd.f32 %v4545, %v4855
        %v5222 = vadd.f32 %v4546, %v4860
        %v5223 = vadd.f32 %v4547, %v4863
        %v5224 = vadd.f32 %v4548, %v4868
        %v5225 = vadd.f32 %v4549, %v4871
        %v5226 = vadd.f32 %v4550, %v4876
        %v5227 = vadd.f32 %v4551, %v4879
        %v5228 = vadd.f32 %v4552, %v4884
        %v5229 = vadd.f32 %v4553, %v4887
        %v5230 = vadd.f32 %v4554, %v4892
        %v5231 = vadd.f32 %v4555, %v4895
        %v5232 = vadd.f32 %v4556, %v4900
        %v5233 = vadd.f32 %v4557, %v4903
        %v5234 = vadd.f32 %v4558, %v4908
        %v5235 = vadd.f32 %v4559, %v4911
        %v5236 = vadd.f32 %v4560, %v4997
        %v5237 = vadd.f32 %v4561, %v5000
        %v5238 = vadd.f32 %v4562, %v5005
        %v5239 = vadd.f32 %v4563, %v5008
        %v5240 = vadd.f32 %v4564, %v5013
        %v5241 = vadd.f32 %v4565, %v5016
        %v5242 = vadd.f32 %v4566, %v5021
        %v5243 = vadd.f32 %v4567, %v5024
        %v5244 = vadd.f32 %v4568, %v5029
        %v5245 = vadd.f32 %v4569, %v5032
        %v5246 = vadd.f32 %v4570, %v5037
        %v5247 = vadd.f32 %v4571, %v5040
        %v5248 = vadd.f32 %v4572, %v5045
        %v5249 = vadd.f32 %v4573, %v5048
        %v5250 = vadd.f32 %v4574, %v5053
        %v5251 = vadd.f32 %v4575, %v5056
        %v5252 = vadd.f32 %v4576, %v5142
        %v5253 = vadd.f32 %v4577, %v5145
        %v5254 = vadd.f32 %v4578, %v5150
        %v5255 = vadd.f32 %v4579, %v5153
        %v5256 = vadd.f32 %v4580, %v5158
        %v5257 = vadd.f32 %v4581, %v5161
        %v5258 = vadd.f32 %v4582, %v5166
        %v5259 = vadd.f32 %v4583, %v5169
        %v5260 = vadd.f32 %v4584, %v5174
        %v5261 = vadd.f32 %v4585, %v5177
        %v5262 = vadd.f32 %v4586, %v5182
        %v5263 = vadd.f32 %v4587, %v5185
        %v5264 = vadd.f32 %v4588, %v5190
        %v5265 = vadd.f32 %v4589, %v5193
        %v5266 = vadd.f32 %v4590, %v5198
        %v5267 = vadd.f32 %v4591, %v5201
        %5268 = vst.msk [vmem:[#allocation4] sm:$0xff] %vm1758, %v5204
        %5269 = vst.msk [vmem:[#allocation4 + $0x8] sm:$0xff] %vm1758, %v5205
        %5270 = vst.msk [vmem:[#allocation4 + $0x10] sm:$0xff] %vm1758, %v5206
        %5271 = vst.msk [vmem:[#allocation4 + $0x18] sm:$0xff] %vm1758, %v5207
        %5272 = vst.msk [vmem:[#allocation4 + $0x20] sm:$0xff] %vm1758, %v5208
        %5273 = vst.msk [vmem:[#allocation4 + $0x28] sm:$0xff] %vm1758, %v5209
        %5274 = vst.msk [vmem:[#allocation4 + $0x30] sm:$0xff] %vm1758, %v5210
        %5275 = vst.msk [vmem:[#allocation4 + $0x38] sm:$0xff] %vm1758, %v5211
        %5276 = vst.msk [vmem:[#allocation4 + $0x40] sm:$0xff] %vm1758, %v5212
        %5277 = vst.msk [vmem:[#allocation4 + $0x48] sm:$0xff] %vm1758, %v5213
        %5278 = vst.msk [vmem:[#allocation4 + $0x50] sm:$0xff] %vm1758, %v5214
        %5279 = vst.msk [vmem:[#allocation4 + $0x58] sm:$0xff] %vm1758, %v5215
        %5280 = vst.msk [vmem:[#allocation4 + $0x60] sm:$0xff] %vm1758, %v5216
        %5281 = vst.msk [vmem:[#allocation4 + $0x68] sm:$0xff] %vm1758, %v5217
        %5282 = vst.msk [vmem:[#allocation4 + $0x70] sm:$0xff] %vm1758, %v5218
        %5283 = vst.msk [vmem:[#allocation4 + $0x78] sm:$0xff] %vm1758, %v5219
        %5284 = vst.msk [vmem:[#allocation4 + $0x80] sm:$0xff] %vm1758, %v5220
        %5285 = vst.msk [vmem:[#allocation4 + $0x88] sm:$0xff] %vm1758, %v5221
        %5286 = vst.msk [vmem:[#allocation4 + $0x90] sm:$0xff] %vm1758, %v5222
        %5287 = vst.msk [vmem:[#allocation4 + $0x98] sm:$0xff] %vm1758, %v5223
        %5288 = vst.msk [vmem:[#allocation4 + $0xa0] sm:$0xff] %vm1758, %v5224
        %5289 = vst.msk [vmem:[#allocation4 + $0xa8] sm:$0xff] %vm1758, %v5225
        %5290 = vst.msk [vmem:[#allocation4 + $0xb0] sm:$0xff] %vm1758, %v5226
        %5291 = vst.msk [vmem:[#allocation4 + $0xb8] sm:$0xff] %vm1758, %v5227
        %5292 = vst.msk [vmem:[#allocation4 + $0xc0] sm:$0xff] %vm1758, %v5228
        %5293 = vst.msk [vmem:[#allocation4 + $0xc8] sm:$0xff] %vm1758, %v5229
        %5294 = vst.msk [vmem:[#allocation4 + $0xd0] sm:$0xff] %vm1758, %v5230
        %5295 = vst.msk [vmem:[#allocation4 + $0xd8] sm:$0xff] %vm1758, %v5231
        %5296 = vst.msk [vmem:[#allocation4 + $0xe0] sm:$0xff] %vm1758, %v5232
        %5297 = vst.msk [vmem:[#allocation4 + $0xe8] sm:$0xff] %vm1758, %v5233
        %5298 = vst.msk [vmem:[#allocation4 + $0xf0] sm:$0xff] %vm1758, %v5234
        %5299 = vst.msk [vmem:[#allocation4 + $0xf8] sm:$0xff] %vm1758, %v5235
        %5300 = vst.msk [vmem:[#allocation4 + $0x100] sm:$0xff] %vm1758, %v5236
        %5301 = vst.msk [vmem:[#allocation4 + $0x108] sm:$0xff] %vm1758, %v5237
        %5302 = vst.msk [vmem:[#allocation4 + $0x110] sm:$0xff] %vm1758, %v5238
        %5303 = vst.msk [vmem:[#allocation4 + $0x118] sm:$0xff] %vm1758, %v5239
        %5304 = vst.msk [vmem:[#allocation4 + $0x120] sm:$0xff] %vm1758, %v5240
        %5305 = vst.msk [vmem:[#allocation4 + $0x128] sm:$0xff] %vm1758, %v5241
        %5306 = vst.msk [vmem:[#allocation4 + $0x130] sm:$0xff] %vm1758, %v5242
        %5307 = vst.msk [vmem:[#allocation4 + $0x138] sm:$0xff] %vm1758, %v5243
        %5308 = vst.msk [vmem:[#allocation4 + $0x140] sm:$0xff] %vm1758, %v5244
        %5309 = vst.msk [vmem:[#allocation4 + $0x148] sm:$0xff] %vm1758, %v5245
        %5310 = vst.msk [vmem:[#allocation4 + $0x150] sm:$0xff] %vm1758, %v5246
        %5311 = vst.msk [vmem:[#allocation4 + $0x158] sm:$0xff] %vm1758, %v5247
        %5312 = vst.msk [vmem:[#allocation4 + $0x160] sm:$0xff] %vm1758, %v5248
        %5313 = vst.msk [vmem:[#allocation4 + $0x168] sm:$0xff] %vm1758, %v5249
        %5314 = vst.msk [vmem:[#allocation4 + $0x170] sm:$0xff] %vm1758, %v5250
        %5315 = vst.msk [vmem:[#allocation4 + $0x178] sm:$0xff] %vm1758, %v5251
        %5316 = vst.msk [vmem:[#allocation4 + $0x180] sm:$0xff] %vm1758, %v5252
        %5317 = vst.msk [vmem:[#allocation4 + $0x188] sm:$0xff] %vm1758, %v5253
        %5318 = vst.msk [vmem:[#allocation4 + $0x190] sm:$0xff] %vm1758, %v5254
        %5319 = vst.msk [vmem:[#allocation4 + $0x198] sm:$0xff] %vm1758, %v5255
        %5320 = vst.msk [vmem:[#allocation4 + $0x1a0] sm:$0xff] %vm1758, %v5256
        %5321 = vst.msk [vmem:[#allocation4 + $0x1a8] sm:$0xff] %vm1758, %v5257
        %5322 = vst.msk [vmem:[#allocation4 + $0x1b0] sm:$0xff] %vm1758, %v5258
        %5323 = vst.msk [vmem:[#allocation4 + $0x1b8] sm:$0xff] %vm1758, %v5259
        %5324 = vst.msk [vmem:[#allocation4 + $0x1c0] sm:$0xff] %vm1758, %v5260
        %5325 = vst.msk [vmem:[#allocation4 + $0x1c8] sm:$0xff] %vm1758, %v5261
        %5326 = vst.msk [vmem:[#allocation4 + $0x1d0] sm:$0xff] %vm1758, %v5262
        %5327 = vst.msk [vmem:[#allocation4 + $0x1d8] sm:$0xff] %vm1758, %v5263
        %5328 = vst.msk [vmem:[#allocation4 + $0x1e0] sm:$0xff] %vm1758, %v5264
        %5329 = vst.msk [vmem:[#allocation4 + $0x1e8] sm:$0xff] %vm1758, %v5265
        %5330 = vst.msk [vmem:[#allocation4 + $0x1f0] sm:$0xff] %vm1758, %v5266
        %5331 = vst.msk [vmem:[#allocation4 + $0x1f8] sm:$0xff] %vm1758, %v5267
        %5332 = vst.msk [vmem:[#allocation2] sm:$0xff] %vm4079, %v2991
        %5333 = vst.msk [vmem:[#allocation2 + $0x8] sm:$0xff] %vm4079, %v2992
        %5334 = vst.msk [vmem:[#allocation2 + $0x10] sm:$0xff] %vm4079, %v2993
        %5335 = vst.msk [vmem:[#allocation2 + $0x18] sm:$0xff] %vm4079, %v2994
        %5336 = vst.msk [vmem:[#allocation2 + $0x20] sm:$0xff] %vm4079, %v2995
        %5337 = vst.msk [vmem:[#allocation2 + $0x28] sm:$0xff] %vm4079, %v2996
        %5338 = vst.msk [vmem:[#allocation2 + $0x30] sm:$0xff] %vm4079, %v2997
        %5339 = vst.msk [vmem:[#allocation2 + $0x38] sm:$0xff] %vm4079, %v2998
        %5340 = vst.msk [vmem:[#allocation2 + $0x40] sm:$0xff] %vm4079, %v2999
        %5341 = vst.msk [vmem:[#allocation2 + $0x48] sm:$0xff] %vm4079, %v3000
        %5342 = vst.msk [vmem:[#allocation2 + $0x50] sm:$0xff] %vm4079, %v3001
        %5343 = vst.msk [vmem:[#allocation2 + $0x58] sm:$0xff] %vm4079, %v3002
        %5344 = vst.msk [vmem:[#allocation2 + $0x60] sm:$0xff] %vm4079, %v3003
        %5345 = vst.msk [vmem:[#allocation2 + $0x68] sm:$0xff] %vm4079, %v3004
        %5346 = vst.msk [vmem:[#allocation2 + $0x70] sm:$0xff] %vm4079, %v3005
        %5347 = vst.msk [vmem:[#allocation2 + $0x78] sm:$0xff] %vm4079, %v3006
        %5348 = vst.msk [vmem:[#allocation2 + $0x80] sm:$0xff] %vm4079, %v3007
        %5349 = vst.msk [vmem:[#allocation2 + $0x88] sm:$0xff] %vm4079, %v3008
        %5350 = vst.msk [vmem:[#allocation2 + $0x90] sm:$0xff] %vm4079, %v3009
        %5351 = vst.msk [vmem:[#allocation2 + $0x98] sm:$0xff] %vm4079, %v3010
        %5352 = vst.msk [vmem:[#allocation2 + $0xa0] sm:$0xff] %vm4079, %v3011
        %5353 = vst.msk [vmem:[#allocation2 + $0xa8] sm:$0xff] %vm4079, %v3012
        %5354 = vst.msk [vmem:[#allocation2 + $0xb0] sm:$0xff] %vm4079, %v3013
        %5355 = vst.msk [vmem:[#allocation2 + $0xb8] sm:$0xff] %vm4079, %v3014
        %5356 = vst.msk [vmem:[#allocation2 + $0xc0] sm:$0xff] %vm4079, %v3015
        %5357 = vst.msk [vmem:[#allocation2 + $0xc8] sm:$0xff] %vm4079, %v3016
        %5358 = vst.msk [vmem:[#allocation2 + $0xd0] sm:$0xff] %vm4079, %v3017
        %5359 = vst.msk [vmem:[#allocation2 + $0xd8] sm:$0xff] %vm4079, %v3018
        %5360 = vst.msk [vmem:[#allocation2 + $0xe0] sm:$0xff] %vm4079, %v3019
        %5361 = vst.msk [vmem:[#allocation2 + $0xe8] sm:$0xff] %vm4079, %v3020
        %5362 = vst.msk [vmem:[#allocation2 + $0xf0] sm:$0xff] %vm4079, %v3021
        %5363 = vst.msk [vmem:[#allocation2 + $0xf8] sm:$0xff] %vm4079, %v3022
        %5364 = vst.msk [vmem:[#allocation2 + $0x100] sm:$0xff] %vm4079, %v3023
        %5365 = vst.msk [vmem:[#allocation2 + $0x108] sm:$0xff] %vm4079, %v3024
        %5366 = vst.msk [vmem:[#allocation2 + $0x110] sm:$0xff] %vm4079, %v3025
        %5367 = vst.msk [vmem:[#allocation2 + $0x118] sm:$0xff] %vm4079, %v3026
        %5368 = vst.msk [vmem:[#allocation2 + $0x120] sm:$0xff] %vm4079, %v3027
        %5369 = vst.msk [vmem:[#allocation2 + $0x128] sm:$0xff] %vm4079, %v3028
        %5370 = vst.msk [vmem:[#allocation2 + $0x130] sm:$0xff] %vm4079, %v3029
        %5371 = vst.msk [vmem:[#allocation2 + $0x138] sm:$0xff] %vm4079, %v3030
        %5372 = vst.msk [vmem:[#allocation2 + $0x140] sm:$0xff] %vm4079, %v3031
        %5373 = vst.msk [vmem:[#allocation2 + $0x148] sm:$0xff] %vm4079, %v3032
        %5374 = vst.msk [vmem:[#allocation2 + $0x150] sm:$0xff] %vm4079, %v3033
        %5375 = vst.msk [vmem:[#allocation2 + $0x158] sm:$0xff] %vm4079, %v3034
        %5376 = vst.msk [vmem:[#allocation2 + $0x160] sm:$0xff] %vm4079, %v3035
        %5377 = vst.msk [vmem:[#allocation2 + $0x168] sm:$0xff] %vm4079, %v3036
        %5378 = vst.msk [vmem:[#allocation2 + $0x170] sm:$0xff] %vm4079, %v3037
        %5379 = vst.msk [vmem:[#allocation2 + $0x178] sm:$0xff] %vm4079, %v3038
        %5380 = vst.msk [vmem:[#allocation2 + $0x180] sm:$0xff] %vm4079, %v3039
        %5381 = vst.msk [vmem:[#allocation2 + $0x188] sm:$0xff] %vm4079, %v3040
        %5382 = vst.msk [vmem:[#allocation2 + $0x190] sm:$0xff] %vm4079, %v3041
        %5383 = vst.msk [vmem:[#allocation2 + $0x198] sm:$0xff] %vm4079, %v3042
        %5384 = vst.msk [vmem:[#allocation2 + $0x1a0] sm:$0xff] %vm4079, %v3043
        %5385 = vst.msk [vmem:[#allocation2 + $0x1a8] sm:$0xff] %vm4079, %v3044
        %5386 = vst.msk [vmem:[#allocation2 + $0x1b0] sm:$0xff] %vm4079, %v3045
        %5387 = vst.msk [vmem:[#allocation2 + $0x1b8] sm:$0xff] %vm4079, %v3046
        %5388 = vst.msk [vmem:[#allocation2 + $0x1c0] sm:$0xff] %vm4079, %v3047
        %5389 = vst.msk [vmem:[#allocation2 + $0x1c8] sm:$0xff] %vm4079, %v3048
        %5390 = vst.msk [vmem:[#allocation2 + $0x1d0] sm:$0xff] %vm4079, %v3049
        %5391 = vst.msk [vmem:[#allocation2 + $0x1d8] sm:$0xff] %vm4079, %v3050
        %5392 = vst.msk [vmem:[#allocation2 + $0x1e0] sm:$0xff] %vm4079, %v3051
        %5393 = vst.msk [vmem:[#allocation2 + $0x1e8] sm:$0xff] %vm4079, %v3052
        %5394 = vst.msk [vmem:[#allocation2 + $0x1f0] sm:$0xff] %vm4079, %v3053
        %5395 = vst.msk [vmem:[#allocation2 + $0x1f8] sm:$0xff] %vm4079, %v3054
        %p5396 = scmp.eq.s32.totalorder %s27, 1
        // Predicated region
        $region210: #{tpu_custom_call.1} parent=188 // pred_check
          %p5397 = pneg %p5396
        $region211: #{tpu_custom_call.1} parent=188 // pred_check_branch
          %5399 = sbr.rel (%p5397) target = $region213
        $region212: #{tpu_custom_call.1} parent=188 // pred_region
          %v5400 = vld [vmem:[#allocation3] sm:$0xff]
          %v5401 = vld [vmem:[#allocation3 + $0x8] sm:$0xff]
          %v5402 = vld [vmem:[#allocation3 + $0x10] sm:$0xff]
          %v5403 = vld [vmem:[#allocation3 + $0x18] sm:$0xff]
          %v5404 = vld [vmem:[#allocation3 + $0x20] sm:$0xff]
          %v5405 = vld [vmem:[#allocation3 + $0x28] sm:$0xff]
          %v5406 = vld [vmem:[#allocation3 + $0x30] sm:$0xff]
          %v5407 = vld [vmem:[#allocation3 + $0x38] sm:$0xff]
          %v5408 = vld [vmem:[#allocation3 + $0x40] sm:$0xff]
          %v5409 = vld [vmem:[#allocation3 + $0x48] sm:$0xff]
          %v5410 = vld [vmem:[#allocation3 + $0x50] sm:$0xff]
          %v5411 = vld [vmem:[#allocation3 + $0x58] sm:$0xff]
          %v5412 = vld [vmem:[#allocation3 + $0x60] sm:$0xff]
          %v5413 = vld [vmem:[#allocation3 + $0x68] sm:$0xff]
          %v5414 = vld [vmem:[#allocation3 + $0x70] sm:$0xff]
          %v5415 = vld [vmem:[#allocation3 + $0x78] sm:$0xff]
          %v5416 = vld [vmem:[#allocation3 + $0x80] sm:$0xff]
          %v5417 = vld [vmem:[#allocation3 + $0x88] sm:$0xff]
          %v5418 = vld [vmem:[#allocation3 + $0x90] sm:$0xff]
          %v5419 = vld [vmem:[#allocation3 + $0x98] sm:$0xff]
          %v5420 = vld [vmem:[#allocation3 + $0xa0] sm:$0xff]
          %v5421 = vld [vmem:[#allocation3 + $0xa8] sm:$0xff]
          %v5422 = vld [vmem:[#allocation3 + $0xb0] sm:$0xff]
          %v5423 = vld [vmem:[#allocation3 + $0xb8] sm:$0xff]
          %v5424 = vld [vmem:[#allocation3 + $0xc0] sm:$0xff]
          %v5425 = vld [vmem:[#allocation3 + $0xc8] sm:$0xff]
          %v5426 = vld [vmem:[#allocation3 + $0xd0] sm:$0xff]
          %v5427 = vld [vmem:[#allocation3 + $0xd8] sm:$0xff]
          %v5428 = vld [vmem:[#allocation3 + $0xe0] sm:$0xff]
          %v5429 = vld [vmem:[#allocation3 + $0xe8] sm:$0xff]
          %v5430 = vld [vmem:[#allocation3 + $0xf0] sm:$0xff]
          %v5431 = vld [vmem:[#allocation3 + $0xf8] sm:$0xff]
          %v5432 = vld [vmem:[#allocation3 + $0x100] sm:$0xff]
          %v5433 = vld [vmem:[#allocation3 + $0x108] sm:$0xff]
          %v5434 = vld [vmem:[#allocation3 + $0x110] sm:$0xff]
          %v5435 = vld [vmem:[#allocation3 + $0x118] sm:$0xff]
          %v5436 = vld [vmem:[#allocation3 + $0x120] sm:$0xff]
          %v5437 = vld [vmem:[#allocation3 + $0x128] sm:$0xff]
          %v5438 = vld [vmem:[#allocation3 + $0x130] sm:$0xff]
          %v5439 = vld [vmem:[#allocation3 + $0x138] sm:$0xff]
          %v5440 = vld [vmem:[#allocation3 + $0x140] sm:$0xff]
          %v5441 = vld [vmem:[#allocation3 + $0x148] sm:$0xff]
          %v5442 = vld [vmem:[#allocation3 + $0x150] sm:$0xff]
          %v5443 = vld [vmem:[#allocation3 + $0x158] sm:$0xff]
          %v5444 = vld [vmem:[#allocation3 + $0x160] sm:$0xff]
          %v5445 = vld [vmem:[#allocation3 + $0x168] sm:$0xff]
          %v5446 = vld [vmem:[#allocation3 + $0x170] sm:$0xff]
          %v5447 = vld [vmem:[#allocation3 + $0x178] sm:$0xff]
          %v5448 = vld [vmem:[#allocation3 + $0x180] sm:$0xff]
          %v5449 = vld [vmem:[#allocation3 + $0x188] sm:$0xff]
          %v5450 = vld [vmem:[#allocation3 + $0x190] sm:$0xff]
          %v5451 = vld [vmem:[#allocation3 + $0x198] sm:$0xff]
          %v5452 = vld [vmem:[#allocation3 + $0x1a0] sm:$0xff]
          %v5453 = vld [vmem:[#allocation3 + $0x1a8] sm:$0xff]
          %v5454 = vld [vmem:[#allocation3 + $0x1b0] sm:$0xff]
          %v5455 = vld [vmem:[#allocation3 + $0x1b8] sm:$0xff]
          %v5456 = vld [vmem:[#allocation3 + $0x1c0] sm:$0xff]
          %v5457 = vld [vmem:[#allocation3 + $0x1c8] sm:$0xff]
          %v5458 = vld [vmem:[#allocation3 + $0x1d0] sm:$0xff]
          %v5459 = vld [vmem:[#allocation3 + $0x1d8] sm:$0xff]
          %v5460 = vld [vmem:[#allocation3 + $0x1e0] sm:$0xff]
          %v5461 = vld [vmem:[#allocation3 + $0x1e8] sm:$0xff]
          %v5462 = vld [vmem:[#allocation3 + $0x1f0] sm:$0xff]
          %v5463 = vld [vmem:[#allocation3 + $0x1f8] sm:$0xff]
          %v5464 = vrcp.pop %v5400
          %v5465 = vrcp.pop %v5401
          %v5466 = vrcp.pop %v5402
          %v5467 = vrcp.pop %v5403
          %v5468 = vrcp.pop %v5404
          %v5469 = vrcp.pop %v5405
          %v5470 = vrcp.pop %v5406
          %v5471 = vrcp.pop %v5407
          %v5472 = vrcp.pop %v5408
          %v5473 = vrcp.pop %v5409
          %v5474 = vrcp.pop %v5410
          %v5475 = vrcp.pop %v5411
          %v5476 = vrcp.pop %v5412
          %v5477 = vrcp.pop %v5413
          %v5478 = vrcp.pop %v5414
          %v5479 = vrcp.pop %v5415
          %v5480 = vrcp.pop %v5416
          %v5481 = vrcp.pop %v5417
          %v5482 = vrcp.pop %v5418
          %v5483 = vrcp.pop %v5419
          %v5484 = vrcp.pop %v5420
          %v5485 = vrcp.pop %v5421
          %v5486 = vrcp.pop %v5422
          %v5487 = vrcp.pop %v5423
          %v5488 = vrcp.pop %v5424
          %v5489 = vrcp.pop %v5425
          %v5490 = vrcp.pop %v5426
          %v5491 = vrcp.pop %v5427
          %v5492 = vrcp.pop %v5428
          %v5493 = vrcp.pop %v5429
          %v5494 = vrcp.pop %v5430
          %v5495 = vrcp.pop %v5431
          %v5496 = vrcp.pop %v5432
          %v5497 = vrcp.pop %v5433
          %v5498 = vrcp.pop %v5434
          %v5499 = vrcp.pop %v5435
          %v5500 = vrcp.pop %v5436
          %v5501 = vrcp.pop %v5437
          %v5502 = vrcp.pop %v5438
          %v5503 = vrcp.pop %v5439
          %v5504 = vrcp.pop %v5440
          %v5505 = vrcp.pop %v5441
          %v5506 = vrcp.pop %v5442
          %v5507 = vrcp.pop %v5443
          %v5508 = vrcp.pop %v5444
          %v5509 = vrcp.pop %v5445
          %v5510 = vrcp.pop %v5446
          %v5511 = vrcp.pop %v5447
          %v5512 = vrcp.pop %v5448
          %v5513 = vrcp.pop %v5449
          %v5514 = vrcp.pop %v5450
          %v5515 = vrcp.pop %v5451
          %v5516 = vrcp.pop %v5452
          %v5517 = vrcp.pop %v5453
          %v5518 = vrcp.pop %v5454
          %v5519 = vrcp.pop %v5455
          %v5520 = vrcp.pop %v5456
          %v5521 = vrcp.pop %v5457
          %v5522 = vrcp.pop %v5458
          %v5523 = vrcp.pop %v5459
          %v5524 = vrcp.pop %v5460
          %v5525 = vrcp.pop %v5461
          %v5526 = vrcp.pop %v5462
          %v5527 = vrcp.pop %v5463
          %v5528 = vld [vmem:[#allocation4] sm:$0xff]
          %v5529 = vld [vmem:[#allocation4 + $0x8] sm:$0xff]
          %v5530 = vld [vmem:[#allocation4 + $0x10] sm:$0xff]
          %v5531 = vld [vmem:[#allocation4 + $0x18] sm:$0xff]
          %v5532 = vld [vmem:[#allocation4 + $0x20] sm:$0xff]
          %v5533 = vld [vmem:[#allocation4 + $0x28] sm:$0xff]
          %v5534 = vld [vmem:[#allocation4 + $0x30] sm:$0xff]
          %v5535 = vld [vmem:[#allocation4 + $0x38] sm:$0xff]
          %v5536 = vld [vmem:[#allocation4 + $0x40] sm:$0xff]
          %v5537 = vld [vmem:[#allocation4 + $0x48] sm:$0xff]
          %v5538 = vld [vmem:[#allocation4 + $0x50] sm:$0xff]
          %v5539 = vld [vmem:[#allocation4 + $0x58] sm:$0xff]
          %v5540 = vld [vmem:[#allocation4 + $0x60] sm:$0xff]
          %v5541 = vld [vmem:[#allocation4 + $0x68] sm:$0xff]
          %v5542 = vld [vmem:[#allocation4 + $0x70] sm:$0xff]
          %v5543 = vld [vmem:[#allocation4 + $0x78] sm:$0xff]
          %v5544 = vld [vmem:[#allocation4 + $0x80] sm:$0xff]
          %v5545 = vld [vmem:[#allocation4 + $0x88] sm:$0xff]
          %v5546 = vld [vmem:[#allocation4 + $0x90] sm:$0xff]
          %v5547 = vld [vmem:[#allocation4 + $0x98] sm:$0xff]
          %v5548 = vld [vmem:[#allocation4 + $0xa0] sm:$0xff]
          %v5549 = vld [vmem:[#allocation4 + $0xa8] sm:$0xff]
          %v5550 = vld [vmem:[#allocation4 + $0xb0] sm:$0xff]
          %v5551 = vld [vmem:[#allocation4 + $0xb8] sm:$0xff]
          %v5552 = vld [vmem:[#allocation4 + $0xc0] sm:$0xff]
          %v5553 = vld [vmem:[#allocation4 + $0xc8] sm:$0xff]
          %v5554 = vld [vmem:[#allocation4 + $0xd0] sm:$0xff]
          %v5555 = vld [vmem:[#allocation4 + $0xd8] sm:$0xff]
          %v5556 = vld [vmem:[#allocation4 + $0xe0] sm:$0xff]
          %v5557 = vld [vmem:[#allocation4 + $0xe8] sm:$0xff]
          %v5558 = vld [vmem:[#allocation4 + $0xf0] sm:$0xff]
          %v5559 = vld [vmem:[#allocation4 + $0xf8] sm:$0xff]
          %v5560 = vld [vmem:[#allocation4 + $0x100] sm:$0xff]
          %v5561 = vld [vmem:[#allocation4 + $0x108] sm:$0xff]
          %v5562 = vld [vmem:[#allocation4 + $0x110] sm:$0xff]
          %v5563 = vld [vmem:[#allocation4 + $0x118] sm:$0xff]
          %v5564 = vld [vmem:[#allocation4 + $0x120] sm:$0xff]
          %v5565 = vld [vmem:[#allocation4 + $0x128] sm:$0xff]
          %v5566 = vld [vmem:[#allocation4 + $0x130] sm:$0xff]
          %v5567 = vld [vmem:[#allocation4 + $0x138] sm:$0xff]
          %v5568 = vld [vmem:[#allocation4 + $0x140] sm:$0xff]
          %v5569 = vld [vmem:[#allocation4 + $0x148] sm:$0xff]
          %v5570 = vld [vmem:[#allocation4 + $0x150] sm:$0xff]
          %v5571 = vld [vmem:[#allocation4 + $0x158] sm:$0xff]
          %v5572 = vld [vmem:[#allocation4 + $0x160] sm:$0xff]
          %v5573 = vld [vmem:[#allocation4 + $0x168] sm:$0xff]
          %v5574 = vld [vmem:[#allocation4 + $0x170] sm:$0xff]
          %v5575 = vld [vmem:[#allocation4 + $0x178] sm:$0xff]
          %v5576 = vld [vmem:[#allocation4 + $0x180] sm:$0xff]
          %v5577 = vld [vmem:[#allocation4 + $0x188] sm:$0xff]
          %v5578 = vld [vmem:[#allocation4 + $0x190] sm:$0xff]
          %v5579 = vld [vmem:[#allocation4 + $0x198] sm:$0xff]
          %v5580 = vld [vmem:[#allocation4 + $0x1a0] sm:$0xff]
          %v5581 = vld [vmem:[#allocation4 + $0x1a8] sm:$0xff]
          %v5582 = vld [vmem:[#allocation4 + $0x1b0] sm:$0xff]
          %v5583 = vld [vmem:[#allocation4 + $0x1b8] sm:$0xff]
          %v5584 = vld [vmem:[#allocation4 + $0x1c0] sm:$0xff]
          %v5585 = vld [vmem:[#allocation4 + $0x1c8] sm:$0xff]
          %v5586 = vld [vmem:[#allocation4 + $0x1d0] sm:$0xff]
          %v5587 = vld [vmem:[#allocation4 + $0x1d8] sm:$0xff]
          %v5588 = vld [vmem:[#allocation4 + $0x1e0] sm:$0xff]
          %v5589 = vld [vmem:[#allocation4 + $0x1e8] sm:$0xff]
          %v5590 = vld [vmem:[#allocation4 + $0x1f0] sm:$0xff]
          %v5591 = vld [vmem:[#allocation4 + $0x1f8] sm:$0xff]
          %5593 = vset.pattern.permute.xlu0 0
          %5594 = vperm.xlu0 %5593, %v5464
          %v5595 = vpop.permute.xlu0 %5594
          %5598 = vset.pattern.permute.xlu0 0
          %5599 = vperm.xlu0 %5598, %v5465
          %v5600 = vpop.permute.xlu0 %5599
          %5603 = vset.pattern.permute.xlu0 0
          %5604 = vperm.xlu0 %5603, %v5466
          %v5605 = vpop.permute.xlu0 %5604
          %5608 = vset.pattern.permute.xlu0 0
          %5609 = vperm.xlu0 %5608, %v5467
          %v5610 = vpop.permute.xlu0 %5609
          %5613 = vset.pattern.permute.xlu0 0
          %5614 = vperm.xlu0 %5613, %v5468
          %v5615 = vpop.permute.xlu0 %5614
          %5618 = vset.pattern.permute.xlu0 0
          %5619 = vperm.xlu0 %5618, %v5469
          %v5620 = vpop.permute.xlu0 %5619
          %5623 = vset.pattern.permute.xlu0 0
          %5624 = vperm.xlu0 %5623, %v5470
          %v5625 = vpop.permute.xlu0 %5624
          %5628 = vset.pattern.permute.xlu0 0
          %5629 = vperm.xlu0 %5628, %v5471
          %v5630 = vpop.permute.xlu0 %5629
          %5633 = vset.pattern.permute.xlu0 0
          %5634 = vperm.xlu0 %5633, %v5472
          %v5635 = vpop.permute.xlu0 %5634
          %5638 = vset.pattern.permute.xlu0 0
          %5639 = vperm.xlu0 %5638, %v5473
          %v5640 = vpop.permute.xlu0 %5639
          %5643 = vset.pattern.permute.xlu0 0
          %5644 = vperm.xlu0 %5643, %v5474
          %v5645 = vpop.permute.xlu0 %5644
          %5648 = vset.pattern.permute.xlu0 0
          %5649 = vperm.xlu0 %5648, %v5475
          %v5650 = vpop.permute.xlu0 %5649
          %5653 = vset.pattern.permute.xlu0 0
          %5654 = vperm.xlu0 %5653, %v5476
          %v5655 = vpop.permute.xlu0 %5654
          %5658 = vset.pattern.permute.xlu0 0
          %5659 = vperm.xlu0 %5658, %v5477
          %v5660 = vpop.permute.xlu0 %5659
          %5663 = vset.pattern.permute.xlu0 0
          %5664 = vperm.xlu0 %5663, %v5478
          %v5665 = vpop.permute.xlu0 %5664
          %5668 = vset.pattern.permute.xlu0 0
          %5669 = vperm.xlu0 %5668, %v5479
          %v5670 = vpop.permute.xlu0 %5669
          %5673 = vset.pattern.permute.xlu0 0
          %5674 = vperm.xlu0 %5673, %v5480
          %v5675 = vpop.permute.xlu0 %5674
          %5678 = vset.pattern.permute.xlu0 0
          %5679 = vperm.xlu0 %5678, %v5481
          %v5680 = vpop.permute.xlu0 %5679
          %5683 = vset.pattern.permute.xlu0 0
          %5684 = vperm.xlu0 %5683, %v5482
          %v5685 = vpop.permute.xlu0 %5684
          %5688 = vset.pattern.permute.xlu0 0
          %5689 = vperm.xlu0 %5688, %v5483
          %v5690 = vpop.permute.xlu0 %5689
          %5693 = vset.pattern.permute.xlu0 0
          %5694 = vperm.xlu0 %5693, %v5484
          %v5695 = vpop.permute.xlu0 %5694
          %5698 = vset.pattern.permute.xlu0 0
          %5699 = vperm.xlu0 %5698, %v5485
          %v5700 = vpop.permute.xlu0 %5699
          %5703 = vset.pattern.permute.xlu0 0
          %5704 = vperm.xlu0 %5703, %v5486
          %v5705 = vpop.permute.xlu0 %5704
          %5708 = vset.pattern.permute.xlu0 0
          %5709 = vperm.xlu0 %5708, %v5487
          %v5710 = vpop.permute.xlu0 %5709
          %5713 = vset.pattern.permute.xlu0 0
          %5714 = vperm.xlu0 %5713, %v5488
          %v5715 = vpop.permute.xlu0 %5714
          %5718 = vset.pattern.permute.xlu0 0
          %5719 = vperm.xlu0 %5718, %v5489
          %v5720 = vpop.permute.xlu0 %5719
          %5723 = vset.pattern.permute.xlu0 0
          %5724 = vperm.xlu0 %5723, %v5490
          %v5725 = vpop.permute.xlu0 %5724
          %5728 = vset.pattern.permute.xlu0 0
          %5729 = vperm.xlu0 %5728, %v5491
          %v5730 = vpop.permute.xlu0 %5729
          %5733 = vset.pattern.permute.xlu0 0
          %5734 = vperm.xlu0 %5733, %v5492
          %v5735 = vpop.permute.xlu0 %5734
          %5738 = vset.pattern.permute.xlu0 0
          %5739 = vperm.xlu0 %5738, %v5493
          %v5740 = vpop.permute.xlu0 %5739
          %5743 = vset.pattern.permute.xlu0 0
          %5744 = vperm.xlu0 %5743, %v5494
          %v5745 = vpop.permute.xlu0 %5744
          %5748 = vset.pattern.permute.xlu0 0
          %5749 = vperm.xlu0 %5748, %v5495
          %v5750 = vpop.permute.xlu0 %5749
          %5753 = vset.pattern.permute.xlu0 0
          %5754 = vperm.xlu0 %5753, %v5496
          %v5755 = vpop.permute.xlu0 %5754
          %5758 = vset.pattern.permute.xlu0 0
          %5759 = vperm.xlu0 %5758, %v5497
          %v5760 = vpop.permute.xlu0 %5759
          %5763 = vset.pattern.permute.xlu0 0
          %5764 = vperm.xlu0 %5763, %v5498
          %v5765 = vpop.permute.xlu0 %5764
          %5768 = vset.pattern.permute.xlu0 0
          %5769 = vperm.xlu0 %5768, %v5499
          %v5770 = vpop.permute.xlu0 %5769
          %5773 = vset.pattern.permute.xlu0 0
          %5774 = vperm.xlu0 %5773, %v5500
          %v5775 = vpop.permute.xlu0 %5774
          %5778 = vset.pattern.permute.xlu0 0
          %5779 = vperm.xlu0 %5778, %v5501
          %v5780 = vpop.permute.xlu0 %5779
          %5783 = vset.pattern.permute.xlu0 0
          %5784 = vperm.xlu0 %5783, %v5502
          %v5785 = vpop.permute.xlu0 %5784
          %5788 = vset.pattern.permute.xlu0 0
          %5789 = vperm.xlu0 %5788, %v5503
          %v5790 = vpop.permute.xlu0 %5789
          %5793 = vset.pattern.permute.xlu0 0
          %5794 = vperm.xlu0 %5793, %v5504
          %v5795 = vpop.permute.xlu0 %5794
          %5798 = vset.pattern.permute.xlu0 0
          %5799 = vperm.xlu0 %5798, %v5505
          %v5800 = vpop.permute.xlu0 %5799
          %5803 = vset.pattern.permute.xlu0 0
          %5804 = vperm.xlu0 %5803, %v5506
          %v5805 = vpop.permute.xlu0 %5804
          %5808 = vset.pattern.permute.xlu0 0
          %5809 = vperm.xlu0 %5808, %v5507
          %v5810 = vpop.permute.xlu0 %5809
          %5813 = vset.pattern.permute.xlu0 0
          %5814 = vperm.xlu0 %5813, %v5508
          %v5815 = vpop.permute.xlu0 %5814
          %5818 = vset.pattern.permute.xlu0 0
          %5819 = vperm.xlu0 %5818, %v5509
          %v5820 = vpop.permute.xlu0 %5819
          %5823 = vset.pattern.permute.xlu0 0
          %5824 = vperm.xlu0 %5823, %v5510
          %v5825 = vpop.permute.xlu0 %5824
          %5828 = vset.pattern.permute.xlu0 0
          %5829 = vperm.xlu0 %5828, %v5511
          %v5830 = vpop.permute.xlu0 %5829
          %5833 = vset.pattern.permute.xlu0 0
          %5834 = vperm.xlu0 %5833, %v5512
          %v5835 = vpop.permute.xlu0 %5834
          %5838 = vset.pattern.permute.xlu0 0
          %5839 = vperm.xlu0 %5838, %v5513
          %v5840 = vpop.permute.xlu0 %5839
          %5843 = vset.pattern.permute.xlu0 0
          %5844 = vperm.xlu0 %5843, %v5514
          %v5845 = vpop.permute.xlu0 %5844
          %5848 = vset.pattern.permute.xlu0 0
          %5849 = vperm.xlu0 %5848, %v5515
          %v5850 = vpop.permute.xlu0 %5849
          %5853 = vset.pattern.permute.xlu0 0
          %5854 = vperm.xlu0 %5853, %v5516
          %v5855 = vpop.permute.xlu0 %5854
          %5858 = vset.pattern.permute.xlu0 0
          %5859 = vperm.xlu0 %5858, %v5517
          %v5860 = vpop.permute.xlu0 %5859
          %5863 = vset.pattern.permute.xlu0 0
          %5864 = vperm.xlu0 %5863, %v5518
          %v5865 = vpop.permute.xlu0 %5864
          %5868 = vset.pattern.permute.xlu0 0
          %5869 = vperm.xlu0 %5868, %v5519
          %v5870 = vpop.permute.xlu0 %5869
          %5873 = vset.pattern.permute.xlu0 0
          %5874 = vperm.xlu0 %5873, %v5520
          %v5875 = vpop.permute.xlu0 %5874
          %5878 = vset.pattern.permute.xlu0 0
          %5879 = vperm.xlu0 %5878, %v5521
          %v5880 = vpop.permute.xlu0 %5879
          %5883 = vset.pattern.permute.xlu0 0
          %5884 = vperm.xlu0 %5883, %v5522
          %v5885 = vpop.permute.xlu0 %5884
          %5888 = vset.pattern.permute.xlu0 0
          %5889 = vperm.xlu0 %5888, %v5523
          %v5890 = vpop.permute.xlu0 %5889
          %5893 = vset.pattern.permute.xlu0 0
          %5894 = vperm.xlu0 %5893, %v5524
          %v5895 = vpop.permute.xlu0 %5894
          %5898 = vset.pattern.permute.xlu0 0
          %5899 = vperm.xlu0 %5898, %v5525
          %v5900 = vpop.permute.xlu0 %5899
          %5903 = vset.pattern.permute.xlu0 0
          %5904 = vperm.xlu0 %5903, %v5526
          %v5905 = vpop.permute.xlu0 %5904
          %5908 = vset.pattern.permute.xlu0 0
          %5909 = vperm.xlu0 %5908, %v5527
          %v5910 = vpop.permute.xlu0 %5909
          %v5912 = vmul.f32 %v5528, %v5595
          %v5913 = vmul.f32 %v5529, %v5600
          %v5914 = vmul.f32 %v5530, %v5605
          %v5915 = vmul.f32 %v5531, %v5610
          %v5916 = vmul.f32 %v5532, %v5615
          %v5917 = vmul.f32 %v5533, %v5620
          %v5918 = vmul.f32 %v5534, %v5625
          %v5919 = vmul.f32 %v5535, %v5630
          %v5920 = vmul.f32 %v5536, %v5635
          %v5921 = vmul.f32 %v5537, %v5640
          %v5922 = vmul.f32 %v5538, %v5645
          %v5923 = vmul.f32 %v5539, %v5650
          %v5924 = vmul.f32 %v5540, %v5655
          %v5925 = vmul.f32 %v5541, %v5660
          %v5926 = vmul.f32 %v5542, %v5665
          %v5927 = vmul.f32 %v5543, %v5670
          %v5928 = vmul.f32 %v5544, %v5675
          %v5929 = vmul.f32 %v5545, %v5680
          %v5930 = vmul.f32 %v5546, %v5685
          %v5931 = vmul.f32 %v5547, %v5690
          %v5932 = vmul.f32 %v5548, %v5695
          %v5933 = vmul.f32 %v5549, %v5700
          %v5934 = vmul.f32 %v5550, %v5705
          %v5935 = vmul.f32 %v5551, %v5710
          %v5936 = vmul.f32 %v5552, %v5715
          %v5937 = vmul.f32 %v5553, %v5720
          %v5938 = vmul.f32 %v5554, %v5725
          %v5939 = vmul.f32 %v5555, %v5730
          %v5940 = vmul.f32 %v5556, %v5735
          %v5941 = vmul.f32 %v5557, %v5740
          %v5942 = vmul.f32 %v5558, %v5745
          %v5943 = vmul.f32 %v5559, %v5750
          %v5944 = vmul.f32 %v5560, %v5755
          %v5945 = vmul.f32 %v5561, %v5760
          %v5946 = vmul.f32 %v5562, %v5765
          %v5947 = vmul.f32 %v5563, %v5770
          %v5948 = vmul.f32 %v5564, %v5775
          %v5949 = vmul.f32 %v5565, %v5780
          %v5950 = vmul.f32 %v5566, %v5785
          %v5951 = vmul.f32 %v5567, %v5790
          %v5952 = vmul.f32 %v5568, %v5795
          %v5953 = vmul.f32 %v5569, %v5800
          %v5954 = vmul.f32 %v5570, %v5805
          %v5955 = vmul.f32 %v5571, %v5810
          %v5956 = vmul.f32 %v5572, %v5815
          %v5957 = vmul.f32 %v5573, %v5820
          %v5958 = vmul.f32 %v5574, %v5825
          %v5959 = vmul.f32 %v5575, %v5830
          %v5960 = vmul.f32 %v5576, %v5835
          %v5961 = vmul.f32 %v5577, %v5840
          %v5962 = vmul.f32 %v5578, %v5845
          %v5963 = vmul.f32 %v5579, %v5850
          %v5964 = vmul.f32 %v5580, %v5855
          %v5965 = vmul.f32 %v5581, %v5860
          %v5966 = vmul.f32 %v5582, %v5865
          %v5967 = vmul.f32 %v5583, %v5870
          %v5968 = vmul.f32 %v5584, %v5875
          %v5969 = vmul.f32 %v5585, %v5880
          %v5970 = vmul.f32 %v5586, %v5885
          %v5971 = vmul.f32 %v5587, %v5890
          %v5972 = vmul.f32 %v5588, %v5895
          %v5973 = vmul.f32 %v5589, %v5900
          %v5974 = vmul.f32 %v5590, %v5905
          %v5975 = vmul.f32 %v5591, %v5910
          %5992 = vrot.lane.b32.xlu0 %v5928, 64
          %v5993 = vpop.permute.xlu0 %5992
          %5994 = vrot.lane.b32.xlu0 %v5929, 64
          %v5995 = vpop.permute.xlu0 %5994
          %5996 = vrot.lane.b32.xlu0 %v5930, 64
          %v5997 = vpop.permute.xlu0 %5996
          %5998 = vrot.lane.b32.xlu0 %v5931, 64
          %v5999 = vpop.permute.xlu0 %5998
          %6000 = vrot.lane.b32.xlu0 %v5932, 64
          %v6001 = vpop.permute.xlu0 %6000
          %6002 = vrot.lane.b32.xlu0 %v5933, 64
          %v6003 = vpop.permute.xlu0 %6002
          %6004 = vrot.lane.b32.xlu0 %v5934, 64
          %v6005 = vpop.permute.xlu0 %6004
          %6006 = vrot.lane.b32.xlu0 %v5935, 64
          %v6007 = vpop.permute.xlu0 %6006
          %6008 = vrot.lane.b32.xlu0 %v5936, 64
          %v6009 = vpop.permute.xlu0 %6008
          %6010 = vrot.lane.b32.xlu0 %v5937, 64
          %v6011 = vpop.permute.xlu0 %6010
          %6012 = vrot.lane.b32.xlu0 %v5938, 64
          %v6013 = vpop.permute.xlu0 %6012
          %6014 = vrot.lane.b32.xlu0 %v5939, 64
          %v6015 = vpop.permute.xlu0 %6014
          %6016 = vrot.lane.b32.xlu0 %v5940, 64
          %v6017 = vpop.permute.xlu0 %6016
          %6018 = vrot.lane.b32.xlu0 %v5941, 64
          %v6019 = vpop.permute.xlu0 %6018
          %6020 = vrot.lane.b32.xlu0 %v5942, 64
          %v6021 = vpop.permute.xlu0 %6020
          %6022 = vrot.lane.b32.xlu0 %v5943, 64
          %v6023 = vpop.permute.xlu0 %6022
          %6056 = vrot.lane.b32.xlu0 %v5960, 64
          %v6057 = vpop.permute.xlu0 %6056
          %6058 = vrot.lane.b32.xlu0 %v5961, 64
          %v6059 = vpop.permute.xlu0 %6058
          %6060 = vrot.lane.b32.xlu0 %v5962, 64
          %v6061 = vpop.permute.xlu0 %6060
          %6062 = vrot.lane.b32.xlu0 %v5963, 64
          %v6063 = vpop.permute.xlu0 %6062
          %6064 = vrot.lane.b32.xlu0 %v5964, 64
          %v6065 = vpop.permute.xlu0 %6064
          %6066 = vrot.lane.b32.xlu0 %v5965, 64
          %v6067 = vpop.permute.xlu0 %6066
          %6068 = vrot.lane.b32.xlu0 %v5966, 64
          %v6069 = vpop.permute.xlu0 %6068
          %6070 = vrot.lane.b32.xlu0 %v5967, 64
          %v6071 = vpop.permute.xlu0 %6070
          %6072 = vrot.lane.b32.xlu0 %v5968, 64
          %v6073 = vpop.permute.xlu0 %6072
          %6074 = vrot.lane.b32.xlu0 %v5969, 64
          %v6075 = vpop.permute.xlu0 %6074
          %6076 = vrot.lane.b32.xlu0 %v5970, 64
          %v6077 = vpop.permute.xlu0 %6076
          %6078 = vrot.lane.b32.xlu0 %v5971, 64
          %v6079 = vpop.permute.xlu0 %6078
          %6080 = vrot.lane.b32.xlu0 %v5972, 64
          %v6081 = vpop.permute.xlu0 %6080
          %6082 = vrot.lane.b32.xlu0 %v5973, 64
          %v6083 = vpop.permute.xlu0 %6082
          %6084 = vrot.lane.b32.xlu0 %v5974, 64
          %v6085 = vpop.permute.xlu0 %6084
          %6086 = vrot.lane.b32.xlu0 %v5975, 64
          %v6087 = vpop.permute.xlu0 %6086
          %v6104 = vsel %vm1758, %v5912, %v5993
          %v6105 = vsel %vm1758, %v5913, %v5995
          %v6106 = vsel %vm1758, %v5914, %v5997
          %v6107 = vsel %vm1758, %v5915, %v5999
          %v6108 = vsel %vm1758, %v5916, %v6001
          %v6109 = vsel %vm1758, %v5917, %v6003
          %v6110 = vsel %vm1758, %v5918, %v6005
          %v6111 = vsel %vm1758, %v5919, %v6007
          %v6112 = vsel %vm1758, %v5920, %v6009
          %v6113 = vsel %vm1758, %v5921, %v6011
          %v6114 = vsel %vm1758, %v5922, %v6013
          %v6115 = vsel %vm1758, %v5923, %v6015
          %v6116 = vsel %vm1758, %v5924, %v6017
          %v6117 = vsel %vm1758, %v5925, %v6019
          %v6118 = vsel %vm1758, %v5926, %v6021
          %v6119 = vsel %vm1758, %v5927, %v6023
          %v6120 = vsel %vm1758, %v5944, %v6057
          %v6121 = vsel %vm1758, %v5945, %v6059
          %v6122 = vsel %vm1758, %v5946, %v6061
          %v6123 = vsel %vm1758, %v5947, %v6063
          %v6124 = vsel %vm1758, %v5948, %v6065
          %v6125 = vsel %vm1758, %v5949, %v6067
          %v6126 = vsel %vm1758, %v5950, %v6069
          %v6127 = vsel %vm1758, %v5951, %v6071
          %v6128 = vsel %vm1758, %v5952, %v6073
          %v6129 = vsel %vm1758, %v5953, %v6075
          %v6130 = vsel %vm1758, %v5954, %v6077
          %v6131 = vsel %vm1758, %v5955, %v6079
          %v6132 = vsel %vm1758, %v5956, %v6081
          %v6133 = vsel %vm1758, %v5957, %v6083
          %v6134 = vsel %vm1758, %v5958, %v6085
          %v6135 = vsel %vm1758, %v5959, %v6087
          %v6136 = vpack.c.bf16 %v6105, %v6104
          %v6137 = vpack.c.bf16 %v6121, %v6120
          %v6138 = vpack.c.bf16 %v6107, %v6106
          %v6139 = vpack.c.bf16 %v6123, %v6122
          %v6140 = vpack.c.bf16 %v6109, %v6108
          %v6141 = vpack.c.bf16 %v6125, %v6124
          %v6142 = vpack.c.bf16 %v6111, %v6110
          %v6143 = vpack.c.bf16 %v6127, %v6126
          %v6144 = vpack.c.bf16 %v6113, %v6112
          %v6145 = vpack.c.bf16 %v6129, %v6128
          %v6146 = vpack.c.bf16 %v6115, %v6114
          %v6147 = vpack.c.bf16 %v6131, %v6130
          %v6148 = vpack.c.bf16 %v6117, %v6116
          %v6149 = vpack.c.bf16 %v6133, %v6132
          %v6150 = vpack.c.bf16 %v6119, %v6118
          %v6151 = vpack.c.bf16 %v6135, %v6134
          %v6152 = vld [vmem:[%s4] sm:$0xff]
          %v6153 = vld [vmem:[%s4 + $0x8] sm:$0xff]
          %v6154 = vld [vmem:[%s4 + $0x10] sm:$0xff]
          %v6155 = vld [vmem:[%s4 + $0x18] sm:$0xff]
          %v6156 = vld [vmem:[%s4 + $0x20] sm:$0xff]
          %v6157 = vld [vmem:[%s4 + $0x28] sm:$0xff]
          %v6158 = vld [vmem:[%s4 + $0x30] sm:$0xff]
          %v6159 = vld [vmem:[%s4 + $0x38] sm:$0xff]
          %v6160 = vld [vmem:[%s4 + $0x40] sm:$0xff]
          %v6161 = vld [vmem:[%s4 + $0x48] sm:$0xff]
          %v6162 = vld [vmem:[%s4 + $0x50] sm:$0xff]
          %v6163 = vld [vmem:[%s4 + $0x58] sm:$0xff]
          %v6164 = vld [vmem:[%s4 + $0x60] sm:$0xff]
          %v6165 = vld [vmem:[%s4 + $0x68] sm:$0xff]
          %v6166 = vld [vmem:[%s4 + $0x70] sm:$0xff]
          %v6167 = vld [vmem:[%s4 + $0x78] sm:$0xff]
          %v6168 = vld [vmem:[%s4 + $0x80] sm:$0xff]
          %v6169 = vld [vmem:[%s4 + $0x88] sm:$0xff]
          %v6170 = vld [vmem:[%s4 + $0x90] sm:$0xff]
          %v6171 = vld [vmem:[%s4 + $0x98] sm:$0xff]
          %v6172 = vld [vmem:[%s4 + $0xa0] sm:$0xff]
          %v6173 = vld [vmem:[%s4 + $0xa8] sm:$0xff]
          %v6174 = vld [vmem:[%s4 + $0xb0] sm:$0xff]
          %v6175 = vld [vmem:[%s4 + $0xb8] sm:$0xff]
          %v6176 = vld [vmem:[%s4 + $0xc0] sm:$0xff]
          %v6177 = vld [vmem:[%s4 + $0xc8] sm:$0xff]
          %v6178 = vld [vmem:[%s4 + $0xd0] sm:$0xff]
          %v6179 = vld [vmem:[%s4 + $0xd8] sm:$0xff]
          %v6180 = vld [vmem:[%s4 + $0xe0] sm:$0xff]
          %v6181 = vld [vmem:[%s4 + $0xe8] sm:$0xff]
          %v6182 = vld [vmem:[%s4 + $0xf0] sm:$0xff]
          %v6183 = vld [vmem:[%s4 + $0xf8] sm:$0xff]
          %v6184 = vld [vmem:[%s5] sm:$0x3]
          %v6186 = vlaneseq
          %v6187 = vshrl.u32 %v6186, 7
          %v6188 = vsub.s32 0, %v6187
          %v6189 = vrot.slane %v6184, %v6188
          %v6190 = vlaneseq
          %v6191 = vshrl.u32 %v6190, 7
          %v6192 = vsub.s32 1, %v6191
          %v6193 = vrot.slane %v6184, %v6192
          %v6228 = vunpack.c.l.b16 %v6152
          %v6229 = vunpack.c.h.b16 %v6152
          %v6230 = vunpack.c.l.b16 %v6153
          %v6231 = vunpack.c.h.b16 %v6153
          %v6232 = vunpack.c.l.b16 %v6154
          %v6233 = vunpack.c.h.b16 %v6154
          %v6234 = vunpack.c.l.b16 %v6155
          %v6235 = vunpack.c.h.b16 %v6155
          %v6236 = vunpack.c.l.b16 %v6156
          %v6237 = vunpack.c.h.b16 %v6156
          %v6238 = vunpack.c.l.b16 %v6157
          %v6239 = vunpack.c.h.b16 %v6157
          %v6240 = vunpack.c.l.b16 %v6158
          %v6241 = vunpack.c.h.b16 %v6158
          %v6242 = vunpack.c.l.b16 %v6159
          %v6243 = vunpack.c.h.b16 %v6159
          %v6244 = vunpack.c.l.b16 %v6160
          %v6245 = vunpack.c.h.b16 %v6160
          %v6246 = vunpack.c.l.b16 %v6161
          %v6247 = vunpack.c.h.b16 %v6161
          %v6248 = vunpack.c.l.b16 %v6162
          %v6249 = vunpack.c.h.b16 %v6162
          %v6250 = vunpack.c.l.b16 %v6163
          %v6251 = vunpack.c.h.b16 %v6163
          %v6252 = vunpack.c.l.b16 %v6164
          %v6253 = vunpack.c.h.b16 %v6164
          %v6254 = vunpack.c.l.b16 %v6165
          %v6255 = vunpack.c.h.b16 %v6165
          %v6256 = vunpack.c.l.b16 %v6166
          %v6257 = vunpack.c.h.b16 %v6166
          %v6258 = vunpack.c.l.b16 %v6167
          %v6259 = vunpack.c.h.b16 %v6167
          %v6260 = vunpack.c.l.b16 %v6168
          %v6261 = vunpack.c.h.b16 %v6168
          %v6262 = vunpack.c.l.b16 %v6169
          %v6263 = vunpack.c.h.b16 %v6169
          %v6264 = vunpack.c.l.b16 %v6170
          %v6265 = vunpack.c.h.b16 %v6170
          %v6266 = vunpack.c.l.b16 %v6171
          %v6267 = vunpack.c.h.b16 %v6171
          %v6268 = vunpack.c.l.b16 %v6172
          %v6269 = vunpack.c.h.b16 %v6172
          %v6270 = vunpack.c.l.b16 %v6173
          %v6271 = vunpack.c.h.b16 %v6173
          %v6272 = vunpack.c.l.b16 %v6174
          %v6273 = vunpack.c.h.b16 %v6174
          %v6274 = vunpack.c.l.b16 %v6175
          %v6275 = vunpack.c.h.b16 %v6175
          %v6276 = vunpack.c.l.b16 %v6176
          %v6277 = vunpack.c.h.b16 %v6176
          %v6278 = vunpack.c.l.b16 %v6177
          %v6279 = vunpack.c.h.b16 %v6177
          %v6280 = vunpack.c.l.b16 %v6178
          %v6281 = vunpack.c.h.b16 %v6178
          %v6282 = vunpack.c.l.b16 %v6179
          %v6283 = vunpack.c.h.b16 %v6179
          %v6284 = vunpack.c.l.b16 %v6180
          %v6285 = vunpack.c.h.b16 %v6180
          %v6286 = vunpack.c.l.b16 %v6181
          %v6287 = vunpack.c.h.b16 %v6181
          %v6288 = vunpack.c.l.b16 %v6182
          %v6289 = vunpack.c.h.b16 %v6182
          %v6290 = vunpack.c.l.b16 %v6183
          %v6291 = vunpack.c.h.b16 %v6183
          %v6292 = vpack.c.b16 %v6230, %v6228
          %v6293 = vpack.c.b16 %v6231, %v6229
          %v6294 = vpack.c.b16 %v6234, %v6232
          %v6295 = vpack.c.b16 %v6235, %v6233
          %v6296 = vpack.c.b16 %v6238, %v6236
          %v6297 = vpack.c.b16 %v6239, %v6237
          %v6298 = vpack.c.b16 %v6242, %v6240
          %v6299 = vpack.c.b16 %v6243, %v6241
          %v6300 = vpack.c.b16 %v6246, %v6244
          %v6301 = vpack.c.b16 %v6247, %v6245
          %v6302 = vpack.c.b16 %v6250, %v6248
          %v6303 = vpack.c.b16 %v6251, %v6249
          %v6304 = vpack.c.b16 %v6254, %v6252
          %v6305 = vpack.c.b16 %v6255, %v6253
          %v6306 = vpack.c.b16 %v6258, %v6256
          %v6307 = vpack.c.b16 %v6259, %v6257
          %v6308 = vpack.c.b16 %v6262, %v6260
          %v6309 = vpack.c.b16 %v6263, %v6261
          %v6310 = vpack.c.b16 %v6266, %v6264
          %v6311 = vpack.c.b16 %v6267, %v6265
          %v6312 = vpack.c.b16 %v6270, %v6268
          %v6313 = vpack.c.b16 %v6271, %v6269
          %v6314 = vpack.c.b16 %v6274, %v6272
          %v6315 = vpack.c.b16 %v6275, %v6273
          %v6316 = vpack.c.b16 %v6278, %v6276
          %v6317 = vpack.c.b16 %v6279, %v6277
          %v6318 = vpack.c.b16 %v6282, %v6280
          %v6319 = vpack.c.b16 %v6283, %v6281
          %v6320 = vpack.c.b16 %v6286, %v6284
          %v6321 = vpack.c.b16 %v6287, %v6285
          %v6322 = vpack.c.b16 %v6290, %v6288
          %v6323 = vpack.c.b16 %v6291, %v6289
          %6356 = vmatprep.subr.bf16.mxu0 %v6293
          %6357 = vmatpush1.bf16.msra.mxu0 %v6292
          %6358 = vmatprep.subr.bf16.mxu0 %v6295
          %6359 = vmatpush1.bf16.msra.mxu0 %v6294
          %6360 = vmatprep.subr.bf16.mxu0 %v6297
          %6361 = vmatpush1.bf16.msra.mxu0 %v6296
          %6362 = vmatprep.subr.bf16.mxu0 %v6299
          %6363 = vmatpush1.bf16.msra.mxu0 %v6298
          %6364 = vmatprep.subr.bf16.mxu0 %v6301
          %6365 = vmatpush1.bf16.msra.mxu0 %v6300
          %6366 = vmatprep.subr.bf16.mxu0 %v6303
          %6367 = vmatpush1.bf16.msra.mxu0 %v6302
          %6368 = vmatprep.subr.bf16.mxu0 %v6305
          %6369 = vmatpush1.bf16.msra.mxu0 %v6304
          %6370 = vmatprep.subr.bf16.mxu0 %v6307
          %6371 = vmatpush1.bf16.msra.mxu0 %v6306
          %6372 = vmatprep.subr.bf16.mxu0 %v6309
          %6373 = vmatpush1.bf16.msra.mxu0 %v6308
          %6374 = vmatprep.subr.bf16.mxu0 %v6311
          %6375 = vmatpush1.bf16.msra.mxu0 %v6310
          %6376 = vmatprep.subr.bf16.mxu0 %v6313
          %6377 = vmatpush1.bf16.msra.mxu0 %v6312
          %6378 = vmatprep.subr.bf16.mxu0 %v6315
          %6379 = vmatpush1.bf16.msra.mxu0 %v6314
          %6380 = vmatprep.subr.bf16.mxu0 %v6317
          %6381 = vmatpush1.bf16.msra.mxu0 %v6316
          %6382 = vmatprep.subr.bf16.mxu0 %v6319
          %6383 = vmatpush1.bf16.msra.mxu0 %v6318
          %6384 = vmatprep.subr.bf16.mxu0 %v6321
          %6385 = vmatpush1.bf16.msra.mxu0 %v6320
          %6386 = vmatprep.subr.bf16.mxu0 %v6323
          %6387 = vmatpush1.bf16.msra.mxu0 %v6322
          %6388 = vmatprep.mubr.bf16.mxu0 %v6137
          %6389 = vmatmul.mubr.bf16.gmra.mrb[0].mxu0 %v6136
          %v6390 = vpop.f32.mrb[0].mxu0
          %v6391 = vadd.f32 %v6189, %v6390
          %v6392 = vpop.f32.mrb[0].mxu0
          %v6393 = vadd.f32 %v6193, %v6392
          %v6394 = vpop.f32.mrb[0].mxu0
          %v6395 = vadd.f32 %v6189, %v6394
          %v6396 = vpop.f32.mrb[0].mxu0
          %v6397 = vadd.f32 %v6193, %v6396
          %6398 = vmatprep.mubr.bf16.mxu0 %v6139
          %6399 = vmatmul.mubr.bf16.gmra.mrb[0].mxu0 %v6138
          %v6400 = vpop.f32.mrb[0].mxu0
          %v6401 = vadd.f32 %v6189, %v6400
          %v6402 = vpop.f32.mrb[0].mxu0
          %v6403 = vadd.f32 %v6193, %v6402
          %v6404 = vpop.f32.mrb[0].mxu0
          %v6405 = vadd.f32 %v6189, %v6404
          %v6406 = vpop.f32.mrb[0].mxu0
          %v6407 = vadd.f32 %v6193, %v6406
          %6408 = vmatprep.mubr.bf16.mxu0 %v6141
          %6409 = vmatmul.mubr.bf16.gmra.mrb[0].mxu0 %v6140
          %v6410 = vpop.f32.mrb[0].mxu0
          %v6411 = vadd.f32 %v6189, %v6410
          %v6412 = vpop.f32.mrb[0].mxu0
          %v6413 = vadd.f32 %v6193, %v6412
          %v6414 = vpop.f32.mrb[0].mxu0
          %v6415 = vadd.f32 %v6189, %v6414
          %v6416 = vpop.f32.mrb[0].mxu0
          %v6417 = vadd.f32 %v6193, %v6416
          %6418 = vmatprep.mubr.bf16.mxu0 %v6143
          %6419 = vmatmul.mubr.bf16.gmra.mrb[0].mxu0 %v6142
          %v6420 = vpop.f32.mrb[0].mxu0
          %v6421 = vadd.f32 %v6189, %v6420
          %v6422 = vpop.f32.mrb[0].mxu0
          %v6423 = vadd.f32 %v6193, %v6422
          %v6424 = vpop.f32.mrb[0].mxu0
          %v6425 = vadd.f32 %v6189, %v6424
          %v6426 = vpop.f32.mrb[0].mxu0
          %v6427 = vadd.f32 %v6193, %v6426
          %6428 = vmatprep.mubr.bf16.mxu0 %v6145
          %6429 = vmatmul.mubr.bf16.gmra.mrb[0].mxu0 %v6144
          %v6430 = vpop.f32.mrb[0].mxu0
          %v6431 = vadd.f32 %v6189, %v6430
          %v6432 = vpop.f32.mrb[0].mxu0
          %v6433 = vadd.f32 %v6193, %v6432
          %v6434 = vpop.f32.mrb[0].mxu0
          %v6435 = vadd.f32 %v6189, %v6434
          %v6436 = vpop.f32.mrb[0].mxu0
          %v6437 = vadd.f32 %v6193, %v6436
          %6438 = vmatprep.mubr.bf16.mxu0 %v6147
          %6439 = vmatmul.mubr.bf16.gmra.mrb[0].mxu0 %v6146
          %v6440 = vpop.f32.mrb[0].mxu0
          %v6441 = vadd.f32 %v6189, %v6440
          %v6442 = vpop.f32.mrb[0].mxu0
          %v6443 = vadd.f32 %v6193, %v6442
          %v6444 = vpop.f32.mrb[0].mxu0
          %v6445 = vadd.f32 %v6189, %v6444
          %v6446 = vpop.f32.mrb[0].mxu0
          %v6447 = vadd.f32 %v6193, %v6446
          %6448 = vmatprep.mubr.bf16.mxu0 %v6149
          %6449 = vmatmul.mubr.bf16.gmra.mrb[0].mxu0 %v6148
          %v6450 = vpop.f32.mrb[0].mxu0
          %v6451 = vadd.f32 %v6189, %v6450
          %v6452 = vpop.f32.mrb[0].mxu0
          %v6453 = vadd.f32 %v6193, %v6452
          %v6454 = vpop.f32.mrb[0].mxu0
          %v6455 = vadd.f32 %v6189, %v6454
          %v6456 = vpop.f32.mrb[0].mxu0
          %v6457 = vadd.f32 %v6193, %v6456
          %6458 = vmatprep.mubr.bf16.mxu0 %v6151
          %6459 = vmatmul.mubr.bf16.gmra.mrb[0].mxu0 %v6150
          %v6460 = vpop.f32.mrb[0].mxu0
          %v6461 = vadd.f32 %v6189, %v6460
          %v6462 = vpop.f32.mrb[0].mxu0
          %v6463 = vadd.f32 %v6193, %v6462
          %v6464 = vpop.f32.mrb[0].mxu0
          %v6465 = vadd.f32 %v6189, %v6464
          %v6466 = vpop.f32.mrb[0].mxu0
          %v6467 = vadd.f32 %v6193, %v6466
          %6468 = vdwg.mxu0
          %6469 = vst [vmem:[%s1279] sm:$0xff] %v6391
          %6470 = vst [vmem:[%s1279 + $0x8] sm:$0xff] %v6393
          %6471 = vst [vmem:[%s1279 + $0x10] sm:$0xff] %v6395
          %6472 = vst [vmem:[%s1279 + $0x18] sm:$0xff] %v6397
          %6473 = vst [vmem:[%s1279 + $0x20] sm:$0xff] %v6401
          %6474 = vst [vmem:[%s1279 + $0x28] sm:$0xff] %v6403
          %6475 = vst [vmem:[%s1279 + $0x30] sm:$0xff] %v6405
          %6476 = vst [vmem:[%s1279 + $0x38] sm:$0xff] %v6407
          %6477 = vst [vmem:[%s1279 + $0x40] sm:$0xff] %v6411
          %6478 = vst [vmem:[%s1279 + $0x48] sm:$0xff] %v6413
          %6479 = vst [vmem:[%s1279 + $0x50] sm:$0xff] %v6415
          %6480 = vst [vmem:[%s1279 + $0x58] sm:$0xff] %v6417
          %6481 = vst [vmem:[%s1279 + $0x60] sm:$0xff] %v6421
          %6482 = vst [vmem:[%s1279 + $0x68] sm:$0xff] %v6423
          %6483 = vst [vmem:[%s1279 + $0x70] sm:$0xff] %v6425
          %6484 = vst [vmem:[%s1279 + $0x78] sm:$0xff] %v6427
          %6485 = vst [vmem:[%s1279 + $0x80] sm:$0xff] %v6431
          %6486 = vst [vmem:[%s1279 + $0x88] sm:$0xff] %v6433
          %6487 = vst [vmem:[%s1279 + $0x90] sm:$0xff] %v6435
          %6488 = vst [vmem:[%s1279 + $0x98] sm:$0xff] %v6437
          %6489 = vst [vmem:[%s1279 + $0xa0] sm:$0xff] %v6441
          %6490 = vst [vmem:[%s1279 + $0xa8] sm:$0xff] %v6443
          %6491 = vst [vmem:[%s1279 + $0xb0] sm:$0xff] %v6445
          %6492 = vst [vmem:[%s1279 + $0xb8] sm:$0xff] %v6447
          %6493 = vst [vmem:[%s1279 + $0xc0] sm:$0xff] %v6451
          %6494 = vst [vmem:[%s1279 + $0xc8] sm:$0xff] %v6453
          %6495 = vst [vmem:[%s1279 + $0xd0] sm:$0xff] %v6455
          %6496 = vst [vmem:[%s1279 + $0xd8] sm:$0xff] %v6457
          %6497 = vst [vmem:[%s1279 + $0xe0] sm:$0xff] %v6461
          %6498 = vst [vmem:[%s1279 + $0xe8] sm:$0xff] %v6463
          %6499 = vst [vmem:[%s1279 + $0xf0] sm:$0xff] %v6465
          %6500 = vst [vmem:[%s1279 + $0xf8] sm:$0xff] %v6467
        $region213: #{tpu_custom_call.1} parent=188 // pred_fallthru
          _
        %s6501 = sand.u32 %s205, 1
        %s6502 = scalar_lea.sflag [#allocation10], %s6501
        %s6503 = sand.u32 %s205, 1
        %s6504 = smul.addr %s6503, 256
        %s6505 = scalar_lea.vmem [#allocation9], %s6504
        // Predicated region
        $region214: #{tpu_custom_call.1} parent=188 // pred_check
          %p6506 = pneg %p215
        $region215: #{tpu_custom_call.1} parent=188 // pred_check_branch
          %6508 = sbr.rel (%p6506) target = $region217
        $region216: #{tpu_custom_call.1} parent=188 // pred_region
          %s6509 = smul.u32 16, %s26
          %s6511 = ssub.s32 4096, 4096
          %6512 = vsyncadd %s6502, %s6511
          %s6513 = smul.addr %s6509, 2
          %s6514 = smul.addr %s25, 64
          %s6515 = sadd.s32 %s6513, %s6514
          %s6516 = smul.addr %s6515, 128
          %s6517 = scalar_lea.hbm %s6, %s6516
          %s6518 = sshll.u32 %s6505, 4
          %s6519 = int_to_ptr.vmem [resolvable:$true] %s6518
          %6524 = dma.vmem_to_hbm [thread:$0]  %s6519, 4096, %s6517, %s6502, 256, 256, 16
        $region217: #{tpu_custom_call.1} parent=188 // pred_fallthru
          _
      $region189: #{tpu_custom_call.1} parent=5 // pred_fallthru
        _
      %p6525 = scmp.le.s32.totalorder 2, %s15
      // Predicated region
      $region218: #{tpu_custom_call.1} parent=5 // pred_check
        %p6526 = pneg %p6525
      $region219: #{tpu_custom_call.1} parent=5 // pred_check_branch
        %6528 = sbr.rel (%p6526) target = $region221
      $region220: #{tpu_custom_call.1} parent=5 // pred_region
        %s6529 = ssub.s32 %s15, 2
        // Predicated region
        $region222: #{tpu_custom_call.1} parent=220 // pred_check
          %p6530 = pneg %p221
        $region223: #{tpu_custom_call.1} parent=220 // pred_check_branch
          %6532 = sbr.rel (%p6530) target = $region225
        $region224: #{tpu_custom_call.1} parent=220 // pred_region
          %s6533 = sand.u32 %s206, 1
          %s6534 = scalar_lea.sflag [#allocation10], %s6533
          %s6535 = sand.u32 %s206, 1
          %s6536 = smul.addr %s6535, 256
          %s6537 = scalar_lea.vmem [#allocation9], %s6536
          %6538 = dma.done %s6534, 4096
        $region225: #{tpu_custom_call.1} parent=220 // pred_fallthru
          _
      $region221: #{tpu_custom_call.1} parent=5 // pred_fallthru
        _
    $region6: #{tpu_custom_call.1} parent=1 // loop_footer
      %s19 = sadd.s32 1, %s15
    $region7: #{tpu_custom_call.1} parent=1 // loop_footer_branch
      %14 = sbr.rel target = $region3
    $region8: #{tpu_custom_call.1} parent=1 // loop_exit
      _
    %6539 = vsyncpa [#allocation10], 1
    %s6540 = scalar_lea.sflag [#allocation10], 1
    %6541 = vsyncpa %s6540, 1

</llo_original>
